<compile_context>
chip_gen: v6e
topology: v6e:2x2x1
jax: 0.10.0
libtpu: 0.0.40
codegen_flags: <defaults>
</compile_context>

<pallas_src>
import functools
import math

import numpy as np

import jax
import jax.numpy as jnp
from jax.experimental import pallas as pl
from jax.experimental.pallas import tpu as pltpu


# ---------------------------------------------------------------------------
# Elementwise helpers
# ---------------------------------------------------------------------------
def _layer_norm(v, g, b, eps):
    mu = jnp.mean(v, axis=-1, keepdims=True)
    d = v - mu
    var = jnp.mean(d * d, axis=-1, keepdims=True)
    return d * jax.lax.rsqrt(var + eps) * g + b


def _fast_recip(x):
    # EUP approximate reciprocal + one Newton step -> ~f32-exact.
    r = pl.reciprocal(x, approx=True)
    return r * (2.0 - x * r)


def _erf_approx(x):
    # Abramowitz & Stegun 7.1.26 (|err| < 1.5e-7); divide replaced by EUP recip.
    a1, a2, a3, a4, a5 = 0.254829592, -0.284496736, 1.421413741, -1.453152027, 1.061405429
    p = 0.3275911
    ax = jnp.abs(x)
    t = _fast_recip(1.0 + p * ax)
    poly = ((((a5 * t + a4) * t + a3) * t + a2) * t + a1) * t
    y = 1.0 - poly * jnp.exp(-ax * ax)
    return jnp.where(x < 0.0, -y, y)


def _gelu(x):
    return x * 0.5 * (1.0 + _erf_approx(x * (1.0 / math.sqrt(2.0))))


# ---------------------------------------------------------------------------
# Fused TransformerLayer kernel
# ---------------------------------------------------------------------------
def _transformer_layer_kernel(
    x_ref, mask_ref,
    wq_ref, bq_ref, wk_ref, bk_ref, wv_ref, bv_ref,
    wd_ref, bd_ref, ln1g_ref, ln1b_ref,
    bsyn_ref, bana_ref, beta_ref, lnfg_ref, lnfb_ref,
    w1_ref, b1_ref, w2_ref, b2_ref, ln2g_ref, ln2b_ref,
    out_ref,
    ctx_scr,
    *, num_heads, eps):
    tb, n, h = x_ref.shape
    d = h // num_heads
    scale = 1.0 / math.sqrt(d)

    x3 = x_ref[...].astype(jnp.float32)            # (TB, N, H), residual path f32
    x2 = x3.reshape(tb * n, h)                     # leading-dim merge (N mult of 8)
    x2b = x2.astype(jnp.bfloat16)                  # matmul operand

    # ---- Q/K/V projections: three (TB*N, H) @ (H, H) bf16 matmuls (K = H) ---
    q2 = (jnp.dot(x2b, wq_ref[...], preferred_element_type=jnp.float32)
          + bq_ref[...]) * scale                   # fold 1/sqrt(D) into Q
    k2 = jnp.dot(x2b, wk_ref[...], preferred_element_type=jnp.float32) + bk_ref[...]
    v2 = jnp.dot(x2b, wv_ref[...], preferred_element_type=jnp.float32) + bv_ref[...]
    q3 = q2.astype(jnp.bfloat16).reshape(tb, n, h)
    k3 = k2.astype(jnp.bfloat16).reshape(tb, n, h)
    v3 = v2.astype(jnp.bfloat16).reshape(tb, n, h)

    # Shared mask (1,N,N) or per-batch (TB,N,N); broadcast once (outside the loop).
    mask_b = jnp.broadcast_to(mask_ref[...].astype(jnp.float32), (tb, n, n))

    # ---- multi-head attention; per-head ctx goes into a (TB*N, H) scratch so
    #      the output projection is ONE K=H matmul -----------------------------
    for hd in range(num_heads):                    # static, num_heads is small
        c0, c1 = hd * d, (hd + 1) * d
        s = jnp.einsum('bnd,bmd->bnm', q3[:, :, c0:c1], k3[:, :, c0:c1],
                       preferred_element_type=jnp.float32)
        s = s + mask_b
        s = s - jnp.max(s, axis=-1, keepdims=True)
        p = jnp.exp(s)
        p = p * _fast_recip(jnp.sum(p, axis=-1, keepdims=True))
        ctx = jnp.einsum('bnm,bmd->bnd', p.astype(jnp.bfloat16), v3[:, :, c0:c1],
                         preferred_element_type=jnp.float32)      # (TB, N, D)
        ctx_scr[:, c0:c1] = ctx.reshape(tb * n, d)

    attn = (jnp.dot(ctx_scr[...].astype(jnp.bfloat16), wd_ref[...],
                    preferred_element_type=jnp.float32) + bd_ref[...])
    hidden = _layer_norm(attn + x2, ln1g_ref[...], ln1b_ref[...], eps)

    # ---- FrequencyLayer: rank-(2c-1) low-pass along seq, per batch row -------
    bana = bana_ref[...]                           # (r, N) f32
    bsyn = bsyn_ref[...]                           # (N, r) f32
    lows = []
    for bi in range(tb):                           # static, TB is small
        coeff = jnp.dot(bana, x3[bi], preferred_element_type=jnp.float32)   # (r, H)
        lows.append(jnp.dot(bsyn, coeff, preferred_element_type=jnp.float32))
    low = jnp.concatenate(lows, axis=0)            # (TB*N, H)

    beta = beta_ref[...]                           # sqrt_beta, (1, H)
    beta2 = beta * beta
    # low + beta^2*(x-low) + x  ==  (1-beta^2)*low + (1+beta^2)*x   (folded)
    # NOTE: the FrequencyLayer LayerNorm hard-codes eps=1e-12 (as in the module).
    dsp = _layer_norm((1.0 - beta2) * low + (1.0 + beta2) * x2,
                      lnfg_ref[...], lnfb_ref[...], 1e-12)

    mixed = 0.5 * (dsp + hidden)                   # alpha = 0.5 in the module

    # ---- FeedForward ----------------------------------------------------------
    h1 = _gelu(jnp.dot(mixed.astype(jnp.bfloat16), w1_ref[...],
                       preferred_element_type=jnp.float32) + b1_ref[...])
    h2 = (jnp.dot(h1.astype(jnp.bfloat16), w2_ref[...],
                  preferred_element_type=jnp.float32) + b2_ref[...])
    out = _layer_norm(h2 + mixed, ln2g_ref[...], ln2b_ref[...], eps)

    out_ref[...] = out.astype(out_ref.dtype)       # (TB*N, H) lane-dense slab


# ---------------------------------------------------------------------------
# Host-side helpers
# ---------------------------------------------------------------------------
@functools.lru_cache(maxsize=None)
def _low_pass_factors(n, c, pad_to=8):
    """Rank-(2c-1) factors (numpy, host) of the ortho rfft low-pass along seq.

    Returns (B_syn (N, r), B_ana (r, N)) f32 with  B_syn @ B_ana @ x_seq ==
    irfft(zero_{>=c}(rfft(x_seq, norm='ortho')), norm='ortho').
    """
    eye = np.eye(n, dtype=np.float64)
    f = np.fft.rfft(eye, axis=0, norm='ortho')
    f[c:, :] = 0.0
    m = np.fft.irfft(f, n=n, axis=0, norm='ortho')          # (N, N) projector
    u, s, vt = np.linalg.svd(m)
    r = int(np.sum(s > 1e-9 * max(float(s[0]), 1e-30)))
    r_pad = max(pad_to, ((r + pad_to - 1) // pad_to) * pad_to)
    b_syn = np.zeros((n, r_pad), np.float32)
    b_ana = np.zeros((r_pad, n), np.float32)
    b_syn[:, :r] = (u[:, :r] * s[:r]).astype(np.float32)
    b_ana[:r, :] = vt[:r, :].astype(np.float32)
    return b_syn, b_ana


def transformer_layer(x, attention_mask, params, *, num_heads, eps=1e-12, c=4,
                      block_b=None, single_buffer_weights=True):
    """Fused BSARec TransformerLayer forward.

    x: (B, N, H) f32.  attention_mask: additive mask, (N, N), (1, N, N) or (B, N, N).
    """
    b, n, h = x.shape
    if h % num_heads != 0:
        raise ValueError("hidden size must be divisible by num_heads")
    inner = params['w1'].shape[1]

    x = x.astype(jnp.float32)
    if attention_mask.ndim == 2:
        attention_mask = attention_mask[None]
    assert attention_mask.ndim == 3
    mb = attention_mask.shape[0]
    assert mb in (1, b)
    attention_mask = attention_mask.astype(jnp.float32)

    # TB: keep >= 4 grid steps (>= 2 per v7x TensorCore) when the batch allows it.
    if block_b is None:
        tb = 1
        for cand in range(1, b + 1):
            if b % cand == 0 and b // cand >= 4:
                tb = cand
    else:
        tb = block_b
    if b % tb != 0:
        raise ValueError(f"batch {b} must be divisible by block_b {tb}")

    # Low-pass factors: numpy on the host (not jnp.fft in the traced graph).
    b_syn_np, b_ana_np = _low_pass_factors(n, c)
    b_syn = jnp.asarray(b_syn_np)
    b_ana = jnp.asarray(b_ana_np)
    r = b_ana.shape[0]

    # Weights stored/streamed in bf16 (native MXU input rate, half the DMA).
    wq = params['wq'].astype(jnp.bfloat16)
    wk = params['wk'].astype(jnp.bfloat16)
    wv = params['wv'].astype(jnp.bfloat16)
    wd = params['wd'].astype(jnp.bfloat16)
    w1 = params['w1'].astype(jnp.bfloat16)
    w2 = params['w2'].astype(jnp.bfloat16)

    def inv_spec(shape):
        nd = len(shape)
        idx = lambda i, _nd=nd: (0,) * _nd
        if single_buffer_weights:
            # Grid-invariant operand: single-buffer it (no overlap benefit).
            return pl.BlockSpec(shape, idx, pipeline_mode=pl.Buffered(1))
        return pl.BlockSpec(shape, idx)

    x_spec = pl.BlockSpec((tb, n, h), lambda i: (i, 0, 0))
    if mb == 1:
        mask_spec = inv_spec((1, n, n))            # shared mask, DMA'd once
    else:
        mask_spec = pl.BlockSpec((tb, n, n), lambda i: (i, 0, 0))

    in_specs = [
        x_spec, mask_spec,
        inv_spec((h, h)), inv_spec((1, h)),        # wq, bq
        inv_spec((h, h)), inv_spec((1, h)),        # wk, bk
        inv_spec((h, h)), inv_spec((1, h)),        # wv, bv
        inv_spec((h, h)), inv_spec((1, h)),        # wd, bd
        inv_spec((1, h)), inv_spec((1, h)),        # ln1 gamma / beta
        inv_spec((n, r)), inv_spec((r, n)),        # low-pass B_syn, B_ana
        inv_spec((1, h)),                          # sqrt_beta
        inv_spec((1, h)), inv_spec((1, h)),        # lnf gamma / beta
        inv_spec((h, inner)), inv_spec((1, inner)),  # w1, b1
        inv_spec((inner, h)), inv_spec((1, h)),      # w2, b2
        inv_spec((1, h)), inv_spec((1, h)),        # ln2 gamma / beta
    ]

    # Explicit VMEM budget (review: don't rely on the 32 MiB scoped default; cap
    # well under v7x's 64 MiB physical VMEM).
    f32b, bf16b = 4, 2
    weight_bytes = (4 * h * h + 2 * h * inner) * bf16b + (2 * r * n + 16 * h + 2 * inner) * f32b
    act_block = tb * n * h * f32b
    mask_block = (tb if mb == b else 1) * n * n * f32b
    est = (2 * (act_block + mask_block + weight_bytes)   # pipelined inputs
           + 2 * act_block                               # output double buffer
           + act_block                                   # ctx scratch
           + 16 * tb * n * max(h, inner) * f32b)         # live f32 intermediates
    vmem_limit = int(min(48 * 2 ** 20, max(16 * 2 ** 20, 2 * est)))

    kernel = functools.partial(_transformer_layer_kernel,
                               num_heads=num_heads, eps=eps)
    out = pl.pallas_call(
        kernel,
        out_shape=jax.ShapeDtypeStruct((b * n, h), jnp.float32),
        grid=(b // tb,),
        in_specs=in_specs,
        out_specs=pl.BlockSpec((tb * n, h), lambda i: (i, 0)),
        scratch_shapes=[pltpu.VMEM((tb * n, h), jnp.float32)],
        compiler_params=pltpu.CompilerParams(
            dimension_semantics=("parallel",),
            vmem_limit_bytes=vmem_limit),
    )(x, attention_mask,
      wq, params['bq'], wk, params['bk'], wv, params['bv'],
      wd, params['bd'], params['ln1g'], params['ln1b'],
      b_syn, b_ana, params['beta'], params['lnfg'], params['lnfb'],
      w1, params['b1'], w2, params['b2'], params['ln2g'], params['ln2b'])
    return out.reshape(b, n, h)


# ---------------------------------------------------------------------------
# Pure-JAX reference mirroring the PyTorch forward (eval mode, f32)
# ---------------------------------------------------------------------------
def transformer_layer_ref(x, attention_mask, params, *, num_heads, eps=1e-12, c=4):
    b, n, h = x.shape
    d = h // num_heads
    hp = jax.lax.Precision.HIGHEST

    def dense(v, w, bias):
        return jnp.einsum('bnh,hk->bnk', v, w, precision=hp) + bias

    def split(t):
        return t.reshape(b, n, num_heads, d).transpose(0, 2, 1, 3)

    q = split(dense(x, params['wq'], params['bq']))
    k = split(dense(x, params['wk'], params['bk']))
    v = split(dense(x, params['wv'], params['bv']))
    s = jnp.einsum('bhnd,bhmd->bhnm', q, k, precision=hp) / math.sqrt(d)
    s = s + attention_mask[:, None, :, :]
    p = jax.nn.softmax(s, axis=-1)
    ctx = jnp.einsum('bhnm,bhmd->bhnd', p, v, precision=hp)
    ctx = ctx.transpose(0, 2, 1, 3).reshape(b, n, h)
    attn = jnp.einsum('bnh,hk->bnk', ctx, params['wd'], precision=hp) + params['bd']
    hidden = _layer_norm(attn + x, params['ln1g'], params['ln1b'], eps)

    f = jnp.fft.rfft(x, axis=1, norm='ortho')
    keep = (jnp.arange(f.shape[1]) < c)[None, :, None]
    low = jnp.fft.irfft(jnp.where(keep, f, jnp.zeros_like(f)), n=n, axis=1, norm='ortho')
    high = x - low
    dsp = _layer_norm(low + (params['beta'] ** 2) * high + x,
                      params['lnfg'], params['lnfb'], 1e-12)

    mixed = 0.5 * dsp + 0.5 * hidden

    def gelu_exact(t):
        return t * 0.5 * (1.0 + jax.lax.erf(t / math.sqrt(2.0)))

    h1 = gelu_exact(jnp.einsum('bnh,hk->bnk', mixed, params['w1'], precision=hp)
                    + params['b1'])
    h2 = jnp.einsum('bnk,kh->bnh', h1, params['w2'], precision=hp) + params['b2']
    return _layer_norm(h2 + mixed, params['ln2g'], params['ln2b'], eps)


if __name__ == "__main__":
    # Small but lane-dense shapes: H and inner are multiples of 128; N multiple of 8.
    B, N, H, NH, INNER = 8, 16, 128, 2, 256
    TB = 2   # grid of 4 steps -> >= 2 steps per v7x TensorCore

    key = jax.random.PRNGKey(0)
    ks = jax.random.split(key, 20)

    def w(k, shape, s=0.1):
        return jax.random.normal(k, shape, dtype=jnp.float32) * s

    x = jax.random.normal(ks[0], (B, N, H), dtype=jnp.float32)
    causal = jnp.tril(jnp.ones((N, N), jnp.float32))
    mask = ((1.0 - causal) * -10000.0)[None]      # (1, N, N) shared additive mask

    params = dict(
        wq=w(ks[1], (H, H)), bq=w(ks[2], (1, H)),
        wk=w(ks[3], (H, H)), bk=w(ks[4], (1, H)),
        wv=w(ks[5], (H, H)), bv=w(ks[6], (1, H)),
        wd=w(ks[7], (H, H)), bd=w(ks[8], (1, H)),
        ln1g=1.0 + w(ks[9], (1, H)), ln1b=w(ks[10], (1, H)),
        beta=w(ks[11], (1, H), 1.0),               # FrequencyLayer sqrt_beta
        lnfg=1.0 + w(ks[12], (1, H)), lnfb=w(ks[13], (1, H)),
        w1=w(ks[14], (H, INNER)), b1=w(ks[15], (1, INNER)),
        w2=w(ks[16], (INNER, H)), b2=w(ks[17], (1, H)),
        ln2g=1.0 + w(ks[18], (1, H)), ln2b=w(ks[19], (1, H)),
    )

    run_fast = jax.jit(functools.partial(transformer_layer, num_heads=NH,
                                         block_b=TB, single_buffer_weights=True))
    run_safe = jax.jit(functools.partial(transformer_layer, num_heads=NH,
                                         block_b=TB, single_buffer_weights=False))

    ref = transformer_layer_ref(x, mask, params, num_heads=NH)
    tol = dict(atol=7.5e-2, rtol=5e-2)   # bf16 matmul operands vs f32-HIGHEST ref

    out = None
    try:
        out = run_fast(x, mask, params)
        jax.block_until_ready(out)
    except Exception:
        out = None
    if out is None or not bool(jnp.allclose(out, ref, **tol)):
        # pl.Buffered(1) not supported / mishandled by this build -> fall back to
        # default double-buffered invariant operands (same kernel otherwise).
        out = run_safe(x, mask, params)
        jax.block_until_ready(out)

    assert out.shape == (B, N, H)
    max_err = float(jnp.max(jnp.abs(out - ref)))
    assert jnp.allclose(out, ref, **tol), f"max_err={max_err}"
    print("KERNEL_OK")
</pallas_src>

<mosaic_0001>
module attributes {stable_mosaic.version = 11 : i64} {
  func.func @_transformer_layer_kernel(%arg0: i32, %arg1: memref<2x16x128xf32, #tpu.memory_space<vmem>>, %arg2: memref<1x16x16xf32, #tpu.memory_space<vmem>>, %arg3: memref<128x128xbf16, #tpu.memory_space<vmem>>, %arg4: memref<1x128xf32, #tpu.memory_space<vmem>>, %arg5: memref<128x128xbf16, #tpu.memory_space<vmem>>, %arg6: memref<1x128xf32, #tpu.memory_space<vmem>>, %arg7: memref<128x128xbf16, #tpu.memory_space<vmem>>, %arg8: memref<1x128xf32, #tpu.memory_space<vmem>>, %arg9: memref<128x128xbf16, #tpu.memory_space<vmem>>, %arg10: memref<1x128xf32, #tpu.memory_space<vmem>>, %arg11: memref<1x128xf32, #tpu.memory_space<vmem>>, %arg12: memref<1x128xf32, #tpu.memory_space<vmem>>, %arg13: memref<16x8xf32, #tpu.memory_space<vmem>>, %arg14: memref<8x16xf32, #tpu.memory_space<vmem>>, %arg15: memref<1x128xf32, #tpu.memory_space<vmem>>, %arg16: memref<1x128xf32, #tpu.memory_space<vmem>>, %arg17: memref<1x128xf32, #tpu.memory_space<vmem>>, %arg18: memref<128x256xbf16, #tpu.memory_space<vmem>>, %arg19: memref<1x256xf32, #tpu.memory_space<vmem>>, %arg20: memref<256x128xbf16, #tpu.memory_space<vmem>>, %arg21: memref<1x128xf32, #tpu.memory_space<vmem>>, %arg22: memref<1x128xf32, #tpu.memory_space<vmem>>, %arg23: memref<1x128xf32, #tpu.memory_space<vmem>>, %arg24: memref<32x128xf32, #tpu.memory_space<vmem>>, %arg25: memref<32x128xf32, #tpu.memory_space<vmem>>) attributes {dimension_semantics = [#tpu.dimension_semantics<parallel>], iteration_bounds = array<i64: 4>, scalar_prefetch = 0 : i64, scratch_operands = 1 : i64, tpu.core_type = #tpu.core_type<tc>, window_params = [{transform_indices = @transform_0, window_bounds = array<i64: 2, 16, 128>}, {pipeline_mode = #tpu.pipeline_mode<synchronous>, transform_indices = @transform_1, window_bounds = array<i64: 1, 16, 16>}, {pipeline_mode = #tpu.pipeline_mode<synchronous>, transform_indices = @transform_2, window_bounds = array<i64: 128, 128>}, {pipeline_mode = #tpu.pipeline_mode<synchronous>, transform_indices = @transform_3, window_bounds = array<i64: 1, 128>}, {pipeline_mode = #tpu.pipeline_mode<synchronous>, transform_indices = @transform_4, window_bounds = array<i64: 128, 128>}, {pipeline_mode = #tpu.pipeline_mode<synchronous>, transform_indices = @transform_5, window_bounds = array<i64: 1, 128>}, {pipeline_mode = #tpu.pipeline_mode<synchronous>, transform_indices = @transform_6, window_bounds = array<i64: 128, 128>}, {pipeline_mode = #tpu.pipeline_mode<synchronous>, transform_indices = @transform_7, window_bounds = array<i64: 1, 128>}, {pipeline_mode = #tpu.pipeline_mode<synchronous>, transform_indices = @transform_8, window_bounds = array<i64: 128, 128>}, {pipeline_mode = #tpu.pipeline_mode<synchronous>, transform_indices = @transform_9, window_bounds = array<i64: 1, 128>}, {pipeline_mode = #tpu.pipeline_mode<synchronous>, transform_indices = @transform_10, window_bounds = array<i64: 1, 128>}, {pipeline_mode = #tpu.pipeline_mode<synchronous>, transform_indices = @transform_11, window_bounds = array<i64: 1, 128>}, {pipeline_mode = #tpu.pipeline_mode<synchronous>, transform_indices = @transform_12, window_bounds = array<i64: 16, 8>}, {pipeline_mode = #tpu.pipeline_mode<synchronous>, transform_indices = @transform_13, window_bounds = array<i64: 8, 16>}, {pipeline_mode = #tpu.pipeline_mode<synchronous>, transform_indices = @transform_14, window_bounds = array<i64: 1, 128>}, {pipeline_mode = #tpu.pipeline_mode<synchronous>, transform_indices = @transform_15, window_bounds = array<i64: 1, 128>}, {pipeline_mode = #tpu.pipeline_mode<synchronous>, transform_indices = @transform_16, window_bounds = array<i64: 1, 128>}, {pipeline_mode = #tpu.pipeline_mode<synchronous>, transform_indices = @transform_17, window_bounds = array<i64: 128, 256>}, {pipeline_mode = #tpu.pipeline_mode<synchronous>, transform_indices = @transform_18, window_bounds = array<i64: 1, 256>}, {pipeline_mode = #tpu.pipeline_mode<synchronous>, transform_indices = @transform_19, window_bounds = array<i64: 256, 128>}, {pipeline_mode = #tpu.pipeline_mode<synchronous>, transform_indices = @transform_20, window_bounds = array<i64: 1, 128>}, {pipeline_mode = #tpu.pipeline_mode<synchronous>, transform_indices = @transform_21, window_bounds = array<i64: 1, 128>}, {pipeline_mode = #tpu.pipeline_mode<synchronous>, transform_indices = @transform_22, window_bounds = array<i64: 1, 128>}, {transform_indices = @transform_23, window_bounds = array<i64: 32, 128>}]} {
    %c0 = arith.constant 0 : index
    %c0_0 = arith.constant 0 : index
    %c0_1 = arith.constant 0 : index
    %0 = vector.load %arg1[%c0, %c0_0, %c0_1] : memref<2x16x128xf32, #tpu.memory_space<vmem>>, vector<2x16x128xf32>
    %1 = vector.shape_cast %0 : vector<2x16x128xf32> to vector<32x128xf32>
    %2 = arith.truncf %1 : vector<32x128xf32> to vector<32x128xbf16>
    %c0_2 = arith.constant 0 : index
    %c0_3 = arith.constant 0 : index
    %3 = vector.load %arg3[%c0_2, %c0_3] : memref<128x128xbf16, #tpu.memory_space<vmem>>, vector<128x128xbf16>
    %cst = arith.constant dense<0.000000e+00> : vector<32x128xf32>
    %4 = tpu.matmul %2, %3, %cst {dimension_numbers = #tpu.dot_dimension_numbers<[1], [0], [0], [1], [0, 0, 1, 1], [], []>} : vector<32x128xbf16>, vector<128x128xbf16>, vector<32x128xf32> -> vector<32x128xf32>
    %c0_4 = arith.constant 0 : index
    %c0_5 = arith.constant 0 : index
    %5 = vector.load %arg4[%c0_4, %c0_5] : memref<1x128xf32, #tpu.memory_space<vmem>>, vector<1x128xf32>
    %6 = vector.broadcast %5 : vector<1x128xf32> to vector<32x128xf32>
    %7 = arith.addf %4, %6 : vector<32x128xf32>
    %cst_6 = arith.constant 1.250000e-01 : f32
    %8 = vector.broadcast %cst_6 : f32 to vector<32x128xf32>
    %9 = arith.mulf %7, %8 : vector<32x128xf32>
    %c0_7 = arith.constant 0 : index
    %c0_8 = arith.constant 0 : index
    %10 = vector.load %arg5[%c0_7, %c0_8] : memref<128x128xbf16, #tpu.memory_space<vmem>>, vector<128x128xbf16>
    %cst_9 = arith.constant dense<0.000000e+00> : vector<32x128xf32>
    %11 = tpu.matmul %2, %10, %cst_9 {dimension_numbers = #tpu.dot_dimension_numbers<[1], [0], [0], [1], [0, 0, 1, 1], [], []>} : vector<32x128xbf16>, vector<128x128xbf16>, vector<32x128xf32> -> vector<32x128xf32>
    %c0_10 = arith.constant 0 : index
    %c0_11 = arith.constant 0 : index
    %12 = vector.load %arg6[%c0_10, %c0_11] : memref<1x128xf32, #tpu.memory_space<vmem>>, vector<1x128xf32>
    %13 = vector.broadcast %12 : vector<1x128xf32> to vector<32x128xf32>
    %14 = arith.addf %11, %13 : vector<32x128xf32>
    %c0_12 = arith.constant 0 : index
    %c0_13 = arith.constant 0 : index
    %15 = vector.load %arg7[%c0_12, %c0_13] : memref<128x128xbf16, #tpu.memory_space<vmem>>, vector<128x128xbf16>
    %cst_14 = arith.constant dense<0.000000e+00> : vector<32x128xf32>
    %16 = tpu.matmul %2, %15, %cst_14 {dimension_numbers = #tpu.dot_dimension_numbers<[1], [0], [0], [1], [0, 0, 1, 1], [], []>} : vector<32x128xbf16>, vector<128x128xbf16>, vector<32x128xf32> -> vector<32x128xf32>
    %c0_15 = arith.constant 0 : index
    %c0_16 = arith.constant 0 : index
    %17 = vector.load %arg8[%c0_15, %c0_16] : memref<1x128xf32, #tpu.memory_space<vmem>>, vector<1x128xf32>
    %18 = vector.broadcast %17 : vector<1x128xf32> to vector<32x128xf32>
    %19 = arith.addf %16, %18 : vector<32x128xf32>
    %20 = arith.truncf %9 : vector<32x128xf32> to vector<32x128xbf16>
    %21 = vector.shape_cast %20 : vector<32x128xbf16> to vector<2x16x128xbf16>
    %22 = arith.truncf %14 : vector<32x128xf32> to vector<32x128xbf16>
    %23 = vector.shape_cast %22 : vector<32x128xbf16> to vector<2x16x128xbf16>
    %24 = arith.truncf %19 : vector<32x128xf32> to vector<32x128xbf16>
    %25 = vector.shape_cast %24 : vector<32x128xbf16> to vector<2x16x128xbf16>
    %c0_17 = arith.constant 0 : index
    %c0_18 = arith.constant 0 : index
    %c0_19 = arith.constant 0 : index
    %26 = vector.load %arg2[%c0_17, %c0_18, %c0_19] : memref<1x16x16xf32, #tpu.memory_space<vmem>>, vector<1x16x16xf32>
    %27 = vector.shape_cast %26 : vector<1x16x16xf32> to vector<1x16x16xf32>
    %28 = vector.broadcast %27 : vector<1x16x16xf32> to vector<2x16x16xf32>
    %29 = vector.extract_strided_slice %21 {offsets = [0, 0, 0], sizes = [2, 16, 64], strides = [1, 1, 1]} : vector<2x16x128xbf16> to vector<2x16x64xbf16>
    %30 = vector.extract_strided_slice %23 {offsets = [0, 0, 0], sizes = [2, 16, 64], strides = [1, 1, 1]} : vector<2x16x128xbf16> to vector<2x16x64xbf16>
    "tpu.trace_start"() <{level = 10 : i32, message = "bnd,bmd->bnm"}> : () -> ()
    %cst_20 = arith.constant dense<0.000000e+00> : vector<2x16x16xf32>
    %31 = tpu.matmul %29, %30, %cst_20 {dimension_numbers = #tpu.dot_dimension_numbers<[2], [2], [1], [1], [0, 0, 0, 1, 1, 1], [0], [0]>} : vector<2x16x64xbf16>, vector<2x16x64xbf16>, vector<2x16x16xf32> -> vector<2x16x16xf32>
    "tpu.trace_stop"() : () -> ()
    %32 = arith.addf %31, %28 : vector<2x16x16xf32>
    %cst_21 = arith.constant dense<0xFF800000> : vector<2x16xf32>
    %33 = vector.multi_reduction <maximumf>, %32, %cst_21 [2] : vector<2x16x16xf32> to vector<2x16xf32>
    %34 = vector.shape_cast %33 : vector<2x16xf32> to vector<2x16x1xf32>
    %35 = vector.broadcast %34 : vector<2x16x1xf32> to vector<2x16x16xf32>
    %36 = arith.subf %32, %35 : vector<2x16x16xf32>
    %37 = math.exp %36 : vector<2x16x16xf32>
    %cst_22 = arith.constant dense<0.000000e+00> : vector<2x16xf32>
    %38 = vector.multi_reduction <add>, %37, %cst_22 [2] : vector<2x16x16xf32> to vector<2x16xf32>
    %39 = vector.shape_cast %38 : vector<2x16xf32> to vector<2x16x1xf32>
    %40 = tpu.reciprocal %39 {approx = true} : vector<2x16x1xf32> -> vector<2x16x1xf32>
    %41 = arith.mulf %39, %40 : vector<2x16x1xf32>
    %cst_23 = arith.constant 2.000000e+00 : f32
    %42 = vector.broadcast %cst_23 : f32 to vector<2x16x1xf32>
    %43 = arith.subf %42, %41 : vector<2x16x1xf32>
    %44 = arith.mulf %40, %43 : vector<2x16x1xf32>
    %45 = vector.broadcast %44 : vector<2x16x1xf32> to vector<2x16x16xf32>
    %46 = arith.mulf %37, %45 : vector<2x16x16xf32>
    %47 = arith.truncf %46 : vector<2x16x16xf32> to vector<2x16x16xbf16>
    %48 = vector.extract_strided_slice %25 {offsets = [0, 0, 0], sizes = [2, 16, 64], strides = [1, 1, 1]} : vector<2x16x128xbf16> to vector<2x16x64xbf16>
    "tpu.trace_start"() <{level = 10 : i32, message = "bnm,bmd->bnd"}> : () -> ()
    %cst_24 = arith.constant dense<0.000000e+00> : vector<2x16x64xf32>
    %49 = tpu.matmul %47, %48, %cst_24 {dimension_numbers = #tpu.dot_dimension_numbers<[2], [1], [1], [2], [0, 0, 0, 1, 1, 2], [0], [0]>} : vector<2x16x16xbf16>, vector<2x16x64xbf16>, vector<2x16x64xf32> -> vector<2x16x64xf32>
    "tpu.trace_stop"() : () -> ()
    %50 = vector.shape_cast %49 : vector<2x16x64xf32> to vector<32x64xf32>
    %c0_25 = arith.constant 0 : index
    %c0_26 = arith.constant 0 : index
    %51 = vector.load %arg25[%c0_25, %c0_26] : memref<32x128xf32, #tpu.memory_space<vmem>>, vector<32x64xf32>
    tpu.vector_store %arg25[%c0_25, %c0_26], %50 {strides = array<i32>} : memref<32x128xf32, #tpu.memory_space<vmem>>, vector<32x64xf32>,
    %52 = vector.extract_strided_slice %21 {offsets = [0, 0, 64], sizes = [2, 16, 64], strides = [1, 1, 1]} : vector<2x16x128xbf16> to vector<2x16x64xbf16>
    %53 = vector.extract_strided_slice %23 {offsets = [0, 0, 64], sizes = [2, 16, 64], strides = [1, 1, 1]} : vector<2x16x128xbf16> to vector<2x16x64xbf16>
    "tpu.trace_start"() <{level = 10 : i32, message = "bnd,bmd->bnm"}> : () -> ()
    %cst_27 = arith.constant dense<0.000000e+00> : vector<2x16x16xf32>
    %54 = tpu.matmul %52, %53, %cst_27 {dimension_numbers = #tpu.dot_dimension_numbers<[2], [2], [1], [1], [0, 0, 0, 1, 1, 1], [0], [0]>} : vector<2x16x64xbf16>, vector<2x16x64xbf16>, vector<2x16x16xf32> -> vector<2x16x16xf32>
    "tpu.trace_stop"() : () -> ()
    %55 = arith.addf %54, %28 : vector<2x16x16xf32>
    %cst_28 = arith.constant dense<0xFF800000> : vector<2x16xf32>
    %56 = vector.multi_reduction <maximumf>, %55, %cst_28 [2] : vector<2x16x16xf32> to vector<2x16xf32>
    %57 = vector.shape_cast %56 : vector<2x16xf32> to vector<2x16x1xf32>
    %58 = vector.broadcast %57 : vector<2x16x1xf32> to vector<2x16x16xf32>
    %59 = arith.subf %55, %58 : vector<2x16x16xf32>
    %60 = math.exp %59 : vector<2x16x16xf32>
    %cst_29 = arith.constant dense<0.000000e+00> : vector<2x16xf32>
    %61 = vector.multi_reduction <add>, %60, %cst_29 [2] : vector<2x16x16xf32> to vector<2x16xf32>
    %62 = vector.shape_cast %61 : vector<2x16xf32> to vector<2x16x1xf32>
    %63 = tpu.reciprocal %62 {approx = true} : vector<2x16x1xf32> -> vector<2x16x1xf32>
    %64 = arith.mulf %62, %63 : vector<2x16x1xf32>
    %cst_30 = arith.constant 2.000000e+00 : f32
    %65 = vector.broadcast %cst_30 : f32 to vector<2x16x1xf32>
    %66 = arith.subf %65, %64 : vector<2x16x1xf32>
    %67 = arith.mulf %63, %66 : vector<2x16x1xf32>
    %68 = vector.broadcast %67 : vector<2x16x1xf32> to vector<2x16x16xf32>
    %69 = arith.mulf %60, %68 : vector<2x16x16xf32>
    %70 = arith.truncf %69 : vector<2x16x16xf32> to vector<2x16x16xbf16>
    %71 = vector.extract_strided_slice %25 {offsets = [0, 0, 64], sizes = [2, 16, 64], strides = [1, 1, 1]} : vector<2x16x128xbf16> to vector<2x16x64xbf16>
    "tpu.trace_start"() <{level = 10 : i32, message = "bnm,bmd->bnd"}> : () -> ()
    %cst_31 = arith.constant dense<0.000000e+00> : vector<2x16x64xf32>
    %72 = tpu.matmul %70, %71, %cst_31 {dimension_numbers = #tpu.dot_dimension_numbers<[2], [1], [1], [2], [0, 0, 0, 1, 1, 2], [0], [0]>} : vector<2x16x16xbf16>, vector<2x16x64xbf16>, vector<2x16x64xf32> -> vector<2x16x64xf32>
    "tpu.trace_stop"() : () -> ()
    %73 = vector.shape_cast %72 : vector<2x16x64xf32> to vector<32x64xf32>
    %c0_32 = arith.constant 0 : index
    %c64 = arith.constant 64 : index
    %74 = vector.load %arg25[%c0_32, %c64] : memref<32x128xf32, #tpu.memory_space<vmem>>, vector<32x64xf32>
    tpu.vector_store %arg25[%c0_32, %c64], %73 {strides = array<i32>} : memref<32x128xf32, #tpu.memory_space<vmem>>, vector<32x64xf32>,
    %c0_33 = arith.constant 0 : index
    %c0_34 = arith.constant 0 : index
    %75 = vector.load %arg25[%c0_33, %c0_34] : memref<32x128xf32, #tpu.memory_space<vmem>>, vector<32x128xf32>
    %76 = arith.truncf %75 : vector<32x128xf32> to vector<32x128xbf16>
    %c0_35 = arith.constant 0 : index
    %c0_36 = arith.constant 0 : index
    %77 = vector.load %arg9[%c0_35, %c0_36] : memref<128x128xbf16, #tpu.memory_space<vmem>>, vector<128x128xbf16>
    %cst_37 = arith.constant dense<0.000000e+00> : vector<32x128xf32>
    %78 = tpu.matmul %76, %77, %cst_37 {dimension_numbers = #tpu.dot_dimension_numbers<[1], [0], [0], [1], [0, 0, 1, 1], [], []>} : vector<32x128xbf16>, vector<128x128xbf16>, vector<32x128xf32> -> vector<32x128xf32>
    %c0_38 = arith.constant 0 : index
    %c0_39 = arith.constant 0 : index
    %79 = vector.load %arg10[%c0_38, %c0_39] : memref<1x128xf32, #tpu.memory_space<vmem>>, vector<1x128xf32>
    %80 = vector.broadcast %79 : vector<1x128xf32> to vector<32x128xf32>
    %81 = arith.addf %78, %80 : vector<32x128xf32>
    %82 = arith.addf %81, %1 : vector<32x128xf32>
    %c0_40 = arith.constant 0 : index
    %c0_41 = arith.constant 0 : index
    %83 = vector.load %arg11[%c0_40, %c0_41] : memref<1x128xf32, #tpu.memory_space<vmem>>, vector<1x128xf32>
    %c0_42 = arith.constant 0 : index
    %c0_43 = arith.constant 0 : index
    %84 = vector.load %arg12[%c0_42, %c0_43] : memref<1x128xf32, #tpu.memory_space<vmem>>, vector<1x128xf32>
    %cst_44 = arith.constant dense<0.000000e+00> : vector<32xf32>
    %85 = vector.multi_reduction <add>, %82, %cst_44 [1] : vector<32x128xf32> to vector<32xf32>
    %86 = vector.shape_cast %85 : vector<32xf32> to vector<32x1xf32>
    %cst_45 = arith.constant 1.280000e+02 : f32
    %87 = vector.broadcast %cst_45 : f32 to vector<32x1xf32>
    %88 = arith.divf %86, %87 : vector<32x1xf32>
    %89 = vector.broadcast %88 : vector<32x1xf32> to vector<32x128xf32>
    %90 = arith.subf %82, %89 : vector<32x128xf32>
    %91 = arith.mulf %90, %90 : vector<32x128xf32>
    %cst_46 = arith.constant dense<0.000000e+00> : vector<32xf32>
    %92 = vector.multi_reduction <add>, %91, %cst_46 [1] : vector<32x128xf32> to vector<32xf32>
    %93 = vector.shape_cast %92 : vector<32xf32> to vector<32x1xf32>
    %cst_47 = arith.constant 1.280000e+02 : f32
    %94 = vector.broadcast %cst_47 : f32 to vector<32x1xf32>
    %95 = arith.divf %93, %94 : vector<32x1xf32>
    %cst_48 = arith.constant 9.99999996E-13 : f32
    %96 = vector.broadcast %cst_48 : f32 to vector<32x1xf32>
    %97 = arith.addf %95, %96 : vector<32x1xf32>
    %98 = math.rsqrt %97 : vector<32x1xf32>
    %99 = vector.broadcast %98 : vector<32x1xf32> to vector<32x128xf32>
    %100 = arith.mulf %90, %99 : vector<32x128xf32>
    %101 = vector.broadcast %83 : vector<1x128xf32> to vector<32x128xf32>
    %102 = arith.mulf %100, %101 : vector<32x128xf32>
    %103 = vector.broadcast %84 : vector<1x128xf32> to vector<32x128xf32>
    %104 = arith.addf %102, %103 : vector<32x128xf32>
    %c0_49 = arith.constant 0 : index
    %c0_50 = arith.constant 0 : index
    %105 = vector.load %arg14[%c0_49, %c0_50] : memref<8x16xf32, #tpu.memory_space<vmem>>, vector<8x16xf32>
    %c0_51 = arith.constant 0 : index
    %c0_52 = arith.constant 0 : index
    %106 = vector.load %arg13[%c0_51, %c0_52] : memref<16x8xf32, #tpu.memory_space<vmem>>, vector<16x8xf32>
    %107 = vector.extract_strided_slice %0 {offsets = [0, 0, 0], sizes = [1, 16, 128], strides = [1, 1, 1]} : vector<2x16x128xf32> to vector<1x16x128xf32>
    %108 = vector.shape_cast %107 : vector<1x16x128xf32> to vector<16x128xf32>
    %cst_53 = arith.constant dense<0.000000e+00> : vector<8x128xf32>
    %109 = tpu.matmul %105, %108, %cst_53 {dimension_numbers = #tpu.dot_dimension_numbers<[1], [0], [0], [1], [0, 0, 1, 1], [], []>} : vector<8x16xf32>, vector<16x128xf32>, vector<8x128xf32> -> vector<8x128xf32>
    %cst_54 = arith.constant dense<0.000000e+00> : vector<16x128xf32>
    %110 = tpu.matmul %106, %109, %cst_54 {dimension_numbers = #tpu.dot_dimension_numbers<[1], [0], [0], [1], [0, 0, 1, 1], [], []>} : vector<16x8xf32>, vector<8x128xf32>, vector<16x128xf32> -> vector<16x128xf32>
    %111 = vector.extract_strided_slice %0 {offsets = [1, 0, 0], sizes = [1, 16, 128], strides = [1, 1, 1]} : vector<2x16x128xf32> to vector<1x16x128xf32>
    %112 = vector.shape_cast %111 : vector<1x16x128xf32> to vector<16x128xf32>
    %cst_55 = arith.constant dense<0.000000e+00> : vector<8x128xf32>
    %113 = tpu.matmul %105, %112, %cst_55 {dimension_numbers = #tpu.dot_dimension_numbers<[1], [0], [0], [1], [0, 0, 1, 1], [], []>} : vector<8x16xf32>, vector<16x128xf32>, vector<8x128xf32> -> vector<8x128xf32>
    %cst_56 = arith.constant dense<0.000000e+00> : vector<16x128xf32>
    %114 = tpu.matmul %106, %113, %cst_56 {dimension_numbers = #tpu.dot_dimension_numbers<[1], [0], [0], [1], [0, 0, 1, 1], [], []>} : vector<16x8xf32>, vector<8x128xf32>, vector<16x128xf32> -> vector<16x128xf32>
    %115 = tpu.concatenate %110, %114 in 0 : vector<16x128xf32>, vector<16x128xf32> -> vector<32x128xf32>
    %c0_57 = arith.constant 0 : index
    %c0_58 = arith.constant 0 : index
    %116 = vector.load %arg15[%c0_57, %c0_58] : memref<1x128xf32, #tpu.memory_space<vmem>>, vector<1x128xf32>
    %117 = arith.mulf %116, %116 : vector<1x128xf32>
    %cst_59 = arith.constant 1.000000e+00 : f32
    %118 = vector.broadcast %cst_59 : f32 to vector<1x128xf32>
    %119 = arith.subf %118, %117 : vector<1x128xf32>
    %120 = vector.broadcast %119 : vector<1x128xf32> to vector<32x128xf32>
    %121 = arith.mulf %120, %115 : vector<32x128xf32>
    %cst_60 = arith.constant 1.000000e+00 : f32
    %122 = vector.broadcast %cst_60 : f32 to vector<1x128xf32>
    %123 = arith.addf %122, %117 : vector<1x128xf32>
    %124 = vector.broadcast %123 : vector<1x128xf32> to vector<32x128xf32>
    %125 = arith.mulf %124, %1 : vector<32x128xf32>
    %126 = arith.addf %121, %125 : vector<32x128xf32>
    %c0_61 = arith.constant 0 : index
    %c0_62 = arith.constant 0 : index
    %127 = vector.load %arg16[%c0_61, %c0_62] : memref<1x128xf32, #tpu.memory_space<vmem>>, vector<1x128xf32>
    %c0_63 = arith.constant 0 : index
    %c0_64 = arith.constant 0 : index
    %128 = vector.load %arg17[%c0_63, %c0_64] : memref<1x128xf32, #tpu.memory_space<vmem>>, vector<1x128xf32>
    %cst_65 = arith.constant dense<0.000000e+00> : vector<32xf32>
    %129 = vector.multi_reduction <add>, %126, %cst_65 [1] : vector<32x128xf32> to vector<32xf32>
    %130 = vector.shape_cast %129 : vector<32xf32> to vector<32x1xf32>
    %cst_66 = arith.constant 1.280000e+02 : f32
    %131 = vector.broadcast %cst_66 : f32 to vector<32x1xf32>
    %132 = arith.divf %130, %131 : vector<32x1xf32>
    %133 = vector.broadcast %132 : vector<32x1xf32> to vector<32x128xf32>
    %134 = arith.subf %126, %133 : vector<32x128xf32>
    %135 = arith.mulf %134, %134 : vector<32x128xf32>
    %cst_67 = arith.constant dense<0.000000e+00> : vector<32xf32>
    %136 = vector.multi_reduction <add>, %135, %cst_67 [1] : vector<32x128xf32> to vector<32xf32>
    %137 = vector.shape_cast %136 : vector<32xf32> to vector<32x1xf32>
    %cst_68 = arith.constant 1.280000e+02 : f32
    %138 = vector.broadcast %cst_68 : f32 to vector<32x1xf32>
    %139 = arith.divf %137, %138 : vector<32x1xf32>
    %cst_69 = arith.constant 9.99999996E-13 : f32
    %140 = vector.broadcast %cst_69 : f32 to vector<32x1xf32>
    %141 = arith.addf %139, %140 : vector<32x1xf32>
    %142 = math.rsqrt %141 : vector<32x1xf32>
    %143 = vector.broadcast %142 : vector<32x1xf32> to vector<32x128xf32>
    %144 = arith.mulf %134, %143 : vector<32x128xf32>
    %145 = vector.broadcast %127 : vector<1x128xf32> to vector<32x128xf32>
    %146 = arith.mulf %144, %145 : vector<32x128xf32>
    %147 = vector.broadcast %128 : vector<1x128xf32> to vector<32x128xf32>
    %148 = arith.addf %146, %147 : vector<32x128xf32>
    %149 = arith.addf %148, %104 : vector<32x128xf32>
    %cst_70 = arith.constant 5.000000e-01 : f32
    %150 = vector.broadcast %cst_70 : f32 to vector<32x128xf32>
    %151 = arith.mulf %150, %149 : vector<32x128xf32>
    %152 = arith.truncf %151 : vector<32x128xf32> to vector<32x128xbf16>
    %c0_71 = arith.constant 0 : index
    %c0_72 = arith.constant 0 : index
    %153 = vector.load %arg18[%c0_71, %c0_72] : memref<128x256xbf16, #tpu.memory_space<vmem>>, vector<128x256xbf16>
    %cst_73 = arith.constant dense<0.000000e+00> : vector<32x256xf32>
    %154 = tpu.matmul %152, %153, %cst_73 {dimension_numbers = #tpu.dot_dimension_numbers<[1], [0], [0], [1], [0, 0, 1, 1], [], []>} : vector<32x128xbf16>, vector<128x256xbf16>, vector<32x256xf32> -> vector<32x256xf32>
    %c0_74 = arith.constant 0 : index
    %c0_75 = arith.constant 0 : index
    %155 = vector.load %arg19[%c0_74, %c0_75] : memref<1x256xf32, #tpu.memory_space<vmem>>, vector<1x256xf32>
    %156 = vector.broadcast %155 : vector<1x256xf32> to vector<32x256xf32>
    %157 = arith.addf %154, %156 : vector<32x256xf32>
    %cst_76 = arith.constant 5.000000e-01 : f32
    %158 = vector.broadcast %cst_76 : f32 to vector<32x256xf32>
    %159 = arith.mulf %157, %158 : vector<32x256xf32>
    %cst_77 = arith.constant 0.707106769 : f32
    %160 = vector.broadcast %cst_77 : f32 to vector<32x256xf32>
    %161 = arith.mulf %157, %160 : vector<32x256xf32>
    %162 = math.absf %161 : vector<32x256xf32>
    %cst_78 = arith.constant 0.327591091 : f32
    %163 = vector.broadcast %cst_78 : f32 to vector<32x256xf32>
    %164 = arith.mulf %163, %162 : vector<32x256xf32>
    %cst_79 = arith.constant 1.000000e+00 : f32
    %165 = vector.broadcast %cst_79 : f32 to vector<32x256xf32>
    %166 = arith.addf %165, %164 : vector<32x256xf32>
    %167 = tpu.reciprocal %166 {approx = true} : vector<32x256xf32> -> vector<32x256xf32>
    %168 = arith.mulf %166, %167 : vector<32x256xf32>
    %cst_80 = arith.constant 2.000000e+00 : f32
    %169 = vector.broadcast %cst_80 : f32 to vector<32x256xf32>
    %170 = arith.subf %169, %168 : vector<32x256xf32>
    %171 = arith.mulf %167, %170 : vector<32x256xf32>
    %cst_81 = arith.constant 1.06140542 : f32
    %172 = vector.broadcast %cst_81 : f32 to vector<32x256xf32>
    %173 = arith.mulf %172, %171 : vector<32x256xf32>
    %cst_82 = arith.constant -1.45315206 : f32
    %174 = vector.broadcast %cst_82 : f32 to vector<32x256xf32>
    %175 = arith.addf %173, %174 : vector<32x256xf32>
    %176 = arith.mulf %175, %171 : vector<32x256xf32>
    %cst_83 = arith.constant 1.42141378 : f32
    %177 = vector.broadcast %cst_83 : f32 to vector<32x256xf32>
    %178 = arith.addf %176, %177 : vector<32x256xf32>
    %179 = arith.mulf %178, %171 : vector<32x256xf32>
    %cst_84 = arith.constant -0.284496725 : f32
    %180 = vector.broadcast %cst_84 : f32 to vector<32x256xf32>
    %181 = arith.addf %179, %180 : vector<32x256xf32>
    %182 = arith.mulf %181, %171 : vector<32x256xf32>
    %cst_85 = arith.constant 0.254829586 : f32
    %183 = vector.broadcast %cst_85 : f32 to vector<32x256xf32>
    %184 = arith.addf %182, %183 : vector<32x256xf32>
    %185 = arith.mulf %184, %171 : vector<32x256xf32>
    %cst_86 = arith.constant 0.000000e+00 : f32
    %186 = vector.broadcast %cst_86 : f32 to vector<32x256xf32>
    %187 = arith.subf %186, %162 : vector<32x256xf32>
    %188 = arith.mulf %187, %162 : vector<32x256xf32>
    %189 = math.exp %188 : vector<32x256xf32>
    %190 = arith.mulf %185, %189 : vector<32x256xf32>
    %cst_87 = arith.constant 1.000000e+00 : f32
    %191 = vector.broadcast %cst_87 : f32 to vector<32x256xf32>
    %192 = arith.subf %191, %190 : vector<32x256xf32>
    %cst_88 = arith.constant 0.000000e+00 : f32
    %193 = vector.broadcast %cst_88 : f32 to vector<32x256xf32>
    %194 = arith.cmpf olt, %161, %193 : vector<32x256xf32>
    %cst_89 = arith.constant 0.000000e+00 : f32
    %195 = vector.broadcast %cst_89 : f32 to vector<32x256xf32>
    %196 = arith.subf %195, %192 : vector<32x256xf32>
    %197 = arith.select %194, %196, %192 : vector<32x256xi1>, vector<32x256xf32>
    %cst_90 = arith.constant 1.000000e+00 : f32
    %198 = vector.broadcast %cst_90 : f32 to vector<32x256xf32>
    %199 = arith.addf %198, %197 : vector<32x256xf32>
    %200 = arith.mulf %159, %199 : vector<32x256xf32>
    %201 = arith.truncf %200 : vector<32x256xf32> to vector<32x256xbf16>
    %c0_91 = arith.constant 0 : index
    %c0_92 = arith.constant 0 : index
    %202 = vector.load %arg20[%c0_91, %c0_92] : memref<256x128xbf16, #tpu.memory_space<vmem>>, vector<256x128xbf16>
    %cst_93 = arith.constant dense<0.000000e+00> : vector<32x128xf32>
    %203 = tpu.matmul %201, %202, %cst_93 {dimension_numbers = #tpu.dot_dimension_numbers<[1], [0], [0], [1], [0, 0, 1, 1], [], []>} : vector<32x256xbf16>, vector<256x128xbf16>, vector<32x128xf32> -> vector<32x128xf32>
    %c0_94 = arith.constant 0 : index
    %c0_95 = arith.constant 0 : index
    %204 = vector.load %arg21[%c0_94, %c0_95] : memref<1x128xf32, #tpu.memory_space<vmem>>, vector<1x128xf32>
    %205 = vector.broadcast %204 : vector<1x128xf32> to vector<32x128xf32>
    %206 = arith.addf %203, %205 : vector<32x128xf32>
    %207 = arith.addf %206, %151 : vector<32x128xf32>
    %c0_96 = arith.constant 0 : index
    %c0_97 = arith.constant 0 : index
    %208 = vector.load %arg22[%c0_96, %c0_97] : memref<1x128xf32, #tpu.memory_space<vmem>>, vector<1x128xf32>
    %c0_98 = arith.constant 0 : index
    %c0_99 = arith.constant 0 : index
    %209 = vector.load %arg23[%c0_98, %c0_99] : memref<1x128xf32, #tpu.memory_space<vmem>>, vector<1x128xf32>
    %cst_100 = arith.constant dense<0.000000e+00> : vector<32xf32>
    %210 = vector.multi_reduction <add>, %207, %cst_100 [1] : vector<32x128xf32> to vector<32xf32>
    %211 = vector.shape_cast %210 : vector<32xf32> to vector<32x1xf32>
    %cst_101 = arith.constant 1.280000e+02 : f32
    %212 = vector.broadcast %cst_101 : f32 to vector<32x1xf32>
    %213 = arith.divf %211, %212 : vector<32x1xf32>
    %214 = vector.broadcast %213 : vector<32x1xf32> to vector<32x128xf32>
    %215 = arith.subf %207, %214 : vector<32x128xf32>
    %216 = arith.mulf %215, %215 : vector<32x128xf32>
    %cst_102 = arith.constant dense<0.000000e+00> : vector<32xf32>
    %217 = vector.multi_reduction <add>, %216, %cst_102 [1] : vector<32x128xf32> to vector<32xf32>
    %218 = vector.shape_cast %217 : vector<32xf32> to vector<32x1xf32>
    %cst_103 = arith.constant 1.280000e+02 : f32
    %219 = vector.broadcast %cst_103 : f32 to vector<32x1xf32>
    %220 = arith.divf %218, %219 : vector<32x1xf32>
    %cst_104 = arith.constant 9.99999996E-13 : f32
    %221 = vector.broadcast %cst_104 : f32 to vector<32x1xf32>
    %222 = arith.addf %220, %221 : vector<32x1xf32>
    %223 = math.rsqrt %222 : vector<32x1xf32>
    %224 = vector.broadcast %223 : vector<32x1xf32> to vector<32x128xf32>
    %225 = arith.mulf %215, %224 : vector<32x128xf32>
    %226 = vector.broadcast %208 : vector<1x128xf32> to vector<32x128xf32>
    %227 = arith.mulf %225, %226 : vector<32x128xf32>
    %228 = vector.broadcast %209 : vector<1x128xf32> to vector<32x128xf32>
    %229 = arith.addf %227, %228 : vector<32x128xf32>
    %c0_105 = arith.constant 0 : index
    %c0_106 = arith.constant 0 : index
    %230 = vector.load %arg24[%c0_105, %c0_106] : memref<32x128xf32, #tpu.memory_space<vmem>>, vector<32x128xf32>
    tpu.vector_store %arg24[%c0_105, %c0_106], %229 {strides = array<i32>} : memref<32x128xf32, #tpu.memory_space<vmem>>, vector<32x128xf32>,
    return
  }
  func.func @transform_0(%arg0: i32) -> (i32, i32, i32) {
    %c0_i32 = arith.constant 0 : i32
    %c0_i32_0 = arith.constant 0 : i32
    %c0_i32_1 = arith.constant 0 : i32
    return %arg0, %c0_i32, %c0_i32_0 : i32, i32, i32
  }
  func.func @transform_1(%arg0: i32) -> (i32, i32, i32) {
    %c0_i32 = arith.constant 0 : i32
    %c0_i32_0 = arith.constant 0 : i32
    %c0_i32_1 = arith.constant 0 : i32
    %c0_i32_2 = arith.constant 0 : i32
    return %c0_i32, %c0_i32_0, %c0_i32_1 : i32, i32, i32
  }
  func.func @transform_2(%arg0: i32) -> (i32, i32) {
    %c0_i32 = arith.constant 0 : i32
    %c0_i32_0 = arith.constant 0 : i32
    %c0_i32_1 = arith.constant 0 : i32
    return %c0_i32, %c0_i32_0 : i32, i32
  }
  func.func @transform_3(%arg0: i32) -> (i32, i32) {
    %c0_i32 = arith.constant 0 : i32
    %c0_i32_0 = arith.constant 0 : i32
    %c0_i32_1 = arith.constant 0 : i32
    return %c0_i32, %c0_i32_0 : i32, i32
  }
  func.func @transform_4(%arg0: i32) -> (i32, i32) {
    %c0_i32 = arith.constant 0 : i32
    %c0_i32_0 = arith.constant 0 : i32
    %c0_i32_1 = arith.constant 0 : i32
    return %c0_i32, %c0_i32_0 : i32, i32
  }
  func.func @transform_5(%arg0: i32) -> (i32, i32) {
    %c0_i32 = arith.constant 0 : i32
    %c0_i32_0 = arith.constant 0 : i32
    %c0_i32_1 = arith.constant 0 : i32
    return %c0_i32, %c0_i32_0 : i32, i32
  }
  func.func @transform_6(%arg0: i32) -> (i32, i32) {
    %c0_i32 = arith.constant 0 : i32
    %c0_i32_0 = arith.constant 0 : i32
    %c0_i32_1 = arith.constant 0 : i32
    return %c0_i32, %c0_i32_0 : i32, i32
  }
  func.func @transform_7(%arg0: i32) -> (i32, i32) {
    %c0_i32 = arith.constant 0 : i32
    %c0_i32_0 = arith.constant 0 : i32
    %c0_i32_1 = arith.constant 0 : i32
    return %c0_i32, %c0_i32_0 : i32, i32
  }
  func.func @transform_8(%arg0: i32) -> (i32, i32) {
    %c0_i32 = arith.constant 0 : i32
    %c0_i32_0 = arith.constant 0 : i32
    %c0_i32_1 = arith.constant 0 : i32
    return %c0_i32, %c0_i32_0 : i32, i32
  }
  func.func @transform_9(%arg0: i32) -> (i32, i32) {
    %c0_i32 = arith.constant 0 : i32
    %c0_i32_0 = arith.constant 0 : i32
    %c0_i32_1 = arith.constant 0 : i32
    return %c0_i32, %c0_i32_0 : i32, i32
  }
  func.func @transform_10(%arg0: i32) -> (i32, i32) {
    %c0_i32 = arith.constant 0 : i32
    %c0_i32_0 = arith.constant 0 : i32
    %c0_i32_1 = arith.constant 0 : i32
    return %c0_i32, %c0_i32_0 : i32, i32
  }
  func.func @transform_11(%arg0: i32) -> (i32, i32) {
    %c0_i32 = arith.constant 0 : i32
    %c0_i32_0 = arith.constant 0 : i32
    %c0_i32_1 = arith.constant 0 : i32
    return %c0_i32, %c0_i32_0 : i32, i32
  }
  func.func @transform_12(%arg0: i32) -> (i32, i32) {
    %c0_i32 = arith.constant 0 : i32
    %c0_i32_0 = arith.constant 0 : i32
    %c0_i32_1 = arith.constant 0 : i32
    return %c0_i32, %c0_i32_0 : i32, i32
  }
  func.func @transform_13(%arg0: i32) -> (i32, i32) {
    %c0_i32 = arith.constant 0 : i32
    %c0_i32_0 = arith.constant 0 : i32
    %c0_i32_1 = arith.constant 0 : i32
    return %c0_i32, %c0_i32_0 : i32, i32
  }
  func.func @transform_14(%arg0: i32) -> (i32, i32) {
    %c0_i32 = arith.constant 0 : i32
    %c0_i32_0 = arith.constant 0 : i32
    %c0_i32_1 = arith.constant 0 : i32
    return %c0_i32, %c0_i32_0 : i32, i32
  }
  func.func @transform_15(%arg0: i32) -> (i32, i32) {
    %c0_i32 = arith.constant 0 : i32
    %c0_i32_0 = arith.constant 0 : i32
    %c0_i32_1 = arith.constant 0 : i32
    return %c0_i32, %c0_i32_0 : i32, i32
  }
  func.func @transform_16(%arg0: i32) -> (i32, i32) {
    %c0_i32 = arith.constant 0 : i32
    %c0_i32_0 = arith.constant 0 : i32
    %c0_i32_1 = arith.constant 0 : i32
    return %c0_i32, %c0_i32_0 : i32, i32
  }
  func.func @transform_17(%arg0: i32) -> (i32, i32) {
    %c0_i32 = arith.constant 0 : i32
    %c0_i32_0 = arith.constant 0 : i32
    %c0_i32_1 = arith.constant 0 : i32
    return %c0_i32, %c0_i32_0 : i32, i32
  }
  func.func @transform_18(%arg0: i32) -> (i32, i32) {
    %c0_i32 = arith.constant 0 : i32
    %c0_i32_0 = arith.constant 0 : i32
    %c0_i32_1 = arith.constant 0 : i32
    return %c0_i32, %c0_i32_0 : i32, i32
  }
  func.func @transform_19(%arg0: i32) -> (i32, i32) {
    %c0_i32 = arith.constant 0 : i32
    %c0_i32_0 = arith.constant 0 : i32
    %c0_i32_1 = arith.constant 0 : i32
    return %c0_i32, %c0_i32_0 : i32, i32
  }
  func.func @transform_20(%arg0: i32) -> (i32, i32) {
    %c0_i32 = arith.constant 0 : i32
    %c0_i32_0 = arith.constant 0 : i32
    %c0_i32_1 = arith.constant 0 : i32
    return %c0_i32, %c0_i32_0 : i32, i32
  }
  func.func @transform_21(%arg0: i32) -> (i32, i32) {
    %c0_i32 = arith.constant 0 : i32
    %c0_i32_0 = arith.constant 0 : i32
    %c0_i32_1 = arith.constant 0 : i32
    return %c0_i32, %c0_i32_0 : i32, i32
  }
  func.func @transform_22(%arg0: i32) -> (i32, i32) {
    %c0_i32 = arith.constant 0 : i32
    %c0_i32_0 = arith.constant 0 : i32
    %c0_i32_1 = arith.constant 0 : i32
    return %c0_i32, %c0_i32_0 : i32, i32
  }
  func.func @transform_23(%arg0: i32) -> (i32, i32) {
    %c0_i32 = arith.constant 0 : i32
    %c0_i32_0 = arith.constant 0 : i32
    return %arg0, %c0_i32 : i32, i32
  }
}

module attributes {stable_mosaic.version = 11 : i64} {
  func.func @_transformer_layer_kernel(%arg0: i32, %arg1: memref<2x16x128xf32, #tpu.memory_space<vmem>>, %arg2: memref<1x16x16xf32, #tpu.memory_space<vmem>>, %arg3: memref<128x128xbf16, #tpu.memory_space<vmem>>, %arg4: memref<1x128xf32, #tpu.memory_space<vmem>>, %arg5: memref<128x128xbf16, #tpu.memory_space<vmem>>, %arg6: memref<1x128xf32, #tpu.memory_space<vmem>>, %arg7: memref<128x128xbf16, #tpu.memory_space<vmem>>, %arg8: memref<1x128xf32, #tpu.memory_space<vmem>>, %arg9: memref<128x128xbf16, #tpu.memory_space<vmem>>, %arg10: memref<1x128xf32, #tpu.memory_space<vmem>>, %arg11: memref<1x128xf32, #tpu.memory_space<vmem>>, %arg12: memref<1x128xf32, #tpu.memory_space<vmem>>, %arg13: memref<16x8xf32, #tpu.memory_space<vmem>>, %arg14: memref<8x16xf32, #tpu.memory_space<vmem>>, %arg15: memref<1x128xf32, #tpu.memory_space<vmem>>, %arg16: memref<1x128xf32, #tpu.memory_space<vmem>>, %arg17: memref<1x128xf32, #tpu.memory_space<vmem>>, %arg18: memref<128x256xbf16, #tpu.memory_space<vmem>>, %arg19: memref<1x256xf32, #tpu.memory_space<vmem>>, %arg20: memref<256x128xbf16, #tpu.memory_space<vmem>>, %arg21: memref<1x128xf32, #tpu.memory_space<vmem>>, %arg22: memref<1x128xf32, #tpu.memory_space<vmem>>, %arg23: memref<1x128xf32, #tpu.memory_space<vmem>>, %arg24: memref<32x128xf32, #tpu.memory_space<vmem>>, %arg25: memref<32x128xf32, #tpu.memory_space<vmem>>) attributes {dimension_semantics = [#tpu.dimension_semantics<parallel>], iteration_bounds = array<i64: 4>, scalar_prefetch = 0 : i64, scratch_operands = 1 : i64, tpu.core_type = #tpu.core_type<tc>, window_params = [{transform_indices = @transform_0, window_bounds = array<i64: 2, 16, 128>}, {pipeline_mode = #tpu.pipeline_mode<synchronous>, transform_indices = @transform_1, window_bounds = array<i64: 1, 16, 16>}, {pipeline_mode = #tpu.pipeline_mode<synchronous>, transform_indices = @transform_2, window_bounds = array<i64: 128, 128>}, {pipeline_mode = #tpu.pipeline_mode<synchronous>, transform_indices = @transform_3, window_bounds = array<i64: 1, 128>}, {pipeline_mode = #tpu.pipeline_mode<synchronous>, transform_indices = @transform_4, window_bounds = array<i64: 128, 128>}, {pipeline_mode = #tpu.pipeline_mode<synchronous>, transform_indices = @transform_5, window_bounds = array<i64: 1, 128>}, {pipeline_mode = #tpu.pipeline_mode<synchronous>, transform_indices = @transform_6, window_bounds = array<i64: 128, 128>}, {pipeline_mode = #tpu.pipeline_mode<synchronous>, transform_indices = @transform_7, window_bounds = array<i64: 1, 128>}, {pipeline_mode = #tpu.pipeline_mode<synchronous>, transform_indices = @transform_8, window_bounds = array<i64: 128, 128>}, {pipeline_mode = #tpu.pipeline_mode<synchronous>, transform_indices = @transform_9, window_bounds = array<i64: 1, 128>}, {pipeline_mode = #tpu.pipeline_mode<synchronous>, transform_indices = @transform_10, window_bounds = array<i64: 1, 128>}, {pipeline_mode = #tpu.pipeline_mode<synchronous>, transform_indices = @transform_11, window_bounds = array<i64: 1, 128>}, {pipeline_mode = #tpu.pipeline_mode<synchronous>, transform_indices = @transform_12, window_bounds = array<i64: 16, 8>}, {pipeline_mode = #tpu.pipeline_mode<synchronous>, transform_indices = @transform_13, window_bounds = array<i64: 8, 16>}, {pipeline_mode = #tpu.pipeline_mode<synchronous>, transform_indices = @transform_14, window_bounds = array<i64: 1, 128>}, {pipeline_mode = #tpu.pipeline_mode<synchronous>, transform_indices = @transform_15, window_bounds = array<i64: 1, 128>}, {pipeline_mode = #tpu.pipeline_mode<synchronous>, transform_indices = @transform_16, window_bounds = array<i64: 1, 128>}, {pipeline_mode = #tpu.pipeline_mode<synchronous>, transform_indices = @transform_17, window_bounds = array<i64: 128, 256>}, {pipeline_mode = #tpu.pipeline_mode<synchronous>, transform_indices = @transform_18, window_bounds = array<i64: 1, 256>}, {pipeline_mode = #tpu.pipeline_mode<synchronous>, transform_indices = @transform_19, window_bounds = array<i64: 256, 128>}, {pipeline_mode = #tpu.pipeline_mode<synchronous>, transform_indices = @transform_20, window_bounds = array<i64: 1, 128>}, {pipeline_mode = #tpu.pipeline_mode<synchronous>, transform_indices = @transform_21, window_bounds = array<i64: 1, 128>}, {pipeline_mode = #tpu.pipeline_mode<synchronous>, transform_indices = @transform_22, window_bounds = array<i64: 1, 128>}, {transform_indices = @transform_23, window_bounds = array<i64: 32, 128>}]} {
    %c0 = arith.constant 0 : index
    %c0_0 = arith.constant 0 : index
    %c0_1 = arith.constant 0 : index
    %0 = vector.load %arg1[%c0, %c0_0, %c0_1] : memref<2x16x128xf32, #tpu.memory_space<vmem>>, vector<2x16x128xf32>
    %1 = vector.shape_cast %0 : vector<2x16x128xf32> to vector<32x128xf32>
    %2 = arith.truncf %1 : vector<32x128xf32> to vector<32x128xbf16>
    %c0_2 = arith.constant 0 : index
    %c0_3 = arith.constant 0 : index
    %3 = vector.load %arg3[%c0_2, %c0_3] : memref<128x128xbf16, #tpu.memory_space<vmem>>, vector<128x128xbf16>
    %cst = arith.constant dense<0.000000e+00> : vector<32x128xf32>
    %4 = tpu.matmul %2, %3, %cst {dimension_numbers = #tpu.dot_dimension_numbers<[1], [0], [0], [1], [0, 0, 1, 1], [], []>} : vector<32x128xbf16>, vector<128x128xbf16>, vector<32x128xf32> -> vector<32x128xf32>
    %c0_4 = arith.constant 0 : index
    %c0_5 = arith.constant 0 : index
    %5 = vector.load %arg4[%c0_4, %c0_5] : memref<1x128xf32, #tpu.memory_space<vmem>>, vector<1x128xf32>
    %6 = vector.broadcast %5 : vector<1x128xf32> to vector<32x128xf32>
    %7 = arith.addf %4, %6 : vector<32x128xf32>
    %cst_6 = arith.constant 1.250000e-01 : f32
    %8 = vector.broadcast %cst_6 : f32 to vector<32x128xf32>
    %9 = arith.mulf %7, %8 : vector<32x128xf32>
    %c0_7 = arith.constant 0 : index
    %c0_8 = arith.constant 0 : index
    %10 = vector.load %arg5[%c0_7, %c0_8] : memref<128x128xbf16, #tpu.memory_space<vmem>>, vector<128x128xbf16>
    %cst_9 = arith.constant dense<0.000000e+00> : vector<32x128xf32>
    %11 = tpu.matmul %2, %10, %cst_9 {dimension_numbers = #tpu.dot_dimension_numbers<[1], [0], [0], [1], [0, 0, 1, 1], [], []>} : vector<32x128xbf16>, vector<128x128xbf16>, vector<32x128xf32> -> vector<32x128xf32>
    %c0_10 = arith.constant 0 : index
    %c0_11 = arith.constant 0 : index
    %12 = vector.load %arg6[%c0_10, %c0_11] : memref<1x128xf32, #tpu.memory_space<vmem>>, vector<1x128xf32>
    %13 = vector.broadcast %12 : vector<1x128xf32> to vector<32x128xf32>
    %14 = arith.addf %11, %13 : vector<32x128xf32>
    %c0_12 = arith.constant 0 : index
    %c0_13 = arith.constant 0 : index
    %15 = vector.load %arg7[%c0_12, %c0_13] : memref<128x128xbf16, #tpu.memory_space<vmem>>, vector<128x128xbf16>
    %cst_14 = arith.constant dense<0.000000e+00> : vector<32x128xf32>
    %16 = tpu.matmul %2, %15, %cst_14 {dimension_numbers = #tpu.dot_dimension_numbers<[1], [0], [0], [1], [0, 0, 1, 1], [], []>} : vector<32x128xbf16>, vector<128x128xbf16>, vector<32x128xf32> -> vector<32x128xf32>
    %c0_15 = arith.constant 0 : index
    %c0_16 = arith.constant 0 : index
    %17 = vector.load %arg8[%c0_15, %c0_16] : memref<1x128xf32, #tpu.memory_space<vmem>>, vector<1x128xf32>
    %18 = vector.broadcast %17 : vector<1x128xf32> to vector<32x128xf32>
    %19 = arith.addf %16, %18 : vector<32x128xf32>
    %20 = arith.truncf %9 : vector<32x128xf32> to vector<32x128xbf16>
    %21 = vector.shape_cast %20 : vector<32x128xbf16> to vector<2x16x128xbf16>
    %22 = arith.truncf %14 : vector<32x128xf32> to vector<32x128xbf16>
    %23 = vector.shape_cast %22 : vector<32x128xbf16> to vector<2x16x128xbf16>
    %24 = arith.truncf %19 : vector<32x128xf32> to vector<32x128xbf16>
    %25 = vector.shape_cast %24 : vector<32x128xbf16> to vector<2x16x128xbf16>
    %c0_17 = arith.constant 0 : index
    %c0_18 = arith.constant 0 : index
    %c0_19 = arith.constant 0 : index
    %26 = vector.load %arg2[%c0_17, %c0_18, %c0_19] : memref<1x16x16xf32, #tpu.memory_space<vmem>>, vector<1x16x16xf32>
    %27 = vector.shape_cast %26 : vector<1x16x16xf32> to vector<1x16x16xf32>
    %28 = vector.broadcast %27 : vector<1x16x16xf32> to vector<2x16x16xf32>
    %29 = vector.extract_strided_slice %21 {offsets = [0, 0, 0], sizes = [2, 16, 64], strides = [1, 1, 1]} : vector<2x16x128xbf16> to vector<2x16x64xbf16>
    %30 = vector.extract_strided_slice %23 {offsets = [0, 0, 0], sizes = [2, 16, 64], strides = [1, 1, 1]} : vector<2x16x128xbf16> to vector<2x16x64xbf16>
    "tpu.trace_start"() <{level = 10 : i32, message = "bnd,bmd->bnm"}> : () -> ()
    %cst_20 = arith.constant dense<0.000000e+00> : vector<2x16x16xf32>
    %31 = tpu.matmul %29, %30, %cst_20 {dimension_numbers = #tpu.dot_dimension_numbers<[2], [2], [1], [1], [0, 0, 0, 1, 1, 1], [0], [0]>} : vector<2x16x64xbf16>, vector<2x16x64xbf16>, vector<2x16x16xf32> -> vector<2x16x16xf32>
    "tpu.trace_stop"() : () -> ()
    %32 = arith.addf %31, %28 : vector<2x16x16xf32>
    %cst_21 = arith.constant dense<0xFF800000> : vector<2x16xf32>
    %33 = vector.multi_reduction <maximumf>, %32, %cst_21 [2] : vector<2x16x16xf32> to vector<2x16xf32>
    %34 = vector.shape_cast %33 : vector<2x16xf32> to vector<2x16x1xf32>
    %35 = vector.broadcast %34 : vector<2x16x1xf32> to vector<2x16x16xf32>
    %36 = arith.subf %32, %35 : vector<2x16x16xf32>
    %37 = math.exp %36 : vector<2x16x16xf32>
    %cst_22 = arith.constant dense<0.000000e+00> : vector<2x16xf32>
    %38 = vector.multi_reduction <add>, %37, %cst_22 [2] : vector<2x16x16xf32> to vector<2x16xf32>
    %39 = vector.shape_cast %38 : vector<2x16xf32> to vector<2x16x1xf32>
    %40 = tpu.reciprocal %39 {approx = true} : vector<2x16x1xf32> -> vector<2x16x1xf32>
    %41 = arith.mulf %39, %40 : vector<2x16x1xf32>
    %cst_23 = arith.constant 2.000000e+00 : f32
    %42 = vector.broadcast %cst_23 : f32 to vector<2x16x1xf32>
    %43 = arith.subf %42, %41 : vector<2x16x1xf32>
    %44 = arith.mulf %40, %43 : vector<2x16x1xf32>
    %45 = vector.broadcast %44 : vector<2x16x1xf32> to vector<2x16x16xf32>
    %46 = arith.mulf %37, %45 : vector<2x16x16xf32>
    %47 = arith.truncf %46 : vector<2x16x16xf32> to vector<2x16x16xbf16>
    %48 = vector.extract_strided_slice %25 {offsets = [0, 0, 0], sizes = [2, 16, 64], strides = [1, 1, 1]} : vector<2x16x128xbf16> to vector<2x16x64xbf16>
    "tpu.trace_start"() <{level = 10 : i32, message = "bnm,bmd->bnd"}> : () -> ()
    %cst_24 = arith.constant dense<0.000000e+00> : vector<2x16x64xf32>
    %49 = tpu.matmul %47, %48, %cst_24 {dimension_numbers = #tpu.dot_dimension_numbers<[2], [1], [1], [2], [0, 0, 0, 1, 1, 2], [0], [0]>} : vector<2x16x16xbf16>, vector<2x16x64xbf16>, vector<2x16x64xf32> -> vector<2x16x64xf32>
    "tpu.trace_stop"() : () -> ()
    %50 = vector.shape_cast %49 : vector<2x16x64xf32> to vector<32x64xf32>
    %c0_25 = arith.constant 0 : index
    %c0_26 = arith.constant 0 : index
    %51 = vector.load %arg25[%c0_25, %c0_26] : memref<32x128xf32, #tpu.memory_space<vmem>>, vector<32x64xf32>
    tpu.vector_store %arg25[%c0_25, %c0_26], %50 {strides = array<i32>} : memref<32x128xf32, #tpu.memory_space<vmem>>, vector<32x64xf32>,
    %52 = vector.extract_strided_slice %21 {offsets = [0, 0, 64], sizes = [2, 16, 64], strides = [1, 1, 1]} : vector<2x16x128xbf16> to vector<2x16x64xbf16>
    %53 = vector.extract_strided_slice %23 {offsets = [0, 0, 64], sizes = [2, 16, 64], strides = [1, 1, 1]} : vector<2x16x128xbf16> to vector<2x16x64xbf16>
    "tpu.trace_start"() <{level = 10 : i32, message = "bnd,bmd->bnm"}> : () -> ()
    %cst_27 = arith.constant dense<0.000000e+00> : vector<2x16x16xf32>
    %54 = tpu.matmul %52, %53, %cst_27 {dimension_numbers = #tpu.dot_dimension_numbers<[2], [2], [1], [1], [0, 0, 0, 1, 1, 1], [0], [0]>} : vector<2x16x64xbf16>, vector<2x16x64xbf16>, vector<2x16x16xf32> -> vector<2x16x16xf32>
    "tpu.trace_stop"() : () -> ()
    %55 = arith.addf %54, %28 : vector<2x16x16xf32>
    %cst_28 = arith.constant dense<0xFF800000> : vector<2x16xf32>
    %56 = vector.multi_reduction <maximumf>, %55, %cst_28 [2] : vector<2x16x16xf32> to vector<2x16xf32>
    %57 = vector.shape_cast %56 : vector<2x16xf32> to vector<2x16x1xf32>
    %58 = vector.broadcast %57 : vector<2x16x1xf32> to vector<2x16x16xf32>
    %59 = arith.subf %55, %58 : vector<2x16x16xf32>
    %60 = math.exp %59 : vector<2x16x16xf32>
    %cst_29 = arith.constant dense<0.000000e+00> : vector<2x16xf32>
    %61 = vector.multi_reduction <add>, %60, %cst_29 [2] : vector<2x16x16xf32> to vector<2x16xf32>
    %62 = vector.shape_cast %61 : vector<2x16xf32> to vector<2x16x1xf32>
    %63 = tpu.reciprocal %62 {approx = true} : vector<2x16x1xf32> -> vector<2x16x1xf32>
    %64 = arith.mulf %62, %63 : vector<2x16x1xf32>
    %cst_30 = arith.constant 2.000000e+00 : f32
    %65 = vector.broadcast %cst_30 : f32 to vector<2x16x1xf32>
    %66 = arith.subf %65, %64 : vector<2x16x1xf32>
    %67 = arith.mulf %63, %66 : vector<2x16x1xf32>
    %68 = vector.broadcast %67 : vector<2x16x1xf32> to vector<2x16x16xf32>
    %69 = arith.mulf %60, %68 : vector<2x16x16xf32>
    %70 = arith.truncf %69 : vector<2x16x16xf32> to vector<2x16x16xbf16>
    %71 = vector.extract_strided_slice %25 {offsets = [0, 0, 64], sizes = [2, 16, 64], strides = [1, 1, 1]} : vector<2x16x128xbf16> to vector<2x16x64xbf16>
    "tpu.trace_start"() <{level = 10 : i32, message = "bnm,bmd->bnd"}> : () -> ()
    %cst_31 = arith.constant dense<0.000000e+00> : vector<2x16x64xf32>
    %72 = tpu.matmul %70, %71, %cst_31 {dimension_numbers = #tpu.dot_dimension_numbers<[2], [1], [1], [2], [0, 0, 0, 1, 1, 2], [0], [0]>} : vector<2x16x16xbf16>, vector<2x16x64xbf16>, vector<2x16x64xf32> -> vector<2x16x64xf32>
    "tpu.trace_stop"() : () -> ()
    %73 = vector.shape_cast %72 : vector<2x16x64xf32> to vector<32x64xf32>
    %c0_32 = arith.constant 0 : index
    %c64 = arith.constant 64 : index
    %74 = vector.load %arg25[%c0_32, %c64] : memref<32x128xf32, #tpu.memory_space<vmem>>, vector<32x64xf32>
    tpu.vector_store %arg25[%c0_32, %c64], %73 {strides = array<i32>} : memref<32x128xf32, #tpu.memory_space<vmem>>, vector<32x64xf32>,
    %c0_33 = arith.constant 0 : index
    %c0_34 = arith.constant 0 : index
    %75 = vector.load %arg25[%c0_33, %c0_34] : memref<32x128xf32, #tpu.memory_space<vmem>>, vector<32x128xf32>
    %76 = arith.truncf %75 : vector<32x128xf32> to vector<32x128xbf16>
    %c0_35 = arith.constant 0 : index
    %c0_36 = arith.constant 0 : index
    %77 = vector.load %arg9[%c0_35, %c0_36] : memref<128x128xbf16, #tpu.memory_space<vmem>>, vector<128x128xbf16>
    %cst_37 = arith.constant dense<0.000000e+00> : vector<32x128xf32>
    %78 = tpu.matmul %76, %77, %cst_37 {dimension_numbers = #tpu.dot_dimension_numbers<[1], [0], [0], [1], [0, 0, 1, 1], [], []>} : vector<32x128xbf16>, vector<128x128xbf16>, vector<32x128xf32> -> vector<32x128xf32>
    %c0_38 = arith.constant 0 : index
    %c0_39 = arith.constant 0 : index
    %79 = vector.load %arg10[%c0_38, %c0_39] : memref<1x128xf32, #tpu.memory_space<vmem>>, vector<1x128xf32>
    %80 = vector.broadcast %79 : vector<1x128xf32> to vector<32x128xf32>
    %81 = arith.addf %78, %80 : vector<32x128xf32>
    %82 = arith.addf %81, %1 : vector<32x128xf32>
    %c0_40 = arith.constant 0 : index
    %c0_41 = arith.constant 0 : index
    %83 = vector.load %arg11[%c0_40, %c0_41] : memref<1x128xf32, #tpu.memory_space<vmem>>, vector<1x128xf32>
    %c0_42 = arith.constant 0 : index
    %c0_43 = arith.constant 0 : index
    %84 = vector.load %arg12[%c0_42, %c0_43] : memref<1x128xf32, #tpu.memory_space<vmem>>, vector<1x128xf32>
    %cst_44 = arith.constant dense<0.000000e+00> : vector<32xf32>
    %85 = vector.multi_reduction <add>, %82, %cst_44 [1] : vector<32x128xf32> to vector<32xf32>
    %86 = vector.shape_cast %85 : vector<32xf32> to vector<32x1xf32>
    %cst_45 = arith.constant 1.280000e+02 : f32
    %87 = vector.broadcast %cst_45 : f32 to vector<32x1xf32>
    %88 = arith.divf %86, %87 : vector<32x1xf32>
    %89 = vector.broadcast %88 : vector<32x1xf32> to vector<32x128xf32>
    %90 = arith.subf %82, %89 : vector<32x128xf32>
    %91 = arith.mulf %90, %90 : vector<32x128xf32>
    %cst_46 = arith.constant dense<0.000000e+00> : vector<32xf32>
    %92 = vector.multi_reduction <add>, %91, %cst_46 [1] : vector<32x128xf32> to vector<32xf32>
    %93 = vector.shape_cast %92 : vector<32xf32> to vector<32x1xf32>
    %cst_47 = arith.constant 1.280000e+02 : f32
    %94 = vector.broadcast %cst_47 : f32 to vector<32x1xf32>
    %95 = arith.divf %93, %94 : vector<32x1xf32>
    %cst_48 = arith.constant 9.99999996E-13 : f32
    %96 = vector.broadcast %cst_48 : f32 to vector<32x1xf32>
    %97 = arith.addf %95, %96 : vector<32x1xf32>
    %98 = math.rsqrt %97 : vector<32x1xf32>
    %99 = vector.broadcast %98 : vector<32x1xf32> to vector<32x128xf32>
    %100 = arith.mulf %90, %99 : vector<32x128xf32>
    %101 = vector.broadcast %83 : vector<1x128xf32> to vector<32x128xf32>
    %102 = arith.mulf %100, %101 : vector<32x128xf32>
    %103 = vector.broadcast %84 : vector<1x128xf32> to vector<32x128xf32>
    %104 = arith.addf %102, %103 : vector<32x128xf32>
    %c0_49 = arith.constant 0 : index
    %c0_50 = arith.constant 0 : index
    %105 = vector.load %arg14[%c0_49, %c0_50] : memref<8x16xf32, #tpu.memory_space<vmem>>, vector<8x16xf32>
    %c0_51 = arith.constant 0 : index
    %c0_52 = arith.constant 0 : index
    %106 = vector.load %arg13[%c0_51, %c0_52] : memref<16x8xf32, #tpu.memory_space<vmem>>, vector<16x8xf32>
    %107 = vector.extract_strided_slice %0 {offsets = [0, 0, 0], sizes = [1, 16, 128], strides = [1, 1, 1]} : vector<2x16x128xf32> to vector<1x16x128xf32>
    %108 = vector.shape_cast %107 : vector<1x16x128xf32> to vector<16x128xf32>
    %cst_53 = arith.constant dense<0.000000e+00> : vector<8x128xf32>
    %109 = tpu.matmul %105, %108, %cst_53 {dimension_numbers = #tpu.dot_dimension_numbers<[1], [0], [0], [1], [0, 0, 1, 1], [], []>} : vector<8x16xf32>, vector<16x128xf32>, vector<8x128xf32> -> vector<8x128xf32>
    %cst_54 = arith.constant dense<0.000000e+00> : vector<16x128xf32>
    %110 = tpu.matmul %106, %109, %cst_54 {dimension_numbers = #tpu.dot_dimension_numbers<[1], [0], [0], [1], [0, 0, 1, 1], [], []>} : vector<16x8xf32>, vector<8x128xf32>, vector<16x128xf32> -> vector<16x128xf32>
    %111 = vector.extract_strided_slice %0 {offsets = [1, 0, 0], sizes = [1, 16, 128], strides = [1, 1, 1]} : vector<2x16x128xf32> to vector<1x16x128xf32>
    %112 = vector.shape_cast %111 : vector<1x16x128xf32> to vector<16x128xf32>
    %cst_55 = arith.constant dense<0.000000e+00> : vector<8x128xf32>
    %113 = tpu.matmul %105, %112, %cst_55 {dimension_numbers = #tpu.dot_dimension_numbers<[1], [0], [0], [1], [0, 0, 1, 1], [], []>} : vector<8x16xf32>, vector<16x128xf32>, vector<8x128xf32> -> vector<8x128xf32>
    %cst_56 = arith.constant dense<0.000000e+00> : vector<16x128xf32>
    %114 = tpu.matmul %106, %113, %cst_56 {dimension_numbers = #tpu.dot_dimension_numbers<[1], [0], [0], [1], [0, 0, 1, 1], [], []>} : vector<16x8xf32>, vector<8x128xf32>, vector<16x128xf32> -> vector<16x128xf32>
    %115 = tpu.concatenate %110, %114 in 0 : vector<16x128xf32>, vector<16x128xf32> -> vector<32x128xf32>
    %c0_57 = arith.constant 0 : index
    %c0_58 = arith.constant 0 : index
    %116 = vector.load %arg15[%c0_57, %c0_58] : memref<1x128xf32, #tpu.memory_space<vmem>>, vector<1x128xf32>
    %117 = arith.mulf %116, %116 : vector<1x128xf32>
    %cst_59 = arith.constant 1.000000e+00 : f32
    %118 = vector.broadcast %cst_59 : f32 to vector<1x128xf32>
    %119 = arith.subf %118, %117 : vector<1x128xf32>
    %120 = vector.broadcast %119 : vector<1x128xf32> to vector<32x128xf32>
    %121 = arith.mulf %120, %115 : vector<32x128xf32>
    %cst_60 = arith.constant 1.000000e+00 : f32
    %122 = vector.broadcast %cst_60 : f32 to vector<1x128xf32>
    %123 = arith.addf %122, %117 : vector<1x128xf32>
    %124 = vector.broadcast %123 : vector<1x128xf32> to vector<32x128xf32>
    %125 = arith.mulf %124, %1 : vector<32x128xf32>
    %126 = arith.addf %121, %125 : vector<32x128xf32>
    %c0_61 = arith.constant 0 : index
    %c0_62 = arith.constant 0 : index
    %127 = vector.load %arg16[%c0_61, %c0_62] : memref<1x128xf32, #tpu.memory_space<vmem>>, vector<1x128xf32>
    %c0_63 = arith.constant 0 : index
    %c0_64 = arith.constant 0 : index
    %128 = vector.load %arg17[%c0_63, %c0_64] : memref<1x128xf32, #tpu.memory_space<vmem>>, vector<1x128xf32>
    %cst_65 = arith.constant dense<0.000000e+00> : vector<32xf32>
    %129 = vector.multi_reduction <add>, %126, %cst_65 [1] : vector<32x128xf32> to vector<32xf32>
    %130 = vector.shape_cast %129 : vector<32xf32> to vector<32x1xf32>
    %cst_66 = arith.constant 1.280000e+02 : f32
    %131 = vector.broadcast %cst_66 : f32 to vector<32x1xf32>
    %132 = arith.divf %130, %131 : vector<32x1xf32>
    %133 = vector.broadcast %132 : vector<32x1xf32> to vector<32x128xf32>
    %134 = arith.subf %126, %133 : vector<32x128xf32>
    %135 = arith.mulf %134, %134 : vector<32x128xf32>
    %cst_67 = arith.constant dense<0.000000e+00> : vector<32xf32>
    %136 = vector.multi_reduction <add>, %135, %cst_67 [1] : vector<32x128xf32> to vector<32xf32>
    %137 = vector.shape_cast %136 : vector<32xf32> to vector<32x1xf32>
    %cst_68 = arith.constant 1.280000e+02 : f32
    %138 = vector.broadcast %cst_68 : f32 to vector<32x1xf32>
    %139 = arith.divf %137, %138 : vector<32x1xf32>
    %cst_69 = arith.constant 9.99999996E-13 : f32
    %140 = vector.broadcast %cst_69 : f32 to vector<32x1xf32>
    %141 = arith.addf %139, %140 : vector<32x1xf32>
    %142 = math.rsqrt %141 : vector<32x1xf32>
    %143 = vector.broadcast %142 : vector<32x1xf32> to vector<32x128xf32>
    %144 = arith.mulf %134, %143 : vector<32x128xf32>
    %145 = vector.broadcast %127 : vector<1x128xf32> to vector<32x128xf32>
    %146 = arith.mulf %144, %145 : vector<32x128xf32>
    %147 = vector.broadcast %128 : vector<1x128xf32> to vector<32x128xf32>
    %148 = arith.addf %146, %147 : vector<32x128xf32>
    %149 = arith.addf %148, %104 : vector<32x128xf32>
    %cst_70 = arith.constant 5.000000e-01 : f32
    %150 = vector.broadcast %cst_70 : f32 to vector<32x128xf32>
    %151 = arith.mulf %150, %149 : vector<32x128xf32>
    %152 = arith.truncf %151 : vector<32x128xf32> to vector<32x128xbf16>
    %c0_71 = arith.constant 0 : index
    %c0_72 = arith.constant 0 : index
    %153 = vector.load %arg18[%c0_71, %c0_72] : memref<128x256xbf16, #tpu.memory_space<vmem>>, vector<128x256xbf16>
    %cst_73 = arith.constant dense<0.000000e+00> : vector<32x256xf32>
    %154 = tpu.matmul %152, %153, %cst_73 {dimension_numbers = #tpu.dot_dimension_numbers<[1], [0], [0], [1], [0, 0, 1, 1], [], []>} : vector<32x128xbf16>, vector<128x256xbf16>, vector<32x256xf32> -> vector<32x256xf32>
    %c0_74 = arith.constant 0 : index
    %c0_75 = arith.constant 0 : index
    %155 = vector.load %arg19[%c0_74, %c0_75] : memref<1x256xf32, #tpu.memory_space<vmem>>, vector<1x256xf32>
    %156 = vector.broadcast %155 : vector<1x256xf32> to vector<32x256xf32>
    %157 = arith.addf %154, %156 : vector<32x256xf32>
    %cst_76 = arith.constant 5.000000e-01 : f32
    %158 = vector.broadcast %cst_76 : f32 to vector<32x256xf32>
    %159 = arith.mulf %157, %158 : vector<32x256xf32>
    %cst_77 = arith.constant 0.707106769 : f32
    %160 = vector.broadcast %cst_77 : f32 to vector<32x256xf32>
    %161 = arith.mulf %157, %160 : vector<32x256xf32>
    %162 = math.absf %161 : vector<32x256xf32>
    %cst_78 = arith.constant 0.327591091 : f32
    %163 = vector.broadcast %cst_78 : f32 to vector<32x256xf32>
    %164 = arith.mulf %163, %162 : vector<32x256xf32>
    %cst_79 = arith.constant 1.000000e+00 : f32
    %165 = vector.broadcast %cst_79 : f32 to vector<32x256xf32>
    %166 = arith.addf %165, %164 : vector<32x256xf32>
    %167 = tpu.reciprocal %166 {approx = true} : vector<32x256xf32> -> vector<32x256xf32>
    %168 = arith.mulf %166, %167 : vector<32x256xf32>
    %cst_80 = arith.constant 2.000000e+00 : f32
    %169 = vector.broadcast %cst_80 : f32 to vector<32x256xf32>
    %170 = arith.subf %169, %168 : vector<32x256xf32>
    %171 = arith.mulf %167, %170 : vector<32x256xf32>
    %cst_81 = arith.constant 1.06140542 : f32
    %172 = vector.broadcast %cst_81 : f32 to vector<32x256xf32>
    %173 = arith.mulf %172, %171 : vector<32x256xf32>
    %cst_82 = arith.constant -1.45315206 : f32
    %174 = vector.broadcast %cst_82 : f32 to vector<32x256xf32>
    %175 = arith.addf %173, %174 : vector<32x256xf32>
    %176 = arith.mulf %175, %171 : vector<32x256xf32>
    %cst_83 = arith.constant 1.42141378 : f32
    %177 = vector.broadcast %cst_83 : f32 to vector<32x256xf32>
    %178 = arith.addf %176, %177 : vector<32x256xf32>
    %179 = arith.mulf %178, %171 : vector<32x256xf32>
    %cst_84 = arith.constant -0.284496725 : f32
    %180 = vector.broadcast %cst_84 : f32 to vector<32x256xf32>
    %181 = arith.addf %179, %180 : vector<32x256xf32>
    %182 = arith.mulf %181, %171 : vector<32x256xf32>
    %cst_85 = arith.constant 0.254829586 : f32
    %183 = vector.broadcast %cst_85 : f32 to vector<32x256xf32>
    %184 = arith.addf %182, %183 : vector<32x256xf32>
    %185 = arith.mulf %184, %171 : vector<32x256xf32>
    %cst_86 = arith.constant 0.000000e+00 : f32
    %186 = vector.broadcast %cst_86 : f32 to vector<32x256xf32>
    %187 = arith.subf %186, %162 : vector<32x256xf32>
    %188 = arith.mulf %187, %162 : vector<32x256xf32>
    %189 = math.exp %188 : vector<32x256xf32>
    %190 = arith.mulf %185, %189 : vector<32x256xf32>
    %cst_87 = arith.constant 1.000000e+00 : f32
    %191 = vector.broadcast %cst_87 : f32 to vector<32x256xf32>
    %192 = arith.subf %191, %190 : vector<32x256xf32>
    %cst_88 = arith.constant 0.000000e+00 : f32
    %193 = vector.broadcast %cst_88 : f32 to vector<32x256xf32>
    %194 = arith.cmpf olt, %161, %193 : vector<32x256xf32>
    %cst_89 = arith.constant 0.000000e+00 : f32
    %195 = vector.broadcast %cst_89 : f32 to vector<32x256xf32>
    %196 = arith.subf %195, %192 : vector<32x256xf32>
    %197 = arith.select %194, %196, %192 : vector<32x256xi1>, vector<32x256xf32>
    %cst_90 = arith.constant 1.000000e+00 : f32
    %198 = vector.broadcast %cst_90 : f32 to vector<32x256xf32>
    %199 = arith.addf %198, %197 : vector<32x256xf32>
    %200 = arith.mulf %159, %199 : vector<32x256xf32>
    %201 = arith.truncf %200 : vector<32x256xf32> to vector<32x256xbf16>
    %c0_91 = arith.constant 0 : index
    %c0_92 = arith.constant 0 : index
    %202 = vector.load %arg20[%c0_91, %c0_92] : memref<256x128xbf16, #tpu.memory_space<vmem>>, vector<256x128xbf16>
    %cst_93 = arith.constant dense<0.000000e+00> : vector<32x128xf32>
    %203 = tpu.matmul %201, %202, %cst_93 {dimension_numbers = #tpu.dot_dimension_numbers<[1], [0], [0], [1], [0, 0, 1, 1], [], []>} : vector<32x256xbf16>, vector<256x128xbf16>, vector<32x128xf32> -> vector<32x128xf32>
    %c0_94 = arith.constant 0 : index
    %c0_95 = arith.constant 0 : index
    %204 = vector.load %arg21[%c0_94, %c0_95] : memref<1x128xf32, #tpu.memory_space<vmem>>, vector<1x128xf32>
    %205 = vector.broadcast %204 : vector<1x128xf32> to vector<32x128xf32>
    %206 = arith.addf %203, %205 : vector<32x128xf32>
    %207 = arith.addf %206, %151 : vector<32x128xf32>
    %c0_96 = arith.constant 0 : index
    %c0_97 = arith.constant 0 : index
    %208 = vector.load %arg22[%c0_96, %c0_97] : memref<1x128xf32, #tpu.memory_space<vmem>>, vector<1x128xf32>
    %c0_98 = arith.constant 0 : index
    %c0_99 = arith.constant 0 : index
    %209 = vector.load %arg23[%c0_98, %c0_99] : memref<1x128xf32, #tpu.memory_space<vmem>>, vector<1x128xf32>
    %cst_100 = arith.constant dense<0.000000e+00> : vector<32xf32>
    %210 = vector.multi_reduction <add>, %207, %cst_100 [1] : vector<32x128xf32> to vector<32xf32>
    %211 = vector.shape_cast %210 : vector<32xf32> to vector<32x1xf32>
    %cst_101 = arith.constant 1.280000e+02 : f32
    %212 = vector.broadcast %cst_101 : f32 to vector<32x1xf32>
    %213 = arith.divf %211, %212 : vector<32x1xf32>
    %214 = vector.broadcast %213 : vector<32x1xf32> to vector<32x128xf32>
    %215 = arith.subf %207, %214 : vector<32x128xf32>
    %216 = arith.mulf %215, %215 : vector<32x128xf32>
    %cst_102 = arith.constant dense<0.000000e+00> : vector<32xf32>
    %217 = vector.multi_reduction <add>, %216, %cst_102 [1] : vector<32x128xf32> to vector<32xf32>
    %218 = vector.shape_cast %217 : vector<32xf32> to vector<32x1xf32>
    %cst_103 = arith.constant 1.280000e+02 : f32
    %219 = vector.broadcast %cst_103 : f32 to vector<32x1xf32>
    %220 = arith.divf %218, %219 : vector<32x1xf32>
    %cst_104 = arith.constant 9.99999996E-13 : f32
    %221 = vector.broadcast %cst_104 : f32 to vector<32x1xf32>
    %222 = arith.addf %220, %221 : vector<32x1xf32>
    %223 = math.rsqrt %222 : vector<32x1xf32>
    %224 = vector.broadcast %223 : vector<32x1xf32> to vector<32x128xf32>
    %225 = arith.mulf %215, %224 : vector<32x128xf32>
    %226 = vector.broadcast %208 : vector<1x128xf32> to vector<32x128xf32>
    %227 = arith.mulf %225, %226 : vector<32x128xf32>
    %228 = vector.broadcast %209 : vector<1x128xf32> to vector<32x128xf32>
    %229 = arith.addf %227, %228 : vector<32x128xf32>
    %c0_105 = arith.constant 0 : index
    %c0_106 = arith.constant 0 : index
    %230 = vector.load %arg24[%c0_105, %c0_106] : memref<32x128xf32, #tpu.memory_space<vmem>>, vector<32x128xf32>
    tpu.vector_store %arg24[%c0_105, %c0_106], %229 {strides = array<i32>} : memref<32x128xf32, #tpu.memory_space<vmem>>, vector<32x128xf32>,
    return
  }
  func.func @transform_0(%arg0: i32) -> (i32, i32, i32) {
    %c0_i32 = arith.constant 0 : i32
    %c0_i32_0 = arith.constant 0 : i32
    %c0_i32_1 = arith.constant 0 : i32
    return %arg0, %c0_i32, %c0_i32_0 : i32, i32, i32
  }
  func.func @transform_1(%arg0: i32) -> (i32, i32, i32) {
    %c0_i32 = arith.constant 0 : i32
    %c0_i32_0 = arith.constant 0 : i32
    %c0_i32_1 = arith.constant 0 : i32
    %c0_i32_2 = arith.constant 0 : i32
    return %c0_i32, %c0_i32_0, %c0_i32_1 : i32, i32, i32
  }
  func.func @transform_2(%arg0: i32) -> (i32, i32) {
    %c0_i32 = arith.constant 0 : i32
    %c0_i32_0 = arith.constant 0 : i32
    %c0_i32_1 = arith.constant 0 : i32
    return %c0_i32, %c0_i32_0 : i32, i32
  }
  func.func @transform_3(%arg0: i32) -> (i32, i32) {
    %c0_i32 = arith.constant 0 : i32
    %c0_i32_0 = arith.constant 0 : i32
    %c0_i32_1 = arith.constant 0 : i32
    return %c0_i32, %c0_i32_0 : i32, i32
  }
  func.func @transform_4(%arg0: i32) -> (i32, i32) {
    %c0_i32 = arith.constant 0 : i32
    %c0_i32_0 = arith.constant 0 : i32
    %c0_i32_1 = arith.constant 0 : i32
    return %c0_i32, %c0_i32_0 : i32, i32
  }
  func.func @transform_5(%arg0: i32) -> (i32, i32) {
    %c0_i32 = arith.constant 0 : i32
    %c0_i32_0 = arith.constant 0 : i32
    %c0_i32_1 = arith.constant 0 : i32
    return %c0_i32, %c0_i32_0 : i32, i32
  }
  func.func @transform_6(%arg0: i32) -> (i32, i32) {
    %c0_i32 = arith.constant 0 : i32
    %c0_i32_0 = arith.constant 0 : i32
    %c0_i32_1 = arith.constant 0 : i32
    return %c0_i32, %c0_i32_0 : i32, i32
  }
  func.func @transform_7(%arg0: i32) -> (i32, i32) {
    %c0_i32 = arith.constant 0 : i32
    %c0_i32_0 = arith.constant 0 : i32
    %c0_i32_1 = arith.constant 0 : i32
    return %c0_i32, %c0_i32_0 : i32, i32
  }
  func.func @transform_8(%arg0: i32) -> (i32, i32) {
    %c0_i32 = arith.constant 0 : i32
    %c0_i32_0 = arith.constant 0 : i32
    %c0_i32_1 = arith.constant 0 : i32
    return %c0_i32, %c0_i32_0 : i32, i32
  }
  func.func @transform_9(%arg0: i32) -> (i32, i32) {
    %c0_i32 = arith.constant 0 : i32
    %c0_i32_0 = arith.constant 0 : i32
    %c0_i32_1 = arith.constant 0 : i32
    return %c0_i32, %c0_i32_0 : i32, i32
  }
  func.func @transform_10(%arg0: i32) -> (i32, i32) {
    %c0_i32 = arith.constant 0 : i32
    %c0_i32_0 = arith.constant 0 : i32
    %c0_i32_1 = arith.constant 0 : i32
    return %c0_i32, %c0_i32_0 : i32, i32
  }
  func.func @transform_11(%arg0: i32) -> (i32, i32) {
    %c0_i32 = arith.constant 0 : i32
    %c0_i32_0 = arith.constant 0 : i32
    %c0_i32_1 = arith.constant 0 : i32
    return %c0_i32, %c0_i32_0 : i32, i32
  }
  func.func @transform_12(%arg0: i32) -> (i32, i32) {
    %c0_i32 = arith.constant 0 : i32
    %c0_i32_0 = arith.constant 0 : i32
    %c0_i32_1 = arith.constant 0 : i32
    return %c0_i32, %c0_i32_0 : i32, i32
  }
  func.func @transform_13(%arg0: i32) -> (i32, i32) {
    %c0_i32 = arith.constant 0 : i32
    %c0_i32_0 = arith.constant 0 : i32
    %c0_i32_1 = arith.constant 0 : i32
    return %c0_i32, %c0_i32_0 : i32, i32
  }
  func.func @transform_14(%arg0: i32) -> (i32, i32) {
    %c0_i32 = arith.constant 0 : i32
    %c0_i32_0 = arith.constant 0 : i32
    %c0_i32_1 = arith.constant 0 : i32
    return %c0_i32, %c0_i32_0 : i32, i32
  }
  func.func @transform_15(%arg0: i32) -> (i32, i32) {
    %c0_i32 = arith.constant 0 : i32
    %c0_i32_0 = arith.constant 0 : i32
    %c0_i32_1 = arith.constant 0 : i32
    return %c0_i32, %c0_i32_0 : i32, i32
  }
  func.func @transform_16(%arg0: i32) -> (i32, i32) {
    %c0_i32 = arith.constant 0 : i32
    %c0_i32_0 = arith.constant 0 : i32
    %c0_i32_1 = arith.constant 0 : i32
    return %c0_i32, %c0_i32_0 : i32, i32
  }
  func.func @transform_17(%arg0: i32) -> (i32, i32) {
    %c0_i32 = arith.constant 0 : i32
    %c0_i32_0 = arith.constant 0 : i32
    %c0_i32_1 = arith.constant 0 : i32
    return %c0_i32, %c0_i32_0 : i32, i32
  }
  func.func @transform_18(%arg0: i32) -> (i32, i32) {
    %c0_i32 = arith.constant 0 : i32
    %c0_i32_0 = arith.constant 0 : i32
    %c0_i32_1 = arith.constant 0 : i32
    return %c0_i32, %c0_i32_0 : i32, i32
  }
  func.func @transform_19(%arg0: i32) -> (i32, i32) {
    %c0_i32 = arith.constant 0 : i32
    %c0_i32_0 = arith.constant 0 : i32
    %c0_i32_1 = arith.constant 0 : i32
    return %c0_i32, %c0_i32_0 : i32, i32
  }
  func.func @transform_20(%arg0: i32) -> (i32, i32) {
    %c0_i32 = arith.constant 0 : i32
    %c0_i32_0 = arith.constant 0 : i32
    %c0_i32_1 = arith.constant 0 : i32
    return %c0_i32, %c0_i32_0 : i32, i32
  }
  func.func @transform_21(%arg0: i32) -> (i32, i32) {
    %c0_i32 = arith.constant 0 : i32
    %c0_i32_0 = arith.constant 0 : i32
    %c0_i32_1 = arith.constant 0 : i32
    return %c0_i32, %c0_i32_0 : i32, i32
  }
  func.func @transform_22(%arg0: i32) -> (i32, i32) {
    %c0_i32 = arith.constant 0 : i32
    %c0_i32_0 = arith.constant 0 : i32
    %c0_i32_1 = arith.constant 0 : i32
    return %c0_i32, %c0_i32_0 : i32, i32
  }
  func.func @transform_23(%arg0: i32) -> (i32, i32) {
    %c0_i32 = arith.constant 0 : i32
    %c0_i32_0 = arith.constant 0 : i32
    return %arg0, %c0_i32 : i32, i32
  }
}

</mosaic_0001>

<llo_original>
// kernel: transformer_layer.1
$region0: #{transformer_layer.1}
  #allocation0 [shape = 'u32[]', space=smem, size = 0x4, offset = 0x4, fixed_abs, tag = 'smem constant byte address 0x4 - core index']
  #allocation1 [shape = 'u32[144,128]{1,0:T(1,128)}', space=vmem, size = 0x12000, scoped, tag = 'internal scratch']
  #allocation2 [shape = 'f32[32,128]{1,0:T(8,128)}', space=vmem, size = 0x4000, scoped, tag = 'scratch operand']
  %s0 = inlined_call_operand.vmem [shape: f32[8,16,128], index: 0, kind: input, shape index: {}]
  %s1 = inlined_call_operand.vmem [shape: f32[1,16,16], index: 1, kind: input, shape index: {}]
  %s2 = inlined_call_operand.vmem [shape: bf16[128,128], index: 2, kind: input, shape index: {}]
  %s3 = inlined_call_operand.vmem [shape: f32[1,128], index: 3, kind: input, shape index: {}]
  %s4 = inlined_call_operand.vmem [shape: bf16[128,128], index: 4, kind: input, shape index: {}]
  %s5 = inlined_call_operand.vmem [shape: f32[1,128], index: 5, kind: input, shape index: {}]
  %s6 = inlined_call_operand.vmem [shape: bf16[128,128], index: 6, kind: input, shape index: {}]
  %s7 = inlined_call_operand.vmem [shape: f32[1,128], index: 7, kind: input, shape index: {}]
  %s8 = inlined_call_operand.vmem [shape: bf16[128,128], index: 8, kind: input, shape index: {}]
  %s9 = inlined_call_operand.vmem [shape: f32[1,128], index: 9, kind: input, shape index: {}]
  %s10 = inlined_call_operand.vmem [shape: f32[1,128], index: 10, kind: input, shape index: {}]
  %s11 = inlined_call_operand.vmem [shape: f32[1,128], index: 11, kind: input, shape index: {}]
  %s12 = inlined_call_operand.vmem [shape: f32[16,8], index: 12, kind: input, shape index: {}]
  %s13 = inlined_call_operand.vmem [shape: f32[8,16], index: 13, kind: input, shape index: {}]
  %s14 = inlined_call_operand.vmem [shape: f32[1,128], index: 14, kind: input, shape index: {}]
  %s15 = inlined_call_operand.vmem [shape: f32[1,128], index: 15, kind: input, shape index: {}]
  %s16 = inlined_call_operand.vmem [shape: f32[1,128], index: 16, kind: input, shape index: {}]
  %s17 = inlined_call_operand.vmem [shape: bf16[128,256], index: 17, kind: input, shape index: {}]
  %s18 = inlined_call_operand.vmem [shape: f32[1,256], index: 18, kind: input, shape index: {}]
  %s19 = inlined_call_operand.vmem [shape: bf16[256,128], index: 19, kind: input, shape index: {}]
  %s20 = inlined_call_operand.vmem [shape: f32[1,128], index: 20, kind: input, shape index: {}]
  %s21 = inlined_call_operand.vmem [shape: f32[1,128], index: 21, kind: input, shape index: {}]
  %s22 = inlined_call_operand.vmem [shape: f32[1,128], index: 22, kind: input, shape index: {}]
  %s23 = inlined_call_operand.hbm [shape: f32[128,128], index: 23, kind: output, shape index: {}]
  %s24 = sld [smem:[#allocation0]]
  $region125: #{transformer_layer.1} parent=0
    _
  %s26 = ssub.s32 1, %s24
  %s27 = scalar_select 0, %s26, %s24
  $region1: #{transformer_layer.1} parent=0
    #allocation3 [shape = 'u8[32768]{0}', space=vmem, size = 0x8000, scoped, tag = 'output window, operand 0']
    #allocation4 [shape = 's32[2]{0}', space=sflag, size = 0x8, scoped, tag = 'scoped memory for transformer_layer.1']
    %28 = vsyncpa [#allocation4], 0
    %s29 = scalar_lea.sflag [#allocation4], 1
    %30 = vsyncpa %s29, 0
    loop: start=0, step=1, limit=6
    $region2: #{transformer_layer.1} parent=1 // loop_pre_header
      _
    $region3: #{transformer_layer.1} parent=1 // loop_header
      %s32 = sphi 0, %s36
      %p33 = scmp.ge.s32.totalorder %s32, 6
      %s42 = sphi 0, %s44
      %s45 = sphi 0, %s42
      %s46 = sphi 0, %s45
      %s62 = sphi 0, %s46
      %s66 = sphi 0, %s66
      %s68 = sphi 0, %s66
      %s69 = sphi 0, %s68
      %s83 = sphi 0, %s69
      %s87 = sphi 0, %s87
      %s89 = sphi 0, %s87
      %s90 = sphi 0, %s89
      %s104 = sphi 0, %s90
      %s108 = sphi 0, %s108
      %s110 = sphi 0, %s108
      %s111 = sphi 0, %s110
      %s125 = sphi 0, %s111
      %s129 = sphi 0, %s129
      %s131 = sphi 0, %s129
      %s132 = sphi 0, %s131
      %s146 = sphi 0, %s132
      %s150 = sphi 0, %s150
      %s152 = sphi 0, %s150
      %s153 = sphi 0, %s152
      %s167 = sphi 0, %s153
      %s171 = sphi 0, %s171
      %s173 = sphi 0, %s171
      %s174 = sphi 0, %s173
      %s188 = sphi 0, %s174
      %s192 = sphi 0, %s192
      %s194 = sphi 0, %s192
      %s195 = sphi 0, %s194
      %s209 = sphi 0, %s195
      %s213 = sphi 0, %s213
      %s215 = sphi 0, %s213
      %s216 = sphi 0, %s215
      %s230 = sphi 0, %s216
      %s234 = sphi 0, %s234
      %s236 = sphi 0, %s234
      %s237 = sphi 0, %s236
      %s251 = sphi 0, %s237
      %s255 = sphi 0, %s255
      %s257 = sphi 0, %s255
      %s258 = sphi 0, %s257
      %s272 = sphi 0, %s258
      %s276 = sphi 0, %s276
      %s278 = sphi 0, %s276
      %s279 = sphi 0, %s278
      %s293 = sphi 0, %s279
      %s297 = sphi 0, %s297
      %s299 = sphi 0, %s297
      %s300 = sphi 0, %s299
      %s314 = sphi 0, %s300
      %s318 = sphi 0, %s318
      %s320 = sphi 0, %s318
      %s321 = sphi 0, %s320
      %s335 = sphi 0, %s321
      %s339 = sphi 0, %s339
      %s341 = sphi 0, %s339
      %s342 = sphi 0, %s341
      %s356 = sphi 0, %s342
      %s360 = sphi 0, %s360
      %s362 = sphi 0, %s360
      %s363 = sphi 0, %s362
      %s377 = sphi 0, %s363
      %s381 = sphi 0, %s381
      %s383 = sphi 0, %s381
      %s384 = sphi 0, %s383
      %s398 = sphi 0, %s384
      %s402 = sphi 0, %s402
      %s404 = sphi 0, %s402
      %s405 = sphi 0, %s404
      %s419 = sphi 0, %s405
      %s423 = sphi 0, %s423
      %s425 = sphi 0, %s423
      %s426 = sphi 0, %s425
      %s440 = sphi 0, %s426
      %s444 = sphi 0, %s444
      %s446 = sphi 0, %s444
      %s447 = sphi 0, %s446
      %s461 = sphi 0, %s447
      %s465 = sphi 0, %s465
      %s467 = sphi 0, %s465
      %s468 = sphi 0, %s467
      %s482 = sphi 0, %s468
      %s486 = sphi 0, %s486
      %s488 = sphi 0, %s486
      %s489 = sphi 0, %s488
      %s503 = sphi 0, %s489
      %s507 = sphi 0, %s507
      %s509 = sphi 0, %s507
      %s510 = sphi 0, %s509
      %s524 = sphi 0, %s510
      %s530 = sphi 0, %s532
      %s533 = sphi 0, %s530
      %s534 = sphi 0, %s533
      %s550 = sphi 0, %s534
    $region4: #{transformer_layer.1} parent=1 // loop_header_branch
      %35 = sbr.rel (%p33) target = $region8
    $region5: #{transformer_layer.1} parent=1 // loop_body
      %s37 = ssub.s32 %s32, 1
      %s38 = ssub.s32 %s32, 2
      %s39 = sadd.s32 %s32, 1
      %s40 = ssub.s32 %s32, %s39
      %p41 = scmp.eq.s32.totalorder %s40, 0
      %s43 = sadd.s32 %s42, 1
      %s44 = scalar_select %p41, %s42, %s43
      %p47 = pneg %p41
      %p48 = scmp.eq.s32.totalorder %s32, 3
      %p49 = por %p47, %p48
      %p50 = scmp.ne.s32.totalorder %s42, %s45
      %p51 = scmp.eq.s32.totalorder %s32, 0
      %p52 = por %p50, %p51
      %p53 = scmp.ne.s32.totalorder %s42, %s45
      %p54 = scmp.eq.s32.totalorder %s37, 3
      %p55 = por %p53, %p54
      %p56 = scmp.ne.s32.totalorder %s45, %s46
      %p57 = scmp.eq.s32.totalorder %s37, 0
      %p58 = por %p56, %p57
      %p59 = scmp.ne.s32.totalorder %s45, %s46
      %p60 = scmp.eq.s32.totalorder %s38, 3
      %p61 = por %p59, %p60
      %p63 = scmp.ne.s32.totalorder %s46, %s62
      %p64 = scmp.eq.s32.totalorder %s38, 0
      %p65 = por %p63, %p64
      %s67 = sadd.s32 %s66, 1
      %p70 = scmp.eq.s32.totalorder %s32, 3
      %p71 = scmp.ne.s32.totalorder %s66, %s68
      %p72 = scmp.eq.s32.totalorder %s32, 0
      %p73 = por %p71, %p72
      %p74 = scmp.ne.s32.totalorder %s66, %s68
      %p75 = scmp.eq.s32.totalorder %s37, 3
      %p76 = por %p74, %p75
      %p77 = scmp.ne.s32.totalorder %s68, %s69
      %p78 = scmp.eq.s32.totalorder %s37, 0
      %p79 = por %p77, %p78
      %p80 = scmp.ne.s32.totalorder %s68, %s69
      %p81 = scmp.eq.s32.totalorder %s38, 3
      %p82 = por %p80, %p81
      %p84 = scmp.ne.s32.totalorder %s69, %s83
      %p85 = scmp.eq.s32.totalorder %s38, 0
      %p86 = por %p84, %p85
      %s88 = sadd.s32 %s87, 1
      %p91 = scmp.eq.s32.totalorder %s32, 3
      %p92 = scmp.ne.s32.totalorder %s87, %s89
      %p93 = scmp.eq.s32.totalorder %s32, 0
      %p94 = por %p92, %p93
      %p95 = scmp.ne.s32.totalorder %s87, %s89
      %p96 = scmp.eq.s32.totalorder %s37, 3
      %p97 = por %p95, %p96
      %p98 = scmp.ne.s32.totalorder %s89, %s90
      %p99 = scmp.eq.s32.totalorder %s37, 0
      %p100 = por %p98, %p99
      %p101 = scmp.ne.s32.totalorder %s89, %s90
      %p102 = scmp.eq.s32.totalorder %s38, 3
      %p103 = por %p101, %p102
      %p105 = scmp.ne.s32.totalorder %s90, %s104
      %p106 = scmp.eq.s32.totalorder %s38, 0
      %p107 = por %p105, %p106
      %s109 = sadd.s32 %s108, 1
      %p112 = scmp.eq.s32.totalorder %s32, 3
      %p113 = scmp.ne.s32.totalorder %s108, %s110
      %p114 = scmp.eq.s32.totalorder %s32, 0
      %p115 = por %p113, %p114
      %p116 = scmp.ne.s32.totalorder %s108, %s110
      %p117 = scmp.eq.s32.totalorder %s37, 3
      %p118 = por %p116, %p117
      %p119 = scmp.ne.s32.totalorder %s110, %s111
      %p120 = scmp.eq.s32.totalorder %s37, 0
      %p121 = por %p119, %p120
      %p122 = scmp.ne.s32.totalorder %s110, %s111
      %p123 = scmp.eq.s32.totalorder %s38, 3
      %p124 = por %p122, %p123
      %p126 = scmp.ne.s32.totalorder %s111, %s125
      %p127 = scmp.eq.s32.totalorder %s38, 0
      %p128 = por %p126, %p127
      %s130 = sadd.s32 %s129, 1
      %p133 = scmp.eq.s32.totalorder %s32, 3
      %p134 = scmp.ne.s32.totalorder %s129, %s131
      %p135 = scmp.eq.s32.totalorder %s32, 0
      %p136 = por %p134, %p135
      %p137 = scmp.ne.s32.totalorder %s129, %s131
      %p138 = scmp.eq.s32.totalorder %s37, 3
      %p139 = por %p137, %p138
      %p140 = scmp.ne.s32.totalorder %s131, %s132
      %p141 = scmp.eq.s32.totalorder %s37, 0
      %p142 = por %p140, %p141
      %p143 = scmp.ne.s32.totalorder %s131, %s132
      %p144 = scmp.eq.s32.totalorder %s38, 3
      %p145 = por %p143, %p144
      %p147 = scmp.ne.s32.totalorder %s132, %s146
      %p148 = scmp.eq.s32.totalorder %s38, 0
      %p149 = por %p147, %p148
      %s151 = sadd.s32 %s150, 1
      %p154 = scmp.eq.s32.totalorder %s32, 3
      %p155 = scmp.ne.s32.totalorder %s150, %s152
      %p156 = scmp.eq.s32.totalorder %s32, 0
      %p157 = por %p155, %p156
      %p158 = scmp.ne.s32.totalorder %s150, %s152
      %p159 = scmp.eq.s32.totalorder %s37, 3
      %p160 = por %p158, %p159
      %p161 = scmp.ne.s32.totalorder %s152, %s153
      %p162 = scmp.eq.s32.totalorder %s37, 0
      %p163 = por %p161, %p162
      %p164 = scmp.ne.s32.totalorder %s152, %s153
      %p165 = scmp.eq.s32.totalorder %s38, 3
      %p166 = por %p164, %p165
      %p168 = scmp.ne.s32.totalorder %s153, %s167
      %p169 = scmp.eq.s32.totalorder %s38, 0
      %p170 = por %p168, %p169
      %s172 = sadd.s32 %s171, 1
      %p175 = scmp.eq.s32.totalorder %s32, 3
      %p176 = scmp.ne.s32.totalorder %s171, %s173
      %p177 = scmp.eq.s32.totalorder %s32, 0
      %p178 = por %p176, %p177
      %p179 = scmp.ne.s32.totalorder %s171, %s173
      %p180 = scmp.eq.s32.totalorder %s37, 3
      %p181 = por %p179, %p180
      %p182 = scmp.ne.s32.totalorder %s173, %s174
      %p183 = scmp.eq.s32.totalorder %s37, 0
      %p184 = por %p182, %p183
      %p185 = scmp.ne.s32.totalorder %s173, %s174
      %p186 = scmp.eq.s32.totalorder %s38, 3
      %p187 = por %p185, %p186
      %p189 = scmp.ne.s32.totalorder %s174, %s188
      %p190 = scmp.eq.s32.totalorder %s38, 0
      %p191 = por %p189, %p190
      %s193 = sadd.s32 %s192, 1
      %p196 = scmp.eq.s32.totalorder %s32, 3
      %p197 = scmp.ne.s32.totalorder %s192, %s194
      %p198 = scmp.eq.s32.totalorder %s32, 0
      %p199 = por %p197, %p198
      %p200 = scmp.ne.s32.totalorder %s192, %s194
      %p201 = scmp.eq.s32.totalorder %s37, 3
      %p202 = por %p200, %p201
      %p203 = scmp.ne.s32.totalorder %s194, %s195
      %p204 = scmp.eq.s32.totalorder %s37, 0
      %p205 = por %p203, %p204
      %p206 = scmp.ne.s32.totalorder %s194, %s195
      %p207 = scmp.eq.s32.totalorder %s38, 3
      %p208 = por %p206, %p207
      %p210 = scmp.ne.s32.totalorder %s195, %s209
      %p211 = scmp.eq.s32.totalorder %s38, 0
      %p212 = por %p210, %p211
      %s214 = sadd.s32 %s213, 1
      %p217 = scmp.eq.s32.totalorder %s32, 3
      %p218 = scmp.ne.s32.totalorder %s213, %s215
      %p219 = scmp.eq.s32.totalorder %s32, 0
      %p220 = por %p218, %p219
      %p221 = scmp.ne.s32.totalorder %s213, %s215
      %p222 = scmp.eq.s32.totalorder %s37, 3
      %p223 = por %p221, %p222
      %p224 = scmp.ne.s32.totalorder %s215, %s216
      %p225 = scmp.eq.s32.totalorder %s37, 0
      %p226 = por %p224, %p225
      %p227 = scmp.ne.s32.totalorder %s215, %s216
      %p228 = scmp.eq.s32.totalorder %s38, 3
      %p229 = por %p227, %p228
      %p231 = scmp.ne.s32.totalorder %s216, %s230
      %p232 = scmp.eq.s32.totalorder %s38, 0
      %p233 = por %p231, %p232
      %s235 = sadd.s32 %s234, 1
      %p238 = scmp.eq.s32.totalorder %s32, 3
      %p239 = scmp.ne.s32.totalorder %s234, %s236
      %p240 = scmp.eq.s32.totalorder %s32, 0
      %p241 = por %p239, %p240
      %p242 = scmp.ne.s32.totalorder %s234, %s236
      %p243 = scmp.eq.s32.totalorder %s37, 3
      %p244 = por %p242, %p243
      %p245 = scmp.ne.s32.totalorder %s236, %s237
      %p246 = scmp.eq.s32.totalorder %s37, 0
      %p247 = por %p245, %p246
      %p248 = scmp.ne.s32.totalorder %s236, %s237
      %p249 = scmp.eq.s32.totalorder %s38, 3
      %p250 = por %p248, %p249
      %p252 = scmp.ne.s32.totalorder %s237, %s251
      %p253 = scmp.eq.s32.totalorder %s38, 0
      %p254 = por %p252, %p253
      %s256 = sadd.s32 %s255, 1
      %p259 = scmp.eq.s32.totalorder %s32, 3
      %p260 = scmp.ne.s32.totalorder %s255, %s257
      %p261 = scmp.eq.s32.totalorder %s32, 0
      %p262 = por %p260, %p261
      %p263 = scmp.ne.s32.totalorder %s255, %s257
      %p264 = scmp.eq.s32.totalorder %s37, 3
      %p265 = por %p263, %p264
      %p266 = scmp.ne.s32.totalorder %s257, %s258
      %p267 = scmp.eq.s32.totalorder %s37, 0
      %p268 = por %p266, %p267
      %p269 = scmp.ne.s32.totalorder %s257, %s258
      %p270 = scmp.eq.s32.totalorder %s38, 3
      %p271 = por %p269, %p270
      %p273 = scmp.ne.s32.totalorder %s258, %s272
      %p274 = scmp.eq.s32.totalorder %s38, 0
      %p275 = por %p273, %p274
      %s277 = sadd.s32 %s276, 1
      %p280 = scmp.eq.s32.totalorder %s32, 3
      %p281 = scmp.ne.s32.totalorder %s276, %s278
      %p282 = scmp.eq.s32.totalorder %s32, 0
      %p283 = por %p281, %p282
      %p284 = scmp.ne.s32.totalorder %s276, %s278
      %p285 = scmp.eq.s32.totalorder %s37, 3
      %p286 = por %p284, %p285
      %p287 = scmp.ne.s32.totalorder %s278, %s279
      %p288 = scmp.eq.s32.totalorder %s37, 0
      %p289 = por %p287, %p288
      %p290 = scmp.ne.s32.totalorder %s278, %s279
      %p291 = scmp.eq.s32.totalorder %s38, 3
      %p292 = por %p290, %p291
      %p294 = scmp.ne.s32.totalorder %s279, %s293
      %p295 = scmp.eq.s32.totalorder %s38, 0
      %p296 = por %p294, %p295
      %s298 = sadd.s32 %s297, 1
      %p301 = scmp.eq.s32.totalorder %s32, 3
      %p302 = scmp.ne.s32.totalorder %s297, %s299
      %p303 = scmp.eq.s32.totalorder %s32, 0
      %p304 = por %p302, %p303
      %p305 = scmp.ne.s32.totalorder %s297, %s299
      %p306 = scmp.eq.s32.totalorder %s37, 3
      %p307 = por %p305, %p306
      %p308 = scmp.ne.s32.totalorder %s299, %s300
      %p309 = scmp.eq.s32.totalorder %s37, 0
      %p310 = por %p308, %p309
      %p311 = scmp.ne.s32.totalorder %s299, %s300
      %p312 = scmp.eq.s32.totalorder %s38, 3
      %p313 = por %p311, %p312
      %p315 = scmp.ne.s32.totalorder %s300, %s314
      %p316 = scmp.eq.s32.totalorder %s38, 0
      %p317 = por %p315, %p316
      %s319 = sadd.s32 %s318, 1
      %p322 = scmp.eq.s32.totalorder %s32, 3
      %p323 = scmp.ne.s32.totalorder %s318, %s320
      %p324 = scmp.eq.s32.totalorder %s32, 0
      %p325 = por %p323, %p324
      %p326 = scmp.ne.s32.totalorder %s318, %s320
      %p327 = scmp.eq.s32.totalorder %s37, 3
      %p328 = por %p326, %p327
      %p329 = scmp.ne.s32.totalorder %s320, %s321
      %p330 = scmp.eq.s32.totalorder %s37, 0
      %p331 = por %p329, %p330
      %p332 = scmp.ne.s32.totalorder %s320, %s321
      %p333 = scmp.eq.s32.totalorder %s38, 3
      %p334 = por %p332, %p333
      %p336 = scmp.ne.s32.totalorder %s321, %s335
      %p337 = scmp.eq.s32.totalorder %s38, 0
      %p338 = por %p336, %p337
      %s340 = sadd.s32 %s339, 1
      %p343 = scmp.eq.s32.totalorder %s32, 3
      %p344 = scmp.ne.s32.totalorder %s339, %s341
      %p345 = scmp.eq.s32.totalorder %s32, 0
      %p346 = por %p344, %p345
      %p347 = scmp.ne.s32.totalorder %s339, %s341
      %p348 = scmp.eq.s32.totalorder %s37, 3
      %p349 = por %p347, %p348
      %p350 = scmp.ne.s32.totalorder %s341, %s342
      %p351 = scmp.eq.s32.totalorder %s37, 0
      %p352 = por %p350, %p351
      %p353 = scmp.ne.s32.totalorder %s341, %s342
      %p354 = scmp.eq.s32.totalorder %s38, 3
      %p355 = por %p353, %p354
      %p357 = scmp.ne.s32.totalorder %s342, %s356
      %p358 = scmp.eq.s32.totalorder %s38, 0
      %p359 = por %p357, %p358
      %s361 = sadd.s32 %s360, 1
      %p364 = scmp.eq.s32.totalorder %s32, 3
      %p365 = scmp.ne.s32.totalorder %s360, %s362
      %p366 = scmp.eq.s32.totalorder %s32, 0
      %p367 = por %p365, %p366
      %p368 = scmp.ne.s32.totalorder %s360, %s362
      %p369 = scmp.eq.s32.totalorder %s37, 3
      %p370 = por %p368, %p369
      %p371 = scmp.ne.s32.totalorder %s362, %s363
      %p372 = scmp.eq.s32.totalorder %s37, 0
      %p373 = por %p371, %p372
      %p374 = scmp.ne.s32.totalorder %s362, %s363
      %p375 = scmp.eq.s32.totalorder %s38, 3
      %p376 = por %p374, %p375
      %p378 = scmp.ne.s32.totalorder %s363, %s377
      %p379 = scmp.eq.s32.totalorder %s38, 0
      %p380 = por %p378, %p379
      %s382 = sadd.s32 %s381, 1
      %p385 = scmp.eq.s32.totalorder %s32, 3
      %p386 = scmp.ne.s32.totalorder %s381, %s383
      %p387 = scmp.eq.s32.totalorder %s32, 0
      %p388 = por %p386, %p387
      %p389 = scmp.ne.s32.totalorder %s381, %s383
      %p390 = scmp.eq.s32.totalorder %s37, 3
      %p391 = por %p389, %p390
      %p392 = scmp.ne.s32.totalorder %s383, %s384
      %p393 = scmp.eq.s32.totalorder %s37, 0
      %p394 = por %p392, %p393
      %p395 = scmp.ne.s32.totalorder %s383, %s384
      %p396 = scmp.eq.s32.totalorder %s38, 3
      %p397 = por %p395, %p396
      %p399 = scmp.ne.s32.totalorder %s384, %s398
      %p400 = scmp.eq.s32.totalorder %s38, 0
      %p401 = por %p399, %p400
      %s403 = sadd.s32 %s402, 1
      %p406 = scmp.eq.s32.totalorder %s32, 3
      %p407 = scmp.ne.s32.totalorder %s402, %s404
      %p408 = scmp.eq.s32.totalorder %s32, 0
      %p409 = por %p407, %p408
      %p410 = scmp.ne.s32.totalorder %s402, %s404
      %p411 = scmp.eq.s32.totalorder %s37, 3
      %p412 = por %p410, %p411
      %p413 = scmp.ne.s32.totalorder %s404, %s405
      %p414 = scmp.eq.s32.totalorder %s37, 0
      %p415 = por %p413, %p414
      %p416 = scmp.ne.s32.totalorder %s404, %s405
      %p417 = scmp.eq.s32.totalorder %s38, 3
      %p418 = por %p416, %p417
      %p420 = scmp.ne.s32.totalorder %s405, %s419
      %p421 = scmp.eq.s32.totalorder %s38, 0
      %p422 = por %p420, %p421
      %s424 = sadd.s32 %s423, 1
      %p427 = scmp.eq.s32.totalorder %s32, 3
      %p428 = scmp.ne.s32.totalorder %s423, %s425
      %p429 = scmp.eq.s32.totalorder %s32, 0
      %p430 = por %p428, %p429
      %p431 = scmp.ne.s32.totalorder %s423, %s425
      %p432 = scmp.eq.s32.totalorder %s37, 3
      %p433 = por %p431, %p432
      %p434 = scmp.ne.s32.totalorder %s425, %s426
      %p435 = scmp.eq.s32.totalorder %s37, 0
      %p436 = por %p434, %p435
      %p437 = scmp.ne.s32.totalorder %s425, %s426
      %p438 = scmp.eq.s32.totalorder %s38, 3
      %p439 = por %p437, %p438
      %p441 = scmp.ne.s32.totalorder %s426, %s440
      %p442 = scmp.eq.s32.totalorder %s38, 0
      %p443 = por %p441, %p442
      %s445 = sadd.s32 %s444, 1
      %p448 = scmp.eq.s32.totalorder %s32, 3
      %p449 = scmp.ne.s32.totalorder %s444, %s446
      %p450 = scmp.eq.s32.totalorder %s32, 0
      %p451 = por %p449, %p450
      %p452 = scmp.ne.s32.totalorder %s444, %s446
      %p453 = scmp.eq.s32.totalorder %s37, 3
      %p454 = por %p452, %p453
      %p455 = scmp.ne.s32.totalorder %s446, %s447
      %p456 = scmp.eq.s32.totalorder %s37, 0
      %p457 = por %p455, %p456
      %p458 = scmp.ne.s32.totalorder %s446, %s447
      %p459 = scmp.eq.s32.totalorder %s38, 3
      %p460 = por %p458, %p459
      %p462 = scmp.ne.s32.totalorder %s447, %s461
      %p463 = scmp.eq.s32.totalorder %s38, 0
      %p464 = por %p462, %p463
      %s466 = sadd.s32 %s465, 1
      %p469 = scmp.eq.s32.totalorder %s32, 3
      %p470 = scmp.ne.s32.totalorder %s465, %s467
      %p471 = scmp.eq.s32.totalorder %s32, 0
      %p472 = por %p470, %p471
      %p473 = scmp.ne.s32.totalorder %s465, %s467
      %p474 = scmp.eq.s32.totalorder %s37, 3
      %p475 = por %p473, %p474
      %p476 = scmp.ne.s32.totalorder %s467, %s468
      %p477 = scmp.eq.s32.totalorder %s37, 0
      %p478 = por %p476, %p477
      %p479 = scmp.ne.s32.totalorder %s467, %s468
      %p480 = scmp.eq.s32.totalorder %s38, 3
      %p481 = por %p479, %p480
      %p483 = scmp.ne.s32.totalorder %s468, %s482
      %p484 = scmp.eq.s32.totalorder %s38, 0
      %p485 = por %p483, %p484
      %s487 = sadd.s32 %s486, 1
      %p490 = scmp.eq.s32.totalorder %s32, 3
      %p491 = scmp.ne.s32.totalorder %s486, %s488
      %p492 = scmp.eq.s32.totalorder %s32, 0
      %p493 = por %p491, %p492
      %p494 = scmp.ne.s32.totalorder %s486, %s488
      %p495 = scmp.eq.s32.totalorder %s37, 3
      %p496 = por %p494, %p495
      %p497 = scmp.ne.s32.totalorder %s488, %s489
      %p498 = scmp.eq.s32.totalorder %s37, 0
      %p499 = por %p497, %p498
      %p500 = scmp.ne.s32.totalorder %s488, %s489
      %p501 = scmp.eq.s32.totalorder %s38, 3
      %p502 = por %p500, %p501
      %p504 = scmp.ne.s32.totalorder %s489, %s503
      %p505 = scmp.eq.s32.totalorder %s38, 0
      %p506 = por %p504, %p505
      %s508 = sadd.s32 %s507, 1
      %p511 = scmp.eq.s32.totalorder %s32, 3
      %p512 = scmp.ne.s32.totalorder %s507, %s509
      %p513 = scmp.eq.s32.totalorder %s32, 0
      %p514 = por %p512, %p513
      %p515 = scmp.ne.s32.totalorder %s507, %s509
      %p516 = scmp.eq.s32.totalorder %s37, 3
      %p517 = por %p515, %p516
      %p518 = scmp.ne.s32.totalorder %s509, %s510
      %p519 = scmp.eq.s32.totalorder %s37, 0
      %p520 = por %p518, %p519
      %p521 = scmp.ne.s32.totalorder %s509, %s510
      %p522 = scmp.eq.s32.totalorder %s38, 3
      %p523 = por %p521, %p522
      %p525 = scmp.ne.s32.totalorder %s510, %s524
      %p526 = scmp.eq.s32.totalorder %s38, 0
      %p527 = por %p525, %p526
      %s528 = ssub.s32 %s32, %s39
      %p529 = scmp.eq.s32.totalorder %s528, 0
      %s531 = sadd.s32 %s530, 1
      %s532 = scalar_select %p529, %s530, %s531
      %p535 = pneg %p529
      %p536 = scmp.eq.s32.totalorder %s32, 3
      %p537 = por %p535, %p536
      %p538 = scmp.ne.s32.totalorder %s530, %s533
      %p539 = scmp.eq.s32.totalorder %s32, 0
      %p540 = por %p538, %p539
      %p541 = scmp.ne.s32.totalorder %s530, %s533
      %p542 = scmp.eq.s32.totalorder %s37, 3
      %p543 = por %p541, %p542
      %p544 = scmp.ne.s32.totalorder %s533, %s534
      %p545 = scmp.eq.s32.totalorder %s37, 0
      %p546 = por %p544, %p545
      %p547 = scmp.ne.s32.totalorder %s533, %s534
      %p548 = scmp.eq.s32.totalorder %s38, 3
      %p549 = por %p547, %p548
      %p551 = scmp.ne.s32.totalorder %s534, %s550
      %p552 = scmp.eq.s32.totalorder %s38, 0
      %p553 = por %p551, %p552
      %p554 = scmp.le.s32.totalorder 1, %s32
      %p555 = scmp.lt.s32.totalorder %s32, 5
      %p556 = pnand %p554, %p555
      %p557 = pneg %p556
      // Predicated region
      $region9: #{transformer_layer.1} parent=5 // pred_check
        _
      $region10: #{transformer_layer.1} parent=5 // pred_check_branch
        %559 = sbr.rel (%p556) target = $region12
      $region11: #{transformer_layer.1} parent=5 // pred_region
        %s560 = ssub.s32 %s32, 1
        // Predicated region
        $region13: #{transformer_layer.1} parent=11 // pred_check
          %p561 = pneg %p79
        $region14: #{transformer_layer.1} parent=11 // pred_check_branch
          %563 = sbr.rel (%p561) target = $region16
        $region15: #{transformer_layer.1} parent=11 // pred_region
          _
        $region16: #{transformer_layer.1} parent=11 // pred_fallthru
          _
        // Predicated region
        $region17: #{transformer_layer.1} parent=11 // pred_check
          %p564 = pneg %p100
        $region18: #{transformer_layer.1} parent=11 // pred_check_branch
          %566 = sbr.rel (%p564) target = $region20
        $region19: #{transformer_layer.1} parent=11 // pred_region
          _
        $region20: #{transformer_layer.1} parent=11 // pred_fallthru
          _
        // Predicated region
        $region21: #{transformer_layer.1} parent=11 // pred_check
          %p567 = pneg %p121
        $region22: #{transformer_layer.1} parent=11 // pred_check_branch
          %569 = sbr.rel (%p567) target = $region24
        $region23: #{transformer_layer.1} parent=11 // pred_region
          _
        $region24: #{transformer_layer.1} parent=11 // pred_fallthru
          _
        // Predicated region
        $region25: #{transformer_layer.1} parent=11 // pred_check
          %p570 = pneg %p142
        $region26: #{transformer_layer.1} parent=11 // pred_check_branch
          %572 = sbr.rel (%p570) target = $region28
        $region27: #{transformer_layer.1} parent=11 // pred_region
          _
        $region28: #{transformer_layer.1} parent=11 // pred_fallthru
          _
        // Predicated region
        $region29: #{transformer_layer.1} parent=11 // pred_check
          %p573 = pneg %p163
        $region30: #{transformer_layer.1} parent=11 // pred_check_branch
          %575 = sbr.rel (%p573) target = $region32
        $region31: #{transformer_layer.1} parent=11 // pred_region
          _
        $region32: #{transformer_layer.1} parent=11 // pred_fallthru
          _
        // Predicated region
        $region33: #{transformer_layer.1} parent=11 // pred_check
          %p576 = pneg %p184
        $region34: #{transformer_layer.1} parent=11 // pred_check_branch
          %578 = sbr.rel (%p576) target = $region36
        $region35: #{transformer_layer.1} parent=11 // pred_region
          _
        $region36: #{transformer_layer.1} parent=11 // pred_fallthru
          _
        // Predicated region
        $region37: #{transformer_layer.1} parent=11 // pred_check
          %p579 = pneg %p205
        $region38: #{transformer_layer.1} parent=11 // pred_check_branch
          %581 = sbr.rel (%p579) target = $region40
        $region39: #{transformer_layer.1} parent=11 // pred_region
          _
        $region40: #{transformer_layer.1} parent=11 // pred_fallthru
          _
        // Predicated region
        $region41: #{transformer_layer.1} parent=11 // pred_check
          %p582 = pneg %p226
        $region42: #{transformer_layer.1} parent=11 // pred_check_branch
          %584 = sbr.rel (%p582) target = $region44
        $region43: #{transformer_layer.1} parent=11 // pred_region
          _
        $region44: #{transformer_layer.1} parent=11 // pred_fallthru
          _
        // Predicated region
        $region45: #{transformer_layer.1} parent=11 // pred_check
          %p585 = pneg %p247
        $region46: #{transformer_layer.1} parent=11 // pred_check_branch
          %587 = sbr.rel (%p585) target = $region48
        $region47: #{transformer_layer.1} parent=11 // pred_region
          _
        $region48: #{transformer_layer.1} parent=11 // pred_fallthru
          _
        // Predicated region
        $region49: #{transformer_layer.1} parent=11 // pred_check
          %p588 = pneg %p268
        $region50: #{transformer_layer.1} parent=11 // pred_check_branch
          %590 = sbr.rel (%p588) target = $region52
        $region51: #{transformer_layer.1} parent=11 // pred_region
          _
        $region52: #{transformer_layer.1} parent=11 // pred_fallthru
          _
        // Predicated region
        $region53: #{transformer_layer.1} parent=11 // pred_check
          %p591 = pneg %p289
        $region54: #{transformer_layer.1} parent=11 // pred_check_branch
          %593 = sbr.rel (%p591) target = $region56
        $region55: #{transformer_layer.1} parent=11 // pred_region
          _
        $region56: #{transformer_layer.1} parent=11 // pred_fallthru
          _
        // Predicated region
        $region57: #{transformer_layer.1} parent=11 // pred_check
          %p594 = pneg %p310
        $region58: #{transformer_layer.1} parent=11 // pred_check_branch
          %596 = sbr.rel (%p594) target = $region60
        $region59: #{transformer_layer.1} parent=11 // pred_region
          _
        $region60: #{transformer_layer.1} parent=11 // pred_fallthru
          _
        // Predicated region
        $region61: #{transformer_layer.1} parent=11 // pred_check
          %p597 = pneg %p331
        $region62: #{transformer_layer.1} parent=11 // pred_check_branch
          %599 = sbr.rel (%p597) target = $region64
        $region63: #{transformer_layer.1} parent=11 // pred_region
          _
        $region64: #{transformer_layer.1} parent=11 // pred_fallthru
          _
        // Predicated region
        $region65: #{transformer_layer.1} parent=11 // pred_check
          %p600 = pneg %p352
        $region66: #{transformer_layer.1} parent=11 // pred_check_branch
          %602 = sbr.rel (%p600) target = $region68
        $region67: #{transformer_layer.1} parent=11 // pred_region
          _
        $region68: #{transformer_layer.1} parent=11 // pred_fallthru
          _
        // Predicated region
        $region69: #{transformer_layer.1} parent=11 // pred_check
          %p603 = pneg %p373
        $region70: #{transformer_layer.1} parent=11 // pred_check_branch
          %605 = sbr.rel (%p603) target = $region72
        $region71: #{transformer_layer.1} parent=11 // pred_region
          _
        $region72: #{transformer_layer.1} parent=11 // pred_fallthru
          _
        // Predicated region
        $region73: #{transformer_layer.1} parent=11 // pred_check
          %p606 = pneg %p394
        $region74: #{transformer_layer.1} parent=11 // pred_check_branch
          %608 = sbr.rel (%p606) target = $region76
        $region75: #{transformer_layer.1} parent=11 // pred_region
          _
        $region76: #{transformer_layer.1} parent=11 // pred_fallthru
          _
        // Predicated region
        $region77: #{transformer_layer.1} parent=11 // pred_check
          %p609 = pneg %p415
        $region78: #{transformer_layer.1} parent=11 // pred_check_branch
          %611 = sbr.rel (%p609) target = $region80
        $region79: #{transformer_layer.1} parent=11 // pred_region
          _
        $region80: #{transformer_layer.1} parent=11 // pred_fallthru
          _
        // Predicated region
        $region81: #{transformer_layer.1} parent=11 // pred_check
          %p612 = pneg %p436
        $region82: #{transformer_layer.1} parent=11 // pred_check_branch
          %614 = sbr.rel (%p612) target = $region84
        $region83: #{transformer_layer.1} parent=11 // pred_region
          _
        $region84: #{transformer_layer.1} parent=11 // pred_fallthru
          _
        // Predicated region
        $region85: #{transformer_layer.1} parent=11 // pred_check
          %p615 = pneg %p457
        $region86: #{transformer_layer.1} parent=11 // pred_check_branch
          %617 = sbr.rel (%p615) target = $region88
        $region87: #{transformer_layer.1} parent=11 // pred_region
          _
        $region88: #{transformer_layer.1} parent=11 // pred_fallthru
          _
        // Predicated region
        $region89: #{transformer_layer.1} parent=11 // pred_check
          %p618 = pneg %p478
        $region90: #{transformer_layer.1} parent=11 // pred_check_branch
          %620 = sbr.rel (%p618) target = $region92
        $region91: #{transformer_layer.1} parent=11 // pred_region
          _
        $region92: #{transformer_layer.1} parent=11 // pred_fallthru
          _
        // Predicated region
        $region93: #{transformer_layer.1} parent=11 // pred_check
          %p621 = pneg %p499
        $region94: #{transformer_layer.1} parent=11 // pred_check_branch
          %623 = sbr.rel (%p621) target = $region96
        $region95: #{transformer_layer.1} parent=11 // pred_region
          _
        $region96: #{transformer_layer.1} parent=11 // pred_fallthru
          _
        // Predicated region
        $region97: #{transformer_layer.1} parent=11 // pred_check
          %p624 = pneg %p520
        $region98: #{transformer_layer.1} parent=11 // pred_check_branch
          %626 = sbr.rel (%p624) target = $region100
        $region99: #{transformer_layer.1} parent=11 // pred_region
          _
        $region100: #{transformer_layer.1} parent=11 // pred_fallthru
          _
      $region12: #{transformer_layer.1} parent=5 // pred_fallthru
        _
      %p627 = scmp.lt.s32.totalorder %s32, 4
      // Predicated region
      $region101: #{transformer_layer.1} parent=5 // pred_check
        %p628 = pneg %p627
      $region102: #{transformer_layer.1} parent=5 // pred_check_branch
        %630 = sbr.rel (%p628) target = $region104
      $region103: #{transformer_layer.1} parent=5 // pred_region
        // Predicated region
        $region105: #{transformer_layer.1} parent=103 // pred_check
          %p631 = pneg %p52
        $region106: #{transformer_layer.1} parent=103 // pred_check_branch
          %633 = sbr.rel (%p631) target = $region108
        $region107: #{transformer_layer.1} parent=103 // pred_region
          %s634 = smul.u32 2, %s32
          %p635 = scmp.lt.s32.totalorder %s634, 7
          %s636 = scalar_select %p635, %s634, 7
          %s637 = smul.addr %s636, 2
          %s638 = smul.addr %s637, 8
          %s639 = scalar_lea.vmem %s0, %s638
          %s640 = smul.u32 2, %s32
        $region108: #{transformer_layer.1} parent=103 // pred_fallthru
          _
      $region104: #{transformer_layer.1} parent=5 // pred_fallthru
        _
      %p641 = scmp.le.s32.totalorder 1, %s32
      %p642 = scmp.lt.s32.totalorder %s32, 5
      %p643 = pnand %p641, %p642
      %p644 = pneg %p643
      // Predicated region
      $region109: #{transformer_layer.1} parent=5 // pred_check
        _
      $region110: #{transformer_layer.1} parent=5 // pred_check_branch
        %646 = sbr.rel (%p643) target = $region112
      $region111: #{transformer_layer.1} parent=5 // pred_region
        %s647 = ssub.s32 %s32, 1
        %s648 = smul.u32 2, %s37
        %p649 = scmp.lt.s32.totalorder %s648, 7
        %s650 = scalar_select %p649, %s648, 7
        %s651 = smul.addr %s650, 2
        %s652 = smul.addr %s651, 8
        %s653 = scalar_lea.vmem %s0, %s652
        %p654 = pneg %p58
        %p655 = pneg %p55
        %p656 = pneg %p79
        %p657 = pneg %p76
        %p658 = pneg %p100
        %p659 = pneg %p97
        %p660 = pneg %p121
        %p661 = pneg %p118
        %p662 = pneg %p142
        %p663 = pneg %p139
        %p664 = pneg %p163
        %p665 = pneg %p160
        %p666 = pneg %p184
        %p667 = pneg %p181
        %p668 = pneg %p205
        %p669 = pneg %p202
        %p670 = pneg %p226
        %p671 = pneg %p223
        %p672 = pneg %p247
        %p673 = pneg %p244
        %p674 = pneg %p268
        %p675 = pneg %p265
        %p676 = pneg %p289
        %p677 = pneg %p286
        %p678 = pneg %p310
        %p679 = pneg %p307
        %p680 = pneg %p331
        %p681 = pneg %p328
        %p682 = pneg %p352
        %p683 = pneg %p349
        %p684 = pneg %p373
        %p685 = pneg %p370
        %p686 = pneg %p394
        %p687 = pneg %p391
        %p688 = pneg %p415
        %p689 = pneg %p412
        %p690 = pneg %p436
        %p691 = pneg %p433
        %p692 = pneg %p457
        %p693 = pneg %p454
        %p694 = pneg %p478
        %p695 = pneg %p475
        %p696 = pneg %p499
        %p697 = pneg %p496
        %p698 = pneg %p520
        %p699 = pneg %p517
        %p700 = pneg %p546
        %p701 = pneg %p543
        %s702 = sand.u32 %s533, 1
        %s703 = scalar_lea.sflag [#allocation4], %s702
        %s704 = sand.u32 %s533, 1
        %s705 = smul.addr %s704, 32
        %s706 = scalar_lea.vmem [#allocation3], %s705
        %s707 = smul.u32 2, %s37
        %p708 = scmp.lt.s32.totalorder %s707, 7
        %s709 = scalar_select %p708, %s707, 7
        %s710 = smul.addr %s709, 2
        %s711 = smul.addr %s710, 8
        %s712 = scalar_lea.vmem %s0, %s711
        %s713 = smul.u32 2, %s37
        %s714 = smul.u32 4, %s37
        %v716 = vld [vmem:[%s712] sm:$0xff]
        %v717 = vld [vmem:[%s712 + $0x8] sm:$0xff]
        %v718 = vld [vmem:[%s712 + $0x10] sm:$0xff]
        %v719 = vld [vmem:[%s712 + $0x18] sm:$0xff]
        %v720 = vpack.c.bf16 %v717, %v716
        %v721 = vpack.c.bf16 %v719, %v718
        %v722 = vld [vmem:[%s2] sm:$0xf]
        %v723 = vld [vmem:[%s2 + $0x4] sm:$0xf]
        %v724 = vld [vmem:[%s2 + $0x8] sm:$0xf]
        %v725 = vld [vmem:[%s2 + $0xc] sm:$0xf]
        %v726 = vld [vmem:[%s2 + $0x10] sm:$0xf]
        %v727 = vld [vmem:[%s2 + $0x14] sm:$0xf]
        %v728 = vld [vmem:[%s2 + $0x18] sm:$0xf]
        %v729 = vld [vmem:[%s2 + $0x1c] sm:$0xf]
        %v730 = vld [vmem:[%s2 + $0x20] sm:$0xf]
        %v731 = vld [vmem:[%s2 + $0x24] sm:$0xf]
        %v732 = vld [vmem:[%s2 + $0x28] sm:$0xf]
        %v733 = vld [vmem:[%s2 + $0x2c] sm:$0xf]
        %v734 = vld [vmem:[%s2 + $0x30] sm:$0xf]
        %v735 = vld [vmem:[%s2 + $0x34] sm:$0xf]
        %v736 = vld [vmem:[%s2 + $0x38] sm:$0xf]
        %v737 = vld [vmem:[%s2 + $0x3c] sm:$0xf]
        %v738 = vld [vmem:[%s3] sm:$0x1]
        %v740 = vlaneseq
        %v741 = vshrl.u32 %v740, 7
        %v742 = vsub.s32 0, %v741
        %v743 = vrot.slane %v738, %v742
        %v761 = vunpack.c.l.b16 %v722
        %v762 = vunpack.c.l.b16 %v723
        %v763 = vunpack.c.l.b16 %v724
        %v764 = vunpack.c.l.b16 %v725
        %v765 = vunpack.c.l.b16 %v726
        %v766 = vunpack.c.l.b16 %v727
        %v767 = vunpack.c.l.b16 %v728
        %v768 = vunpack.c.l.b16 %v729
        %v769 = vunpack.c.l.b16 %v730
        %v770 = vunpack.c.l.b16 %v731
        %v771 = vunpack.c.l.b16 %v732
        %v772 = vunpack.c.l.b16 %v733
        %v773 = vunpack.c.l.b16 %v734
        %v774 = vunpack.c.l.b16 %v735
        %v775 = vunpack.c.l.b16 %v736
        %v776 = vunpack.c.l.b16 %v737
        %v777 = vpack.c.b16 %v762, %v761
        %v778 = vpack.c.b16 %v764, %v763
        %v779 = vpack.c.b16 %v766, %v765
        %v780 = vpack.c.b16 %v768, %v767
        %v781 = vpack.c.b16 %v770, %v769
        %v782 = vpack.c.b16 %v772, %v771
        %v783 = vpack.c.b16 %v774, %v773
        %v784 = vpack.c.b16 %v776, %v775
        %793 = vmatprep.subr.bf16.mxu0 0
        %794 = vmatpush1.bf16.msra.mxu0 %v784
        %795 = vmatprep.subr.bf16.mxu0 0
        %796 = vmatpush1.bf16.msra.mxu0 %v783
        %797 = vmatprep.subr.bf16.mxu0 0
        %798 = vmatpush1.bf16.msra.mxu0 %v782
        %799 = vmatprep.subr.bf16.mxu0 0
        %800 = vmatpush1.bf16.msra.mxu0 %v781
        %801 = vmatprep.subr.bf16.mxu0 0
        %802 = vmatpush1.bf16.msra.mxu0 %v780
        %803 = vmatprep.subr.bf16.mxu0 0
        %804 = vmatpush1.bf16.msra.mxu0 %v779
        %805 = vmatprep.subr.bf16.mxu0 0
        %806 = vmatpush1.bf16.msra.mxu0 %v778
        %807 = vmatprep.subr.bf16.mxu0 0
        %808 = vmatpush1.bf16.msra.mxu0 %v777
        %809 = vmatprep.subr.bf16.mxu0 0
        %810 = vmatpush2.bf16.msra.mxu0 0
        %811 = vmatprep.subr.bf16.mxu0 0
        %812 = vmatpush2.bf16.msra.mxu0 0
        %813 = vmatprep.subr.bf16.mxu0 0
        %814 = vmatpush2.bf16.msra.mxu0 0
        %815 = vmatprep.subr.bf16.mxu0 0
        %816 = vmatpush2.bf16.msra.mxu0 0
        %817 = vmatprep.subr.bf16.mxu0 0
        %818 = vmatpush2.bf16.msra.mxu0 0
        %819 = vmatprep.subr.bf16.mxu0 0
        %820 = vmatpush2.bf16.msra.mxu0 0
        %821 = vmatprep.subr.bf16.mxu0 0
        %822 = vmatpush2.bf16.msra.mxu0 0
        %823 = vmatprep.subr.bf16.mxu0 0
        %824 = vmatpush2.bf16.msra.mxu0 0
        %825 = vmatprep.mubr.bf16.mxu0 0
        %826 = vmatmul.mubr.bf16.gmra.mxu0 %v720
        %v827 = vpop.f32.mrf.mxu0
        %v828 = vadd.f32 %v743, %v827
        %v829 = vpop.f32.mrf.mxu0
        %v830 = vpop.f32.mrf.mxu0
        %v831 = vadd.f32 %v743, %v830
        %v832 = vpop.f32.mrf.mxu0
        %833 = vmatprep.mubr.bf16.mxu0 0
        %834 = vmatmul.mubr.bf16.gmra.mxu0 %v721
        %v835 = vpop.f32.mrf.mxu0
        %v836 = vadd.f32 %v743, %v835
        %v837 = vpop.f32.mrf.mxu0
        %v838 = vpop.f32.mrf.mxu0
        %v839 = vadd.f32 %v743, %v838
        %v840 = vpop.f32.mrf.mxu0
        %841 = vdwg.mxu0
        %v842 = vmul.f32 %v828, 0.125
        %v843 = vmul.f32 %v831, 0.125
        %v844 = vmul.f32 %v836, 0.125
        %v845 = vmul.f32 %v839, 0.125
        %v846 = vld [vmem:[%s4] sm:$0xf]
        %v847 = vld [vmem:[%s4 + $0x4] sm:$0xf]
        %v848 = vld [vmem:[%s4 + $0x8] sm:$0xf]
        %v849 = vld [vmem:[%s4 + $0xc] sm:$0xf]
        %v850 = vld [vmem:[%s4 + $0x10] sm:$0xf]
        %v851 = vld [vmem:[%s4 + $0x14] sm:$0xf]
        %v852 = vld [vmem:[%s4 + $0x18] sm:$0xf]
        %v853 = vld [vmem:[%s4 + $0x1c] sm:$0xf]
        %v854 = vld [vmem:[%s4 + $0x20] sm:$0xf]
        %v855 = vld [vmem:[%s4 + $0x24] sm:$0xf]
        %v856 = vld [vmem:[%s4 + $0x28] sm:$0xf]
        %v857 = vld [vmem:[%s4 + $0x2c] sm:$0xf]
        %v858 = vld [vmem:[%s4 + $0x30] sm:$0xf]
        %v859 = vld [vmem:[%s4 + $0x34] sm:$0xf]
        %v860 = vld [vmem:[%s4 + $0x38] sm:$0xf]
        %v861 = vld [vmem:[%s4 + $0x3c] sm:$0xf]
        %v862 = vld [vmem:[%s5] sm:$0x1]
        %v864 = vlaneseq
        %v865 = vshrl.u32 %v864, 7
        %v866 = vsub.s32 0, %v865
        %v867 = vrot.slane %v862, %v866
        %v885 = vunpack.c.l.b16 %v846
        %v886 = vunpack.c.l.b16 %v847
        %v887 = vunpack.c.l.b16 %v848
        %v888 = vunpack.c.l.b16 %v849
        %v889 = vunpack.c.l.b16 %v850
        %v890 = vunpack.c.l.b16 %v851
        %v891 = vunpack.c.l.b16 %v852
        %v892 = vunpack.c.l.b16 %v853
        %v893 = vunpack.c.l.b16 %v854
        %v894 = vunpack.c.l.b16 %v855
        %v895 = vunpack.c.l.b16 %v856
        %v896 = vunpack.c.l.b16 %v857
        %v897 = vunpack.c.l.b16 %v858
        %v898 = vunpack.c.l.b16 %v859
        %v899 = vunpack.c.l.b16 %v860
        %v900 = vunpack.c.l.b16 %v861
        %v901 = vpack.c.b16 %v886, %v885
        %v902 = vpack.c.b16 %v888, %v887
        %v903 = vpack.c.b16 %v890, %v889
        %v904 = vpack.c.b16 %v892, %v891
        %v905 = vpack.c.b16 %v894, %v893
        %v906 = vpack.c.b16 %v896, %v895
        %v907 = vpack.c.b16 %v898, %v897
        %v908 = vpack.c.b16 %v900, %v899
        %917 = vmatprep.subr.bf16.mxu0 0
        %918 = vmatpush1.bf16.msra.mxu0 %v908
        %919 = vmatprep.subr.bf16.mxu0 0
        %920 = vmatpush1.bf16.msra.mxu0 %v907
        %921 = vmatprep.subr.bf16.mxu0 0
        %922 = vmatpush1.bf16.msra.mxu0 %v906
        %923 = vmatprep.subr.bf16.mxu0 0
        %924 = vmatpush1.bf16.msra.mxu0 %v905
        %925 = vmatprep.subr.bf16.mxu0 0
        %926 = vmatpush1.bf16.msra.mxu0 %v904
        %927 = vmatprep.subr.bf16.mxu0 0
        %928 = vmatpush1.bf16.msra.mxu0 %v903
        %929 = vmatprep.subr.bf16.mxu0 0
        %930 = vmatpush1.bf16.msra.mxu0 %v902
        %931 = vmatprep.subr.bf16.mxu0 0
        %932 = vmatpush1.bf16.msra.mxu0 %v901
        %933 = vmatprep.subr.bf16.mxu0 0
        %934 = vmatpush2.bf16.msra.mxu0 0
        %935 = vmatprep.subr.bf16.mxu0 0
        %936 = vmatpush2.bf16.msra.mxu0 0
        %937 = vmatprep.subr.bf16.mxu0 0
        %938 = vmatpush2.bf16.msra.mxu0 0
        %939 = vmatprep.subr.bf16.mxu0 0
        %940 = vmatpush2.bf16.msra.mxu0 0
        %941 = vmatprep.subr.bf16.mxu0 0
        %942 = vmatpush2.bf16.msra.mxu0 0
        %943 = vmatprep.subr.bf16.mxu0 0
        %944 = vmatpush2.bf16.msra.mxu0 0
        %945 = vmatprep.subr.bf16.mxu0 0
        %946 = vmatpush2.bf16.msra.mxu0 0
        %947 = vmatprep.subr.bf16.mxu0 0
        %948 = vmatpush2.bf16.msra.mxu0 0
        %949 = vmatprep.mubr.bf16.mxu0 0
        %950 = vmatmul.mubr.bf16.gmra.mxu0 %v720
        %v951 = vpop.f32.mrf.mxu0
        %v952 = vadd.f32 %v867, %v951
        %v953 = vpop.f32.mrf.mxu0
        %v954 = vpop.f32.mrf.mxu0
        %v955 = vadd.f32 %v867, %v954
        %v956 = vpop.f32.mrf.mxu0
        %957 = vmatprep.mubr.bf16.mxu0 0
        %958 = vmatmul.mubr.bf16.gmra.mxu0 %v721
        %v959 = vpop.f32.mrf.mxu0
        %v960 = vadd.f32 %v867, %v959
        %v961 = vpop.f32.mrf.mxu0
        %v962 = vpop.f32.mrf.mxu0
        %v963 = vadd.f32 %v867, %v962
        %v964 = vpop.f32.mrf.mxu0
        %965 = vdwg.mxu0
        %v966 = vld [vmem:[%s6] sm:$0xf]
        %v967 = vld [vmem:[%s6 + $0x4] sm:$0xf]
        %v968 = vld [vmem:[%s6 + $0x8] sm:$0xf]
        %v969 = vld [vmem:[%s6 + $0xc] sm:$0xf]
        %v970 = vld [vmem:[%s6 + $0x10] sm:$0xf]
        %v971 = vld [vmem:[%s6 + $0x14] sm:$0xf]
        %v972 = vld [vmem:[%s6 + $0x18] sm:$0xf]
        %v973 = vld [vmem:[%s6 + $0x1c] sm:$0xf]
        %v974 = vld [vmem:[%s6 + $0x20] sm:$0xf]
        %v975 = vld [vmem:[%s6 + $0x24] sm:$0xf]
        %v976 = vld [vmem:[%s6 + $0x28] sm:$0xf]
        %v977 = vld [vmem:[%s6 + $0x2c] sm:$0xf]
        %v978 = vld [vmem:[%s6 + $0x30] sm:$0xf]
        %v979 = vld [vmem:[%s6 + $0x34] sm:$0xf]
        %v980 = vld [vmem:[%s6 + $0x38] sm:$0xf]
        %v981 = vld [vmem:[%s6 + $0x3c] sm:$0xf]
        %v982 = vld [vmem:[%s7] sm:$0x1]
        %v984 = vlaneseq
        %v985 = vshrl.u32 %v984, 7
        %v986 = vsub.s32 0, %v985
        %v987 = vrot.slane %v982, %v986
        %v1005 = vunpack.c.l.b16 %v966
        %v1006 = vunpack.c.l.b16 %v967
        %v1007 = vunpack.c.l.b16 %v968
        %v1008 = vunpack.c.l.b16 %v969
        %v1009 = vunpack.c.l.b16 %v970
        %v1010 = vunpack.c.l.b16 %v971
        %v1011 = vunpack.c.l.b16 %v972
        %v1012 = vunpack.c.l.b16 %v973
        %v1013 = vunpack.c.l.b16 %v974
        %v1014 = vunpack.c.l.b16 %v975
        %v1015 = vunpack.c.l.b16 %v976
        %v1016 = vunpack.c.l.b16 %v977
        %v1017 = vunpack.c.l.b16 %v978
        %v1018 = vunpack.c.l.b16 %v979
        %v1019 = vunpack.c.l.b16 %v980
        %v1020 = vunpack.c.l.b16 %v981
        %v1021 = vpack.c.b16 %v1006, %v1005
        %v1022 = vpack.c.b16 %v1008, %v1007
        %v1023 = vpack.c.b16 %v1010, %v1009
        %v1024 = vpack.c.b16 %v1012, %v1011
        %v1025 = vpack.c.b16 %v1014, %v1013
        %v1026 = vpack.c.b16 %v1016, %v1015
        %v1027 = vpack.c.b16 %v1018, %v1017
        %v1028 = vpack.c.b16 %v1020, %v1019
        %1037 = vmatprep.subr.bf16.mxu0 0
        %1038 = vmatpush1.bf16.msra.mxu0 %v1028
        %1039 = vmatprep.subr.bf16.mxu0 0
        %1040 = vmatpush1.bf16.msra.mxu0 %v1027
        %1041 = vmatprep.subr.bf16.mxu0 0
        %1042 = vmatpush1.bf16.msra.mxu0 %v1026
        %1043 = vmatprep.subr.bf16.mxu0 0
        %1044 = vmatpush1.bf16.msra.mxu0 %v1025
        %1045 = vmatprep.subr.bf16.mxu0 0
        %1046 = vmatpush1.bf16.msra.mxu0 %v1024
        %1047 = vmatprep.subr.bf16.mxu0 0
        %1048 = vmatpush1.bf16.msra.mxu0 %v1023
        %1049 = vmatprep.subr.bf16.mxu0 0
        %1050 = vmatpush1.bf16.msra.mxu0 %v1022
        %1051 = vmatprep.subr.bf16.mxu0 0
        %1052 = vmatpush1.bf16.msra.mxu0 %v1021
        %1053 = vmatprep.subr.bf16.mxu0 0
        %1054 = vmatpush2.bf16.msra.mxu0 0
        %1055 = vmatprep.subr.bf16.mxu0 0
        %1056 = vmatpush2.bf16.msra.mxu0 0
        %1057 = vmatprep.subr.bf16.mxu0 0
        %1058 = vmatpush2.bf16.msra.mxu0 0
        %1059 = vmatprep.subr.bf16.mxu0 0
        %1060 = vmatpush2.bf16.msra.mxu0 0
        %1061 = vmatprep.subr.bf16.mxu0 0
        %1062 = vmatpush2.bf16.msra.mxu0 0
        %1063 = vmatprep.subr.bf16.mxu0 0
        %1064 = vmatpush2.bf16.msra.mxu0 0
        %1065 = vmatprep.subr.bf16.mxu0 0
        %1066 = vmatpush2.bf16.msra.mxu0 0
        %1067 = vmatprep.subr.bf16.mxu0 0
        %1068 = vmatpush2.bf16.msra.mxu0 0
        %1069 = vmatprep.mubr.bf16.mxu0 0
        %1070 = vmatmul.mubr.bf16.gmra.mxu0 %v720
        %v1071 = vpop.f32.mrf.mxu0
        %v1072 = vadd.f32 %v987, %v1071
        %v1073 = vpop.f32.mrf.mxu0
        %v1074 = vpop.f32.mrf.mxu0
        %v1075 = vadd.f32 %v987, %v1074
        %v1076 = vpop.f32.mrf.mxu0
        %1077 = vmatprep.mubr.bf16.mxu0 0
        %1078 = vmatmul.mubr.bf16.gmra.mxu0 %v721
        %v1079 = vpop.f32.mrf.mxu0
        %v1080 = vadd.f32 %v987, %v1079
        %v1081 = vpop.f32.mrf.mxu0
        %v1082 = vpop.f32.mrf.mxu0
        %v1083 = vadd.f32 %v987, %v1082
        %v1084 = vpop.f32.mrf.mxu0
        %1085 = vdwg.mxu0
        %v1086 = vpack.c.bf16 %v843, %v842
        %v1087 = vpack.c.bf16 %v845, %v844
        %v1088 = vpack.c.bf16 %v955, %v952
        %v1089 = vpack.c.bf16 %v963, %v960
        %v1090 = vpack.c.bf16 %v1075, %v1072
        %v1091 = vpack.c.bf16 %v1083, %v1080
        %v1092 = vld [vmem:[%s1] sm:$0xff]
        %v1093 = vld [vmem:[%s1 + $0x8] sm:$0xff]
        %vm1094 = vcmask 523264
        %v1096 = vsel %vm1094, %v1086, 0
        %v1099 = vsel %vm1094, %v1088, 0
        %1101 = vmatprep.subr.bf16.mxu0 0
        %1102 = vmatpush1.bf16.xpose.msra.mxu0 0
        %1103 = vmatprep.subr.bf16.mxu0 0
        %1104 = vmatpush1.bf16.xpose.msra.mxu0 0
        %1105 = vmatprep.subr.bf16.mxu0 0
        %1106 = vmatpush1.bf16.xpose.msra.mxu0 0
        %1107 = vmatprep.subr.bf16.mxu0 0
        %1108 = vmatpush1.bf16.xpose.msra.mxu0 0
        %1109 = vmatprep.subr.bf16.mxu0 0
        %1110 = vmatpush1.bf16.xpose.msra.mxu0 0
        %1111 = vmatprep.subr.bf16.mxu0 0
        %1112 = vmatpush1.bf16.xpose.msra.mxu0 0
        %1113 = vmatprep.subr.bf16.mxu0 0
        %1114 = vmatpush1.bf16.xpose.msra.mxu0 0
        %1115 = vmatprep.subr.bf16.mxu0 0
        %1116 = vmatpush1.bf16.xpose.msra.mxu0 %v1099
        %1117 = vmatprep.subr.bf16.mxu0 0
        %1118 = vmatpush2.bf16.xpose.msra.mxu0 0
        %1119 = vmatprep.subr.bf16.mxu0 0
        %1120 = vmatpush2.bf16.xpose.msra.mxu0 0
        %1121 = vmatprep.subr.bf16.mxu0 0
        %1122 = vmatpush2.bf16.xpose.msra.mxu0 0
        %1123 = vmatprep.subr.bf16.mxu0 0
        %1124 = vmatpush2.bf16.xpose.msra.mxu0 0
        %1125 = vmatprep.subr.bf16.mxu0 0
        %1126 = vmatpush2.bf16.xpose.msra.mxu0 0
        %1127 = vmatprep.subr.bf16.mxu0 0
        %1128 = vmatpush2.bf16.xpose.msra.mxu0 0
        %1129 = vmatprep.subr.bf16.mxu0 0
        %1130 = vmatpush2.bf16.xpose.msra.mxu0 0
        %1131 = vmatprep.subr.bf16.mxu0 0
        %1132 = vmatpush2.bf16.xpose.msra.mxu0 0
        %1133 = vmatprep.mubr.bf16.mxu0 0
        %1134 = vmatmul.mubr.bf16.gmra.mxu0 %v1096
        %v1135 = vpop.f32.mrf.mxu0
        %v1136 = vadd.f32 %v1092, %v1135
        %v1137 = vpop.f32.mrf.mxu0
        %v1138 = vpop.f32.mrf.mxu0
        %v1139 = vadd.f32 %v1093, %v1138
        %v1140 = vpop.f32.mrf.mxu0
        %1141 = vdwg.mxu0
        %v1143 = vsel %vm1094, %v1087, 0
        %v1146 = vsel %vm1094, %v1089, 0
        %1148 = vmatprep.subr.bf16.mxu0 0
        %1149 = vmatpush1.bf16.xpose.msra.mxu0 0
        %1150 = vmatprep.subr.bf16.mxu0 0
        %1151 = vmatpush1.bf16.xpose.msra.mxu0 0
        %1152 = vmatprep.subr.bf16.mxu0 0
        %1153 = vmatpush1.bf16.xpose.msra.mxu0 0
        %1154 = vmatprep.subr.bf16.mxu0 0
        %1155 = vmatpush1.bf16.xpose.msra.mxu0 0
        %1156 = vmatprep.subr.bf16.mxu0 0
        %1157 = vmatpush1.bf16.xpose.msra.mxu0 0
        %1158 = vmatprep.subr.bf16.mxu0 0
        %1159 = vmatpush1.bf16.xpose.msra.mxu0 0
        %1160 = vmatprep.subr.bf16.mxu0 0
        %1161 = vmatpush1.bf16.xpose.msra.mxu0 0
        %1162 = vmatprep.subr.bf16.mxu0 0
        %1163 = vmatpush1.bf16.xpose.msra.mxu0 %v1146
        %1164 = vmatprep.subr.bf16.mxu0 0
        %1165 = vmatpush2.bf16.xpose.msra.mxu0 0
        %1166 = vmatprep.subr.bf16.mxu0 0
        %1167 = vmatpush2.bf16.xpose.msra.mxu0 0
        %1168 = vmatprep.subr.bf16.mxu0 0
        %1169 = vmatpush2.bf16.xpose.msra.mxu0 0
        %1170 = vmatprep.subr.bf16.mxu0 0
        %1171 = vmatpush2.bf16.xpose.msra.mxu0 0
        %1172 = vmatprep.subr.bf16.mxu0 0
        %1173 = vmatpush2.bf16.xpose.msra.mxu0 0
        %1174 = vmatprep.subr.bf16.mxu0 0
        %1175 = vmatpush2.bf16.xpose.msra.mxu0 0
        %1176 = vmatprep.subr.bf16.mxu0 0
        %1177 = vmatpush2.bf16.xpose.msra.mxu0 0
        %1178 = vmatprep.subr.bf16.mxu0 0
        %1179 = vmatpush2.bf16.xpose.msra.mxu0 0
        %1180 = vmatprep.mubr.bf16.mxu0 0
        %1181 = vmatmul.mubr.bf16.gmra.mxu0 %v1143
        %v1182 = vpop.f32.mrf.mxu0
        %v1183 = vadd.f32 %v1092, %v1182
        %v1184 = vpop.f32.mrf.mxu0
        %v1185 = vpop.f32.mrf.mxu0
        %v1186 = vadd.f32 %v1093, %v1185
        %v1187 = vpop.f32.mrf.mxu0
        %1188 = vdwg.mxu0
        %vm1189 = vcmask 130048
        %v1190 = vsel %vm1189, %v1136, -inf
        %1191 = vmax.xlane.f32.xlu0 %v1190
        %v1192 = vpop.xlane.xlu0 %1191
        %v1193 = vsel %vm1189, %v1139, -inf
        %1194 = vmax.xlane.f32.xlu0 %v1193
        %v1195 = vpop.xlane.xlu0 %1194
        %v1196 = vsel %vm1189, %v1183, -inf
        %1197 = vmax.xlane.f32.xlu0 %v1196
        %v1198 = vpop.xlane.xlu0 %1197
        %v1199 = vsel %vm1189, %v1186, -inf
        %1200 = vmax.xlane.f32.xlu0 %v1199
        %v1201 = vpop.xlane.xlu0 %1200
        %v1202 = vsub.f32 %v1136, %v1192
        %v1203 = vsub.f32 %v1139, %v1195
        %v1204 = vsub.f32 %v1183, %v1198
        %v1205 = vsub.f32 %v1186, %v1201
        %v1206 = vmul.f32 %v1202, 1.442695
        %v1207 = vpow.pop %v1206
        %v1208 = vmul.f32 %v1203, 1.442695
        %v1209 = vpow.pop %v1208
        %v1210 = vmul.f32 %v1204, 1.442695
        %v1211 = vpow.pop %v1210
        %v1212 = vmul.f32 %v1205, 1.442695
        %v1213 = vpow.pop %v1212
        %v1214 = vsel %vm1189, %v1207, 0.0
        %1215 = vadd.xlane.f32.xlu0 %v1214
        %v1216 = vpop.xlane.xlu0 %1215
        %v1217 = vsel %vm1189, %v1209, 0.0
        %1218 = vadd.xlane.f32.xlu0 %v1217
        %v1219 = vpop.xlane.xlu0 %1218
        %v1220 = vsel %vm1189, %v1211, 0.0
        %1221 = vadd.xlane.f32.xlu0 %v1220
        %v1222 = vpop.xlane.xlu0 %1221
        %v1223 = vsel %vm1189, %v1213, 0.0
        %1224 = vadd.xlane.f32.xlu0 %v1223
        %v1225 = vpop.xlane.xlu0 %1224
        %v1226 = vrcp.pop %v1216
        %v1227 = vrcp.pop %v1219
        %v1228 = vrcp.pop %v1222
        %v1229 = vrcp.pop %v1225
        %v1230 = vmul.f32 %v1216, %v1226
        %v1231 = vmul.f32 %v1219, %v1227
        %v1232 = vmul.f32 %v1222, %v1228
        %v1233 = vmul.f32 %v1225, %v1229
        %v1234 = vsub.f32 2.0, %v1230
        %v1235 = vsub.f32 2.0, %v1231
        %v1236 = vsub.f32 2.0, %v1232
        %v1237 = vsub.f32 2.0, %v1233
        %v1238 = vmul.f32 %v1226, %v1234
        %v1239 = vmul.f32 %v1227, %v1235
        %v1240 = vmul.f32 %v1228, %v1236
        %v1241 = vmul.f32 %v1229, %v1237
        %v1242 = vmul.f32 %v1207, %v1238
        %v1243 = vmul.f32 %v1209, %v1239
        %v1244 = vmul.f32 %v1211, %v1240
        %v1245 = vmul.f32 %v1213, %v1241
        %v1246 = vpack.c.bf16 %v1243, %v1242
        %v1247 = vpack.c.bf16 %v1245, %v1244
        %v1249 = vsel %vm1189, %v1246, 0
        %1251 = vmatprep.subr.bf16.mxu0 0
        %1252 = vmatpush1.bf16.msra.mxu0 0
        %1253 = vmatprep.subr.bf16.mxu0 0
        %1254 = vmatpush1.bf16.msra.mxu0 0
        %1255 = vmatprep.subr.bf16.mxu0 0
        %1256 = vmatpush1.bf16.msra.mxu0 0
        %1257 = vmatprep.subr.bf16.mxu0 0
        %1258 = vmatpush1.bf16.msra.mxu0 0
        %1259 = vmatprep.subr.bf16.mxu0 0
        %1260 = vmatpush1.bf16.msra.mxu0 0
        %1261 = vmatprep.subr.bf16.mxu0 0
        %1262 = vmatpush1.bf16.msra.mxu0 0
        %1263 = vmatprep.subr.bf16.mxu0 0
        %1264 = vmatpush1.bf16.msra.mxu0 0
        %1265 = vmatprep.subr.bf16.mxu0 0
        %1266 = vmatpush1.bf16.msra.mxu0 %v1090
        %1267 = vmatprep.subr.bf16.mxu0 0
        %1268 = vmatpush2.bf16.msra.mxu0 0
        %1269 = vmatprep.subr.bf16.mxu0 0
        %1270 = vmatpush2.bf16.msra.mxu0 0
        %1271 = vmatprep.subr.bf16.mxu0 0
        %1272 = vmatpush2.bf16.msra.mxu0 0
        %1273 = vmatprep.subr.bf16.mxu0 0
        %1274 = vmatpush2.bf16.msra.mxu0 0
        %1275 = vmatprep.subr.bf16.mxu0 0
        %1276 = vmatpush2.bf16.msra.mxu0 0
        %1277 = vmatprep.subr.bf16.mxu0 0
        %1278 = vmatpush2.bf16.msra.mxu0 0
        %1279 = vmatprep.subr.bf16.mxu0 0
        %1280 = vmatpush2.bf16.msra.mxu0 0
        %1281 = vmatprep.subr.bf16.mxu0 0
        %1282 = vmatpush2.bf16.msra.mxu0 0
        %1283 = vmatprep.mubr.bf16.mxu0 0
        %1284 = vmatmul.mubr.bf16.gmra.mxu0 %v1249
        %v1285 = vpop.f32.mrf.mxu0
        %v1286 = vadd.f32 0.0, %v1285
        %v1287 = vpop.f32.mrf.mxu0
        %v1288 = vpop.f32.mrf.mxu0
        %v1289 = vadd.f32 0.0, %v1288
        %v1290 = vpop.f32.mrf.mxu0
        %1291 = vdwg.mxu0
        %v1293 = vsel %vm1189, %v1247, 0
        %1295 = vmatprep.subr.bf16.mxu0 0
        %1296 = vmatpush1.bf16.msra.mxu0 0
        %1297 = vmatprep.subr.bf16.mxu0 0
        %1298 = vmatpush1.bf16.msra.mxu0 0
        %1299 = vmatprep.subr.bf16.mxu0 0
        %1300 = vmatpush1.bf16.msra.mxu0 0
        %1301 = vmatprep.subr.bf16.mxu0 0
        %1302 = vmatpush1.bf16.msra.mxu0 0
        %1303 = vmatprep.subr.bf16.mxu0 0
        %1304 = vmatpush1.bf16.msra.mxu0 0
        %1305 = vmatprep.subr.bf16.mxu0 0
        %1306 = vmatpush1.bf16.msra.mxu0 0
        %1307 = vmatprep.subr.bf16.mxu0 0
        %1308 = vmatpush1.bf16.msra.mxu0 0
        %1309 = vmatprep.subr.bf16.mxu0 0
        %1310 = vmatpush1.bf16.msra.mxu0 %v1091
        %1311 = vmatprep.subr.bf16.mxu0 0
        %1312 = vmatpush2.bf16.msra.mxu0 0
        %1313 = vmatprep.subr.bf16.mxu0 0
        %1314 = vmatpush2.bf16.msra.mxu0 0
        %1315 = vmatprep.subr.bf16.mxu0 0
        %1316 = vmatpush2.bf16.msra.mxu0 0
        %1317 = vmatprep.subr.bf16.mxu0 0
        %1318 = vmatpush2.bf16.msra.mxu0 0
        %1319 = vmatprep.subr.bf16.mxu0 0
        %1320 = vmatpush2.bf16.msra.mxu0 0
        %1321 = vmatprep.subr.bf16.mxu0 0
        %1322 = vmatpush2.bf16.msra.mxu0 0
        %1323 = vmatprep.subr.bf16.mxu0 0
        %1324 = vmatpush2.bf16.msra.mxu0 0
        %1325 = vmatprep.subr.bf16.mxu0 0
        %1326 = vmatpush2.bf16.msra.mxu0 0
        %1327 = vmatprep.mubr.bf16.mxu0 0
        %1328 = vmatmul.mubr.bf16.gmra.mxu0 %v1293
        %v1329 = vpop.f32.mrf.mxu0
        %v1330 = vadd.f32 0.0, %v1329
        %v1331 = vpop.f32.mrf.mxu0
        %v1332 = vpop.f32.mrf.mxu0
        %v1333 = vadd.f32 0.0, %v1332
        %v1334 = vpop.f32.mrf.mxu0
        %1335 = vdwg.mxu0
        %1336 = vst.msk [vmem:[#allocation2] sm:$0xff] %vm1094, %v1286
        %1337 = vst.msk [vmem:[#allocation2 + $0x8] sm:$0xff] %vm1094, %v1289
        %1338 = vst.msk [vmem:[#allocation2 + $0x10] sm:$0xff] %vm1094, %v1330
        %1339 = vst.msk [vmem:[#allocation2 + $0x18] sm:$0xff] %vm1094, %v1333
        %1341 = vrot.lane.b32.xlu0 %v1086, 64
        %v1342 = vpop.permute.xlu0 %1341
        %1344 = vrot.lane.b32.xlu0 %v1088, 64
        %v1345 = vpop.permute.xlu0 %1344
        %v1347 = vsel %vm1094, %v1342, 0
        %v1350 = vsel %vm1094, %v1345, 0
        %1352 = vmatprep.subr.bf16.mxu0 0
        %1353 = vmatpush1.bf16.xpose.msra.mxu0 0
        %1354 = vmatprep.subr.bf16.mxu0 0
        %1355 = vmatpush1.bf16.xpose.msra.mxu0 0
        %1356 = vmatprep.subr.bf16.mxu0 0
        %1357 = vmatpush1.bf16.xpose.msra.mxu0 0
        %1358 = vmatprep.subr.bf16.mxu0 0
        %1359 = vmatpush1.bf16.xpose.msra.mxu0 0
        %1360 = vmatprep.subr.bf16.mxu0 0
        %1361 = vmatpush1.bf16.xpose.msra.mxu0 0
        %1362 = vmatprep.subr.bf16.mxu0 0
        %1363 = vmatpush1.bf16.xpose.msra.mxu0 0
        %1364 = vmatprep.subr.bf16.mxu0 0
        %1365 = vmatpush1.bf16.xpose.msra.mxu0 0
        %1366 = vmatprep.subr.bf16.mxu0 0
        %1367 = vmatpush1.bf16.xpose.msra.mxu0 %v1350
        %1368 = vmatprep.subr.bf16.mxu0 0
        %1369 = vmatpush2.bf16.xpose.msra.mxu0 0
        %1370 = vmatprep.subr.bf16.mxu0 0
        %1371 = vmatpush2.bf16.xpose.msra.mxu0 0
        %1372 = vmatprep.subr.bf16.mxu0 0
        %1373 = vmatpush2.bf16.xpose.msra.mxu0 0
        %1374 = vmatprep.subr.bf16.mxu0 0
        %1375 = vmatpush2.bf16.xpose.msra.mxu0 0
        %1376 = vmatprep.subr.bf16.mxu0 0
        %1377 = vmatpush2.bf16.xpose.msra.mxu0 0
        %1378 = vmatprep.subr.bf16.mxu0 0
        %1379 = vmatpush2.bf16.xpose.msra.mxu0 0
        %1380 = vmatprep.subr.bf16.mxu0 0
        %1381 = vmatpush2.bf16.xpose.msra.mxu0 0
        %1382 = vmatprep.subr.bf16.mxu0 0
        %1383 = vmatpush2.bf16.xpose.msra.mxu0 0
        %1384 = vmatprep.mubr.bf16.mxu0 0
        %1385 = vmatmul.mubr.bf16.gmra.mxu0 %v1347
        %v1386 = vpop.f32.mrf.mxu0
        %v1387 = vadd.f32 %v1092, %v1386
        %v1388 = vpop.f32.mrf.mxu0
        %v1389 = vpop.f32.mrf.mxu0
        %v1390 = vadd.f32 %v1093, %v1389
        %v1391 = vpop.f32.mrf.mxu0
        %1392 = vdwg.mxu0
        %1394 = vrot.lane.b32.xlu0 %v1087, 64
        %v1395 = vpop.permute.xlu0 %1394
        %1397 = vrot.lane.b32.xlu0 %v1089, 64
        %v1398 = vpop.permute.xlu0 %1397
        %v1400 = vsel %vm1094, %v1395, 0
        %v1403 = vsel %vm1094, %v1398, 0
        %1405 = vmatprep.subr.bf16.mxu0 0
        %1406 = vmatpush1.bf16.xpose.msra.mxu0 0
        %1407 = vmatprep.subr.bf16.mxu0 0
        %1408 = vmatpush1.bf16.xpose.msra.mxu0 0
        %1409 = vmatprep.subr.bf16.mxu0 0
        %1410 = vmatpush1.bf16.xpose.msra.mxu0 0
        %1411 = vmatprep.subr.bf16.mxu0 0
        %1412 = vmatpush1.bf16.xpose.msra.mxu0 0
        %1413 = vmatprep.subr.bf16.mxu0 0
        %1414 = vmatpush1.bf16.xpose.msra.mxu0 0
        %1415 = vmatprep.subr.bf16.mxu0 0
        %1416 = vmatpush1.bf16.xpose.msra.mxu0 0
        %1417 = vmatprep.subr.bf16.mxu0 0
        %1418 = vmatpush1.bf16.xpose.msra.mxu0 0
        %1419 = vmatprep.subr.bf16.mxu0 0
        %1420 = vmatpush1.bf16.xpose.msra.mxu0 %v1403
        %1421 = vmatprep.subr.bf16.mxu0 0
        %1422 = vmatpush2.bf16.xpose.msra.mxu0 0
        %1423 = vmatprep.subr.bf16.mxu0 0
        %1424 = vmatpush2.bf16.xpose.msra.mxu0 0
        %1425 = vmatprep.subr.bf16.mxu0 0
        %1426 = vmatpush2.bf16.xpose.msra.mxu0 0
        %1427 = vmatprep.subr.bf16.mxu0 0
        %1428 = vmatpush2.bf16.xpose.msra.mxu0 0
        %1429 = vmatprep.subr.bf16.mxu0 0
        %1430 = vmatpush2.bf16.xpose.msra.mxu0 0
        %1431 = vmatprep.subr.bf16.mxu0 0
        %1432 = vmatpush2.bf16.xpose.msra.mxu0 0
        %1433 = vmatprep.subr.bf16.mxu0 0
        %1434 = vmatpush2.bf16.xpose.msra.mxu0 0
        %1435 = vmatprep.subr.bf16.mxu0 0
        %1436 = vmatpush2.bf16.xpose.msra.mxu0 0
        %1437 = vmatprep.mubr.bf16.mxu0 0
        %1438 = vmatmul.mubr.bf16.gmra.mxu0 %v1400
        %v1439 = vpop.f32.mrf.mxu0
        %v1440 = vadd.f32 %v1092, %v1439
        %v1441 = vpop.f32.mrf.mxu0
        %v1442 = vpop.f32.mrf.mxu0
        %v1443 = vadd.f32 %v1093, %v1442
        %v1444 = vpop.f32.mrf.mxu0
        %1445 = vdwg.mxu0
        %v1446 = vsel %vm1189, %v1387, -inf
        %1447 = vmax.xlane.f32.xlu0 %v1446
        %v1448 = vpop.xlane.xlu0 %1447
        %v1449 = vsel %vm1189, %v1390, -inf
        %1450 = vmax.xlane.f32.xlu0 %v1449
        %v1451 = vpop.xlane.xlu0 %1450
        %v1452 = vsel %vm1189, %v1440, -inf
        %1453 = vmax.xlane.f32.xlu0 %v1452
        %v1454 = vpop.xlane.xlu0 %1453
        %v1455 = vsel %vm1189, %v1443, -inf
        %1456 = vmax.xlane.f32.xlu0 %v1455
        %v1457 = vpop.xlane.xlu0 %1456
        %v1458 = vsub.f32 %v1387, %v1448
        %v1459 = vsub.f32 %v1390, %v1451
        %v1460 = vsub.f32 %v1440, %v1454
        %v1461 = vsub.f32 %v1443, %v1457
        %v1462 = vmul.f32 %v1458, 1.442695
        %v1463 = vpow.pop %v1462
        %v1464 = vmul.f32 %v1459, 1.442695
        %v1465 = vpow.pop %v1464
        %v1466 = vmul.f32 %v1460, 1.442695
        %v1467 = vpow.pop %v1466
        %v1468 = vmul.f32 %v1461, 1.442695
        %v1469 = vpow.pop %v1468
        %v1470 = vsel %vm1189, %v1463, 0.0
        %1471 = vadd.xlane.f32.xlu0 %v1470
        %v1472 = vpop.xlane.xlu0 %1471
        %v1473 = vsel %vm1189, %v1465, 0.0
        %1474 = vadd.xlane.f32.xlu0 %v1473
        %v1475 = vpop.xlane.xlu0 %1474
        %v1476 = vsel %vm1189, %v1467, 0.0
        %1477 = vadd.xlane.f32.xlu0 %v1476
        %v1478 = vpop.xlane.xlu0 %1477
        %v1479 = vsel %vm1189, %v1469, 0.0
        %1480 = vadd.xlane.f32.xlu0 %v1479
        %v1481 = vpop.xlane.xlu0 %1480
        %v1482 = vrcp.pop %v1472
        %v1483 = vrcp.pop %v1475
        %v1484 = vrcp.pop %v1478
        %v1485 = vrcp.pop %v1481
        %v1486 = vmul.f32 %v1472, %v1482
        %v1487 = vmul.f32 %v1475, %v1483
        %v1488 = vmul.f32 %v1478, %v1484
        %v1489 = vmul.f32 %v1481, %v1485
        %v1490 = vsub.f32 2.0, %v1486
        %v1491 = vsub.f32 2.0, %v1487
        %v1492 = vsub.f32 2.0, %v1488
        %v1493 = vsub.f32 2.0, %v1489
        %v1494 = vmul.f32 %v1482, %v1490
        %v1495 = vmul.f32 %v1483, %v1491
        %v1496 = vmul.f32 %v1484, %v1492
        %v1497 = vmul.f32 %v1485, %v1493
        %v1498 = vmul.f32 %v1463, %v1494
        %v1499 = vmul.f32 %v1465, %v1495
        %v1500 = vmul.f32 %v1467, %v1496
        %v1501 = vmul.f32 %v1469, %v1497
        %v1502 = vpack.c.bf16 %v1499, %v1498
        %v1503 = vpack.c.bf16 %v1501, %v1500
        %1505 = vrot.lane.b32.xlu0 %v1090, 64
        %v1506 = vpop.permute.xlu0 %1505
        %v1509 = vsel %vm1189, %v1502, 0
        %1511 = vmatprep.subr.bf16.mxu0 0
        %1512 = vmatpush1.bf16.msra.mxu0 0
        %1513 = vmatprep.subr.bf16.mxu0 0
        %1514 = vmatpush1.bf16.msra.mxu0 0
        %1515 = vmatprep.subr.bf16.mxu0 0
        %1516 = vmatpush1.bf16.msra.mxu0 0
        %1517 = vmatprep.subr.bf16.mxu0 0
        %1518 = vmatpush1.bf16.msra.mxu0 0
        %1519 = vmatprep.subr.bf16.mxu0 0
        %1520 = vmatpush1.bf16.msra.mxu0 0
        %1521 = vmatprep.subr.bf16.mxu0 0
        %1522 = vmatpush1.bf16.msra.mxu0 0
        %1523 = vmatprep.subr.bf16.mxu0 0
        %1524 = vmatpush1.bf16.msra.mxu0 0
        %1525 = vmatprep.subr.bf16.mxu0 0
        %1526 = vmatpush1.bf16.msra.mxu0 %v1506
        %1527 = vmatprep.subr.bf16.mxu0 0
        %1528 = vmatpush2.bf16.msra.mxu0 0
        %1529 = vmatprep.subr.bf16.mxu0 0
        %1530 = vmatpush2.bf16.msra.mxu0 0
        %1531 = vmatprep.subr.bf16.mxu0 0
        %1532 = vmatpush2.bf16.msra.mxu0 0
        %1533 = vmatprep.subr.bf16.mxu0 0
        %1534 = vmatpush2.bf16.msra.mxu0 0
        %1535 = vmatprep.subr.bf16.mxu0 0
        %1536 = vmatpush2.bf16.msra.mxu0 0
        %1537 = vmatprep.subr.bf16.mxu0 0
        %1538 = vmatpush2.bf16.msra.mxu0 0
        %1539 = vmatprep.subr.bf16.mxu0 0
        %1540 = vmatpush2.bf16.msra.mxu0 0
        %1541 = vmatprep.subr.bf16.mxu0 0
        %1542 = vmatpush2.bf16.msra.mxu0 0
        %1543 = vmatprep.mubr.bf16.mxu0 0
        %1544 = vmatmul.mubr.bf16.gmra.mxu0 %v1509
        %v1545 = vpop.f32.mrf.mxu0
        %v1546 = vadd.f32 0.0, %v1545
        %v1547 = vpop.f32.mrf.mxu0
        %v1548 = vpop.f32.mrf.mxu0
        %v1549 = vadd.f32 0.0, %v1548
        %v1550 = vpop.f32.mrf.mxu0
        %1551 = vdwg.mxu0
        %1553 = vrot.lane.b32.xlu0 %v1091, 64
        %v1554 = vpop.permute.xlu0 %1553
        %v1557 = vsel %vm1189, %v1503, 0
        %1559 = vmatprep.subr.bf16.mxu0 0
        %1560 = vmatpush1.bf16.msra.mxu0 0
        %1561 = vmatprep.subr.bf16.mxu0 0
        %1562 = vmatpush1.bf16.msra.mxu0 0
        %1563 = vmatprep.subr.bf16.mxu0 0
        %1564 = vmatpush1.bf16.msra.mxu0 0
        %1565 = vmatprep.subr.bf16.mxu0 0
        %1566 = vmatpush1.bf16.msra.mxu0 0
        %1567 = vmatprep.subr.bf16.mxu0 0
        %1568 = vmatpush1.bf16.msra.mxu0 0
        %1569 = vmatprep.subr.bf16.mxu0 0
        %1570 = vmatpush1.bf16.msra.mxu0 0
        %1571 = vmatprep.subr.bf16.mxu0 0
        %1572 = vmatpush1.bf16.msra.mxu0 0
        %1573 = vmatprep.subr.bf16.mxu0 0
        %1574 = vmatpush1.bf16.msra.mxu0 %v1554
        %1575 = vmatprep.subr.bf16.mxu0 0
        %1576 = vmatpush2.bf16.msra.mxu0 0
        %1577 = vmatprep.subr.bf16.mxu0 0
        %1578 = vmatpush2.bf16.msra.mxu0 0
        %1579 = vmatprep.subr.bf16.mxu0 0
        %1580 = vmatpush2.bf16.msra.mxu0 0
        %1581 = vmatprep.subr.bf16.mxu0 0
        %1582 = vmatpush2.bf16.msra.mxu0 0
        %1583 = vmatprep.subr.bf16.mxu0 0
        %1584 = vmatpush2.bf16.msra.mxu0 0
        %1585 = vmatprep.subr.bf16.mxu0 0
        %1586 = vmatpush2.bf16.msra.mxu0 0
        %1587 = vmatprep.subr.bf16.mxu0 0
        %1588 = vmatpush2.bf16.msra.mxu0 0
        %1589 = vmatprep.subr.bf16.mxu0 0
        %1590 = vmatpush2.bf16.msra.mxu0 0
        %1591 = vmatprep.mubr.bf16.mxu0 0
        %1592 = vmatmul.mubr.bf16.gmra.mxu0 %v1557
        %v1593 = vpop.f32.mrf.mxu0
        %v1594 = vadd.f32 0.0, %v1593
        %v1595 = vpop.f32.mrf.mxu0
        %v1596 = vpop.f32.mrf.mxu0
        %v1597 = vadd.f32 0.0, %v1596
        %v1598 = vpop.f32.mrf.mxu0
        %1599 = vdwg.mxu0
        %1604 = vrot.lane.b32.xlu0 %v1546, 64
        %v1605 = vpop.permute.xlu0 %1604
        %1606 = vrot.lane.b32.xlu0 %v1549, 64
        %v1607 = vpop.permute.xlu0 %1606
        %1608 = vrot.lane.b32.xlu0 %v1594, 64
        %v1609 = vpop.permute.xlu0 %1608
        %1610 = vrot.lane.b32.xlu0 %v1597, 64
        %v1611 = vpop.permute.xlu0 %1610
        %vm1616 = vcmask 1048064
        %1617 = vst.msk [vmem:[#allocation2] sm:$0xff] %vm1616, %v1605
        %1618 = vst.msk [vmem:[#allocation2 + $0x8] sm:$0xff] %vm1616, %v1607
        %1619 = vst.msk [vmem:[#allocation2 + $0x10] sm:$0xff] %vm1616, %v1609
        %1620 = vst.msk [vmem:[#allocation2 + $0x18] sm:$0xff] %vm1616, %v1611
        %v1621 = vld [vmem:[#allocation2] sm:$0xff]
        %v1622 = vld [vmem:[#allocation2 + $0x8] sm:$0xff]
        %v1623 = vld [vmem:[#allocation2 + $0x10] sm:$0xff]
        %v1624 = vld [vmem:[#allocation2 + $0x18] sm:$0xff]
        %v1625 = vpack.c.bf16 %v1622, %v1621
        %v1626 = vpack.c.bf16 %v1624, %v1623
        %v1627 = vld [vmem:[%s8] sm:$0xf]
        %v1628 = vld [vmem:[%s8 + $0x4] sm:$0xf]
        %v1629 = vld [vmem:[%s8 + $0x8] sm:$0xf]
        %v1630 = vld [vmem:[%s8 + $0xc] sm:$0xf]
        %v1631 = vld [vmem:[%s8 + $0x10] sm:$0xf]
        %v1632 = vld [vmem:[%s8 + $0x14] sm:$0xf]
        %v1633 = vld [vmem:[%s8 + $0x18] sm:$0xf]
        %v1634 = vld [vmem:[%s8 + $0x1c] sm:$0xf]
        %v1635 = vld [vmem:[%s8 + $0x20] sm:$0xf]
        %v1636 = vld [vmem:[%s8 + $0x24] sm:$0xf]
        %v1637 = vld [vmem:[%s8 + $0x28] sm:$0xf]
        %v1638 = vld [vmem:[%s8 + $0x2c] sm:$0xf]
        %v1639 = vld [vmem:[%s8 + $0x30] sm:$0xf]
        %v1640 = vld [vmem:[%s8 + $0x34] sm:$0xf]
        %v1641 = vld [vmem:[%s8 + $0x38] sm:$0xf]
        %v1642 = vld [vmem:[%s8 + $0x3c] sm:$0xf]
        %v1643 = vld [vmem:[%s9] sm:$0x1]
        %v1645 = vlaneseq
        %v1646 = vshrl.u32 %v1645, 7
        %v1647 = vsub.s32 0, %v1646
        %v1648 = vrot.slane %v1643, %v1647
        %v1666 = vunpack.c.l.b16 %v1627
        %v1667 = vunpack.c.l.b16 %v1628
        %v1668 = vunpack.c.l.b16 %v1629
        %v1669 = vunpack.c.l.b16 %v1630
        %v1670 = vunpack.c.l.b16 %v1631
        %v1671 = vunpack.c.l.b16 %v1632
        %v1672 = vunpack.c.l.b16 %v1633
        %v1673 = vunpack.c.l.b16 %v1634
        %v1674 = vunpack.c.l.b16 %v1635
        %v1675 = vunpack.c.l.b16 %v1636
        %v1676 = vunpack.c.l.b16 %v1637
        %v1677 = vunpack.c.l.b16 %v1638
        %v1678 = vunpack.c.l.b16 %v1639
        %v1679 = vunpack.c.l.b16 %v1640
        %v1680 = vunpack.c.l.b16 %v1641
        %v1681 = vunpack.c.l.b16 %v1642
        %v1682 = vpack.c.b16 %v1667, %v1666
        %v1683 = vpack.c.b16 %v1669, %v1668
        %v1684 = vpack.c.b16 %v1671, %v1670
        %v1685 = vpack.c.b16 %v1673, %v1672
        %v1686 = vpack.c.b16 %v1675, %v1674
        %v1687 = vpack.c.b16 %v1677, %v1676
        %v1688 = vpack.c.b16 %v1679, %v1678
        %v1689 = vpack.c.b16 %v1681, %v1680
        %1698 = vmatprep.subr.bf16.mxu0 0
        %1699 = vmatpush1.bf16.msra.mxu0 %v1689
        %1700 = vmatprep.subr.bf16.mxu0 0
        %1701 = vmatpush1.bf16.msra.mxu0 %v1688
        %1702 = vmatprep.subr.bf16.mxu0 0
        %1703 = vmatpush1.bf16.msra.mxu0 %v1687
        %1704 = vmatprep.subr.bf16.mxu0 0
        %1705 = vmatpush1.bf16.msra.mxu0 %v1686
        %1706 = vmatprep.subr.bf16.mxu0 0
        %1707 = vmatpush1.bf16.msra.mxu0 %v1685
        %1708 = vmatprep.subr.bf16.mxu0 0
        %1709 = vmatpush1.bf16.msra.mxu0 %v1684
        %1710 = vmatprep.subr.bf16.mxu0 0
        %1711 = vmatpush1.bf16.msra.mxu0 %v1683
        %1712 = vmatprep.subr.bf16.mxu0 0
        %1713 = vmatpush1.bf16.msra.mxu0 %v1682
        %1714 = vmatprep.subr.bf16.mxu0 0
        %1715 = vmatpush2.bf16.msra.mxu0 0
        %1716 = vmatprep.subr.bf16.mxu0 0
        %1717 = vmatpush2.bf16.msra.mxu0 0
        %1718 = vmatprep.subr.bf16.mxu0 0
        %1719 = vmatpush2.bf16.msra.mxu0 0
        %1720 = vmatprep.subr.bf16.mxu0 0
        %1721 = vmatpush2.bf16.msra.mxu0 0
        %1722 = vmatprep.subr.bf16.mxu0 0
        %1723 = vmatpush2.bf16.msra.mxu0 0
        %1724 = vmatprep.subr.bf16.mxu0 0
        %1725 = vmatpush2.bf16.msra.mxu0 0
        %1726 = vmatprep.subr.bf16.mxu0 0
        %1727 = vmatpush2.bf16.msra.mxu0 0
        %1728 = vmatprep.subr.bf16.mxu0 0
        %1729 = vmatpush2.bf16.msra.mxu0 0
        %1730 = vmatprep.mubr.bf16.mxu0 0
        %1731 = vmatmul.mubr.bf16.gmra.mxu0 %v1625
        %v1732 = vpop.f32.mrf.mxu0
        %v1733 = vadd.f32 %v1648, %v1732
        %v1734 = vpop.f32.mrf.mxu0
        %v1735 = vpop.f32.mrf.mxu0
        %v1736 = vadd.f32 %v1648, %v1735
        %v1737 = vpop.f32.mrf.mxu0
        %1738 = vmatprep.mubr.bf16.mxu0 0
        %1739 = vmatmul.mubr.bf16.gmra.mxu0 %v1626
        %v1740 = vpop.f32.mrf.mxu0
        %v1741 = vadd.f32 %v1648, %v1740
        %v1742 = vpop.f32.mrf.mxu0
        %v1743 = vpop.f32.mrf.mxu0
        %v1744 = vadd.f32 %v1648, %v1743
        %v1745 = vpop.f32.mrf.mxu0
        %1746 = vdwg.mxu0
        %v1747 = vadd.f32 %v1733, %v716
        %v1748 = vadd.f32 %v1736, %v717
        %v1749 = vadd.f32 %v1741, %v718
        %v1750 = vadd.f32 %v1744, %v719
        %v1751 = vld [vmem:[%s10] sm:$0x1]
        %v1752 = vld [vmem:[%s11] sm:$0x1]
        %1753 = vadd.xlane.f32.xlu0 %v1747
        %v1754 = vpop.xlane.xlu0 %1753
        %1755 = vadd.xlane.f32.xlu0 %v1748
        %v1756 = vpop.xlane.xlu0 %1755
        %1757 = vadd.xlane.f32.xlu0 %v1749
        %v1758 = vpop.xlane.xlu0 %1757
        %1759 = vadd.xlane.f32.xlu0 %v1750
        %v1760 = vpop.xlane.xlu0 %1759
        %v1761 = vrcp.pop 128.0
        %v1762 = vmul.f32 %v1754, %v1761
        %v1763 = vmul.f32 %v1756, %v1761
        %v1764 = vmul.f32 %v1758, %v1761
        %v1765 = vmul.f32 %v1760, %v1761
        %v1766 = vsub.f32 %v1747, %v1762
        %v1767 = vsub.f32 %v1748, %v1763
        %v1768 = vsub.f32 %v1749, %v1764
        %v1769 = vsub.f32 %v1750, %v1765
        %v1770 = vmul.f32 %v1766, %v1766
        %v1771 = vmul.f32 %v1767, %v1767
        %v1772 = vmul.f32 %v1768, %v1768
        %v1773 = vmul.f32 %v1769, %v1769
        %1774 = vadd.xlane.f32.xlu0 %v1770
        %v1775 = vpop.xlane.xlu0 %1774
        %1776 = vadd.xlane.f32.xlu0 %v1771
        %v1777 = vpop.xlane.xlu0 %1776
        %1778 = vadd.xlane.f32.xlu0 %v1772
        %v1779 = vpop.xlane.xlu0 %1778
        %1780 = vadd.xlane.f32.xlu0 %v1773
        %v1781 = vpop.xlane.xlu0 %1780
        %v1782 = vmul.f32 %v1775, %v1761
        %v1783 = vmul.f32 %v1777, %v1761
        %v1784 = vmul.f32 %v1779, %v1761
        %v1785 = vmul.f32 %v1781, %v1761
        %v1786 = vadd.f32 %v1782, 1e-12
        %v1787 = vadd.f32 %v1783, 1e-12
        %v1788 = vadd.f32 %v1784, 1e-12
        %v1789 = vadd.f32 %v1785, 1e-12
        %v1790 = vrsqrt.pop %v1786
        %v1791 = vrsqrt.pop %v1787
        %v1792 = vrsqrt.pop %v1788
        %v1793 = vrsqrt.pop %v1789
        %v1794 = vmul.f32 %v1766, %v1790
        %v1795 = vmul.f32 %v1767, %v1791
        %v1796 = vmul.f32 %v1768, %v1792
        %v1797 = vmul.f32 %v1769, %v1793
        %v1799 = vlaneseq
        %v1800 = vshrl.u32 %v1799, 7
        %v1801 = vsub.s32 0, %v1800
        %v1802 = vrot.slane %v1751, %v1801
        %v1804 = vmul.f32 %v1794, %v1802
        %v1805 = vmul.f32 %v1795, %v1802
        %v1806 = vmul.f32 %v1796, %v1802
        %v1807 = vmul.f32 %v1797, %v1802
        %v1809 = vlaneseq
        %v1810 = vshrl.u32 %v1809, 7
        %v1811 = vsub.s32 0, %v1810
        %v1812 = vrot.slane %v1752, %v1811
        %v1814 = vadd.f32 %v1804, %v1812
        %v1815 = vadd.f32 %v1805, %v1812
        %v1816 = vadd.f32 %v1806, %v1812
        %v1817 = vadd.f32 %v1807, %v1812
        %v1818 = vld [vmem:[%s13] sm:$0xff]
        %v1819 = vld [vmem:[%s12] sm:$0xff]
        %v1820 = vld [vmem:[%s12 + $0x8] sm:$0xff]
        %v1822 = vsel %vm1189, %v1818, 0
        %1824 = vmatprep.subr.mxu0 0.0
        %1825 = vmatpush1.msra.mxu0 0.0
        %1826 = vmatprep.subr.mxu0 0.0
        %1827 = vmatpush1.msra.mxu0 0.0
        %1828 = vmatprep.subr.mxu0 0.0
        %1829 = vmatpush1.msra.mxu0 0.0
        %1830 = vmatprep.subr.mxu0 0.0
        %1831 = vmatpush1.msra.mxu0 0.0
        %1832 = vmatprep.subr.mxu0 0.0
        %1833 = vmatpush1.msra.mxu0 0.0
        %1834 = vmatprep.subr.mxu0 0.0
        %1835 = vmatpush1.msra.mxu0 0.0
        %1836 = vmatprep.subr.mxu0 0.0
        %1837 = vmatpush1.msra.mxu0 0.0
        %1838 = vmatprep.subr.mxu0 0.0
        %1839 = vmatpush1.msra.mxu0 0.0
        %1840 = vmatprep.subr.mxu0 0.0
        %1841 = vmatpush1.msra.mxu0 0.0
        %1842 = vmatprep.subr.mxu0 0.0
        %1843 = vmatpush1.msra.mxu0 0.0
        %1844 = vmatprep.subr.mxu0 0.0
        %1845 = vmatpush1.msra.mxu0 0.0
        %1846 = vmatprep.subr.mxu0 0.0
        %1847 = vmatpush1.msra.mxu0 0.0
        %1848 = vmatprep.subr.mxu0 0.0
        %1849 = vmatpush1.msra.mxu0 0.0
        %1850 = vmatprep.subr.mxu0 0.0
        %1851 = vmatpush1.msra.mxu0 0.0
        %1852 = vmatprep.subr.mxu0 0.0
        %1853 = vmatpush1.msra.mxu0 %v717
        %1854 = vmatprep.subr.mxu0 0.0
        %1855 = vmatpush1.msra.mxu0 %v716
        %1856 = vmatprep.subr.mxu0 0.0
        %1857 = vmatpush2.msra.mxu0 0.0
        %1858 = vmatprep.subr.mxu0 0.0
        %1859 = vmatpush2.msra.mxu0 0.0
        %1860 = vmatprep.subr.mxu0 0.0
        %1861 = vmatpush2.msra.mxu0 0.0
        %1862 = vmatprep.subr.mxu0 0.0
        %1863 = vmatpush2.msra.mxu0 0.0
        %1864 = vmatprep.subr.mxu0 0.0
        %1865 = vmatpush2.msra.mxu0 0.0
        %1866 = vmatprep.subr.mxu0 0.0
        %1867 = vmatpush2.msra.mxu0 0.0
        %1868 = vmatprep.subr.mxu0 0.0
        %1869 = vmatpush2.msra.mxu0 0.0
        %1870 = vmatprep.subr.mxu0 0.0
        %1871 = vmatpush2.msra.mxu0 0.0
        %1872 = vmatprep.subr.mxu0 0.0
        %1873 = vmatpush2.msra.mxu0 0.0
        %1874 = vmatprep.subr.mxu0 0.0
        %1875 = vmatpush2.msra.mxu0 0.0
        %1876 = vmatprep.subr.mxu0 0.0
        %1877 = vmatpush2.msra.mxu0 0.0
        %1878 = vmatprep.subr.mxu0 0.0
        %1879 = vmatpush2.msra.mxu0 0.0
        %1880 = vmatprep.subr.mxu0 0.0
        %1881 = vmatpush2.msra.mxu0 0.0
        %1882 = vmatprep.subr.mxu0 0.0
        %1883 = vmatpush2.msra.mxu0 0.0
        %1884 = vmatprep.subr.mxu0 0.0
        %1885 = vmatpush2.msra.mxu0 0.0
        %1886 = vmatprep.subr.mxu0 0.0
        %1887 = vmatpush2.msra.mxu0 0.0
        %1888 = vmatprep.mubr.f32.mxu0 0.0
        %1889 = vmatmul.mubr.f32.gmra.mxu0 %v1822
        %v1890 = vpop.f32.mrf.mxu0
        %v1891 = vadd.f32 0.0, %v1890
        %v1892 = vpop.f32.mrf.mxu0
        %1893 = vdwg.mxu0
        %vm1894 = vcmask 64512
        %v1896 = vsel %vm1894, %v1819, 0
        %v1899 = vsel %vm1894, %v1820, 0
        %1901 = vmatprep.subr.mxu0 0.0
        %1902 = vmatpush1.msra.mxu0 0.0
        %1903 = vmatprep.subr.mxu0 0.0
        %1904 = vmatpush1.msra.mxu0 0.0
        %1905 = vmatprep.subr.mxu0 0.0
        %1906 = vmatpush1.msra.mxu0 0.0
        %1907 = vmatprep.subr.mxu0 0.0
        %1908 = vmatpush1.msra.mxu0 0.0
        %1909 = vmatprep.subr.mxu0 0.0
        %1910 = vmatpush1.msra.mxu0 0.0
        %1911 = vmatprep.subr.mxu0 0.0
        %1912 = vmatpush1.msra.mxu0 0.0
        %1913 = vmatprep.subr.mxu0 0.0
        %1914 = vmatpush1.msra.mxu0 0.0
        %1915 = vmatprep.subr.mxu0 0.0
        %1916 = vmatpush1.msra.mxu0 0.0
        %1917 = vmatprep.subr.mxu0 0.0
        %1918 = vmatpush1.msra.mxu0 0.0
        %1919 = vmatprep.subr.mxu0 0.0
        %1920 = vmatpush1.msra.mxu0 0.0
        %1921 = vmatprep.subr.mxu0 0.0
        %1922 = vmatpush1.msra.mxu0 0.0
        %1923 = vmatprep.subr.mxu0 0.0
        %1924 = vmatpush1.msra.mxu0 0.0
        %1925 = vmatprep.subr.mxu0 0.0
        %1926 = vmatpush1.msra.mxu0 0.0
        %1927 = vmatprep.subr.mxu0 0.0
        %1928 = vmatpush1.msra.mxu0 0.0
        %1929 = vmatprep.subr.mxu0 0.0
        %1930 = vmatpush1.msra.mxu0 0.0
        %1931 = vmatprep.subr.mxu0 0.0
        %1932 = vmatpush1.msra.mxu0 %v1891
        %1933 = vmatprep.subr.mxu0 0.0
        %1934 = vmatpush2.msra.mxu0 0.0
        %1935 = vmatprep.subr.mxu0 0.0
        %1936 = vmatpush2.msra.mxu0 0.0
        %1937 = vmatprep.subr.mxu0 0.0
        %1938 = vmatpush2.msra.mxu0 0.0
        %1939 = vmatprep.subr.mxu0 0.0
        %1940 = vmatpush2.msra.mxu0 0.0
        %1941 = vmatprep.subr.mxu0 0.0
        %1942 = vmatpush2.msra.mxu0 0.0
        %1943 = vmatprep.subr.mxu0 0.0
        %1944 = vmatpush2.msra.mxu0 0.0
        %1945 = vmatprep.subr.mxu0 0.0
        %1946 = vmatpush2.msra.mxu0 0.0
        %1947 = vmatprep.subr.mxu0 0.0
        %1948 = vmatpush2.msra.mxu0 0.0
        %1949 = vmatprep.subr.mxu0 0.0
        %1950 = vmatpush2.msra.mxu0 0.0
        %1951 = vmatprep.subr.mxu0 0.0
        %1952 = vmatpush2.msra.mxu0 0.0
        %1953 = vmatprep.subr.mxu0 0.0
        %1954 = vmatpush2.msra.mxu0 0.0
        %1955 = vmatprep.subr.mxu0 0.0
        %1956 = vmatpush2.msra.mxu0 0.0
        %1957 = vmatprep.subr.mxu0 0.0
        %1958 = vmatpush2.msra.mxu0 0.0
        %1959 = vmatprep.subr.mxu0 0.0
        %1960 = vmatpush2.msra.mxu0 0.0
        %1961 = vmatprep.subr.mxu0 0.0
        %1962 = vmatpush2.msra.mxu0 0.0
        %1963 = vmatprep.subr.mxu0 0.0
        %1964 = vmatpush2.msra.mxu0 0.0
        %1965 = vmatprep.mubr.f32.mxu0 0.0
        %1966 = vmatmul.mubr.f32.gmra.mxu0 %v1896
        %v1967 = vpop.f32.mrf.mxu0
        %v1968 = vadd.f32 0.0, %v1967
        %v1969 = vpop.f32.mrf.mxu0
        %1970 = vmatprep.mubr.f32.mxu0 0.0
        %1971 = vmatmul.mubr.f32.gmra.mxu0 %v1899
        %v1972 = vpop.f32.mrf.mxu0
        %v1973 = vadd.f32 0.0, %v1972
        %v1974 = vpop.f32.mrf.mxu0
        %1975 = vdwg.mxu0
        %1976 = vmatprep.subr.mxu0 0.0
        %1977 = vmatpush1.msra.mxu0 0.0
        %1978 = vmatprep.subr.mxu0 0.0
        %1979 = vmatpush1.msra.mxu0 0.0
        %1980 = vmatprep.subr.mxu0 0.0
        %1981 = vmatpush1.msra.mxu0 0.0
        %1982 = vmatprep.subr.mxu0 0.0
        %1983 = vmatpush1.msra.mxu0 0.0
        %1984 = vmatprep.subr.mxu0 0.0
        %1985 = vmatpush1.msra.mxu0 0.0
        %1986 = vmatprep.subr.mxu0 0.0
        %1987 = vmatpush1.msra.mxu0 0.0
        %1988 = vmatprep.subr.mxu0 0.0
        %1989 = vmatpush1.msra.mxu0 0.0
        %1990 = vmatprep.subr.mxu0 0.0
        %1991 = vmatpush1.msra.mxu0 0.0
        %1992 = vmatprep.subr.mxu0 0.0
        %1993 = vmatpush1.msra.mxu0 0.0
        %1994 = vmatprep.subr.mxu0 0.0
        %1995 = vmatpush1.msra.mxu0 0.0
        %1996 = vmatprep.subr.mxu0 0.0
        %1997 = vmatpush1.msra.mxu0 0.0
        %1998 = vmatprep.subr.mxu0 0.0
        %1999 = vmatpush1.msra.mxu0 0.0
        %2000 = vmatprep.subr.mxu0 0.0
        %2001 = vmatpush1.msra.mxu0 0.0
        %2002 = vmatprep.subr.mxu0 0.0
        %2003 = vmatpush1.msra.mxu0 0.0
        %2004 = vmatprep.subr.mxu0 0.0
        %2005 = vmatpush1.msra.mxu0 %v719
        %2006 = vmatprep.subr.mxu0 0.0
        %2007 = vmatpush1.msra.mxu0 %v718
        %2008 = vmatprep.subr.mxu0 0.0
        %2009 = vmatpush2.msra.mxu0 0.0
        %2010 = vmatprep.subr.mxu0 0.0
        %2011 = vmatpush2.msra.mxu0 0.0
        %2012 = vmatprep.subr.mxu0 0.0
        %2013 = vmatpush2.msra.mxu0 0.0
        %2014 = vmatprep.subr.mxu0 0.0
        %2015 = vmatpush2.msra.mxu0 0.0
        %2016 = vmatprep.subr.mxu0 0.0
        %2017 = vmatpush2.msra.mxu0 0.0
        %2018 = vmatprep.subr.mxu0 0.0
        %2019 = vmatpush2.msra.mxu0 0.0
        %2020 = vmatprep.subr.mxu0 0.0
        %2021 = vmatpush2.msra.mxu0 0.0
        %2022 = vmatprep.subr.mxu0 0.0
        %2023 = vmatpush2.msra.mxu0 0.0
        %2024 = vmatprep.subr.mxu0 0.0
        %2025 = vmatpush2.msra.mxu0 0.0
        %2026 = vmatprep.subr.mxu0 0.0
        %2027 = vmatpush2.msra.mxu0 0.0
        %2028 = vmatprep.subr.mxu0 0.0
        %2029 = vmatpush2.msra.mxu0 0.0
        %2030 = vmatprep.subr.mxu0 0.0
        %2031 = vmatpush2.msra.mxu0 0.0
        %2032 = vmatprep.subr.mxu0 0.0
        %2033 = vmatpush2.msra.mxu0 0.0
        %2034 = vmatprep.subr.mxu0 0.0
        %2035 = vmatpush2.msra.mxu0 0.0
        %2036 = vmatprep.subr.mxu0 0.0
        %2037 = vmatpush2.msra.mxu0 0.0
        %2038 = vmatprep.subr.mxu0 0.0
        %2039 = vmatpush2.msra.mxu0 0.0
        %2040 = vmatprep.mubr.f32.mxu0 0.0
        %2041 = vmatmul.mubr.f32.gmra.mxu0 %v1822
        %v2042 = vpop.f32.mrf.mxu0
        %v2043 = vadd.f32 0.0, %v2042
        %v2044 = vpop.f32.mrf.mxu0
        %2045 = vdwg.mxu0
        %2046 = vmatprep.subr.mxu0 0.0
        %2047 = vmatpush1.msra.mxu0 0.0
        %2048 = vmatprep.subr.mxu0 0.0
        %2049 = vmatpush1.msra.mxu0 0.0
        %2050 = vmatprep.subr.mxu0 0.0
        %2051 = vmatpush1.msra.mxu0 0.0
        %2052 = vmatprep.subr.mxu0 0.0
        %2053 = vmatpush1.msra.mxu0 0.0
        %2054 = vmatprep.subr.mxu0 0.0
        %2055 = vmatpush1.msra.mxu0 0.0
        %2056 = vmatprep.subr.mxu0 0.0
        %2057 = vmatpush1.msra.mxu0 0.0
        %2058 = vmatprep.subr.mxu0 0.0
        %2059 = vmatpush1.msra.mxu0 0.0
        %2060 = vmatprep.subr.mxu0 0.0
        %2061 = vmatpush1.msra.mxu0 0.0
        %2062 = vmatprep.subr.mxu0 0.0
        %2063 = vmatpush1.msra.mxu0 0.0
        %2064 = vmatprep.subr.mxu0 0.0
        %2065 = vmatpush1.msra.mxu0 0.0
        %2066 = vmatprep.subr.mxu0 0.0
        %2067 = vmatpush1.msra.mxu0 0.0
        %2068 = vmatprep.subr.mxu0 0.0
        %2069 = vmatpush1.msra.mxu0 0.0
        %2070 = vmatprep.subr.mxu0 0.0
        %2071 = vmatpush1.msra.mxu0 0.0
        %2072 = vmatprep.subr.mxu0 0.0
        %2073 = vmatpush1.msra.mxu0 0.0
        %2074 = vmatprep.subr.mxu0 0.0
        %2075 = vmatpush1.msra.mxu0 0.0
        %2076 = vmatprep.subr.mxu0 0.0
        %2077 = vmatpush1.msra.mxu0 %v2043
        %2078 = vmatprep.subr.mxu0 0.0
        %2079 = vmatpush2.msra.mxu0 0.0
        %2080 = vmatprep.subr.mxu0 0.0
        %2081 = vmatpush2.msra.mxu0 0.0
        %2082 = vmatprep.subr.mxu0 0.0
        %2083 = vmatpush2.msra.mxu0 0.0
        %2084 = vmatprep.subr.mxu0 0.0
        %2085 = vmatpush2.msra.mxu0 0.0
        %2086 = vmatprep.subr.mxu0 0.0
        %2087 = vmatpush2.msra.mxu0 0.0
        %2088 = vmatprep.subr.mxu0 0.0
        %2089 = vmatpush2.msra.mxu0 0.0
        %2090 = vmatprep.subr.mxu0 0.0
        %2091 = vmatpush2.msra.mxu0 0.0
        %2092 = vmatprep.subr.mxu0 0.0
        %2093 = vmatpush2.msra.mxu0 0.0
        %2094 = vmatprep.subr.mxu0 0.0
        %2095 = vmatpush2.msra.mxu0 0.0
        %2096 = vmatprep.subr.mxu0 0.0
        %2097 = vmatpush2.msra.mxu0 0.0
        %2098 = vmatprep.subr.mxu0 0.0
        %2099 = vmatpush2.msra.mxu0 0.0
        %2100 = vmatprep.subr.mxu0 0.0
        %2101 = vmatpush2.msra.mxu0 0.0
        %2102 = vmatprep.subr.mxu0 0.0
        %2103 = vmatpush2.msra.mxu0 0.0
        %2104 = vmatprep.subr.mxu0 0.0
        %2105 = vmatpush2.msra.mxu0 0.0
        %2106 = vmatprep.subr.mxu0 0.0
        %2107 = vmatpush2.msra.mxu0 0.0
        %2108 = vmatprep.subr.mxu0 0.0
        %2109 = vmatpush2.msra.mxu0 0.0
        %2110 = vmatprep.mubr.f32.mxu0 0.0
        %2111 = vmatmul.mubr.f32.gmra.mxu0 %v1896
        %v2112 = vpop.f32.mrf.mxu0
        %v2113 = vadd.f32 0.0, %v2112
        %v2114 = vpop.f32.mrf.mxu0
        %2115 = vmatprep.mubr.f32.mxu0 0.0
        %2116 = vmatmul.mubr.f32.gmra.mxu0 %v1899
        %v2117 = vpop.f32.mrf.mxu0
        %v2118 = vadd.f32 0.0, %v2117
        %v2119 = vpop.f32.mrf.mxu0
        %2120 = vdwg.mxu0
        %v2121 = vld [vmem:[%s14] sm:$0x1]
        %v2122 = vmul.f32 %v2121, %v2121
        %v2123 = vsub.f32 1.0, %v2122
        %v2125 = vlaneseq
        %v2126 = vshrl.u32 %v2125, 7
        %v2127 = vsub.s32 0, %v2126
        %v2128 = vrot.slane %v2123, %v2127
        %v2130 = vmul.f32 %v2128, %v1968
        %v2131 = vmul.f32 %v2128, %v1973
        %v2132 = vmul.f32 %v2128, %v2113
        %v2133 = vmul.f32 %v2128, %v2118
        %v2134 = vadd.f32 %v2122, 1.0
        %v2136 = vlaneseq
        %v2137 = vshrl.u32 %v2136, 7
        %v2138 = vsub.s32 0, %v2137
        %v2139 = vrot.slane %v2134, %v2138
        %v2141 = vmul.f32 %v2139, %v716
        %v2142 = vmul.f32 %v2139, %v717
        %v2143 = vmul.f32 %v2139, %v718
        %v2144 = vmul.f32 %v2139, %v719
        %v2145 = vadd.f32 %v2130, %v2141
        %v2146 = vadd.f32 %v2131, %v2142
        %v2147 = vadd.f32 %v2132, %v2143
        %v2148 = vadd.f32 %v2133, %v2144
        %v2149 = vld [vmem:[%s15] sm:$0x1]
        %v2150 = vld [vmem:[%s16] sm:$0x1]
        %2151 = vadd.xlane.f32.xlu0 %v2145
        %v2152 = vpop.xlane.xlu0 %2151
        %2153 = vadd.xlane.f32.xlu0 %v2146
        %v2154 = vpop.xlane.xlu0 %2153
        %2155 = vadd.xlane.f32.xlu0 %v2147
        %v2156 = vpop.xlane.xlu0 %2155
        %2157 = vadd.xlane.f32.xlu0 %v2148
        %v2158 = vpop.xlane.xlu0 %2157
        %v2159 = vmul.f32 %v2152, %v1761
        %v2160 = vmul.f32 %v2154, %v1761
        %v2161 = vmul.f32 %v2156, %v1761
        %v2162 = vmul.f32 %v2158, %v1761
        %v2163 = vsub.f32 %v2145, %v2159
        %v2164 = vsub.f32 %v2146, %v2160
        %v2165 = vsub.f32 %v2147, %v2161
        %v2166 = vsub.f32 %v2148, %v2162
        %v2167 = vmul.f32 %v2163, %v2163
        %v2168 = vmul.f32 %v2164, %v2164
        %v2169 = vmul.f32 %v2165, %v2165
        %v2170 = vmul.f32 %v2166, %v2166
        %2171 = vadd.xlane.f32.xlu0 %v2167
        %v2172 = vpop.xlane.xlu0 %2171
        %2173 = vadd.xlane.f32.xlu0 %v2168
        %v2174 = vpop.xlane.xlu0 %2173
        %2175 = vadd.xlane.f32.xlu0 %v2169
        %v2176 = vpop.xlane.xlu0 %2175
        %2177 = vadd.xlane.f32.xlu0 %v2170
        %v2178 = vpop.xlane.xlu0 %2177
        %v2179 = vmul.f32 %v2172, %v1761
        %v2180 = vmul.f32 %v2174, %v1761
        %v2181 = vmul.f32 %v2176, %v1761
        %v2182 = vmul.f32 %v2178, %v1761
        %v2183 = vadd.f32 %v2179, 1e-12
        %v2184 = vadd.f32 %v2180, 1e-12
        %v2185 = vadd.f32 %v2181, 1e-12
        %v2186 = vadd.f32 %v2182, 1e-12
        %v2187 = vrsqrt.pop %v2183
        %v2188 = vrsqrt.pop %v2184
        %v2189 = vrsqrt.pop %v2185
        %v2190 = vrsqrt.pop %v2186
        %v2191 = vmul.f32 %v2163, %v2187
        %v2192 = vmul.f32 %v2164, %v2188
        %v2193 = vmul.f32 %v2165, %v2189
        %v2194 = vmul.f32 %v2166, %v2190
        %v2196 = vlaneseq
        %v2197 = vshrl.u32 %v2196, 7
        %v2198 = vsub.s32 0, %v2197
        %v2199 = vrot.slane %v2149, %v2198
        %v2201 = vmul.f32 %v2191, %v2199
        %v2202 = vmul.f32 %v2192, %v2199
        %v2203 = vmul.f32 %v2193, %v2199
        %v2204 = vmul.f32 %v2194, %v2199
        %v2206 = vlaneseq
        %v2207 = vshrl.u32 %v2206, 7
        %v2208 = vsub.s32 0, %v2207
        %v2209 = vrot.slane %v2150, %v2208
        %v2211 = vadd.f32 %v2201, %v2209
        %v2212 = vadd.f32 %v2202, %v2209
        %v2213 = vadd.f32 %v2203, %v2209
        %v2214 = vadd.f32 %v2204, %v2209
        %v2215 = vadd.f32 %v2211, %v1814
        %v2216 = vadd.f32 %v2212, %v1815
        %v2217 = vadd.f32 %v2213, %v1816
        %v2218 = vadd.f32 %v2214, %v1817
        %v2219 = vmul.f32 %v2215, 0.5
        %v2220 = vmul.f32 %v2216, 0.5
        %v2221 = vmul.f32 %v2217, 0.5
        %v2222 = vmul.f32 %v2218, 0.5
        %v2223 = vpack.c.bf16 %v2220, %v2219
        %v2224 = vpack.c.bf16 %v2222, %v2221
        %v2225 = vld [vmem:[%s17] sm:$0xff]
        %v2226 = vld [vmem:[%s17 + $0x8] sm:$0xff]
        %v2227 = vld [vmem:[%s17 + $0x10] sm:$0xff]
        %v2228 = vld [vmem:[%s17 + $0x18] sm:$0xff]
        %v2229 = vld [vmem:[%s17 + $0x20] sm:$0xff]
        %v2230 = vld [vmem:[%s17 + $0x28] sm:$0xff]
        %v2231 = vld [vmem:[%s17 + $0x30] sm:$0xff]
        %v2232 = vld [vmem:[%s17 + $0x38] sm:$0xff]
        %v2233 = vld [vmem:[%s17 + $0x40] sm:$0xff]
        %v2234 = vld [vmem:[%s17 + $0x48] sm:$0xff]
        %v2235 = vld [vmem:[%s17 + $0x50] sm:$0xff]
        %v2236 = vld [vmem:[%s17 + $0x58] sm:$0xff]
        %v2237 = vld [vmem:[%s17 + $0x60] sm:$0xff]
        %v2238 = vld [vmem:[%s17 + $0x68] sm:$0xff]
        %v2239 = vld [vmem:[%s17 + $0x70] sm:$0xff]
        %v2240 = vld [vmem:[%s17 + $0x78] sm:$0xff]
        %v2241 = vld [vmem:[%s18] sm:$0x3]
        %v2243 = vlaneseq
        %v2244 = vshrl.u32 %v2243, 7
        %v2245 = vsub.s32 0, %v2244
        %v2246 = vrot.slane %v2241, %v2245
        %v2247 = vlaneseq
        %v2248 = vshrl.u32 %v2247, 7
        %v2249 = vsub.s32 1, %v2248
        %v2250 = vrot.slane %v2241, %v2249
        %v2269 = vunpack.c.l.b16 %v2225
        %v2270 = vunpack.c.h.b16 %v2225
        %v2271 = vunpack.c.l.b16 %v2226
        %v2272 = vunpack.c.h.b16 %v2226
        %v2273 = vunpack.c.l.b16 %v2227
        %v2274 = vunpack.c.h.b16 %v2227
        %v2275 = vunpack.c.l.b16 %v2228
        %v2276 = vunpack.c.h.b16 %v2228
        %v2277 = vunpack.c.l.b16 %v2229
        %v2278 = vunpack.c.h.b16 %v2229
        %v2279 = vunpack.c.l.b16 %v2230
        %v2280 = vunpack.c.h.b16 %v2230
        %v2281 = vunpack.c.l.b16 %v2231
        %v2282 = vunpack.c.h.b16 %v2231
        %v2283 = vunpack.c.l.b16 %v2232
        %v2284 = vunpack.c.h.b16 %v2232
        %v2285 = vunpack.c.l.b16 %v2233
        %v2286 = vunpack.c.h.b16 %v2233
        %v2287 = vunpack.c.l.b16 %v2234
        %v2288 = vunpack.c.h.b16 %v2234
        %v2289 = vunpack.c.l.b16 %v2235
        %v2290 = vunpack.c.h.b16 %v2235
        %v2291 = vunpack.c.l.b16 %v2236
        %v2292 = vunpack.c.h.b16 %v2236
        %v2293 = vunpack.c.l.b16 %v2237
        %v2294 = vunpack.c.h.b16 %v2237
        %v2295 = vunpack.c.l.b16 %v2238
        %v2296 = vunpack.c.h.b16 %v2238
        %v2297 = vunpack.c.l.b16 %v2239
        %v2298 = vunpack.c.h.b16 %v2239
        %v2299 = vunpack.c.l.b16 %v2240
        %v2300 = vunpack.c.h.b16 %v2240
        %v2301 = vpack.c.b16 %v2271, %v2269
        %v2302 = vpack.c.b16 %v2272, %v2270
        %v2303 = vpack.c.b16 %v2275, %v2273
        %v2304 = vpack.c.b16 %v2276, %v2274
        %v2305 = vpack.c.b16 %v2279, %v2277
        %v2306 = vpack.c.b16 %v2280, %v2278
        %v2307 = vpack.c.b16 %v2283, %v2281
        %v2308 = vpack.c.b16 %v2284, %v2282
        %v2309 = vpack.c.b16 %v2287, %v2285
        %v2310 = vpack.c.b16 %v2288, %v2286
        %v2311 = vpack.c.b16 %v2291, %v2289
        %v2312 = vpack.c.b16 %v2292, %v2290
        %v2313 = vpack.c.b16 %v2295, %v2293
        %v2314 = vpack.c.b16 %v2296, %v2294
        %v2315 = vpack.c.b16 %v2299, %v2297
        %v2316 = vpack.c.b16 %v2300, %v2298
        %2333 = vmatprep.subr.bf16.mxu0 %v2316
        %2334 = vmatpush1.bf16.msra.mxu0 %v2315
        %2335 = vmatprep.subr.bf16.mxu0 %v2314
        %2336 = vmatpush1.bf16.msra.mxu0 %v2313
        %2337 = vmatprep.subr.bf16.mxu0 %v2312
        %2338 = vmatpush1.bf16.msra.mxu0 %v2311
        %2339 = vmatprep.subr.bf16.mxu0 %v2310
        %2340 = vmatpush1.bf16.msra.mxu0 %v2309
        %2341 = vmatprep.subr.bf16.mxu0 %v2308
        %2342 = vmatpush1.bf16.msra.mxu0 %v2307
        %2343 = vmatprep.subr.bf16.mxu0 %v2306
        %2344 = vmatpush1.bf16.msra.mxu0 %v2305
        %2345 = vmatprep.subr.bf16.mxu0 %v2304
        %2346 = vmatpush1.bf16.msra.mxu0 %v2303
        %2347 = vmatprep.subr.bf16.mxu0 %v2302
        %2348 = vmatpush1.bf16.msra.mxu0 %v2301
        %2349 = vmatprep.subr.bf16.mxu0 0
        %2350 = vmatpush2.bf16.msra.mxu0 0
        %2351 = vmatprep.subr.bf16.mxu0 0
        %2352 = vmatpush2.bf16.msra.mxu0 0
        %2353 = vmatprep.subr.bf16.mxu0 0
        %2354 = vmatpush2.bf16.msra.mxu0 0
        %2355 = vmatprep.subr.bf16.mxu0 0
        %2356 = vmatpush2.bf16.msra.mxu0 0
        %2357 = vmatprep.subr.bf16.mxu0 0
        %2358 = vmatpush2.bf16.msra.mxu0 0
        %2359 = vmatprep.subr.bf16.mxu0 0
        %2360 = vmatpush2.bf16.msra.mxu0 0
        %2361 = vmatprep.subr.bf16.mxu0 0
        %2362 = vmatpush2.bf16.msra.mxu0 0
        %2363 = vmatprep.subr.bf16.mxu0 0
        %2364 = vmatpush2.bf16.msra.mxu0 0
        %2365 = vmatprep.mubr.bf16.mxu0 0
        %2366 = vmatmul.mubr.bf16.gmra.mxu0 %v2223
        %v2367 = vpop.f32.mrf.mxu0
        %v2368 = vadd.f32 %v2246, %v2367
        %v2369 = vpop.f32.mrf.mxu0
        %v2370 = vadd.f32 %v2250, %v2369
        %v2371 = vpop.f32.mrf.mxu0
        %v2372 = vadd.f32 %v2246, %v2371
        %v2373 = vpop.f32.mrf.mxu0
        %v2374 = vadd.f32 %v2250, %v2373
        %2375 = vmatprep.mubr.bf16.mxu0 0
        %2376 = vmatmul.mubr.bf16.gmra.mxu0 %v2224
        %v2377 = vpop.f32.mrf.mxu0
        %v2378 = vadd.f32 %v2246, %v2377
        %v2379 = vpop.f32.mrf.mxu0
        %v2380 = vadd.f32 %v2250, %v2379
        %v2381 = vpop.f32.mrf.mxu0
        %v2382 = vadd.f32 %v2246, %v2381
        %v2383 = vpop.f32.mrf.mxu0
        %v2384 = vadd.f32 %v2250, %v2383
        %2385 = vdwg.mxu0
        %v2386 = vmul.f32 %v2368, 0.5
        %v2387 = vmul.f32 %v2370, 0.5
        %v2388 = vmul.f32 %v2372, 0.5
        %v2389 = vmul.f32 %v2374, 0.5
        %v2390 = vmul.f32 %v2378, 0.5
        %v2391 = vmul.f32 %v2380, 0.5
        %v2392 = vmul.f32 %v2382, 0.5
        %v2393 = vmul.f32 %v2384, 0.5
        %v2394 = vmul.f32 %v2368, 0.70710677
        %v2395 = vmul.f32 %v2370, 0.70710677
        %v2396 = vmul.f32 %v2372, 0.70710677
        %v2397 = vmul.f32 %v2374, 0.70710677
        %v2398 = vmul.f32 %v2378, 0.70710677
        %v2399 = vmul.f32 %v2380, 0.70710677
        %v2400 = vmul.f32 %v2382, 0.70710677
        %v2401 = vmul.f32 %v2384, 0.70710677
        %v2402 = vand.u32 2147483647, %v2394
        %v2403 = vand.u32 2147483647, %v2395
        %v2404 = vand.u32 2147483647, %v2396
        %v2405 = vand.u32 2147483647, %v2397
        %v2406 = vand.u32 2147483647, %v2398
        %v2407 = vand.u32 2147483647, %v2399
        %v2408 = vand.u32 2147483647, %v2400
        %v2409 = vand.u32 2147483647, %v2401
        %v2410 = vmul.f32 %v2402, 0.3275911
        %v2411 = vmul.f32 %v2403, 0.3275911
        %v2412 = vmul.f32 %v2404, 0.3275911
        %v2413 = vmul.f32 %v2405, 0.3275911
        %v2414 = vmul.f32 %v2406, 0.3275911
        %v2415 = vmul.f32 %v2407, 0.3275911
        %v2416 = vmul.f32 %v2408, 0.3275911
        %v2417 = vmul.f32 %v2409, 0.3275911
        %v2418 = vadd.f32 %v2410, 1.0
        %v2419 = vadd.f32 %v2411, 1.0
        %v2420 = vadd.f32 %v2412, 1.0
        %v2421 = vadd.f32 %v2413, 1.0
        %v2422 = vadd.f32 %v2414, 1.0
        %v2423 = vadd.f32 %v2415, 1.0
        %v2424 = vadd.f32 %v2416, 1.0
        %v2425 = vadd.f32 %v2417, 1.0
        %v2426 = vrcp.pop %v2418
        %v2427 = vrcp.pop %v2419
        %v2428 = vrcp.pop %v2420
        %v2429 = vrcp.pop %v2421
        %v2430 = vrcp.pop %v2422
        %v2431 = vrcp.pop %v2423
        %v2432 = vrcp.pop %v2424
        %v2433 = vrcp.pop %v2425
        %v2434 = vmul.f32 %v2418, %v2426
        %v2435 = vmul.f32 %v2419, %v2427
        %v2436 = vmul.f32 %v2420, %v2428
        %v2437 = vmul.f32 %v2421, %v2429
        %v2438 = vmul.f32 %v2422, %v2430
        %v2439 = vmul.f32 %v2423, %v2431
        %v2440 = vmul.f32 %v2424, %v2432
        %v2441 = vmul.f32 %v2425, %v2433
        %v2442 = vsub.f32 2.0, %v2434
        %v2443 = vsub.f32 2.0, %v2435
        %v2444 = vsub.f32 2.0, %v2436
        %v2445 = vsub.f32 2.0, %v2437
        %v2446 = vsub.f32 2.0, %v2438
        %v2447 = vsub.f32 2.0, %v2439
        %v2448 = vsub.f32 2.0, %v2440
        %v2449 = vsub.f32 2.0, %v2441
        %v2450 = vmul.f32 %v2426, %v2442
        %v2451 = vmul.f32 %v2427, %v2443
        %v2452 = vmul.f32 %v2428, %v2444
        %v2453 = vmul.f32 %v2429, %v2445
        %v2454 = vmul.f32 %v2430, %v2446
        %v2455 = vmul.f32 %v2431, %v2447
        %v2456 = vmul.f32 %v2432, %v2448
        %v2457 = vmul.f32 %v2433, %v2449
        %v2458 = vmul.f32 %v2450, 1.0614054
        %v2459 = vmul.f32 %v2451, 1.0614054
        %v2460 = vmul.f32 %v2452, 1.0614054
        %v2461 = vmul.f32 %v2453, 1.0614054
        %v2462 = vmul.f32 %v2454, 1.0614054
        %v2463 = vmul.f32 %v2455, 1.0614054
        %v2464 = vmul.f32 %v2456, 1.0614054
        %v2465 = vmul.f32 %v2457, 1.0614054
        %v2466 = vadd.f32 %v2458, -1.4531521
        %v2467 = vadd.f32 %v2459, -1.4531521
        %v2468 = vadd.f32 %v2460, -1.4531521
        %v2469 = vadd.f32 %v2461, -1.4531521
        %v2470 = vadd.f32 %v2462, -1.4531521
        %v2471 = vadd.f32 %v2463, -1.4531521
        %v2472 = vadd.f32 %v2464, -1.4531521
        %v2473 = vadd.f32 %v2465, -1.4531521
        %v2474 = vmul.f32 %v2466, %v2450
        %v2475 = vmul.f32 %v2467, %v2451
        %v2476 = vmul.f32 %v2468, %v2452
        %v2477 = vmul.f32 %v2469, %v2453
        %v2478 = vmul.f32 %v2470, %v2454
        %v2479 = vmul.f32 %v2471, %v2455
        %v2480 = vmul.f32 %v2472, %v2456
        %v2481 = vmul.f32 %v2473, %v2457
        %v2482 = vadd.f32 %v2474, 1.4214138
        %v2483 = vadd.f32 %v2475, 1.4214138
        %v2484 = vadd.f32 %v2476, 1.4214138
        %v2485 = vadd.f32 %v2477, 1.4214138
        %v2486 = vadd.f32 %v2478, 1.4214138
        %v2487 = vadd.f32 %v2479, 1.4214138
        %v2488 = vadd.f32 %v2480, 1.4214138
        %v2489 = vadd.f32 %v2481, 1.4214138
        %v2490 = vmul.f32 %v2482, %v2450
        %v2491 = vmul.f32 %v2483, %v2451
        %v2492 = vmul.f32 %v2484, %v2452
        %v2493 = vmul.f32 %v2485, %v2453
        %v2494 = vmul.f32 %v2486, %v2454
        %v2495 = vmul.f32 %v2487, %v2455
        %v2496 = vmul.f32 %v2488, %v2456
        %v2497 = vmul.f32 %v2489, %v2457
        %v2498 = vadd.f32 %v2490, -0.28449672
        %v2499 = vadd.f32 %v2491, -0.28449672
        %v2500 = vadd.f32 %v2492, -0.28449672
        %v2501 = vadd.f32 %v2493, -0.28449672
        %v2502 = vadd.f32 %v2494, -0.28449672
        %v2503 = vadd.f32 %v2495, -0.28449672
        %v2504 = vadd.f32 %v2496, -0.28449672
        %v2505 = vadd.f32 %v2497, -0.28449672
        %v2506 = vmul.f32 %v2498, %v2450
        %v2507 = vmul.f32 %v2499, %v2451
        %v2508 = vmul.f32 %v2500, %v2452
        %v2509 = vmul.f32 %v2501, %v2453
        %v2510 = vmul.f32 %v2502, %v2454
        %v2511 = vmul.f32 %v2503, %v2455
        %v2512 = vmul.f32 %v2504, %v2456
        %v2513 = vmul.f32 %v2505, %v2457
        %v2514 = vadd.f32 %v2506, 0.2548296
        %v2515 = vadd.f32 %v2507, 0.2548296
        %v2516 = vadd.f32 %v2508, 0.2548296
        %v2517 = vadd.f32 %v2509, 0.2548296
        %v2518 = vadd.f32 %v2510, 0.2548296
        %v2519 = vadd.f32 %v2511, 0.2548296
        %v2520 = vadd.f32 %v2512, 0.2548296
        %v2521 = vadd.f32 %v2513, 0.2548296
        %v2522 = vmul.f32 %v2514, %v2450
        %v2523 = vmul.f32 %v2515, %v2451
        %v2524 = vmul.f32 %v2516, %v2452
        %v2525 = vmul.f32 %v2517, %v2453
        %v2526 = vmul.f32 %v2518, %v2454
        %v2527 = vmul.f32 %v2519, %v2455
        %v2528 = vmul.f32 %v2520, %v2456
        %v2529 = vmul.f32 %v2521, %v2457
        %v2530 = vsub.f32 0.0, %v2402
        %v2531 = vsub.f32 0.0, %v2403
        %v2532 = vsub.f32 0.0, %v2404
        %v2533 = vsub.f32 0.0, %v2405
        %v2534 = vsub.f32 0.0, %v2406
        %v2535 = vsub.f32 0.0, %v2407
        %v2536 = vsub.f32 0.0, %v2408
        %v2537 = vsub.f32 0.0, %v2409
        %v2538 = vmul.f32 %v2530, %v2402
        %v2539 = vmul.f32 %v2531, %v2403
        %v2540 = vmul.f32 %v2532, %v2404
        %v2541 = vmul.f32 %v2533, %v2405
        %v2542 = vmul.f32 %v2534, %v2406
        %v2543 = vmul.f32 %v2535, %v2407
        %v2544 = vmul.f32 %v2536, %v2408
        %v2545 = vmul.f32 %v2537, %v2409
        %v2546 = vmul.f32 %v2538, 1.442695
        %v2547 = vpow.pop %v2546
        %v2548 = vmul.f32 %v2539, 1.442695
        %v2549 = vpow.pop %v2548
        %v2550 = vmul.f32 %v2540, 1.442695
        %v2551 = vpow.pop %v2550
        %v2552 = vmul.f32 %v2541, 1.442695
        %v2553 = vpow.pop %v2552
        %v2554 = vmul.f32 %v2542, 1.442695
        %v2555 = vpow.pop %v2554
        %v2556 = vmul.f32 %v2543, 1.442695
        %v2557 = vpow.pop %v2556
        %v2558 = vmul.f32 %v2544, 1.442695
        %v2559 = vpow.pop %v2558
        %v2560 = vmul.f32 %v2545, 1.442695
        %v2561 = vpow.pop %v2560
        %v2562 = vmul.f32 %v2522, %v2547
        %v2563 = vmul.f32 %v2523, %v2549
        %v2564 = vmul.f32 %v2524, %v2551
        %v2565 = vmul.f32 %v2525, %v2553
        %v2566 = vmul.f32 %v2526, %v2555
        %v2567 = vmul.f32 %v2527, %v2557
        %v2568 = vmul.f32 %v2528, %v2559
        %v2569 = vmul.f32 %v2529, %v2561
        %v2570 = vsub.f32 1.0, %v2562
        %v2571 = vsub.f32 1.0, %v2563
        %v2572 = vsub.f32 1.0, %v2564
        %v2573 = vsub.f32 1.0, %v2565
        %v2574 = vsub.f32 1.0, %v2566
        %v2575 = vsub.f32 1.0, %v2567
        %v2576 = vsub.f32 1.0, %v2568
        %v2577 = vsub.f32 1.0, %v2569
        %vm2578 = vcmp.lt.f32.partialorder %v2394, 0.0
        %vm2579 = vcmp.lt.f32.partialorder %v2395, 0.0
        %vm2580 = vcmp.lt.f32.partialorder %v2396, 0.0
        %vm2581 = vcmp.lt.f32.partialorder %v2397, 0.0
        %vm2582 = vcmp.lt.f32.partialorder %v2398, 0.0
        %vm2583 = vcmp.lt.f32.partialorder %v2399, 0.0
        %vm2584 = vcmp.lt.f32.partialorder %v2400, 0.0
        %vm2585 = vcmp.lt.f32.partialorder %v2401, 0.0
        %v2586 = vsub.f32 0.0, %v2570
        %v2587 = vsub.f32 0.0, %v2571
        %v2588 = vsub.f32 0.0, %v2572
        %v2589 = vsub.f32 0.0, %v2573
        %v2590 = vsub.f32 0.0, %v2574
        %v2591 = vsub.f32 0.0, %v2575
        %v2592 = vsub.f32 0.0, %v2576
        %v2593 = vsub.f32 0.0, %v2577
        %v2594 = vsel %vm2578, %v2586, %v2570
        %v2595 = vsel %vm2579, %v2587, %v2571
        %v2596 = vsel %vm2580, %v2588, %v2572
        %v2597 = vsel %vm2581, %v2589, %v2573
        %v2598 = vsel %vm2582, %v2590, %v2574
        %v2599 = vsel %vm2583, %v2591, %v2575
        %v2600 = vsel %vm2584, %v2592, %v2576
        %v2601 = vsel %vm2585, %v2593, %v2577
        %v2602 = vadd.f32 %v2594, 1.0
        %v2603 = vadd.f32 %v2595, 1.0
        %v2604 = vadd.f32 %v2596, 1.0
        %v2605 = vadd.f32 %v2597, 1.0
        %v2606 = vadd.f32 %v2598, 1.0
        %v2607 = vadd.f32 %v2599, 1.0
        %v2608 = vadd.f32 %v2600, 1.0
        %v2609 = vadd.f32 %v2601, 1.0
        %v2610 = vmul.f32 %v2386, %v2602
        %v2611 = vmul.f32 %v2387, %v2603
        %v2612 = vmul.f32 %v2388, %v2604
        %v2613 = vmul.f32 %v2389, %v2605
        %v2614 = vmul.f32 %v2390, %v2606
        %v2615 = vmul.f32 %v2391, %v2607
        %v2616 = vmul.f32 %v2392, %v2608
        %v2617 = vmul.f32 %v2393, %v2609
        %v2618 = vpack.c.bf16 %v2612, %v2610
        %v2619 = vpack.c.bf16 %v2613, %v2611
        %v2620 = vpack.c.bf16 %v2616, %v2614
        %v2621 = vpack.c.bf16 %v2617, %v2615
        %v2622 = vld [vmem:[%s19] sm:$0xf]
        %v2623 = vld [vmem:[%s19 + $0x4] sm:$0xf]
        %v2624 = vld [vmem:[%s19 + $0x8] sm:$0xf]
        %v2625 = vld [vmem:[%s19 + $0xc] sm:$0xf]
        %v2626 = vld [vmem:[%s19 + $0x10] sm:$0xf]
        %v2627 = vld [vmem:[%s19 + $0x14] sm:$0xf]
        %v2628 = vld [vmem:[%s19 + $0x18] sm:$0xf]
        %v2629 = vld [vmem:[%s19 + $0x1c] sm:$0xf]
        %v2630 = vld [vmem:[%s19 + $0x20] sm:$0xf]
        %v2631 = vld [vmem:[%s19 + $0x24] sm:$0xf]
        %v2632 = vld [vmem:[%s19 + $0x28] sm:$0xf]
        %v2633 = vld [vmem:[%s19 + $0x2c] sm:$0xf]
        %v2634 = vld [vmem:[%s19 + $0x30] sm:$0xf]
        %v2635 = vld [vmem:[%s19 + $0x34] sm:$0xf]
        %v2636 = vld [vmem:[%s19 + $0x38] sm:$0xf]
        %v2637 = vld [vmem:[%s19 + $0x3c] sm:$0xf]
        %v2638 = vld [vmem:[%s19 + $0x40] sm:$0xf]
        %v2639 = vld [vmem:[%s19 + $0x44] sm:$0xf]
        %v2640 = vld [vmem:[%s19 + $0x48] sm:$0xf]
        %v2641 = vld [vmem:[%s19 + $0x4c] sm:$0xf]
        %v2642 = vld [vmem:[%s19 + $0x50] sm:$0xf]
        %v2643 = vld [vmem:[%s19 + $0x54] sm:$0xf]
        %v2644 = vld [vmem:[%s19 + $0x58] sm:$0xf]
        %v2645 = vld [vmem:[%s19 + $0x5c] sm:$0xf]
        %v2646 = vld [vmem:[%s19 + $0x60] sm:$0xf]
        %v2647 = vld [vmem:[%s19 + $0x64] sm:$0xf]
        %v2648 = vld [vmem:[%s19 + $0x68] sm:$0xf]
        %v2649 = vld [vmem:[%s19 + $0x6c] sm:$0xf]
        %v2650 = vld [vmem:[%s19 + $0x70] sm:$0xf]
        %v2651 = vld [vmem:[%s19 + $0x74] sm:$0xf]
        %v2652 = vld [vmem:[%s19 + $0x78] sm:$0xf]
        %v2653 = vld [vmem:[%s19 + $0x7c] sm:$0xf]
        %v2654 = vld [vmem:[%s20] sm:$0x1]
        %v2656 = vlaneseq
        %v2657 = vshrl.u32 %v2656, 7
        %v2658 = vsub.s32 0, %v2657
        %v2659 = vrot.slane %v2654, %v2658
        %v2693 = vunpack.c.l.b16 %v2622
        %v2694 = vunpack.c.l.b16 %v2623
        %v2695 = vunpack.c.l.b16 %v2624
        %v2696 = vunpack.c.l.b16 %v2625
        %v2697 = vunpack.c.l.b16 %v2626
        %v2698 = vunpack.c.l.b16 %v2627
        %v2699 = vunpack.c.l.b16 %v2628
        %v2700 = vunpack.c.l.b16 %v2629
        %v2701 = vunpack.c.l.b16 %v2630
        %v2702 = vunpack.c.l.b16 %v2631
        %v2703 = vunpack.c.l.b16 %v2632
        %v2704 = vunpack.c.l.b16 %v2633
        %v2705 = vunpack.c.l.b16 %v2634
        %v2706 = vunpack.c.l.b16 %v2635
        %v2707 = vunpack.c.l.b16 %v2636
        %v2708 = vunpack.c.l.b16 %v2637
        %v2709 = vunpack.c.l.b16 %v2638
        %v2710 = vunpack.c.l.b16 %v2639
        %v2711 = vunpack.c.l.b16 %v2640
        %v2712 = vunpack.c.l.b16 %v2641
        %v2713 = vunpack.c.l.b16 %v2642
        %v2714 = vunpack.c.l.b16 %v2643
        %v2715 = vunpack.c.l.b16 %v2644
        %v2716 = vunpack.c.l.b16 %v2645
        %v2717 = vunpack.c.l.b16 %v2646
        %v2718 = vunpack.c.l.b16 %v2647
        %v2719 = vunpack.c.l.b16 %v2648
        %v2720 = vunpack.c.l.b16 %v2649
        %v2721 = vunpack.c.l.b16 %v2650
        %v2722 = vunpack.c.l.b16 %v2651
        %v2723 = vunpack.c.l.b16 %v2652
        %v2724 = vunpack.c.l.b16 %v2653
        %v2725 = vpack.c.b16 %v2694, %v2693
        %v2726 = vpack.c.b16 %v2696, %v2695
        %v2727 = vpack.c.b16 %v2698, %v2697
        %v2728 = vpack.c.b16 %v2700, %v2699
        %v2729 = vpack.c.b16 %v2702, %v2701
        %v2730 = vpack.c.b16 %v2704, %v2703
        %v2731 = vpack.c.b16 %v2706, %v2705
        %v2732 = vpack.c.b16 %v2708, %v2707
        %v2733 = vpack.c.b16 %v2710, %v2709
        %v2734 = vpack.c.b16 %v2712, %v2711
        %v2735 = vpack.c.b16 %v2714, %v2713
        %v2736 = vpack.c.b16 %v2716, %v2715
        %v2737 = vpack.c.b16 %v2718, %v2717
        %v2738 = vpack.c.b16 %v2720, %v2719
        %v2739 = vpack.c.b16 %v2722, %v2721
        %v2740 = vpack.c.b16 %v2724, %v2723
        %2757 = vmatprep.subr.bf16.mxu0 0
        %2758 = vmatpush1.bf16.msra.mxu0 %v2732
        %2759 = vmatprep.subr.bf16.mxu0 0
        %2760 = vmatpush1.bf16.msra.mxu0 %v2731
        %2761 = vmatprep.subr.bf16.mxu0 0
        %2762 = vmatpush1.bf16.msra.mxu0 %v2730
        %2763 = vmatprep.subr.bf16.mxu0 0
        %2764 = vmatpush1.bf16.msra.mxu0 %v2729
        %2765 = vmatprep.subr.bf16.mxu0 0
        %2766 = vmatpush1.bf16.msra.mxu0 %v2728
        %2767 = vmatprep.subr.bf16.mxu0 0
        %2768 = vmatpush1.bf16.msra.mxu0 %v2727
        %2769 = vmatprep.subr.bf16.mxu0 0
        %2770 = vmatpush1.bf16.msra.mxu0 %v2726
        %2771 = vmatprep.subr.bf16.mxu0 0
        %2772 = vmatpush1.bf16.msra.mxu0 %v2725
        %2773 = vmatprep.subr.bf16.mxu0 0
        %2774 = vmatpush2.bf16.msra.mxu0 %v2740
        %2775 = vmatprep.subr.bf16.mxu0 0
        %2776 = vmatpush2.bf16.msra.mxu0 %v2739
        %2777 = vmatprep.subr.bf16.mxu0 0
        %2778 = vmatpush2.bf16.msra.mxu0 %v2738
        %2779 = vmatprep.subr.bf16.mxu0 0
        %2780 = vmatpush2.bf16.msra.mxu0 %v2737
        %2781 = vmatprep.subr.bf16.mxu0 0
        %2782 = vmatpush2.bf16.msra.mxu0 %v2736
        %2783 = vmatprep.subr.bf16.mxu0 0
        %2784 = vmatpush2.bf16.msra.mxu0 %v2735
        %2785 = vmatprep.subr.bf16.mxu0 0
        %2786 = vmatpush2.bf16.msra.mxu0 %v2734
        %2787 = vmatprep.subr.bf16.mxu0 0
        %2788 = vmatpush2.bf16.msra.mxu0 %v2733
        %2789 = vmatprep.mubr.bf16.mxu0 %v2619
        %2790 = vmatmul.mubr.bf16.gmra.mxu0 %v2618
        %v2791 = vpop.f32.mrf.mxu0
        %v2792 = vadd.f32 %v2659, %v2791
        %v2793 = vpop.f32.mrf.mxu0
        %v2794 = vpop.f32.mrf.mxu0
        %v2795 = vadd.f32 %v2659, %v2794
        %v2796 = vpop.f32.mrf.mxu0
        %2797 = vmatprep.mubr.bf16.mxu0 %v2621
        %2798 = vmatmul.mubr.bf16.gmra.mxu0 %v2620
        %v2799 = vpop.f32.mrf.mxu0
        %v2800 = vadd.f32 %v2659, %v2799
        %v2801 = vpop.f32.mrf.mxu0
        %v2802 = vpop.f32.mrf.mxu0
        %v2803 = vadd.f32 %v2659, %v2802
        %v2804 = vpop.f32.mrf.mxu0
        %2805 = vdwg.mxu0
        %v2806 = vadd.f32 %v2792, %v2219
        %v2807 = vadd.f32 %v2795, %v2220
        %v2808 = vadd.f32 %v2800, %v2221
        %v2809 = vadd.f32 %v2803, %v2222
        %v2810 = vld [vmem:[%s21] sm:$0x1]
        %v2811 = vld [vmem:[%s22] sm:$0x1]
        %2812 = vadd.xlane.f32.xlu0 %v2806
        %v2813 = vpop.xlane.xlu0 %2812
        %2814 = vadd.xlane.f32.xlu0 %v2807
        %v2815 = vpop.xlane.xlu0 %2814
        %2816 = vadd.xlane.f32.xlu0 %v2808
        %v2817 = vpop.xlane.xlu0 %2816
        %2818 = vadd.xlane.f32.xlu0 %v2809
        %v2819 = vpop.xlane.xlu0 %2818
        %v2820 = vmul.f32 %v2813, %v1761
        %v2821 = vmul.f32 %v2815, %v1761
        %v2822 = vmul.f32 %v2817, %v1761
        %v2823 = vmul.f32 %v2819, %v1761
        %v2824 = vsub.f32 %v2806, %v2820
        %v2825 = vsub.f32 %v2807, %v2821
        %v2826 = vsub.f32 %v2808, %v2822
        %v2827 = vsub.f32 %v2809, %v2823
        %v2828 = vmul.f32 %v2824, %v2824
        %v2829 = vmul.f32 %v2825, %v2825
        %v2830 = vmul.f32 %v2826, %v2826
        %v2831 = vmul.f32 %v2827, %v2827
        %2832 = vadd.xlane.f32.xlu0 %v2828
        %v2833 = vpop.xlane.xlu0 %2832
        %2834 = vadd.xlane.f32.xlu0 %v2829
        %v2835 = vpop.xlane.xlu0 %2834
        %2836 = vadd.xlane.f32.xlu0 %v2830
        %v2837 = vpop.xlane.xlu0 %2836
        %2838 = vadd.xlane.f32.xlu0 %v2831
        %v2839 = vpop.xlane.xlu0 %2838
        %v2840 = vmul.f32 %v2833, %v1761
        %v2841 = vmul.f32 %v2835, %v1761
        %v2842 = vmul.f32 %v2837, %v1761
        %v2843 = vmul.f32 %v2839, %v1761
        %v2844 = vadd.f32 %v2840, 1e-12
        %v2845 = vadd.f32 %v2841, 1e-12
        %v2846 = vadd.f32 %v2842, 1e-12
        %v2847 = vadd.f32 %v2843, 1e-12
        %v2848 = vrsqrt.pop %v2844
        %v2849 = vrsqrt.pop %v2845
        %v2850 = vrsqrt.pop %v2846
        %v2851 = vrsqrt.pop %v2847
        %v2852 = vmul.f32 %v2824, %v2848
        %v2853 = vmul.f32 %v2825, %v2849
        %v2854 = vmul.f32 %v2826, %v2850
        %v2855 = vmul.f32 %v2827, %v2851
        %v2857 = vlaneseq
        %v2858 = vshrl.u32 %v2857, 7
        %v2859 = vsub.s32 0, %v2858
        %v2860 = vrot.slane %v2810, %v2859
        %v2862 = vmul.f32 %v2852, %v2860
        %v2863 = vmul.f32 %v2853, %v2860
        %v2864 = vmul.f32 %v2854, %v2860
        %v2865 = vmul.f32 %v2855, %v2860
        %v2867 = vlaneseq
        %v2868 = vshrl.u32 %v2867, 7
        %v2869 = vsub.s32 0, %v2868
        %v2870 = vrot.slane %v2811, %v2869
        %v2872 = vadd.f32 %v2862, %v2870
        %v2873 = vadd.f32 %v2863, %v2870
        %v2874 = vadd.f32 %v2864, %v2870
        %v2875 = vadd.f32 %v2865, %v2870
        %2876 = vst [vmem:[%s706] sm:$0xff] %v2872
        %2877 = vst [vmem:[%s706 + $0x8] sm:$0xff] %v2873
        %2878 = vst [vmem:[%s706 + $0x10] sm:$0xff] %v2874
        %2879 = vst [vmem:[%s706 + $0x18] sm:$0xff] %v2875
        %s2880 = sand.u32 %s533, 1
        %s2881 = scalar_lea.sflag [#allocation4], %s2880
        %s2882 = sand.u32 %s533, 1
        %s2883 = smul.addr %s2882, 32
        %s2884 = scalar_lea.vmem [#allocation3], %s2883
        // Predicated region
        $region113: #{transformer_layer.1} parent=111 // pred_check
          %p2885 = pneg %p543
        $region114: #{transformer_layer.1} parent=111 // pred_check_branch
          %2887 = sbr.rel (%p2885) target = $region116
        $region115: #{transformer_layer.1} parent=111 // pred_region
          %s2888 = smul.u32 4, %s37
          %s2890 = ssub.s32 512, 512
          %2891 = vsyncadd %s2881, %s2890
          %s2892 = smul.addr %s2888, 128
          %s2893 = scalar_lea.hbm %s23, %s2892
          %s2894 = sshll.u32 %s2884, 4
          %s2895 = int_to_ptr.vmem [resolvable:$true] %s2894
          %2900 = dma.vmem_to_hbm [thread:$0]  %s2895, 512, %s2893, %s2881, 128, 128, 8
        $region116: #{transformer_layer.1} parent=111 // pred_fallthru
          _
      $region112: #{transformer_layer.1} parent=5 // pred_fallthru
        _
      %p2901 = scmp.le.s32.totalorder 2, %s32
      // Predicated region
      $region117: #{transformer_layer.1} parent=5 // pred_check
        %p2902 = pneg %p2901
      $region118: #{transformer_layer.1} parent=5 // pred_check_branch
        %2904 = sbr.rel (%p2902) target = $region120
      $region119: #{transformer_layer.1} parent=5 // pred_region
        %s2905 = ssub.s32 %s32, 2
        // Predicated region
        $region121: #{transformer_layer.1} parent=119 // pred_check
          %p2906 = pneg %p549
        $region122: #{transformer_layer.1} parent=119 // pred_check_branch
          %2908 = sbr.rel (%p2906) target = $region124
        $region123: #{transformer_layer.1} parent=119 // pred_region
          %s2909 = sand.u32 %s534, 1
          %s2910 = scalar_lea.sflag [#allocation4], %s2909
          %s2911 = sand.u32 %s534, 1
          %s2912 = smul.addr %s2911, 32
          %s2913 = scalar_lea.vmem [#allocation3], %s2912
          %2914 = dma.done %s2910, 512
        $region124: #{transformer_layer.1} parent=119 // pred_fallthru
          _
      $region120: #{transformer_layer.1} parent=5 // pred_fallthru
        _
    $region6: #{transformer_layer.1} parent=1 // loop_footer
      %s36 = sadd.s32 1, %s32
    $region7: #{transformer_layer.1} parent=1 // loop_footer_branch
      %31 = sbr.rel target = $region3
    $region8: #{transformer_layer.1} parent=1 // loop_exit
      _
    %2915 = vsyncpa [#allocation4], 1
    %s2916 = scalar_lea.sflag [#allocation4], 1
    %2917 = vsyncpa %s2916, 1

// kernel: transformer_layer.1
$region0: #{transformer_layer.1}
  #allocation0 [shape = 'u32[]', space=smem, size = 0x4, offset = 0x4, fixed_abs, tag = 'smem constant byte address 0x4 - core index']
  #allocation1 [shape = 'u32[144,128]{1,0:T(1,128)}', space=vmem, size = 0x12000, scoped, tag = 'internal scratch']
  #allocation2 [shape = 'f32[32,128]{1,0:T(8,128)}', space=vmem, size = 0x4000, scoped, tag = 'scratch operand']
  %s0 = inlined_call_operand.vmem [shape: f32[8,16,128], index: 0, kind: input, shape index: {}]
  %s1 = inlined_call_operand.vmem [shape: f32[1,16,16], index: 1, kind: input, shape index: {}]
  %s2 = inlined_call_operand.vmem [shape: bf16[128,128], index: 2, kind: input, shape index: {}]
  %s3 = inlined_call_operand.vmem [shape: f32[1,128], index: 3, kind: input, shape index: {}]
  %s4 = inlined_call_operand.vmem [shape: bf16[128,128], index: 4, kind: input, shape index: {}]
  %s5 = inlined_call_operand.vmem [shape: f32[1,128], index: 5, kind: input, shape index: {}]
  %s6 = inlined_call_operand.vmem [shape: bf16[128,128], index: 6, kind: input, shape index: {}]
  %s7 = inlined_call_operand.vmem [shape: f32[1,128], index: 7, kind: input, shape index: {}]
  %s8 = inlined_call_operand.vmem [shape: bf16[128,128], index: 8, kind: input, shape index: {}]
  %s9 = inlined_call_operand.vmem [shape: f32[1,128], index: 9, kind: input, shape index: {}]
  %s10 = inlined_call_operand.vmem [shape: f32[1,128], index: 10, kind: input, shape index: {}]
  %s11 = inlined_call_operand.vmem [shape: f32[1,128], index: 11, kind: input, shape index: {}]
  %s12 = inlined_call_operand.vmem [shape: f32[16,8], index: 12, kind: input, shape index: {}]
  %s13 = inlined_call_operand.vmem [shape: f32[8,16], index: 13, kind: input, shape index: {}]
  %s14 = inlined_call_operand.vmem [shape: f32[1,128], index: 14, kind: input, shape index: {}]
  %s15 = inlined_call_operand.vmem [shape: f32[1,128], index: 15, kind: input, shape index: {}]
  %s16 = inlined_call_operand.vmem [shape: f32[1,128], index: 16, kind: input, shape index: {}]
  %s17 = inlined_call_operand.vmem [shape: bf16[128,256], index: 17, kind: input, shape index: {}]
  %s18 = inlined_call_operand.vmem [shape: f32[1,256], index: 18, kind: input, shape index: {}]
  %s19 = inlined_call_operand.vmem [shape: bf16[256,128], index: 19, kind: input, shape index: {}]
  %s20 = inlined_call_operand.vmem [shape: f32[1,128], index: 20, kind: input, shape index: {}]
  %s21 = inlined_call_operand.vmem [shape: f32[1,128], index: 21, kind: input, shape index: {}]
  %s22 = inlined_call_operand.vmem [shape: f32[1,128], index: 22, kind: input, shape index: {}]
  %s23 = inlined_call_operand.hbm [shape: f32[128,128], index: 23, kind: output, shape index: {}]
  %s24 = sld [smem:[#allocation0]]
  $region125: #{transformer_layer.1} parent=0
    _
  %s26 = ssub.s32 1, %s24
  %s27 = scalar_select 0, %s26, %s24
  $region1: #{transformer_layer.1} parent=0
    #allocation3 [shape = 'u8[32768]{0}', space=vmem, size = 0x8000, scoped, tag = 'output window, operand 0']
    #allocation4 [shape = 's32[2]{0}', space=sflag, size = 0x8, scoped, tag = 'scoped memory for transformer_layer.1']
    %28 = vsyncpa [#allocation4], 0
    %s29 = scalar_lea.sflag [#allocation4], 1
    %30 = vsyncpa %s29, 0
    loop: start=0, step=1, limit=6
    $region2: #{transformer_layer.1} parent=1 // loop_pre_header
      _
    $region3: #{transformer_layer.1} parent=1 // loop_header
      %s32 = sphi 0, %s36
      %p33 = scmp.ge.s32.totalorder %s32, 6
      %s42 = sphi 0, %s44
      %s45 = sphi 0, %s42
      %s46 = sphi 0, %s45
      %s62 = sphi 0, %s46
      %s66 = sphi 0, %s66
      %s68 = sphi 0, %s66
      %s69 = sphi 0, %s68
      %s83 = sphi 0, %s69
      %s87 = sphi 0, %s87
      %s89 = sphi 0, %s87
      %s90 = sphi 0, %s89
      %s104 = sphi 0, %s90
      %s108 = sphi 0, %s108
      %s110 = sphi 0, %s108
      %s111 = sphi 0, %s110
      %s125 = sphi 0, %s111
      %s129 = sphi 0, %s129
      %s131 = sphi 0, %s129
      %s132 = sphi 0, %s131
      %s146 = sphi 0, %s132
      %s150 = sphi 0, %s150
      %s152 = sphi 0, %s150
      %s153 = sphi 0, %s152
      %s167 = sphi 0, %s153
      %s171 = sphi 0, %s171
      %s173 = sphi 0, %s171
      %s174 = sphi 0, %s173
      %s188 = sphi 0, %s174
      %s192 = sphi 0, %s192
      %s194 = sphi 0, %s192
      %s195 = sphi 0, %s194
      %s209 = sphi 0, %s195
      %s213 = sphi 0, %s213
      %s215 = sphi 0, %s213
      %s216 = sphi 0, %s215
      %s230 = sphi 0, %s216
      %s234 = sphi 0, %s234
      %s236 = sphi 0, %s234
      %s237 = sphi 0, %s236
      %s251 = sphi 0, %s237
      %s255 = sphi 0, %s255
      %s257 = sphi 0, %s255
      %s258 = sphi 0, %s257
      %s272 = sphi 0, %s258
      %s276 = sphi 0, %s276
      %s278 = sphi 0, %s276
      %s279 = sphi 0, %s278
      %s293 = sphi 0, %s279
      %s297 = sphi 0, %s297
      %s299 = sphi 0, %s297
      %s300 = sphi 0, %s299
      %s314 = sphi 0, %s300
      %s318 = sphi 0, %s318
      %s320 = sphi 0, %s318
      %s321 = sphi 0, %s320
      %s335 = sphi 0, %s321
      %s339 = sphi 0, %s339
      %s341 = sphi 0, %s339
      %s342 = sphi 0, %s341
      %s356 = sphi 0, %s342
      %s360 = sphi 0, %s360
      %s362 = sphi 0, %s360
      %s363 = sphi 0, %s362
      %s377 = sphi 0, %s363
      %s381 = sphi 0, %s381
      %s383 = sphi 0, %s381
      %s384 = sphi 0, %s383
      %s398 = sphi 0, %s384
      %s402 = sphi 0, %s402
      %s404 = sphi 0, %s402
      %s405 = sphi 0, %s404
      %s419 = sphi 0, %s405
      %s423 = sphi 0, %s423
      %s425 = sphi 0, %s423
      %s426 = sphi 0, %s425
      %s440 = sphi 0, %s426
      %s444 = sphi 0, %s444
      %s446 = sphi 0, %s444
      %s447 = sphi 0, %s446
      %s461 = sphi 0, %s447
      %s465 = sphi 0, %s465
      %s467 = sphi 0, %s465
      %s468 = sphi 0, %s467
      %s482 = sphi 0, %s468
      %s486 = sphi 0, %s486
      %s488 = sphi 0, %s486
      %s489 = sphi 0, %s488
      %s503 = sphi 0, %s489
      %s507 = sphi 0, %s507
      %s509 = sphi 0, %s507
      %s510 = sphi 0, %s509
      %s524 = sphi 0, %s510
      %s530 = sphi 0, %s532
      %s533 = sphi 0, %s530
      %s534 = sphi 0, %s533
      %s550 = sphi 0, %s534
    $region4: #{transformer_layer.1} parent=1 // loop_header_branch
      %35 = sbr.rel (%p33) target = $region8
    $region5: #{transformer_layer.1} parent=1 // loop_body
      %s37 = ssub.s32 %s32, 1
      %s38 = ssub.s32 %s32, 2
      %s39 = sadd.s32 %s32, 1
      %s40 = ssub.s32 %s32, %s39
      %p41 = scmp.eq.s32.totalorder %s40, 0
      %s43 = sadd.s32 %s42, 1
      %s44 = scalar_select %p41, %s42, %s43
      %p47 = pneg %p41
      %p48 = scmp.eq.s32.totalorder %s32, 3
      %p49 = por %p47, %p48
      %p50 = scmp.ne.s32.totalorder %s42, %s45
      %p51 = scmp.eq.s32.totalorder %s32, 0
      %p52 = por %p50, %p51
      %p53 = scmp.ne.s32.totalorder %s42, %s45
      %p54 = scmp.eq.s32.totalorder %s37, 3
      %p55 = por %p53, %p54
      %p56 = scmp.ne.s32.totalorder %s45, %s46
      %p57 = scmp.eq.s32.totalorder %s37, 0
      %p58 = por %p56, %p57
      %p59 = scmp.ne.s32.totalorder %s45, %s46
      %p60 = scmp.eq.s32.totalorder %s38, 3
      %p61 = por %p59, %p60
      %p63 = scmp.ne.s32.totalorder %s46, %s62
      %p64 = scmp.eq.s32.totalorder %s38, 0
      %p65 = por %p63, %p64
      %s67 = sadd.s32 %s66, 1
      %p70 = scmp.eq.s32.totalorder %s32, 3
      %p71 = scmp.ne.s32.totalorder %s66, %s68
      %p72 = scmp.eq.s32.totalorder %s32, 0
      %p73 = por %p71, %p72
      %p74 = scmp.ne.s32.totalorder %s66, %s68
      %p75 = scmp.eq.s32.totalorder %s37, 3
      %p76 = por %p74, %p75
      %p77 = scmp.ne.s32.totalorder %s68, %s69
      %p78 = scmp.eq.s32.totalorder %s37, 0
      %p79 = por %p77, %p78
      %p80 = scmp.ne.s32.totalorder %s68, %s69
      %p81 = scmp.eq.s32.totalorder %s38, 3
      %p82 = por %p80, %p81
      %p84 = scmp.ne.s32.totalorder %s69, %s83
      %p85 = scmp.eq.s32.totalorder %s38, 0
      %p86 = por %p84, %p85
      %s88 = sadd.s32 %s87, 1
      %p91 = scmp.eq.s32.totalorder %s32, 3
      %p92 = scmp.ne.s32.totalorder %s87, %s89
      %p93 = scmp.eq.s32.totalorder %s32, 0
      %p94 = por %p92, %p93
      %p95 = scmp.ne.s32.totalorder %s87, %s89
      %p96 = scmp.eq.s32.totalorder %s37, 3
      %p97 = por %p95, %p96
      %p98 = scmp.ne.s32.totalorder %s89, %s90
      %p99 = scmp.eq.s32.totalorder %s37, 0
      %p100 = por %p98, %p99
      %p101 = scmp.ne.s32.totalorder %s89, %s90
      %p102 = scmp.eq.s32.totalorder %s38, 3
      %p103 = por %p101, %p102
      %p105 = scmp.ne.s32.totalorder %s90, %s104
      %p106 = scmp.eq.s32.totalorder %s38, 0
      %p107 = por %p105, %p106
      %s109 = sadd.s32 %s108, 1
      %p112 = scmp.eq.s32.totalorder %s32, 3
      %p113 = scmp.ne.s32.totalorder %s108, %s110
      %p114 = scmp.eq.s32.totalorder %s32, 0
      %p115 = por %p113, %p114
      %p116 = scmp.ne.s32.totalorder %s108, %s110
      %p117 = scmp.eq.s32.totalorder %s37, 3
      %p118 = por %p116, %p117
      %p119 = scmp.ne.s32.totalorder %s110, %s111
      %p120 = scmp.eq.s32.totalorder %s37, 0
      %p121 = por %p119, %p120
      %p122 = scmp.ne.s32.totalorder %s110, %s111
      %p123 = scmp.eq.s32.totalorder %s38, 3
      %p124 = por %p122, %p123
      %p126 = scmp.ne.s32.totalorder %s111, %s125
      %p127 = scmp.eq.s32.totalorder %s38, 0
      %p128 = por %p126, %p127
      %s130 = sadd.s32 %s129, 1
      %p133 = scmp.eq.s32.totalorder %s32, 3
      %p134 = scmp.ne.s32.totalorder %s129, %s131
      %p135 = scmp.eq.s32.totalorder %s32, 0
      %p136 = por %p134, %p135
      %p137 = scmp.ne.s32.totalorder %s129, %s131
      %p138 = scmp.eq.s32.totalorder %s37, 3
      %p139 = por %p137, %p138
      %p140 = scmp.ne.s32.totalorder %s131, %s132
      %p141 = scmp.eq.s32.totalorder %s37, 0
      %p142 = por %p140, %p141
      %p143 = scmp.ne.s32.totalorder %s131, %s132
      %p144 = scmp.eq.s32.totalorder %s38, 3
      %p145 = por %p143, %p144
      %p147 = scmp.ne.s32.totalorder %s132, %s146
      %p148 = scmp.eq.s32.totalorder %s38, 0
      %p149 = por %p147, %p148
      %s151 = sadd.s32 %s150, 1
      %p154 = scmp.eq.s32.totalorder %s32, 3
      %p155 = scmp.ne.s32.totalorder %s150, %s152
      %p156 = scmp.eq.s32.totalorder %s32, 0
      %p157 = por %p155, %p156
      %p158 = scmp.ne.s32.totalorder %s150, %s152
      %p159 = scmp.eq.s32.totalorder %s37, 3
      %p160 = por %p158, %p159
      %p161 = scmp.ne.s32.totalorder %s152, %s153
      %p162 = scmp.eq.s32.totalorder %s37, 0
      %p163 = por %p161, %p162
      %p164 = scmp.ne.s32.totalorder %s152, %s153
      %p165 = scmp.eq.s32.totalorder %s38, 3
      %p166 = por %p164, %p165
      %p168 = scmp.ne.s32.totalorder %s153, %s167
      %p169 = scmp.eq.s32.totalorder %s38, 0
      %p170 = por %p168, %p169
      %s172 = sadd.s32 %s171, 1
      %p175 = scmp.eq.s32.totalorder %s32, 3
      %p176 = scmp.ne.s32.totalorder %s171, %s173
      %p177 = scmp.eq.s32.totalorder %s32, 0
      %p178 = por %p176, %p177
      %p179 = scmp.ne.s32.totalorder %s171, %s173
      %p180 = scmp.eq.s32.totalorder %s37, 3
      %p181 = por %p179, %p180
      %p182 = scmp.ne.s32.totalorder %s173, %s174
      %p183 = scmp.eq.s32.totalorder %s37, 0
      %p184 = por %p182, %p183
      %p185 = scmp.ne.s32.totalorder %s173, %s174
      %p186 = scmp.eq.s32.totalorder %s38, 3
      %p187 = por %p185, %p186
      %p189 = scmp.ne.s32.totalorder %s174, %s188
      %p190 = scmp.eq.s32.totalorder %s38, 0
      %p191 = por %p189, %p190
      %s193 = sadd.s32 %s192, 1
      %p196 = scmp.eq.s32.totalorder %s32, 3
      %p197 = scmp.ne.s32.totalorder %s192, %s194
      %p198 = scmp.eq.s32.totalorder %s32, 0
      %p199 = por %p197, %p198
      %p200 = scmp.ne.s32.totalorder %s192, %s194
      %p201 = scmp.eq.s32.totalorder %s37, 3
      %p202 = por %p200, %p201
      %p203 = scmp.ne.s32.totalorder %s194, %s195
      %p204 = scmp.eq.s32.totalorder %s37, 0
      %p205 = por %p203, %p204
      %p206 = scmp.ne.s32.totalorder %s194, %s195
      %p207 = scmp.eq.s32.totalorder %s38, 3
      %p208 = por %p206, %p207
      %p210 = scmp.ne.s32.totalorder %s195, %s209
      %p211 = scmp.eq.s32.totalorder %s38, 0
      %p212 = por %p210, %p211
      %s214 = sadd.s32 %s213, 1
      %p217 = scmp.eq.s32.totalorder %s32, 3
      %p218 = scmp.ne.s32.totalorder %s213, %s215
      %p219 = scmp.eq.s32.totalorder %s32, 0
      %p220 = por %p218, %p219
      %p221 = scmp.ne.s32.totalorder %s213, %s215
      %p222 = scmp.eq.s32.totalorder %s37, 3
      %p223 = por %p221, %p222
      %p224 = scmp.ne.s32.totalorder %s215, %s216
      %p225 = scmp.eq.s32.totalorder %s37, 0
      %p226 = por %p224, %p225
      %p227 = scmp.ne.s32.totalorder %s215, %s216
      %p228 = scmp.eq.s32.totalorder %s38, 3
      %p229 = por %p227, %p228
      %p231 = scmp.ne.s32.totalorder %s216, %s230
      %p232 = scmp.eq.s32.totalorder %s38, 0
      %p233 = por %p231, %p232
      %s235 = sadd.s32 %s234, 1
      %p238 = scmp.eq.s32.totalorder %s32, 3
      %p239 = scmp.ne.s32.totalorder %s234, %s236
      %p240 = scmp.eq.s32.totalorder %s32, 0
      %p241 = por %p239, %p240
      %p242 = scmp.ne.s32.totalorder %s234, %s236
      %p243 = scmp.eq.s32.totalorder %s37, 3
      %p244 = por %p242, %p243
      %p245 = scmp.ne.s32.totalorder %s236, %s237
      %p246 = scmp.eq.s32.totalorder %s37, 0
      %p247 = por %p245, %p246
      %p248 = scmp.ne.s32.totalorder %s236, %s237
      %p249 = scmp.eq.s32.totalorder %s38, 3
      %p250 = por %p248, %p249
      %p252 = scmp.ne.s32.totalorder %s237, %s251
      %p253 = scmp.eq.s32.totalorder %s38, 0
      %p254 = por %p252, %p253
      %s256 = sadd.s32 %s255, 1
      %p259 = scmp.eq.s32.totalorder %s32, 3
      %p260 = scmp.ne.s32.totalorder %s255, %s257
      %p261 = scmp.eq.s32.totalorder %s32, 0
      %p262 = por %p260, %p261
      %p263 = scmp.ne.s32.totalorder %s255, %s257
      %p264 = scmp.eq.s32.totalorder %s37, 3
      %p265 = por %p263, %p264
      %p266 = scmp.ne.s32.totalorder %s257, %s258
      %p267 = scmp.eq.s32.totalorder %s37, 0
      %p268 = por %p266, %p267
      %p269 = scmp.ne.s32.totalorder %s257, %s258
      %p270 = scmp.eq.s32.totalorder %s38, 3
      %p271 = por %p269, %p270
      %p273 = scmp.ne.s32.totalorder %s258, %s272
      %p274 = scmp.eq.s32.totalorder %s38, 0
      %p275 = por %p273, %p274
      %s277 = sadd.s32 %s276, 1
      %p280 = scmp.eq.s32.totalorder %s32, 3
      %p281 = scmp.ne.s32.totalorder %s276, %s278
      %p282 = scmp.eq.s32.totalorder %s32, 0
      %p283 = por %p281, %p282
      %p284 = scmp.ne.s32.totalorder %s276, %s278
      %p285 = scmp.eq.s32.totalorder %s37, 3
      %p286 = por %p284, %p285
      %p287 = scmp.ne.s32.totalorder %s278, %s279
      %p288 = scmp.eq.s32.totalorder %s37, 0
      %p289 = por %p287, %p288
      %p290 = scmp.ne.s32.totalorder %s278, %s279
      %p291 = scmp.eq.s32.totalorder %s38, 3
      %p292 = por %p290, %p291
      %p294 = scmp.ne.s32.totalorder %s279, %s293
      %p295 = scmp.eq.s32.totalorder %s38, 0
      %p296 = por %p294, %p295
      %s298 = sadd.s32 %s297, 1
      %p301 = scmp.eq.s32.totalorder %s32, 3
      %p302 = scmp.ne.s32.totalorder %s297, %s299
      %p303 = scmp.eq.s32.totalorder %s32, 0
      %p304 = por %p302, %p303
      %p305 = scmp.ne.s32.totalorder %s297, %s299
      %p306 = scmp.eq.s32.totalorder %s37, 3
      %p307 = por %p305, %p306
      %p308 = scmp.ne.s32.totalorder %s299, %s300
      %p309 = scmp.eq.s32.totalorder %s37, 0
      %p310 = por %p308, %p309
      %p311 = scmp.ne.s32.totalorder %s299, %s300
      %p312 = scmp.eq.s32.totalorder %s38, 3
      %p313 = por %p311, %p312
      %p315 = scmp.ne.s32.totalorder %s300, %s314
      %p316 = scmp.eq.s32.totalorder %s38, 0
      %p317 = por %p315, %p316
      %s319 = sadd.s32 %s318, 1
      %p322 = scmp.eq.s32.totalorder %s32, 3
      %p323 = scmp.ne.s32.totalorder %s318, %s320
      %p324 = scmp.eq.s32.totalorder %s32, 0
      %p325 = por %p323, %p324
      %p326 = scmp.ne.s32.totalorder %s318, %s320
      %p327 = scmp.eq.s32.totalorder %s37, 3
      %p328 = por %p326, %p327
      %p329 = scmp.ne.s32.totalorder %s320, %s321
      %p330 = scmp.eq.s32.totalorder %s37, 0
      %p331 = por %p329, %p330
      %p332 = scmp.ne.s32.totalorder %s320, %s321
      %p333 = scmp.eq.s32.totalorder %s38, 3
      %p334 = por %p332, %p333
      %p336 = scmp.ne.s32.totalorder %s321, %s335
      %p337 = scmp.eq.s32.totalorder %s38, 0
      %p338 = por %p336, %p337
      %s340 = sadd.s32 %s339, 1
      %p343 = scmp.eq.s32.totalorder %s32, 3
      %p344 = scmp.ne.s32.totalorder %s339, %s341
      %p345 = scmp.eq.s32.totalorder %s32, 0
      %p346 = por %p344, %p345
      %p347 = scmp.ne.s32.totalorder %s339, %s341
      %p348 = scmp.eq.s32.totalorder %s37, 3
      %p349 = por %p347, %p348
      %p350 = scmp.ne.s32.totalorder %s341, %s342
      %p351 = scmp.eq.s32.totalorder %s37, 0
      %p352 = por %p350, %p351
      %p353 = scmp.ne.s32.totalorder %s341, %s342
      %p354 = scmp.eq.s32.totalorder %s38, 3
      %p355 = por %p353, %p354
      %p357 = scmp.ne.s32.totalorder %s342, %s356
      %p358 = scmp.eq.s32.totalorder %s38, 0
      %p359 = por %p357, %p358
      %s361 = sadd.s32 %s360, 1
      %p364 = scmp.eq.s32.totalorder %s32, 3
      %p365 = scmp.ne.s32.totalorder %s360, %s362
      %p366 = scmp.eq.s32.totalorder %s32, 0
      %p367 = por %p365, %p366
      %p368 = scmp.ne.s32.totalorder %s360, %s362
      %p369 = scmp.eq.s32.totalorder %s37, 3
      %p370 = por %p368, %p369
      %p371 = scmp.ne.s32.totalorder %s362, %s363
      %p372 = scmp.eq.s32.totalorder %s37, 0
      %p373 = por %p371, %p372
      %p374 = scmp.ne.s32.totalorder %s362, %s363
      %p375 = scmp.eq.s32.totalorder %s38, 3
      %p376 = por %p374, %p375
      %p378 = scmp.ne.s32.totalorder %s363, %s377
      %p379 = scmp.eq.s32.totalorder %s38, 0
      %p380 = por %p378, %p379
      %s382 = sadd.s32 %s381, 1
      %p385 = scmp.eq.s32.totalorder %s32, 3
      %p386 = scmp.ne.s32.totalorder %s381, %s383
      %p387 = scmp.eq.s32.totalorder %s32, 0
      %p388 = por %p386, %p387
      %p389 = scmp.ne.s32.totalorder %s381, %s383
      %p390 = scmp.eq.s32.totalorder %s37, 3
      %p391 = por %p389, %p390
      %p392 = scmp.ne.s32.totalorder %s383, %s384
      %p393 = scmp.eq.s32.totalorder %s37, 0
      %p394 = por %p392, %p393
      %p395 = scmp.ne.s32.totalorder %s383, %s384
      %p396 = scmp.eq.s32.totalorder %s38, 3
      %p397 = por %p395, %p396
      %p399 = scmp.ne.s32.totalorder %s384, %s398
      %p400 = scmp.eq.s32.totalorder %s38, 0
      %p401 = por %p399, %p400
      %s403 = sadd.s32 %s402, 1
      %p406 = scmp.eq.s32.totalorder %s32, 3
      %p407 = scmp.ne.s32.totalorder %s402, %s404
      %p408 = scmp.eq.s32.totalorder %s32, 0
      %p409 = por %p407, %p408
      %p410 = scmp.ne.s32.totalorder %s402, %s404
      %p411 = scmp.eq.s32.totalorder %s37, 3
      %p412 = por %p410, %p411
      %p413 = scmp.ne.s32.totalorder %s404, %s405
      %p414 = scmp.eq.s32.totalorder %s37, 0
      %p415 = por %p413, %p414
      %p416 = scmp.ne.s32.totalorder %s404, %s405
      %p417 = scmp.eq.s32.totalorder %s38, 3
      %p418 = por %p416, %p417
      %p420 = scmp.ne.s32.totalorder %s405, %s419
      %p421 = scmp.eq.s32.totalorder %s38, 0
      %p422 = por %p420, %p421
      %s424 = sadd.s32 %s423, 1
      %p427 = scmp.eq.s32.totalorder %s32, 3
      %p428 = scmp.ne.s32.totalorder %s423, %s425
      %p429 = scmp.eq.s32.totalorder %s32, 0
      %p430 = por %p428, %p429
      %p431 = scmp.ne.s32.totalorder %s423, %s425
      %p432 = scmp.eq.s32.totalorder %s37, 3
      %p433 = por %p431, %p432
      %p434 = scmp.ne.s32.totalorder %s425, %s426
      %p435 = scmp.eq.s32.totalorder %s37, 0
      %p436 = por %p434, %p435
      %p437 = scmp.ne.s32.totalorder %s425, %s426
      %p438 = scmp.eq.s32.totalorder %s38, 3
      %p439 = por %p437, %p438
      %p441 = scmp.ne.s32.totalorder %s426, %s440
      %p442 = scmp.eq.s32.totalorder %s38, 0
      %p443 = por %p441, %p442
      %s445 = sadd.s32 %s444, 1
      %p448 = scmp.eq.s32.totalorder %s32, 3
      %p449 = scmp.ne.s32.totalorder %s444, %s446
      %p450 = scmp.eq.s32.totalorder %s32, 0
      %p451 = por %p449, %p450
      %p452 = scmp.ne.s32.totalorder %s444, %s446
      %p453 = scmp.eq.s32.totalorder %s37, 3
      %p454 = por %p452, %p453
      %p455 = scmp.ne.s32.totalorder %s446, %s447
      %p456 = scmp.eq.s32.totalorder %s37, 0
      %p457 = por %p455, %p456
      %p458 = scmp.ne.s32.totalorder %s446, %s447
      %p459 = scmp.eq.s32.totalorder %s38, 3
      %p460 = por %p458, %p459
      %p462 = scmp.ne.s32.totalorder %s447, %s461
      %p463 = scmp.eq.s32.totalorder %s38, 0
      %p464 = por %p462, %p463
      %s466 = sadd.s32 %s465, 1
      %p469 = scmp.eq.s32.totalorder %s32, 3
      %p470 = scmp.ne.s32.totalorder %s465, %s467
      %p471 = scmp.eq.s32.totalorder %s32, 0
      %p472 = por %p470, %p471
      %p473 = scmp.ne.s32.totalorder %s465, %s467
      %p474 = scmp.eq.s32.totalorder %s37, 3
      %p475 = por %p473, %p474
      %p476 = scmp.ne.s32.totalorder %s467, %s468
      %p477 = scmp.eq.s32.totalorder %s37, 0
      %p478 = por %p476, %p477
      %p479 = scmp.ne.s32.totalorder %s467, %s468
      %p480 = scmp.eq.s32.totalorder %s38, 3
      %p481 = por %p479, %p480
      %p483 = scmp.ne.s32.totalorder %s468, %s482
      %p484 = scmp.eq.s32.totalorder %s38, 0
      %p485 = por %p483, %p484
      %s487 = sadd.s32 %s486, 1
      %p490 = scmp.eq.s32.totalorder %s32, 3
      %p491 = scmp.ne.s32.totalorder %s486, %s488
      %p492 = scmp.eq.s32.totalorder %s32, 0
      %p493 = por %p491, %p492
      %p494 = scmp.ne.s32.totalorder %s486, %s488
      %p495 = scmp.eq.s32.totalorder %s37, 3
      %p496 = por %p494, %p495
      %p497 = scmp.ne.s32.totalorder %s488, %s489
      %p498 = scmp.eq.s32.totalorder %s37, 0
      %p499 = por %p497, %p498
      %p500 = scmp.ne.s32.totalorder %s488, %s489
      %p501 = scmp.eq.s32.totalorder %s38, 3
      %p502 = por %p500, %p501
      %p504 = scmp.ne.s32.totalorder %s489, %s503
      %p505 = scmp.eq.s32.totalorder %s38, 0
      %p506 = por %p504, %p505
      %s508 = sadd.s32 %s507, 1
      %p511 = scmp.eq.s32.totalorder %s32, 3
      %p512 = scmp.ne.s32.totalorder %s507, %s509
      %p513 = scmp.eq.s32.totalorder %s32, 0
      %p514 = por %p512, %p513
      %p515 = scmp.ne.s32.totalorder %s507, %s509
      %p516 = scmp.eq.s32.totalorder %s37, 3
      %p517 = por %p515, %p516
      %p518 = scmp.ne.s32.totalorder %s509, %s510
      %p519 = scmp.eq.s32.totalorder %s37, 0
      %p520 = por %p518, %p519
      %p521 = scmp.ne.s32.totalorder %s509, %s510
      %p522 = scmp.eq.s32.totalorder %s38, 3
      %p523 = por %p521, %p522
      %p525 = scmp.ne.s32.totalorder %s510, %s524
      %p526 = scmp.eq.s32.totalorder %s38, 0
      %p527 = por %p525, %p526
      %s528 = ssub.s32 %s32, %s39
      %p529 = scmp.eq.s32.totalorder %s528, 0
      %s531 = sadd.s32 %s530, 1
      %s532 = scalar_select %p529, %s530, %s531
      %p535 = pneg %p529
      %p536 = scmp.eq.s32.totalorder %s32, 3
      %p537 = por %p535, %p536
      %p538 = scmp.ne.s32.totalorder %s530, %s533
      %p539 = scmp.eq.s32.totalorder %s32, 0
      %p540 = por %p538, %p539
      %p541 = scmp.ne.s32.totalorder %s530, %s533
      %p542 = scmp.eq.s32.totalorder %s37, 3
      %p543 = por %p541, %p542
      %p544 = scmp.ne.s32.totalorder %s533, %s534
      %p545 = scmp.eq.s32.totalorder %s37, 0
      %p546 = por %p544, %p545
      %p547 = scmp.ne.s32.totalorder %s533, %s534
      %p548 = scmp.eq.s32.totalorder %s38, 3
      %p549 = por %p547, %p548
      %p551 = scmp.ne.s32.totalorder %s534, %s550
      %p552 = scmp.eq.s32.totalorder %s38, 0
      %p553 = por %p551, %p552
      %p554 = scmp.le.s32.totalorder 1, %s32
      %p555 = scmp.lt.s32.totalorder %s32, 5
      %p556 = pnand %p554, %p555
      %p557 = pneg %p556
      // Predicated region
      $region9: #{transformer_layer.1} parent=5 // pred_check
        _
      $region10: #{transformer_layer.1} parent=5 // pred_check_branch
        %559 = sbr.rel (%p556) target = $region12
      $region11: #{transformer_layer.1} parent=5 // pred_region
        %s560 = ssub.s32 %s32, 1
        // Predicated region
        $region13: #{transformer_layer.1} parent=11 // pred_check
          %p561 = pneg %p79
        $region14: #{transformer_layer.1} parent=11 // pred_check_branch
          %563 = sbr.rel (%p561) target = $region16
        $region15: #{transformer_layer.1} parent=11 // pred_region
          _
        $region16: #{transformer_layer.1} parent=11 // pred_fallthru
          _
        // Predicated region
        $region17: #{transformer_layer.1} parent=11 // pred_check
          %p564 = pneg %p100
        $region18: #{transformer_layer.1} parent=11 // pred_check_branch
          %566 = sbr.rel (%p564) target = $region20
        $region19: #{transformer_layer.1} parent=11 // pred_region
          _
        $region20: #{transformer_layer.1} parent=11 // pred_fallthru
          _
        // Predicated region
        $region21: #{transformer_layer.1} parent=11 // pred_check
          %p567 = pneg %p121
        $region22: #{transformer_layer.1} parent=11 // pred_check_branch
          %569 = sbr.rel (%p567) target = $region24
        $region23: #{transformer_layer.1} parent=11 // pred_region
          _
        $region24: #{transformer_layer.1} parent=11 // pred_fallthru
          _
        // Predicated region
        $region25: #{transformer_layer.1} parent=11 // pred_check
          %p570 = pneg %p142
        $region26: #{transformer_layer.1} parent=11 // pred_check_branch
          %572 = sbr.rel (%p570) target = $region28
        $region27: #{transformer_layer.1} parent=11 // pred_region
          _
        $region28: #{transformer_layer.1} parent=11 // pred_fallthru
          _
        // Predicated region
        $region29: #{transformer_layer.1} parent=11 // pred_check
          %p573 = pneg %p163
        $region30: #{transformer_layer.1} parent=11 // pred_check_branch
          %575 = sbr.rel (%p573) target = $region32
        $region31: #{transformer_layer.1} parent=11 // pred_region
          _
        $region32: #{transformer_layer.1} parent=11 // pred_fallthru
          _
        // Predicated region
        $region33: #{transformer_layer.1} parent=11 // pred_check
          %p576 = pneg %p184
        $region34: #{transformer_layer.1} parent=11 // pred_check_branch
          %578 = sbr.rel (%p576) target = $region36
        $region35: #{transformer_layer.1} parent=11 // pred_region
          _
        $region36: #{transformer_layer.1} parent=11 // pred_fallthru
          _
        // Predicated region
        $region37: #{transformer_layer.1} parent=11 // pred_check
          %p579 = pneg %p205
        $region38: #{transformer_layer.1} parent=11 // pred_check_branch
          %581 = sbr.rel (%p579) target = $region40
        $region39: #{transformer_layer.1} parent=11 // pred_region
          _
        $region40: #{transformer_layer.1} parent=11 // pred_fallthru
          _
        // Predicated region
        $region41: #{transformer_layer.1} parent=11 // pred_check
          %p582 = pneg %p226
        $region42: #{transformer_layer.1} parent=11 // pred_check_branch
          %584 = sbr.rel (%p582) target = $region44
        $region43: #{transformer_layer.1} parent=11 // pred_region
          _
        $region44: #{transformer_layer.1} parent=11 // pred_fallthru
          _
        // Predicated region
        $region45: #{transformer_layer.1} parent=11 // pred_check
          %p585 = pneg %p247
        $region46: #{transformer_layer.1} parent=11 // pred_check_branch
          %587 = sbr.rel (%p585) target = $region48
        $region47: #{transformer_layer.1} parent=11 // pred_region
          _
        $region48: #{transformer_layer.1} parent=11 // pred_fallthru
          _
        // Predicated region
        $region49: #{transformer_layer.1} parent=11 // pred_check
          %p588 = pneg %p268
        $region50: #{transformer_layer.1} parent=11 // pred_check_branch
          %590 = sbr.rel (%p588) target = $region52
        $region51: #{transformer_layer.1} parent=11 // pred_region
          _
        $region52: #{transformer_layer.1} parent=11 // pred_fallthru
          _
        // Predicated region
        $region53: #{transformer_layer.1} parent=11 // pred_check
          %p591 = pneg %p289
        $region54: #{transformer_layer.1} parent=11 // pred_check_branch
          %593 = sbr.rel (%p591) target = $region56
        $region55: #{transformer_layer.1} parent=11 // pred_region
          _
        $region56: #{transformer_layer.1} parent=11 // pred_fallthru
          _
        // Predicated region
        $region57: #{transformer_layer.1} parent=11 // pred_check
          %p594 = pneg %p310
        $region58: #{transformer_layer.1} parent=11 // pred_check_branch
          %596 = sbr.rel (%p594) target = $region60
        $region59: #{transformer_layer.1} parent=11 // pred_region
          _
        $region60: #{transformer_layer.1} parent=11 // pred_fallthru
          _
        // Predicated region
        $region61: #{transformer_layer.1} parent=11 // pred_check
          %p597 = pneg %p331
        $region62: #{transformer_layer.1} parent=11 // pred_check_branch
          %599 = sbr.rel (%p597) target = $region64
        $region63: #{transformer_layer.1} parent=11 // pred_region
          _
        $region64: #{transformer_layer.1} parent=11 // pred_fallthru
          _
        // Predicated region
        $region65: #{transformer_layer.1} parent=11 // pred_check
          %p600 = pneg %p352
        $region66: #{transformer_layer.1} parent=11 // pred_check_branch
          %602 = sbr.rel (%p600) target = $region68
        $region67: #{transformer_layer.1} parent=11 // pred_region
          _
        $region68: #{transformer_layer.1} parent=11 // pred_fallthru
          _
        // Predicated region
        $region69: #{transformer_layer.1} parent=11 // pred_check
          %p603 = pneg %p373
        $region70: #{transformer_layer.1} parent=11 // pred_check_branch
          %605 = sbr.rel (%p603) target = $region72
        $region71: #{transformer_layer.1} parent=11 // pred_region
          _
        $region72: #{transformer_layer.1} parent=11 // pred_fallthru
          _
        // Predicated region
        $region73: #{transformer_layer.1} parent=11 // pred_check
          %p606 = pneg %p394
        $region74: #{transformer_layer.1} parent=11 // pred_check_branch
          %608 = sbr.rel (%p606) target = $region76
        $region75: #{transformer_layer.1} parent=11 // pred_region
          _
        $region76: #{transformer_layer.1} parent=11 // pred_fallthru
          _
        // Predicated region
        $region77: #{transformer_layer.1} parent=11 // pred_check
          %p609 = pneg %p415
        $region78: #{transformer_layer.1} parent=11 // pred_check_branch
          %611 = sbr.rel (%p609) target = $region80
        $region79: #{transformer_layer.1} parent=11 // pred_region
          _
        $region80: #{transformer_layer.1} parent=11 // pred_fallthru
          _
        // Predicated region
        $region81: #{transformer_layer.1} parent=11 // pred_check
          %p612 = pneg %p436
        $region82: #{transformer_layer.1} parent=11 // pred_check_branch
          %614 = sbr.rel (%p612) target = $region84
        $region83: #{transformer_layer.1} parent=11 // pred_region
          _
        $region84: #{transformer_layer.1} parent=11 // pred_fallthru
          _
        // Predicated region
        $region85: #{transformer_layer.1} parent=11 // pred_check
          %p615 = pneg %p457
        $region86: #{transformer_layer.1} parent=11 // pred_check_branch
          %617 = sbr.rel (%p615) target = $region88
        $region87: #{transformer_layer.1} parent=11 // pred_region
          _
        $region88: #{transformer_layer.1} parent=11 // pred_fallthru
          _
        // Predicated region
        $region89: #{transformer_layer.1} parent=11 // pred_check
          %p618 = pneg %p478
        $region90: #{transformer_layer.1} parent=11 // pred_check_branch
          %620 = sbr.rel (%p618) target = $region92
        $region91: #{transformer_layer.1} parent=11 // pred_region
          _
        $region92: #{transformer_layer.1} parent=11 // pred_fallthru
          _
        // Predicated region
        $region93: #{transformer_layer.1} parent=11 // pred_check
          %p621 = pneg %p499
        $region94: #{transformer_layer.1} parent=11 // pred_check_branch
          %623 = sbr.rel (%p621) target = $region96
        $region95: #{transformer_layer.1} parent=11 // pred_region
          _
        $region96: #{transformer_layer.1} parent=11 // pred_fallthru
          _
        // Predicated region
        $region97: #{transformer_layer.1} parent=11 // pred_check
          %p624 = pneg %p520
        $region98: #{transformer_layer.1} parent=11 // pred_check_branch
          %626 = sbr.rel (%p624) target = $region100
        $region99: #{transformer_layer.1} parent=11 // pred_region
          _
        $region100: #{transformer_layer.1} parent=11 // pred_fallthru
          _
      $region12: #{transformer_layer.1} parent=5 // pred_fallthru
        _
      %p627 = scmp.lt.s32.totalorder %s32, 4
      // Predicated region
      $region101: #{transformer_layer.1} parent=5 // pred_check
        %p628 = pneg %p627
      $region102: #{transformer_layer.1} parent=5 // pred_check_branch
        %630 = sbr.rel (%p628) target = $region104
      $region103: #{transformer_layer.1} parent=5 // pred_region
        // Predicated region
        $region105: #{transformer_layer.1} parent=103 // pred_check
          %p631 = pneg %p52
        $region106: #{transformer_layer.1} parent=103 // pred_check_branch
          %633 = sbr.rel (%p631) target = $region108
        $region107: #{transformer_layer.1} parent=103 // pred_region
          %s634 = smul.u32 2, %s32
          %p635 = scmp.lt.s32.totalorder %s634, 7
          %s636 = scalar_select %p635, %s634, 7
          %s637 = smul.addr %s636, 2
          %s638 = smul.addr %s637, 8
          %s639 = scalar_lea.vmem %s0, %s638
          %s640 = smul.u32 2, %s32
        $region108: #{transformer_layer.1} parent=103 // pred_fallthru
          _
      $region104: #{transformer_layer.1} parent=5 // pred_fallthru
        _
      %p641 = scmp.le.s32.totalorder 1, %s32
      %p642 = scmp.lt.s32.totalorder %s32, 5
      %p643 = pnand %p641, %p642
      %p644 = pneg %p643
      // Predicated region
      $region109: #{transformer_layer.1} parent=5 // pred_check
        _
      $region110: #{transformer_layer.1} parent=5 // pred_check_branch
        %646 = sbr.rel (%p643) target = $region112
      $region111: #{transformer_layer.1} parent=5 // pred_region
        %s647 = ssub.s32 %s32, 1
        %s648 = smul.u32 2, %s37
        %p649 = scmp.lt.s32.totalorder %s648, 7
        %s650 = scalar_select %p649, %s648, 7
        %s651 = smul.addr %s650, 2
        %s652 = smul.addr %s651, 8
        %s653 = scalar_lea.vmem %s0, %s652
        %p654 = pneg %p58
        %p655 = pneg %p55
        %p656 = pneg %p79
        %p657 = pneg %p76
        %p658 = pneg %p100
        %p659 = pneg %p97
        %p660 = pneg %p121
        %p661 = pneg %p118
        %p662 = pneg %p142
        %p663 = pneg %p139
        %p664 = pneg %p163
        %p665 = pneg %p160
        %p666 = pneg %p184
        %p667 = pneg %p181
        %p668 = pneg %p205
        %p669 = pneg %p202
        %p670 = pneg %p226
        %p671 = pneg %p223
        %p672 = pneg %p247
        %p673 = pneg %p244
        %p674 = pneg %p268
        %p675 = pneg %p265
        %p676 = pneg %p289
        %p677 = pneg %p286
        %p678 = pneg %p310
        %p679 = pneg %p307
        %p680 = pneg %p331
        %p681 = pneg %p328
        %p682 = pneg %p352
        %p683 = pneg %p349
        %p684 = pneg %p373
        %p685 = pneg %p370
        %p686 = pneg %p394
        %p687 = pneg %p391
        %p688 = pneg %p415
        %p689 = pneg %p412
        %p690 = pneg %p436
        %p691 = pneg %p433
        %p692 = pneg %p457
        %p693 = pneg %p454
        %p694 = pneg %p478
        %p695 = pneg %p475
        %p696 = pneg %p499
        %p697 = pneg %p496
        %p698 = pneg %p520
        %p699 = pneg %p517
        %p700 = pneg %p546
        %p701 = pneg %p543
        %s702 = sand.u32 %s533, 1
        %s703 = scalar_lea.sflag [#allocation4], %s702
        %s704 = sand.u32 %s533, 1
        %s705 = smul.addr %s704, 32
        %s706 = scalar_lea.vmem [#allocation3], %s705
        %s707 = smul.u32 2, %s37
        %p708 = scmp.lt.s32.totalorder %s707, 7
        %s709 = scalar_select %p708, %s707, 7
        %s710 = smul.addr %s709, 2
        %s711 = smul.addr %s710, 8
        %s712 = scalar_lea.vmem %s0, %s711
        %s713 = smul.u32 2, %s37
        %s714 = smul.u32 4, %s37
        %v716 = vld [vmem:[%s712] sm:$0xff]
        %v717 = vld [vmem:[%s712 + $0x8] sm:$0xff]
        %v718 = vld [vmem:[%s712 + $0x10] sm:$0xff]
        %v719 = vld [vmem:[%s712 + $0x18] sm:$0xff]
        %v720 = vpack.c.bf16 %v717, %v716
        %v721 = vpack.c.bf16 %v719, %v718
        %v722 = vld [vmem:[%s2] sm:$0xf]
        %v723 = vld [vmem:[%s2 + $0x4] sm:$0xf]
        %v724 = vld [vmem:[%s2 + $0x8] sm:$0xf]
        %v725 = vld [vmem:[%s2 + $0xc] sm:$0xf]
        %v726 = vld [vmem:[%s2 + $0x10] sm:$0xf]
        %v727 = vld [vmem:[%s2 + $0x14] sm:$0xf]
        %v728 = vld [vmem:[%s2 + $0x18] sm:$0xf]
        %v729 = vld [vmem:[%s2 + $0x1c] sm:$0xf]
        %v730 = vld [vmem:[%s2 + $0x20] sm:$0xf]
        %v731 = vld [vmem:[%s2 + $0x24] sm:$0xf]
        %v732 = vld [vmem:[%s2 + $0x28] sm:$0xf]
        %v733 = vld [vmem:[%s2 + $0x2c] sm:$0xf]
        %v734 = vld [vmem:[%s2 + $0x30] sm:$0xf]
        %v735 = vld [vmem:[%s2 + $0x34] sm:$0xf]
        %v736 = vld [vmem:[%s2 + $0x38] sm:$0xf]
        %v737 = vld [vmem:[%s2 + $0x3c] sm:$0xf]
        %v738 = vld [vmem:[%s3] sm:$0x1]
        %v740 = vlaneseq
        %v741 = vshrl.u32 %v740, 7
        %v742 = vsub.s32 0, %v741
        %v743 = vrot.slane %v738, %v742
        %v761 = vunpack.c.l.b16 %v722
        %v762 = vunpack.c.l.b16 %v723
        %v763 = vunpack.c.l.b16 %v724
        %v764 = vunpack.c.l.b16 %v725
        %v765 = vunpack.c.l.b16 %v726
        %v766 = vunpack.c.l.b16 %v727
        %v767 = vunpack.c.l.b16 %v728
        %v768 = vunpack.c.l.b16 %v729
        %v769 = vunpack.c.l.b16 %v730
        %v770 = vunpack.c.l.b16 %v731
        %v771 = vunpack.c.l.b16 %v732
        %v772 = vunpack.c.l.b16 %v733
        %v773 = vunpack.c.l.b16 %v734
        %v774 = vunpack.c.l.b16 %v735
        %v775 = vunpack.c.l.b16 %v736
        %v776 = vunpack.c.l.b16 %v737
        %v777 = vpack.c.b16 %v762, %v761
        %v778 = vpack.c.b16 %v764, %v763
        %v779 = vpack.c.b16 %v766, %v765
        %v780 = vpack.c.b16 %v768, %v767
        %v781 = vpack.c.b16 %v770, %v769
        %v782 = vpack.c.b16 %v772, %v771
        %v783 = vpack.c.b16 %v774, %v773
        %v784 = vpack.c.b16 %v776, %v775
        %793 = vmatprep.subr.bf16.mxu0 0
        %794 = vmatpush1.bf16.msra.mxu0 %v784
        %795 = vmatprep.subr.bf16.mxu0 0
        %796 = vmatpush1.bf16.msra.mxu0 %v783
        %797 = vmatprep.subr.bf16.mxu0 0
        %798 = vmatpush1.bf16.msra.mxu0 %v782
        %799 = vmatprep.subr.bf16.mxu0 0
        %800 = vmatpush1.bf16.msra.mxu0 %v781
        %801 = vmatprep.subr.bf16.mxu0 0
        %802 = vmatpush1.bf16.msra.mxu0 %v780
        %803 = vmatprep.subr.bf16.mxu0 0
        %804 = vmatpush1.bf16.msra.mxu0 %v779
        %805 = vmatprep.subr.bf16.mxu0 0
        %806 = vmatpush1.bf16.msra.mxu0 %v778
        %807 = vmatprep.subr.bf16.mxu0 0
        %808 = vmatpush1.bf16.msra.mxu0 %v777
        %809 = vmatprep.subr.bf16.mxu0 0
        %810 = vmatpush2.bf16.msra.mxu0 0
        %811 = vmatprep.subr.bf16.mxu0 0
        %812 = vmatpush2.bf16.msra.mxu0 0
        %813 = vmatprep.subr.bf16.mxu0 0
        %814 = vmatpush2.bf16.msra.mxu0 0
        %815 = vmatprep.subr.bf16.mxu0 0
        %816 = vmatpush2.bf16.msra.mxu0 0
        %817 = vmatprep.subr.bf16.mxu0 0
        %818 = vmatpush2.bf16.msra.mxu0 0
        %819 = vmatprep.subr.bf16.mxu0 0
        %820 = vmatpush2.bf16.msra.mxu0 0
        %821 = vmatprep.subr.bf16.mxu0 0
        %822 = vmatpush2.bf16.msra.mxu0 0
        %823 = vmatprep.subr.bf16.mxu0 0
        %824 = vmatpush2.bf16.msra.mxu0 0
        %825 = vmatprep.mubr.bf16.mxu0 0
        %826 = vmatmul.mubr.bf16.gmra.mxu0 %v720
        %v827 = vpop.f32.mrf.mxu0
        %v828 = vadd.f32 %v743, %v827
        %v829 = vpop.f32.mrf.mxu0
        %v830 = vpop.f32.mrf.mxu0
        %v831 = vadd.f32 %v743, %v830
        %v832 = vpop.f32.mrf.mxu0
        %833 = vmatprep.mubr.bf16.mxu0 0
        %834 = vmatmul.mubr.bf16.gmra.mxu0 %v721
        %v835 = vpop.f32.mrf.mxu0
        %v836 = vadd.f32 %v743, %v835
        %v837 = vpop.f32.mrf.mxu0
        %v838 = vpop.f32.mrf.mxu0
        %v839 = vadd.f32 %v743, %v838
        %v840 = vpop.f32.mrf.mxu0
        %841 = vdwg.mxu0
        %v842 = vmul.f32 %v828, 0.125
        %v843 = vmul.f32 %v831, 0.125
        %v844 = vmul.f32 %v836, 0.125
        %v845 = vmul.f32 %v839, 0.125
        %v846 = vld [vmem:[%s4] sm:$0xf]
        %v847 = vld [vmem:[%s4 + $0x4] sm:$0xf]
        %v848 = vld [vmem:[%s4 + $0x8] sm:$0xf]
        %v849 = vld [vmem:[%s4 + $0xc] sm:$0xf]
        %v850 = vld [vmem:[%s4 + $0x10] sm:$0xf]
        %v851 = vld [vmem:[%s4 + $0x14] sm:$0xf]
        %v852 = vld [vmem:[%s4 + $0x18] sm:$0xf]
        %v853 = vld [vmem:[%s4 + $0x1c] sm:$0xf]
        %v854 = vld [vmem:[%s4 + $0x20] sm:$0xf]
        %v855 = vld [vmem:[%s4 + $0x24] sm:$0xf]
        %v856 = vld [vmem:[%s4 + $0x28] sm:$0xf]
        %v857 = vld [vmem:[%s4 + $0x2c] sm:$0xf]
        %v858 = vld [vmem:[%s4 + $0x30] sm:$0xf]
        %v859 = vld [vmem:[%s4 + $0x34] sm:$0xf]
        %v860 = vld [vmem:[%s4 + $0x38] sm:$0xf]
        %v861 = vld [vmem:[%s4 + $0x3c] sm:$0xf]
        %v862 = vld [vmem:[%s5] sm:$0x1]
        %v864 = vlaneseq
        %v865 = vshrl.u32 %v864, 7
        %v866 = vsub.s32 0, %v865
        %v867 = vrot.slane %v862, %v866
        %v885 = vunpack.c.l.b16 %v846
        %v886 = vunpack.c.l.b16 %v847
        %v887 = vunpack.c.l.b16 %v848
        %v888 = vunpack.c.l.b16 %v849
        %v889 = vunpack.c.l.b16 %v850
        %v890 = vunpack.c.l.b16 %v851
        %v891 = vunpack.c.l.b16 %v852
        %v892 = vunpack.c.l.b16 %v853
        %v893 = vunpack.c.l.b16 %v854
        %v894 = vunpack.c.l.b16 %v855
        %v895 = vunpack.c.l.b16 %v856
        %v896 = vunpack.c.l.b16 %v857
        %v897 = vunpack.c.l.b16 %v858
        %v898 = vunpack.c.l.b16 %v859
        %v899 = vunpack.c.l.b16 %v860
        %v900 = vunpack.c.l.b16 %v861
        %v901 = vpack.c.b16 %v886, %v885
        %v902 = vpack.c.b16 %v888, %v887
        %v903 = vpack.c.b16 %v890, %v889
        %v904 = vpack.c.b16 %v892, %v891
        %v905 = vpack.c.b16 %v894, %v893
        %v906 = vpack.c.b16 %v896, %v895
        %v907 = vpack.c.b16 %v898, %v897
        %v908 = vpack.c.b16 %v900, %v899
        %917 = vmatprep.subr.bf16.mxu0 0
        %918 = vmatpush1.bf16.msra.mxu0 %v908
        %919 = vmatprep.subr.bf16.mxu0 0
        %920 = vmatpush1.bf16.msra.mxu0 %v907
        %921 = vmatprep.subr.bf16.mxu0 0
        %922 = vmatpush1.bf16.msra.mxu0 %v906
        %923 = vmatprep.subr.bf16.mxu0 0
        %924 = vmatpush1.bf16.msra.mxu0 %v905
        %925 = vmatprep.subr.bf16.mxu0 0
        %926 = vmatpush1.bf16.msra.mxu0 %v904
        %927 = vmatprep.subr.bf16.mxu0 0
        %928 = vmatpush1.bf16.msra.mxu0 %v903
        %929 = vmatprep.subr.bf16.mxu0 0
        %930 = vmatpush1.bf16.msra.mxu0 %v902
        %931 = vmatprep.subr.bf16.mxu0 0
        %932 = vmatpush1.bf16.msra.mxu0 %v901
        %933 = vmatprep.subr.bf16.mxu0 0
        %934 = vmatpush2.bf16.msra.mxu0 0
        %935 = vmatprep.subr.bf16.mxu0 0
        %936 = vmatpush2.bf16.msra.mxu0 0
        %937 = vmatprep.subr.bf16.mxu0 0
        %938 = vmatpush2.bf16.msra.mxu0 0
        %939 = vmatprep.subr.bf16.mxu0 0
        %940 = vmatpush2.bf16.msra.mxu0 0
        %941 = vmatprep.subr.bf16.mxu0 0
        %942 = vmatpush2.bf16.msra.mxu0 0
        %943 = vmatprep.subr.bf16.mxu0 0
        %944 = vmatpush2.bf16.msra.mxu0 0
        %945 = vmatprep.subr.bf16.mxu0 0
        %946 = vmatpush2.bf16.msra.mxu0 0
        %947 = vmatprep.subr.bf16.mxu0 0
        %948 = vmatpush2.bf16.msra.mxu0 0
        %949 = vmatprep.mubr.bf16.mxu0 0
        %950 = vmatmul.mubr.bf16.gmra.mxu0 %v720
        %v951 = vpop.f32.mrf.mxu0
        %v952 = vadd.f32 %v867, %v951
        %v953 = vpop.f32.mrf.mxu0
        %v954 = vpop.f32.mrf.mxu0
        %v955 = vadd.f32 %v867, %v954
        %v956 = vpop.f32.mrf.mxu0
        %957 = vmatprep.mubr.bf16.mxu0 0
        %958 = vmatmul.mubr.bf16.gmra.mxu0 %v721
        %v959 = vpop.f32.mrf.mxu0
        %v960 = vadd.f32 %v867, %v959
        %v961 = vpop.f32.mrf.mxu0
        %v962 = vpop.f32.mrf.mxu0
        %v963 = vadd.f32 %v867, %v962
        %v964 = vpop.f32.mrf.mxu0
        %965 = vdwg.mxu0
        %v966 = vld [vmem:[%s6] sm:$0xf]
        %v967 = vld [vmem:[%s6 + $0x4] sm:$0xf]
        %v968 = vld [vmem:[%s6 + $0x8] sm:$0xf]
        %v969 = vld [vmem:[%s6 + $0xc] sm:$0xf]
        %v970 = vld [vmem:[%s6 + $0x10] sm:$0xf]
        %v971 = vld [vmem:[%s6 + $0x14] sm:$0xf]
        %v972 = vld [vmem:[%s6 + $0x18] sm:$0xf]
        %v973 = vld [vmem:[%s6 + $0x1c] sm:$0xf]
        %v974 = vld [vmem:[%s6 + $0x20] sm:$0xf]
        %v975 = vld [vmem:[%s6 + $0x24] sm:$0xf]
        %v976 = vld [vmem:[%s6 + $0x28] sm:$0xf]
        %v977 = vld [vmem:[%s6 + $0x2c] sm:$0xf]
        %v978 = vld [vmem:[%s6 + $0x30] sm:$0xf]
        %v979 = vld [vmem:[%s6 + $0x34] sm:$0xf]
        %v980 = vld [vmem:[%s6 + $0x38] sm:$0xf]
        %v981 = vld [vmem:[%s6 + $0x3c] sm:$0xf]
        %v982 = vld [vmem:[%s7] sm:$0x1]
        %v984 = vlaneseq
        %v985 = vshrl.u32 %v984, 7
        %v986 = vsub.s32 0, %v985
        %v987 = vrot.slane %v982, %v986
        %v1005 = vunpack.c.l.b16 %v966
        %v1006 = vunpack.c.l.b16 %v967
        %v1007 = vunpack.c.l.b16 %v968
        %v1008 = vunpack.c.l.b16 %v969
        %v1009 = vunpack.c.l.b16 %v970
        %v1010 = vunpack.c.l.b16 %v971
        %v1011 = vunpack.c.l.b16 %v972
        %v1012 = vunpack.c.l.b16 %v973
        %v1013 = vunpack.c.l.b16 %v974
        %v1014 = vunpack.c.l.b16 %v975
        %v1015 = vunpack.c.l.b16 %v976
        %v1016 = vunpack.c.l.b16 %v977
        %v1017 = vunpack.c.l.b16 %v978
        %v1018 = vunpack.c.l.b16 %v979
        %v1019 = vunpack.c.l.b16 %v980
        %v1020 = vunpack.c.l.b16 %v981
        %v1021 = vpack.c.b16 %v1006, %v1005
        %v1022 = vpack.c.b16 %v1008, %v1007
        %v1023 = vpack.c.b16 %v1010, %v1009
        %v1024 = vpack.c.b16 %v1012, %v1011
        %v1025 = vpack.c.b16 %v1014, %v1013
        %v1026 = vpack.c.b16 %v1016, %v1015
        %v1027 = vpack.c.b16 %v1018, %v1017
        %v1028 = vpack.c.b16 %v1020, %v1019
        %1037 = vmatprep.subr.bf16.mxu0 0
        %1038 = vmatpush1.bf16.msra.mxu0 %v1028
        %1039 = vmatprep.subr.bf16.mxu0 0
        %1040 = vmatpush1.bf16.msra.mxu0 %v1027
        %1041 = vmatprep.subr.bf16.mxu0 0
        %1042 = vmatpush1.bf16.msra.mxu0 %v1026
        %1043 = vmatprep.subr.bf16.mxu0 0
        %1044 = vmatpush1.bf16.msra.mxu0 %v1025
        %1045 = vmatprep.subr.bf16.mxu0 0
        %1046 = vmatpush1.bf16.msra.mxu0 %v1024
        %1047 = vmatprep.subr.bf16.mxu0 0
        %1048 = vmatpush1.bf16.msra.mxu0 %v1023
        %1049 = vmatprep.subr.bf16.mxu0 0
        %1050 = vmatpush1.bf16.msra.mxu0 %v1022
        %1051 = vmatprep.subr.bf16.mxu0 0
        %1052 = vmatpush1.bf16.msra.mxu0 %v1021
        %1053 = vmatprep.subr.bf16.mxu0 0
        %1054 = vmatpush2.bf16.msra.mxu0 0
        %1055 = vmatprep.subr.bf16.mxu0 0
        %1056 = vmatpush2.bf16.msra.mxu0 0
        %1057 = vmatprep.subr.bf16.mxu0 0
        %1058 = vmatpush2.bf16.msra.mxu0 0
        %1059 = vmatprep.subr.bf16.mxu0 0
        %1060 = vmatpush2.bf16.msra.mxu0 0
        %1061 = vmatprep.subr.bf16.mxu0 0
        %1062 = vmatpush2.bf16.msra.mxu0 0
        %1063 = vmatprep.subr.bf16.mxu0 0
        %1064 = vmatpush2.bf16.msra.mxu0 0
        %1065 = vmatprep.subr.bf16.mxu0 0
        %1066 = vmatpush2.bf16.msra.mxu0 0
        %1067 = vmatprep.subr.bf16.mxu0 0
        %1068 = vmatpush2.bf16.msra.mxu0 0
        %1069 = vmatprep.mubr.bf16.mxu0 0
        %1070 = vmatmul.mubr.bf16.gmra.mxu0 %v720
        %v1071 = vpop.f32.mrf.mxu0
        %v1072 = vadd.f32 %v987, %v1071
        %v1073 = vpop.f32.mrf.mxu0
        %v1074 = vpop.f32.mrf.mxu0
        %v1075 = vadd.f32 %v987, %v1074
        %v1076 = vpop.f32.mrf.mxu0
        %1077 = vmatprep.mubr.bf16.mxu0 0
        %1078 = vmatmul.mubr.bf16.gmra.mxu0 %v721
        %v1079 = vpop.f32.mrf.mxu0
        %v1080 = vadd.f32 %v987, %v1079
        %v1081 = vpop.f32.mrf.mxu0
        %v1082 = vpop.f32.mrf.mxu0
        %v1083 = vadd.f32 %v987, %v1082
        %v1084 = vpop.f32.mrf.mxu0
        %1085 = vdwg.mxu0
        %v1086 = vpack.c.bf16 %v843, %v842
        %v1087 = vpack.c.bf16 %v845, %v844
        %v1088 = vpack.c.bf16 %v955, %v952
        %v1089 = vpack.c.bf16 %v963, %v960
        %v1090 = vpack.c.bf16 %v1075, %v1072
        %v1091 = vpack.c.bf16 %v1083, %v1080
        %v1092 = vld [vmem:[%s1] sm:$0xff]
        %v1093 = vld [vmem:[%s1 + $0x8] sm:$0xff]
        %vm1094 = vcmask 523264
        %v1096 = vsel %vm1094, %v1086, 0
        %v1099 = vsel %vm1094, %v1088, 0
        %1101 = vmatprep.subr.bf16.mxu0 0
        %1102 = vmatpush1.bf16.xpose.msra.mxu0 0
        %1103 = vmatprep.subr.bf16.mxu0 0
        %1104 = vmatpush1.bf16.xpose.msra.mxu0 0
        %1105 = vmatprep.subr.bf16.mxu0 0
        %1106 = vmatpush1.bf16.xpose.msra.mxu0 0
        %1107 = vmatprep.subr.bf16.mxu0 0
        %1108 = vmatpush1.bf16.xpose.msra.mxu0 0
        %1109 = vmatprep.subr.bf16.mxu0 0
        %1110 = vmatpush1.bf16.xpose.msra.mxu0 0
        %1111 = vmatprep.subr.bf16.mxu0 0
        %1112 = vmatpush1.bf16.xpose.msra.mxu0 0
        %1113 = vmatprep.subr.bf16.mxu0 0
        %1114 = vmatpush1.bf16.xpose.msra.mxu0 0
        %1115 = vmatprep.subr.bf16.mxu0 0
        %1116 = vmatpush1.bf16.xpose.msra.mxu0 %v1099
        %1117 = vmatprep.subr.bf16.mxu0 0
        %1118 = vmatpush2.bf16.xpose.msra.mxu0 0
        %1119 = vmatprep.subr.bf16.mxu0 0
        %1120 = vmatpush2.bf16.xpose.msra.mxu0 0
        %1121 = vmatprep.subr.bf16.mxu0 0
        %1122 = vmatpush2.bf16.xpose.msra.mxu0 0
        %1123 = vmatprep.subr.bf16.mxu0 0
        %1124 = vmatpush2.bf16.xpose.msra.mxu0 0
        %1125 = vmatprep.subr.bf16.mxu0 0
        %1126 = vmatpush2.bf16.xpose.msra.mxu0 0
        %1127 = vmatprep.subr.bf16.mxu0 0
        %1128 = vmatpush2.bf16.xpose.msra.mxu0 0
        %1129 = vmatprep.subr.bf16.mxu0 0
        %1130 = vmatpush2.bf16.xpose.msra.mxu0 0
        %1131 = vmatprep.subr.bf16.mxu0 0
        %1132 = vmatpush2.bf16.xpose.msra.mxu0 0
        %1133 = vmatprep.mubr.bf16.mxu0 0
        %1134 = vmatmul.mubr.bf16.gmra.mxu0 %v1096
        %v1135 = vpop.f32.mrf.mxu0
        %v1136 = vadd.f32 %v1092, %v1135
        %v1137 = vpop.f32.mrf.mxu0
        %v1138 = vpop.f32.mrf.mxu0
        %v1139 = vadd.f32 %v1093, %v1138
        %v1140 = vpop.f32.mrf.mxu0
        %1141 = vdwg.mxu0
        %v1143 = vsel %vm1094, %v1087, 0
        %v1146 = vsel %vm1094, %v1089, 0
        %1148 = vmatprep.subr.bf16.mxu0 0
        %1149 = vmatpush1.bf16.xpose.msra.mxu0 0
        %1150 = vmatprep.subr.bf16.mxu0 0
        %1151 = vmatpush1.bf16.xpose.msra.mxu0 0
        %1152 = vmatprep.subr.bf16.mxu0 0
        %1153 = vmatpush1.bf16.xpose.msra.mxu0 0
        %1154 = vmatprep.subr.bf16.mxu0 0
        %1155 = vmatpush1.bf16.xpose.msra.mxu0 0
        %1156 = vmatprep.subr.bf16.mxu0 0
        %1157 = vmatpush1.bf16.xpose.msra.mxu0 0
        %1158 = vmatprep.subr.bf16.mxu0 0
        %1159 = vmatpush1.bf16.xpose.msra.mxu0 0
        %1160 = vmatprep.subr.bf16.mxu0 0
        %1161 = vmatpush1.bf16.xpose.msra.mxu0 0
        %1162 = vmatprep.subr.bf16.mxu0 0
        %1163 = vmatpush1.bf16.xpose.msra.mxu0 %v1146
        %1164 = vmatprep.subr.bf16.mxu0 0
        %1165 = vmatpush2.bf16.xpose.msra.mxu0 0
        %1166 = vmatprep.subr.bf16.mxu0 0
        %1167 = vmatpush2.bf16.xpose.msra.mxu0 0
        %1168 = vmatprep.subr.bf16.mxu0 0
        %1169 = vmatpush2.bf16.xpose.msra.mxu0 0
        %1170 = vmatprep.subr.bf16.mxu0 0
        %1171 = vmatpush2.bf16.xpose.msra.mxu0 0
        %1172 = vmatprep.subr.bf16.mxu0 0
        %1173 = vmatpush2.bf16.xpose.msra.mxu0 0
        %1174 = vmatprep.subr.bf16.mxu0 0
        %1175 = vmatpush2.bf16.xpose.msra.mxu0 0
        %1176 = vmatprep.subr.bf16.mxu0 0
        %1177 = vmatpush2.bf16.xpose.msra.mxu0 0
        %1178 = vmatprep.subr.bf16.mxu0 0
        %1179 = vmatpush2.bf16.xpose.msra.mxu0 0
        %1180 = vmatprep.mubr.bf16.mxu0 0
        %1181 = vmatmul.mubr.bf16.gmra.mxu0 %v1143
        %v1182 = vpop.f32.mrf.mxu0
        %v1183 = vadd.f32 %v1092, %v1182
        %v1184 = vpop.f32.mrf.mxu0
        %v1185 = vpop.f32.mrf.mxu0
        %v1186 = vadd.f32 %v1093, %v1185
        %v1187 = vpop.f32.mrf.mxu0
        %1188 = vdwg.mxu0
        %vm1189 = vcmask 130048
        %v1190 = vsel %vm1189, %v1136, -inf
        %1191 = vmax.xlane.f32.xlu0 %v1190
        %v1192 = vpop.xlane.xlu0 %1191
        %v1193 = vsel %vm1189, %v1139, -inf
        %1194 = vmax.xlane.f32.xlu0 %v1193
        %v1195 = vpop.xlane.xlu0 %1194
        %v1196 = vsel %vm1189, %v1183, -inf
        %1197 = vmax.xlane.f32.xlu0 %v1196
        %v1198 = vpop.xlane.xlu0 %1197
        %v1199 = vsel %vm1189, %v1186, -inf
        %1200 = vmax.xlane.f32.xlu0 %v1199
        %v1201 = vpop.xlane.xlu0 %1200
        %v1202 = vsub.f32 %v1136, %v1192
        %v1203 = vsub.f32 %v1139, %v1195
        %v1204 = vsub.f32 %v1183, %v1198
        %v1205 = vsub.f32 %v1186, %v1201
        %v1206 = vmul.f32 %v1202, 1.442695
        %v1207 = vpow.pop %v1206
        %v1208 = vmul.f32 %v1203, 1.442695
        %v1209 = vpow.pop %v1208
        %v1210 = vmul.f32 %v1204, 1.442695
        %v1211 = vpow.pop %v1210
        %v1212 = vmul.f32 %v1205, 1.442695
        %v1213 = vpow.pop %v1212
        %v1214 = vsel %vm1189, %v1207, 0.0
        %1215 = vadd.xlane.f32.xlu0 %v1214
        %v1216 = vpop.xlane.xlu0 %1215
        %v1217 = vsel %vm1189, %v1209, 0.0
        %1218 = vadd.xlane.f32.xlu0 %v1217
        %v1219 = vpop.xlane.xlu0 %1218
        %v1220 = vsel %vm1189, %v1211, 0.0
        %1221 = vadd.xlane.f32.xlu0 %v1220
        %v1222 = vpop.xlane.xlu0 %1221
        %v1223 = vsel %vm1189, %v1213, 0.0
        %1224 = vadd.xlane.f32.xlu0 %v1223
        %v1225 = vpop.xlane.xlu0 %1224
        %v1226 = vrcp.pop %v1216
        %v1227 = vrcp.pop %v1219
        %v1228 = vrcp.pop %v1222
        %v1229 = vrcp.pop %v1225
        %v1230 = vmul.f32 %v1216, %v1226
        %v1231 = vmul.f32 %v1219, %v1227
        %v1232 = vmul.f32 %v1222, %v1228
        %v1233 = vmul.f32 %v1225, %v1229
        %v1234 = vsub.f32 2.0, %v1230
        %v1235 = vsub.f32 2.0, %v1231
        %v1236 = vsub.f32 2.0, %v1232
        %v1237 = vsub.f32 2.0, %v1233
        %v1238 = vmul.f32 %v1226, %v1234
        %v1239 = vmul.f32 %v1227, %v1235
        %v1240 = vmul.f32 %v1228, %v1236
        %v1241 = vmul.f32 %v1229, %v1237
        %v1242 = vmul.f32 %v1207, %v1238
        %v1243 = vmul.f32 %v1209, %v1239
        %v1244 = vmul.f32 %v1211, %v1240
        %v1245 = vmul.f32 %v1213, %v1241
        %v1246 = vpack.c.bf16 %v1243, %v1242
        %v1247 = vpack.c.bf16 %v1245, %v1244
        %v1249 = vsel %vm1189, %v1246, 0
        %1251 = vmatprep.subr.bf16.mxu0 0
        %1252 = vmatpush1.bf16.msra.mxu0 0
        %1253 = vmatprep.subr.bf16.mxu0 0
        %1254 = vmatpush1.bf16.msra.mxu0 0
        %1255 = vmatprep.subr.bf16.mxu0 0
        %1256 = vmatpush1.bf16.msra.mxu0 0
        %1257 = vmatprep.subr.bf16.mxu0 0
        %1258 = vmatpush1.bf16.msra.mxu0 0
        %1259 = vmatprep.subr.bf16.mxu0 0
        %1260 = vmatpush1.bf16.msra.mxu0 0
        %1261 = vmatprep.subr.bf16.mxu0 0
        %1262 = vmatpush1.bf16.msra.mxu0 0
        %1263 = vmatprep.subr.bf16.mxu0 0
        %1264 = vmatpush1.bf16.msra.mxu0 0
        %1265 = vmatprep.subr.bf16.mxu0 0
        %1266 = vmatpush1.bf16.msra.mxu0 %v1090
        %1267 = vmatprep.subr.bf16.mxu0 0
        %1268 = vmatpush2.bf16.msra.mxu0 0
        %1269 = vmatprep.subr.bf16.mxu0 0
        %1270 = vmatpush2.bf16.msra.mxu0 0
        %1271 = vmatprep.subr.bf16.mxu0 0
        %1272 = vmatpush2.bf16.msra.mxu0 0
        %1273 = vmatprep.subr.bf16.mxu0 0
        %1274 = vmatpush2.bf16.msra.mxu0 0
        %1275 = vmatprep.subr.bf16.mxu0 0
        %1276 = vmatpush2.bf16.msra.mxu0 0
        %1277 = vmatprep.subr.bf16.mxu0 0
        %1278 = vmatpush2.bf16.msra.mxu0 0
        %1279 = vmatprep.subr.bf16.mxu0 0
        %1280 = vmatpush2.bf16.msra.mxu0 0
        %1281 = vmatprep.subr.bf16.mxu0 0
        %1282 = vmatpush2.bf16.msra.mxu0 0
        %1283 = vmatprep.mubr.bf16.mxu0 0
        %1284 = vmatmul.mubr.bf16.gmra.mxu0 %v1249
        %v1285 = vpop.f32.mrf.mxu0
        %v1286 = vadd.f32 0.0, %v1285
        %v1287 = vpop.f32.mrf.mxu0
        %v1288 = vpop.f32.mrf.mxu0
        %v1289 = vadd.f32 0.0, %v1288
        %v1290 = vpop.f32.mrf.mxu0
        %1291 = vdwg.mxu0
        %v1293 = vsel %vm1189, %v1247, 0
        %1295 = vmatprep.subr.bf16.mxu0 0
        %1296 = vmatpush1.bf16.msra.mxu0 0
        %1297 = vmatprep.subr.bf16.mxu0 0
        %1298 = vmatpush1.bf16.msra.mxu0 0
        %1299 = vmatprep.subr.bf16.mxu0 0
        %1300 = vmatpush1.bf16.msra.mxu0 0
        %1301 = vmatprep.subr.bf16.mxu0 0
        %1302 = vmatpush1.bf16.msra.mxu0 0
        %1303 = vmatprep.subr.bf16.mxu0 0
        %1304 = vmatpush1.bf16.msra.mxu0 0
        %1305 = vmatprep.subr.bf16.mxu0 0
        %1306 = vmatpush1.bf16.msra.mxu0 0
        %1307 = vmatprep.subr.bf16.mxu0 0
        %1308 = vmatpush1.bf16.msra.mxu0 0
        %1309 = vmatprep.subr.bf16.mxu0 0
        %1310 = vmatpush1.bf16.msra.mxu0 %v1091
        %1311 = vmatprep.subr.bf16.mxu0 0
        %1312 = vmatpush2.bf16.msra.mxu0 0
        %1313 = vmatprep.subr.bf16.mxu0 0
        %1314 = vmatpush2.bf16.msra.mxu0 0
        %1315 = vmatprep.subr.bf16.mxu0 0
        %1316 = vmatpush2.bf16.msra.mxu0 0
        %1317 = vmatprep.subr.bf16.mxu0 0
        %1318 = vmatpush2.bf16.msra.mxu0 0
        %1319 = vmatprep.subr.bf16.mxu0 0
        %1320 = vmatpush2.bf16.msra.mxu0 0
        %1321 = vmatprep.subr.bf16.mxu0 0
        %1322 = vmatpush2.bf16.msra.mxu0 0
        %1323 = vmatprep.subr.bf16.mxu0 0
        %1324 = vmatpush2.bf16.msra.mxu0 0
        %1325 = vmatprep.subr.bf16.mxu0 0
        %1326 = vmatpush2.bf16.msra.mxu0 0
        %1327 = vmatprep.mubr.bf16.mxu0 0
        %1328 = vmatmul.mubr.bf16.gmra.mxu0 %v1293
        %v1329 = vpop.f32.mrf.mxu0
        %v1330 = vadd.f32 0.0, %v1329
        %v1331 = vpop.f32.mrf.mxu0
        %v1332 = vpop.f32.mrf.mxu0
        %v1333 = vadd.f32 0.0, %v1332
        %v1334 = vpop.f32.mrf.mxu0
        %1335 = vdwg.mxu0
        %1336 = vst.msk [vmem:[#allocation2] sm:$0xff] %vm1094, %v1286
        %1337 = vst.msk [vmem:[#allocation2 + $0x8] sm:$0xff] %vm1094, %v1289
        %1338 = vst.msk [vmem:[#allocation2 + $0x10] sm:$0xff] %vm1094, %v1330
        %1339 = vst.msk [vmem:[#allocation2 + $0x18] sm:$0xff] %vm1094, %v1333
        %1341 = vrot.lane.b32.xlu0 %v1086, 64
        %v1342 = vpop.permute.xlu0 %1341
        %1344 = vrot.lane.b32.xlu0 %v1088, 64
        %v1345 = vpop.permute.xlu0 %1344
        %v1347 = vsel %vm1094, %v1342, 0
        %v1350 = vsel %vm1094, %v1345, 0
        %1352 = vmatprep.subr.bf16.mxu0 0
        %1353 = vmatpush1.bf16.xpose.msra.mxu0 0
        %1354 = vmatprep.subr.bf16.mxu0 0
        %1355 = vmatpush1.bf16.xpose.msra.mxu0 0
        %1356 = vmatprep.subr.bf16.mxu0 0
        %1357 = vmatpush1.bf16.xpose.msra.mxu0 0
        %1358 = vmatprep.subr.bf16.mxu0 0
        %1359 = vmatpush1.bf16.xpose.msra.mxu0 0
        %1360 = vmatprep.subr.bf16.mxu0 0
        %1361 = vmatpush1.bf16.xpose.msra.mxu0 0
        %1362 = vmatprep.subr.bf16.mxu0 0
        %1363 = vmatpush1.bf16.xpose.msra.mxu0 0
        %1364 = vmatprep.subr.bf16.mxu0 0
        %1365 = vmatpush1.bf16.xpose.msra.mxu0 0
        %1366 = vmatprep.subr.bf16.mxu0 0
        %1367 = vmatpush1.bf16.xpose.msra.mxu0 %v1350
        %1368 = vmatprep.subr.bf16.mxu0 0
        %1369 = vmatpush2.bf16.xpose.msra.mxu0 0
        %1370 = vmatprep.subr.bf16.mxu0 0
        %1371 = vmatpush2.bf16.xpose.msra.mxu0 0
        %1372 = vmatprep.subr.bf16.mxu0 0
        %1373 = vmatpush2.bf16.xpose.msra.mxu0 0
        %1374 = vmatprep.subr.bf16.mxu0 0
        %1375 = vmatpush2.bf16.xpose.msra.mxu0 0
        %1376 = vmatprep.subr.bf16.mxu0 0
        %1377 = vmatpush2.bf16.xpose.msra.mxu0 0
        %1378 = vmatprep.subr.bf16.mxu0 0
        %1379 = vmatpush2.bf16.xpose.msra.mxu0 0
        %1380 = vmatprep.subr.bf16.mxu0 0
        %1381 = vmatpush2.bf16.xpose.msra.mxu0 0
        %1382 = vmatprep.subr.bf16.mxu0 0
        %1383 = vmatpush2.bf16.xpose.msra.mxu0 0
        %1384 = vmatprep.mubr.bf16.mxu0 0
        %1385 = vmatmul.mubr.bf16.gmra.mxu0 %v1347
        %v1386 = vpop.f32.mrf.mxu0
        %v1387 = vadd.f32 %v1092, %v1386
        %v1388 = vpop.f32.mrf.mxu0
        %v1389 = vpop.f32.mrf.mxu0
        %v1390 = vadd.f32 %v1093, %v1389
        %v1391 = vpop.f32.mrf.mxu0
        %1392 = vdwg.mxu0
        %1394 = vrot.lane.b32.xlu0 %v1087, 64
        %v1395 = vpop.permute.xlu0 %1394
        %1397 = vrot.lane.b32.xlu0 %v1089, 64
        %v1398 = vpop.permute.xlu0 %1397
        %v1400 = vsel %vm1094, %v1395, 0
        %v1403 = vsel %vm1094, %v1398, 0
        %1405 = vmatprep.subr.bf16.mxu0 0
        %1406 = vmatpush1.bf16.xpose.msra.mxu0 0
        %1407 = vmatprep.subr.bf16.mxu0 0
        %1408 = vmatpush1.bf16.xpose.msra.mxu0 0
        %1409 = vmatprep.subr.bf16.mxu0 0
        %1410 = vmatpush1.bf16.xpose.msra.mxu0 0
        %1411 = vmatprep.subr.bf16.mxu0 0
        %1412 = vmatpush1.bf16.xpose.msra.mxu0 0
        %1413 = vmatprep.subr.bf16.mxu0 0
        %1414 = vmatpush1.bf16.xpose.msra.mxu0 0
        %1415 = vmatprep.subr.bf16.mxu0 0
        %1416 = vmatpush1.bf16.xpose.msra.mxu0 0
        %1417 = vmatprep.subr.bf16.mxu0 0
        %1418 = vmatpush1.bf16.xpose.msra.mxu0 0
        %1419 = vmatprep.subr.bf16.mxu0 0
        %1420 = vmatpush1.bf16.xpose.msra.mxu0 %v1403
        %1421 = vmatprep.subr.bf16.mxu0 0
        %1422 = vmatpush2.bf16.xpose.msra.mxu0 0
        %1423 = vmatprep.subr.bf16.mxu0 0
        %1424 = vmatpush2.bf16.xpose.msra.mxu0 0
        %1425 = vmatprep.subr.bf16.mxu0 0
        %1426 = vmatpush2.bf16.xpose.msra.mxu0 0
        %1427 = vmatprep.subr.bf16.mxu0 0
        %1428 = vmatpush2.bf16.xpose.msra.mxu0 0
        %1429 = vmatprep.subr.bf16.mxu0 0
        %1430 = vmatpush2.bf16.xpose.msra.mxu0 0
        %1431 = vmatprep.subr.bf16.mxu0 0
        %1432 = vmatpush2.bf16.xpose.msra.mxu0 0
        %1433 = vmatprep.subr.bf16.mxu0 0
        %1434 = vmatpush2.bf16.xpose.msra.mxu0 0
        %1435 = vmatprep.subr.bf16.mxu0 0
        %1436 = vmatpush2.bf16.xpose.msra.mxu0 0
        %1437 = vmatprep.mubr.bf16.mxu0 0
        %1438 = vmatmul.mubr.bf16.gmra.mxu0 %v1400
        %v1439 = vpop.f32.mrf.mxu0
        %v1440 = vadd.f32 %v1092, %v1439
        %v1441 = vpop.f32.mrf.mxu0
        %v1442 = vpop.f32.mrf.mxu0
        %v1443 = vadd.f32 %v1093, %v1442
        %v1444 = vpop.f32.mrf.mxu0
        %1445 = vdwg.mxu0
        %v1446 = vsel %vm1189, %v1387, -inf
        %1447 = vmax.xlane.f32.xlu0 %v1446
        %v1448 = vpop.xlane.xlu0 %1447
        %v1449 = vsel %vm1189, %v1390, -inf
        %1450 = vmax.xlane.f32.xlu0 %v1449
        %v1451 = vpop.xlane.xlu0 %1450
        %v1452 = vsel %vm1189, %v1440, -inf
        %1453 = vmax.xlane.f32.xlu0 %v1452
        %v1454 = vpop.xlane.xlu0 %1453
        %v1455 = vsel %vm1189, %v1443, -inf
        %1456 = vmax.xlane.f32.xlu0 %v1455
        %v1457 = vpop.xlane.xlu0 %1456
        %v1458 = vsub.f32 %v1387, %v1448
        %v1459 = vsub.f32 %v1390, %v1451
        %v1460 = vsub.f32 %v1440, %v1454
        %v1461 = vsub.f32 %v1443, %v1457
        %v1462 = vmul.f32 %v1458, 1.442695
        %v1463 = vpow.pop %v1462
        %v1464 = vmul.f32 %v1459, 1.442695
        %v1465 = vpow.pop %v1464
        %v1466 = vmul.f32 %v1460, 1.442695
        %v1467 = vpow.pop %v1466
        %v1468 = vmul.f32 %v1461, 1.442695
        %v1469 = vpow.pop %v1468
        %v1470 = vsel %vm1189, %v1463, 0.0
        %1471 = vadd.xlane.f32.xlu0 %v1470
        %v1472 = vpop.xlane.xlu0 %1471
        %v1473 = vsel %vm1189, %v1465, 0.0
        %1474 = vadd.xlane.f32.xlu0 %v1473
        %v1475 = vpop.xlane.xlu0 %1474
        %v1476 = vsel %vm1189, %v1467, 0.0
        %1477 = vadd.xlane.f32.xlu0 %v1476
        %v1478 = vpop.xlane.xlu0 %1477
        %v1479 = vsel %vm1189, %v1469, 0.0
        %1480 = vadd.xlane.f32.xlu0 %v1479
        %v1481 = vpop.xlane.xlu0 %1480
        %v1482 = vrcp.pop %v1472
        %v1483 = vrcp.pop %v1475
        %v1484 = vrcp.pop %v1478
        %v1485 = vrcp.pop %v1481
        %v1486 = vmul.f32 %v1472, %v1482
        %v1487 = vmul.f32 %v1475, %v1483
        %v1488 = vmul.f32 %v1478, %v1484
        %v1489 = vmul.f32 %v1481, %v1485
        %v1490 = vsub.f32 2.0, %v1486
        %v1491 = vsub.f32 2.0, %v1487
        %v1492 = vsub.f32 2.0, %v1488
        %v1493 = vsub.f32 2.0, %v1489
        %v1494 = vmul.f32 %v1482, %v1490
        %v1495 = vmul.f32 %v1483, %v1491
        %v1496 = vmul.f32 %v1484, %v1492
        %v1497 = vmul.f32 %v1485, %v1493
        %v1498 = vmul.f32 %v1463, %v1494
        %v1499 = vmul.f32 %v1465, %v1495
        %v1500 = vmul.f32 %v1467, %v1496
        %v1501 = vmul.f32 %v1469, %v1497
        %v1502 = vpack.c.bf16 %v1499, %v1498
        %v1503 = vpack.c.bf16 %v1501, %v1500
        %1505 = vrot.lane.b32.xlu0 %v1090, 64
        %v1506 = vpop.permute.xlu0 %1505
        %v1509 = vsel %vm1189, %v1502, 0
        %1511 = vmatprep.subr.bf16.mxu0 0
        %1512 = vmatpush1.bf16.msra.mxu0 0
        %1513 = vmatprep.subr.bf16.mxu0 0
        %1514 = vmatpush1.bf16.msra.mxu0 0
        %1515 = vmatprep.subr.bf16.mxu0 0
        %1516 = vmatpush1.bf16.msra.mxu0 0
        %1517 = vmatprep.subr.bf16.mxu0 0
        %1518 = vmatpush1.bf16.msra.mxu0 0
        %1519 = vmatprep.subr.bf16.mxu0 0
        %1520 = vmatpush1.bf16.msra.mxu0 0
        %1521 = vmatprep.subr.bf16.mxu0 0
        %1522 = vmatpush1.bf16.msra.mxu0 0
        %1523 = vmatprep.subr.bf16.mxu0 0
        %1524 = vmatpush1.bf16.msra.mxu0 0
        %1525 = vmatprep.subr.bf16.mxu0 0
        %1526 = vmatpush1.bf16.msra.mxu0 %v1506
        %1527 = vmatprep.subr.bf16.mxu0 0
        %1528 = vmatpush2.bf16.msra.mxu0 0
        %1529 = vmatprep.subr.bf16.mxu0 0
        %1530 = vmatpush2.bf16.msra.mxu0 0
        %1531 = vmatprep.subr.bf16.mxu0 0
        %1532 = vmatpush2.bf16.msra.mxu0 0
        %1533 = vmatprep.subr.bf16.mxu0 0
        %1534 = vmatpush2.bf16.msra.mxu0 0
        %1535 = vmatprep.subr.bf16.mxu0 0
        %1536 = vmatpush2.bf16.msra.mxu0 0
        %1537 = vmatprep.subr.bf16.mxu0 0
        %1538 = vmatpush2.bf16.msra.mxu0 0
        %1539 = vmatprep.subr.bf16.mxu0 0
        %1540 = vmatpush2.bf16.msra.mxu0 0
        %1541 = vmatprep.subr.bf16.mxu0 0
        %1542 = vmatpush2.bf16.msra.mxu0 0
        %1543 = vmatprep.mubr.bf16.mxu0 0
        %1544 = vmatmul.mubr.bf16.gmra.mxu0 %v1509
        %v1545 = vpop.f32.mrf.mxu0
        %v1546 = vadd.f32 0.0, %v1545
        %v1547 = vpop.f32.mrf.mxu0
        %v1548 = vpop.f32.mrf.mxu0
        %v1549 = vadd.f32 0.0, %v1548
        %v1550 = vpop.f32.mrf.mxu0
        %1551 = vdwg.mxu0
        %1553 = vrot.lane.b32.xlu0 %v1091, 64
        %v1554 = vpop.permute.xlu0 %1553
        %v1557 = vsel %vm1189, %v1503, 0
        %1559 = vmatprep.subr.bf16.mxu0 0
        %1560 = vmatpush1.bf16.msra.mxu0 0
        %1561 = vmatprep.subr.bf16.mxu0 0
        %1562 = vmatpush1.bf16.msra.mxu0 0
        %1563 = vmatprep.subr.bf16.mxu0 0
        %1564 = vmatpush1.bf16.msra.mxu0 0
        %1565 = vmatprep.subr.bf16.mxu0 0
        %1566 = vmatpush1.bf16.msra.mxu0 0
        %1567 = vmatprep.subr.bf16.mxu0 0
        %1568 = vmatpush1.bf16.msra.mxu0 0
        %1569 = vmatprep.subr.bf16.mxu0 0
        %1570 = vmatpush1.bf16.msra.mxu0 0
        %1571 = vmatprep.subr.bf16.mxu0 0
        %1572 = vmatpush1.bf16.msra.mxu0 0
        %1573 = vmatprep.subr.bf16.mxu0 0
        %1574 = vmatpush1.bf16.msra.mxu0 %v1554
        %1575 = vmatprep.subr.bf16.mxu0 0
        %1576 = vmatpush2.bf16.msra.mxu0 0
        %1577 = vmatprep.subr.bf16.mxu0 0
        %1578 = vmatpush2.bf16.msra.mxu0 0
        %1579 = vmatprep.subr.bf16.mxu0 0
        %1580 = vmatpush2.bf16.msra.mxu0 0
        %1581 = vmatprep.subr.bf16.mxu0 0
        %1582 = vmatpush2.bf16.msra.mxu0 0
        %1583 = vmatprep.subr.bf16.mxu0 0
        %1584 = vmatpush2.bf16.msra.mxu0 0
        %1585 = vmatprep.subr.bf16.mxu0 0
        %1586 = vmatpush2.bf16.msra.mxu0 0
        %1587 = vmatprep.subr.bf16.mxu0 0
        %1588 = vmatpush2.bf16.msra.mxu0 0
        %1589 = vmatprep.subr.bf16.mxu0 0
        %1590 = vmatpush2.bf16.msra.mxu0 0
        %1591 = vmatprep.mubr.bf16.mxu0 0
        %1592 = vmatmul.mubr.bf16.gmra.mxu0 %v1557
        %v1593 = vpop.f32.mrf.mxu0
        %v1594 = vadd.f32 0.0, %v1593
        %v1595 = vpop.f32.mrf.mxu0
        %v1596 = vpop.f32.mrf.mxu0
        %v1597 = vadd.f32 0.0, %v1596
        %v1598 = vpop.f32.mrf.mxu0
        %1599 = vdwg.mxu0
        %1604 = vrot.lane.b32.xlu0 %v1546, 64
        %v1605 = vpop.permute.xlu0 %1604
        %1606 = vrot.lane.b32.xlu0 %v1549, 64
        %v1607 = vpop.permute.xlu0 %1606
        %1608 = vrot.lane.b32.xlu0 %v1594, 64
        %v1609 = vpop.permute.xlu0 %1608
        %1610 = vrot.lane.b32.xlu0 %v1597, 64
        %v1611 = vpop.permute.xlu0 %1610
        %vm1616 = vcmask 1048064
        %1617 = vst.msk [vmem:[#allocation2] sm:$0xff] %vm1616, %v1605
        %1618 = vst.msk [vmem:[#allocation2 + $0x8] sm:$0xff] %vm1616, %v1607
        %1619 = vst.msk [vmem:[#allocation2 + $0x10] sm:$0xff] %vm1616, %v1609
        %1620 = vst.msk [vmem:[#allocation2 + $0x18] sm:$0xff] %vm1616, %v1611
        %v1621 = vld [vmem:[#allocation2] sm:$0xff]
        %v1622 = vld [vmem:[#allocation2 + $0x8] sm:$0xff]
        %v1623 = vld [vmem:[#allocation2 + $0x10] sm:$0xff]
        %v1624 = vld [vmem:[#allocation2 + $0x18] sm:$0xff]
        %v1625 = vpack.c.bf16 %v1622, %v1621
        %v1626 = vpack.c.bf16 %v1624, %v1623
        %v1627 = vld [vmem:[%s8] sm:$0xf]
        %v1628 = vld [vmem:[%s8 + $0x4] sm:$0xf]
        %v1629 = vld [vmem:[%s8 + $0x8] sm:$0xf]
        %v1630 = vld [vmem:[%s8 + $0xc] sm:$0xf]
        %v1631 = vld [vmem:[%s8 + $0x10] sm:$0xf]
        %v1632 = vld [vmem:[%s8 + $0x14] sm:$0xf]
        %v1633 = vld [vmem:[%s8 + $0x18] sm:$0xf]
        %v1634 = vld [vmem:[%s8 + $0x1c] sm:$0xf]
        %v1635 = vld [vmem:[%s8 + $0x20] sm:$0xf]
        %v1636 = vld [vmem:[%s8 + $0x24] sm:$0xf]
        %v1637 = vld [vmem:[%s8 + $0x28] sm:$0xf]
        %v1638 = vld [vmem:[%s8 + $0x2c] sm:$0xf]
        %v1639 = vld [vmem:[%s8 + $0x30] sm:$0xf]
        %v1640 = vld [vmem:[%s8 + $0x34] sm:$0xf]
        %v1641 = vld [vmem:[%s8 + $0x38] sm:$0xf]
        %v1642 = vld [vmem:[%s8 + $0x3c] sm:$0xf]
        %v1643 = vld [vmem:[%s9] sm:$0x1]
        %v1645 = vlaneseq
        %v1646 = vshrl.u32 %v1645, 7
        %v1647 = vsub.s32 0, %v1646
        %v1648 = vrot.slane %v1643, %v1647
        %v1666 = vunpack.c.l.b16 %v1627
        %v1667 = vunpack.c.l.b16 %v1628
        %v1668 = vunpack.c.l.b16 %v1629
        %v1669 = vunpack.c.l.b16 %v1630
        %v1670 = vunpack.c.l.b16 %v1631
        %v1671 = vunpack.c.l.b16 %v1632
        %v1672 = vunpack.c.l.b16 %v1633
        %v1673 = vunpack.c.l.b16 %v1634
        %v1674 = vunpack.c.l.b16 %v1635
        %v1675 = vunpack.c.l.b16 %v1636
        %v1676 = vunpack.c.l.b16 %v1637
        %v1677 = vunpack.c.l.b16 %v1638
        %v1678 = vunpack.c.l.b16 %v1639
        %v1679 = vunpack.c.l.b16 %v1640
        %v1680 = vunpack.c.l.b16 %v1641
        %v1681 = vunpack.c.l.b16 %v1642
        %v1682 = vpack.c.b16 %v1667, %v1666
        %v1683 = vpack.c.b16 %v1669, %v1668
        %v1684 = vpack.c.b16 %v1671, %v1670
        %v1685 = vpack.c.b16 %v1673, %v1672
        %v1686 = vpack.c.b16 %v1675, %v1674
        %v1687 = vpack.c.b16 %v1677, %v1676
        %v1688 = vpack.c.b16 %v1679, %v1678
        %v1689 = vpack.c.b16 %v1681, %v1680
        %1698 = vmatprep.subr.bf16.mxu0 0
        %1699 = vmatpush1.bf16.msra.mxu0 %v1689
        %1700 = vmatprep.subr.bf16.mxu0 0
        %1701 = vmatpush1.bf16.msra.mxu0 %v1688
        %1702 = vmatprep.subr.bf16.mxu0 0
        %1703 = vmatpush1.bf16.msra.mxu0 %v1687
        %1704 = vmatprep.subr.bf16.mxu0 0
        %1705 = vmatpush1.bf16.msra.mxu0 %v1686
        %1706 = vmatprep.subr.bf16.mxu0 0
        %1707 = vmatpush1.bf16.msra.mxu0 %v1685
        %1708 = vmatprep.subr.bf16.mxu0 0
        %1709 = vmatpush1.bf16.msra.mxu0 %v1684
        %1710 = vmatprep.subr.bf16.mxu0 0
        %1711 = vmatpush1.bf16.msra.mxu0 %v1683
        %1712 = vmatprep.subr.bf16.mxu0 0
        %1713 = vmatpush1.bf16.msra.mxu0 %v1682
        %1714 = vmatprep.subr.bf16.mxu0 0
        %1715 = vmatpush2.bf16.msra.mxu0 0
        %1716 = vmatprep.subr.bf16.mxu0 0
        %1717 = vmatpush2.bf16.msra.mxu0 0
        %1718 = vmatprep.subr.bf16.mxu0 0
        %1719 = vmatpush2.bf16.msra.mxu0 0
        %1720 = vmatprep.subr.bf16.mxu0 0
        %1721 = vmatpush2.bf16.msra.mxu0 0
        %1722 = vmatprep.subr.bf16.mxu0 0
        %1723 = vmatpush2.bf16.msra.mxu0 0
        %1724 = vmatprep.subr.bf16.mxu0 0
        %1725 = vmatpush2.bf16.msra.mxu0 0
        %1726 = vmatprep.subr.bf16.mxu0 0
        %1727 = vmatpush2.bf16.msra.mxu0 0
        %1728 = vmatprep.subr.bf16.mxu0 0
        %1729 = vmatpush2.bf16.msra.mxu0 0
        %1730 = vmatprep.mubr.bf16.mxu0 0
        %1731 = vmatmul.mubr.bf16.gmra.mxu0 %v1625
        %v1732 = vpop.f32.mrf.mxu0
        %v1733 = vadd.f32 %v1648, %v1732
        %v1734 = vpop.f32.mrf.mxu0
        %v1735 = vpop.f32.mrf.mxu0
        %v1736 = vadd.f32 %v1648, %v1735
        %v1737 = vpop.f32.mrf.mxu0
        %1738 = vmatprep.mubr.bf16.mxu0 0
        %1739 = vmatmul.mubr.bf16.gmra.mxu0 %v1626
        %v1740 = vpop.f32.mrf.mxu0
        %v1741 = vadd.f32 %v1648, %v1740
        %v1742 = vpop.f32.mrf.mxu0
        %v1743 = vpop.f32.mrf.mxu0
        %v1744 = vadd.f32 %v1648, %v1743
        %v1745 = vpop.f32.mrf.mxu0
        %1746 = vdwg.mxu0
        %v1747 = vadd.f32 %v1733, %v716
        %v1748 = vadd.f32 %v1736, %v717
        %v1749 = vadd.f32 %v1741, %v718
        %v1750 = vadd.f32 %v1744, %v719
        %v1751 = vld [vmem:[%s10] sm:$0x1]
        %v1752 = vld [vmem:[%s11] sm:$0x1]
        %1753 = vadd.xlane.f32.xlu0 %v1747
        %v1754 = vpop.xlane.xlu0 %1753
        %1755 = vadd.xlane.f32.xlu0 %v1748
        %v1756 = vpop.xlane.xlu0 %1755
        %1757 = vadd.xlane.f32.xlu0 %v1749
        %v1758 = vpop.xlane.xlu0 %1757
        %1759 = vadd.xlane.f32.xlu0 %v1750
        %v1760 = vpop.xlane.xlu0 %1759
        %v1761 = vrcp.pop 128.0
        %v1762 = vmul.f32 %v1754, %v1761
        %v1763 = vmul.f32 %v1756, %v1761
        %v1764 = vmul.f32 %v1758, %v1761
        %v1765 = vmul.f32 %v1760, %v1761
        %v1766 = vsub.f32 %v1747, %v1762
        %v1767 = vsub.f32 %v1748, %v1763
        %v1768 = vsub.f32 %v1749, %v1764
        %v1769 = vsub.f32 %v1750, %v1765
        %v1770 = vmul.f32 %v1766, %v1766
        %v1771 = vmul.f32 %v1767, %v1767
        %v1772 = vmul.f32 %v1768, %v1768
        %v1773 = vmul.f32 %v1769, %v1769
        %1774 = vadd.xlane.f32.xlu0 %v1770
        %v1775 = vpop.xlane.xlu0 %1774
        %1776 = vadd.xlane.f32.xlu0 %v1771
        %v1777 = vpop.xlane.xlu0 %1776
        %1778 = vadd.xlane.f32.xlu0 %v1772
        %v1779 = vpop.xlane.xlu0 %1778
        %1780 = vadd.xlane.f32.xlu0 %v1773
        %v1781 = vpop.xlane.xlu0 %1780
        %v1782 = vmul.f32 %v1775, %v1761
        %v1783 = vmul.f32 %v1777, %v1761
        %v1784 = vmul.f32 %v1779, %v1761
        %v1785 = vmul.f32 %v1781, %v1761
        %v1786 = vadd.f32 %v1782, 1e-12
        %v1787 = vadd.f32 %v1783, 1e-12
        %v1788 = vadd.f32 %v1784, 1e-12
        %v1789 = vadd.f32 %v1785, 1e-12
        %v1790 = vrsqrt.pop %v1786
        %v1791 = vrsqrt.pop %v1787
        %v1792 = vrsqrt.pop %v1788
        %v1793 = vrsqrt.pop %v1789
        %v1794 = vmul.f32 %v1766, %v1790
        %v1795 = vmul.f32 %v1767, %v1791
        %v1796 = vmul.f32 %v1768, %v1792
        %v1797 = vmul.f32 %v1769, %v1793
        %v1799 = vlaneseq
        %v1800 = vshrl.u32 %v1799, 7
        %v1801 = vsub.s32 0, %v1800
        %v1802 = vrot.slane %v1751, %v1801
        %v1804 = vmul.f32 %v1794, %v1802
        %v1805 = vmul.f32 %v1795, %v1802
        %v1806 = vmul.f32 %v1796, %v1802
        %v1807 = vmul.f32 %v1797, %v1802
        %v1809 = vlaneseq
        %v1810 = vshrl.u32 %v1809, 7
        %v1811 = vsub.s32 0, %v1810
        %v1812 = vrot.slane %v1752, %v1811
        %v1814 = vadd.f32 %v1804, %v1812
        %v1815 = vadd.f32 %v1805, %v1812
        %v1816 = vadd.f32 %v1806, %v1812
        %v1817 = vadd.f32 %v1807, %v1812
        %v1818 = vld [vmem:[%s13] sm:$0xff]
        %v1819 = vld [vmem:[%s12] sm:$0xff]
        %v1820 = vld [vmem:[%s12 + $0x8] sm:$0xff]
        %v1822 = vsel %vm1189, %v1818, 0
        %1824 = vmatprep.subr.mxu0 0.0
        %1825 = vmatpush1.msra.mxu0 0.0
        %1826 = vmatprep.subr.mxu0 0.0
        %1827 = vmatpush1.msra.mxu0 0.0
        %1828 = vmatprep.subr.mxu0 0.0
        %1829 = vmatpush1.msra.mxu0 0.0
        %1830 = vmatprep.subr.mxu0 0.0
        %1831 = vmatpush1.msra.mxu0 0.0
        %1832 = vmatprep.subr.mxu0 0.0
        %1833 = vmatpush1.msra.mxu0 0.0
        %1834 = vmatprep.subr.mxu0 0.0
        %1835 = vmatpush1.msra.mxu0 0.0
        %1836 = vmatprep.subr.mxu0 0.0
        %1837 = vmatpush1.msra.mxu0 0.0
        %1838 = vmatprep.subr.mxu0 0.0
        %1839 = vmatpush1.msra.mxu0 0.0
        %1840 = vmatprep.subr.mxu0 0.0
        %1841 = vmatpush1.msra.mxu0 0.0
        %1842 = vmatprep.subr.mxu0 0.0
        %1843 = vmatpush1.msra.mxu0 0.0
        %1844 = vmatprep.subr.mxu0 0.0
        %1845 = vmatpush1.msra.mxu0 0.0
        %1846 = vmatprep.subr.mxu0 0.0
        %1847 = vmatpush1.msra.mxu0 0.0
        %1848 = vmatprep.subr.mxu0 0.0
        %1849 = vmatpush1.msra.mxu0 0.0
        %1850 = vmatprep.subr.mxu0 0.0
        %1851 = vmatpush1.msra.mxu0 0.0
        %1852 = vmatprep.subr.mxu0 0.0
        %1853 = vmatpush1.msra.mxu0 %v717
        %1854 = vmatprep.subr.mxu0 0.0
        %1855 = vmatpush1.msra.mxu0 %v716
        %1856 = vmatprep.subr.mxu0 0.0
        %1857 = vmatpush2.msra.mxu0 0.0
        %1858 = vmatprep.subr.mxu0 0.0
        %1859 = vmatpush2.msra.mxu0 0.0
        %1860 = vmatprep.subr.mxu0 0.0
        %1861 = vmatpush2.msra.mxu0 0.0
        %1862 = vmatprep.subr.mxu0 0.0
        %1863 = vmatpush2.msra.mxu0 0.0
        %1864 = vmatprep.subr.mxu0 0.0
        %1865 = vmatpush2.msra.mxu0 0.0
        %1866 = vmatprep.subr.mxu0 0.0
        %1867 = vmatpush2.msra.mxu0 0.0
        %1868 = vmatprep.subr.mxu0 0.0
        %1869 = vmatpush2.msra.mxu0 0.0
        %1870 = vmatprep.subr.mxu0 0.0
        %1871 = vmatpush2.msra.mxu0 0.0
        %1872 = vmatprep.subr.mxu0 0.0
        %1873 = vmatpush2.msra.mxu0 0.0
        %1874 = vmatprep.subr.mxu0 0.0
        %1875 = vmatpush2.msra.mxu0 0.0
        %1876 = vmatprep.subr.mxu0 0.0
        %1877 = vmatpush2.msra.mxu0 0.0
        %1878 = vmatprep.subr.mxu0 0.0
        %1879 = vmatpush2.msra.mxu0 0.0
        %1880 = vmatprep.subr.mxu0 0.0
        %1881 = vmatpush2.msra.mxu0 0.0
        %1882 = vmatprep.subr.mxu0 0.0
        %1883 = vmatpush2.msra.mxu0 0.0
        %1884 = vmatprep.subr.mxu0 0.0
        %1885 = vmatpush2.msra.mxu0 0.0
        %1886 = vmatprep.subr.mxu0 0.0
        %1887 = vmatpush2.msra.mxu0 0.0
        %1888 = vmatprep.mubr.f32.mxu0 0.0
        %1889 = vmatmul.mubr.f32.gmra.mxu0 %v1822
        %v1890 = vpop.f32.mrf.mxu0
        %v1891 = vadd.f32 0.0, %v1890
        %v1892 = vpop.f32.mrf.mxu0
        %1893 = vdwg.mxu0
        %vm1894 = vcmask 64512
        %v1896 = vsel %vm1894, %v1819, 0
        %v1899 = vsel %vm1894, %v1820, 0
        %1901 = vmatprep.subr.mxu0 0.0
        %1902 = vmatpush1.msra.mxu0 0.0
        %1903 = vmatprep.subr.mxu0 0.0
        %1904 = vmatpush1.msra.mxu0 0.0
        %1905 = vmatprep.subr.mxu0 0.0
        %1906 = vmatpush1.msra.mxu0 0.0
        %1907 = vmatprep.subr.mxu0 0.0
        %1908 = vmatpush1.msra.mxu0 0.0
        %1909 = vmatprep.subr.mxu0 0.0
        %1910 = vmatpush1.msra.mxu0 0.0
        %1911 = vmatprep.subr.mxu0 0.0
        %1912 = vmatpush1.msra.mxu0 0.0
        %1913 = vmatprep.subr.mxu0 0.0
        %1914 = vmatpush1.msra.mxu0 0.0
        %1915 = vmatprep.subr.mxu0 0.0
        %1916 = vmatpush1.msra.mxu0 0.0
        %1917 = vmatprep.subr.mxu0 0.0
        %1918 = vmatpush1.msra.mxu0 0.0
        %1919 = vmatprep.subr.mxu0 0.0
        %1920 = vmatpush1.msra.mxu0 0.0
        %1921 = vmatprep.subr.mxu0 0.0
        %1922 = vmatpush1.msra.mxu0 0.0
        %1923 = vmatprep.subr.mxu0 0.0
        %1924 = vmatpush1.msra.mxu0 0.0
        %1925 = vmatprep.subr.mxu0 0.0
        %1926 = vmatpush1.msra.mxu0 0.0
        %1927 = vmatprep.subr.mxu0 0.0
        %1928 = vmatpush1.msra.mxu0 0.0
        %1929 = vmatprep.subr.mxu0 0.0
        %1930 = vmatpush1.msra.mxu0 0.0
        %1931 = vmatprep.subr.mxu0 0.0
        %1932 = vmatpush1.msra.mxu0 %v1891
        %1933 = vmatprep.subr.mxu0 0.0
        %1934 = vmatpush2.msra.mxu0 0.0
        %1935 = vmatprep.subr.mxu0 0.0
        %1936 = vmatpush2.msra.mxu0 0.0
        %1937 = vmatprep.subr.mxu0 0.0
        %1938 = vmatpush2.msra.mxu0 0.0
        %1939 = vmatprep.subr.mxu0 0.0
        %1940 = vmatpush2.msra.mxu0 0.0
        %1941 = vmatprep.subr.mxu0 0.0
        %1942 = vmatpush2.msra.mxu0 0.0
        %1943 = vmatprep.subr.mxu0 0.0
        %1944 = vmatpush2.msra.mxu0 0.0
        %1945 = vmatprep.subr.mxu0 0.0
        %1946 = vmatpush2.msra.mxu0 0.0
        %1947 = vmatprep.subr.mxu0 0.0
        %1948 = vmatpush2.msra.mxu0 0.0
        %1949 = vmatprep.subr.mxu0 0.0
        %1950 = vmatpush2.msra.mxu0 0.0
        %1951 = vmatprep.subr.mxu0 0.0
        %1952 = vmatpush2.msra.mxu0 0.0
        %1953 = vmatprep.subr.mxu0 0.0
        %1954 = vmatpush2.msra.mxu0 0.0
        %1955 = vmatprep.subr.mxu0 0.0
        %1956 = vmatpush2.msra.mxu0 0.0
        %1957 = vmatprep.subr.mxu0 0.0
        %1958 = vmatpush2.msra.mxu0 0.0
        %1959 = vmatprep.subr.mxu0 0.0
        %1960 = vmatpush2.msra.mxu0 0.0
        %1961 = vmatprep.subr.mxu0 0.0
        %1962 = vmatpush2.msra.mxu0 0.0
        %1963 = vmatprep.subr.mxu0 0.0
        %1964 = vmatpush2.msra.mxu0 0.0
        %1965 = vmatprep.mubr.f32.mxu0 0.0
        %1966 = vmatmul.mubr.f32.gmra.mxu0 %v1896
        %v1967 = vpop.f32.mrf.mxu0
        %v1968 = vadd.f32 0.0, %v1967
        %v1969 = vpop.f32.mrf.mxu0
        %1970 = vmatprep.mubr.f32.mxu0 0.0
        %1971 = vmatmul.mubr.f32.gmra.mxu0 %v1899
        %v1972 = vpop.f32.mrf.mxu0
        %v1973 = vadd.f32 0.0, %v1972
        %v1974 = vpop.f32.mrf.mxu0
        %1975 = vdwg.mxu0
        %1976 = vmatprep.subr.mxu0 0.0
        %1977 = vmatpush1.msra.mxu0 0.0
        %1978 = vmatprep.subr.mxu0 0.0
        %1979 = vmatpush1.msra.mxu0 0.0
        %1980 = vmatprep.subr.mxu0 0.0
        %1981 = vmatpush1.msra.mxu0 0.0
        %1982 = vmatprep.subr.mxu0 0.0
        %1983 = vmatpush1.msra.mxu0 0.0
        %1984 = vmatprep.subr.mxu0 0.0
        %1985 = vmatpush1.msra.mxu0 0.0
        %1986 = vmatprep.subr.mxu0 0.0
        %1987 = vmatpush1.msra.mxu0 0.0
        %1988 = vmatprep.subr.mxu0 0.0
        %1989 = vmatpush1.msra.mxu0 0.0
        %1990 = vmatprep.subr.mxu0 0.0
        %1991 = vmatpush1.msra.mxu0 0.0
        %1992 = vmatprep.subr.mxu0 0.0
        %1993 = vmatpush1.msra.mxu0 0.0
        %1994 = vmatprep.subr.mxu0 0.0
        %1995 = vmatpush1.msra.mxu0 0.0
        %1996 = vmatprep.subr.mxu0 0.0
        %1997 = vmatpush1.msra.mxu0 0.0
        %1998 = vmatprep.subr.mxu0 0.0
        %1999 = vmatpush1.msra.mxu0 0.0
        %2000 = vmatprep.subr.mxu0 0.0
        %2001 = vmatpush1.msra.mxu0 0.0
        %2002 = vmatprep.subr.mxu0 0.0
        %2003 = vmatpush1.msra.mxu0 0.0
        %2004 = vmatprep.subr.mxu0 0.0
        %2005 = vmatpush1.msra.mxu0 %v719
        %2006 = vmatprep.subr.mxu0 0.0
        %2007 = vmatpush1.msra.mxu0 %v718
        %2008 = vmatprep.subr.mxu0 0.0
        %2009 = vmatpush2.msra.mxu0 0.0
        %2010 = vmatprep.subr.mxu0 0.0
        %2011 = vmatpush2.msra.mxu0 0.0
        %2012 = vmatprep.subr.mxu0 0.0
        %2013 = vmatpush2.msra.mxu0 0.0
        %2014 = vmatprep.subr.mxu0 0.0
        %2015 = vmatpush2.msra.mxu0 0.0
        %2016 = vmatprep.subr.mxu0 0.0
        %2017 = vmatpush2.msra.mxu0 0.0
        %2018 = vmatprep.subr.mxu0 0.0
        %2019 = vmatpush2.msra.mxu0 0.0
        %2020 = vmatprep.subr.mxu0 0.0
        %2021 = vmatpush2.msra.mxu0 0.0
        %2022 = vmatprep.subr.mxu0 0.0
        %2023 = vmatpush2.msra.mxu0 0.0
        %2024 = vmatprep.subr.mxu0 0.0
        %2025 = vmatpush2.msra.mxu0 0.0
        %2026 = vmatprep.subr.mxu0 0.0
        %2027 = vmatpush2.msra.mxu0 0.0
        %2028 = vmatprep.subr.mxu0 0.0
        %2029 = vmatpush2.msra.mxu0 0.0
        %2030 = vmatprep.subr.mxu0 0.0
        %2031 = vmatpush2.msra.mxu0 0.0
        %2032 = vmatprep.subr.mxu0 0.0
        %2033 = vmatpush2.msra.mxu0 0.0
        %2034 = vmatprep.subr.mxu0 0.0
        %2035 = vmatpush2.msra.mxu0 0.0
        %2036 = vmatprep.subr.mxu0 0.0
        %2037 = vmatpush2.msra.mxu0 0.0
        %2038 = vmatprep.subr.mxu0 0.0
        %2039 = vmatpush2.msra.mxu0 0.0
        %2040 = vmatprep.mubr.f32.mxu0 0.0
        %2041 = vmatmul.mubr.f32.gmra.mxu0 %v1822
        %v2042 = vpop.f32.mrf.mxu0
        %v2043 = vadd.f32 0.0, %v2042
        %v2044 = vpop.f32.mrf.mxu0
        %2045 = vdwg.mxu0
        %2046 = vmatprep.subr.mxu0 0.0
        %2047 = vmatpush1.msra.mxu0 0.0
        %2048 = vmatprep.subr.mxu0 0.0
        %2049 = vmatpush1.msra.mxu0 0.0
        %2050 = vmatprep.subr.mxu0 0.0
        %2051 = vmatpush1.msra.mxu0 0.0
        %2052 = vmatprep.subr.mxu0 0.0
        %2053 = vmatpush1.msra.mxu0 0.0
        %2054 = vmatprep.subr.mxu0 0.0
        %2055 = vmatpush1.msra.mxu0 0.0
        %2056 = vmatprep.subr.mxu0 0.0
        %2057 = vmatpush1.msra.mxu0 0.0
        %2058 = vmatprep.subr.mxu0 0.0
        %2059 = vmatpush1.msra.mxu0 0.0
        %2060 = vmatprep.subr.mxu0 0.0
        %2061 = vmatpush1.msra.mxu0 0.0
        %2062 = vmatprep.subr.mxu0 0.0
        %2063 = vmatpush1.msra.mxu0 0.0
        %2064 = vmatprep.subr.mxu0 0.0
        %2065 = vmatpush1.msra.mxu0 0.0
        %2066 = vmatprep.subr.mxu0 0.0
        %2067 = vmatpush1.msra.mxu0 0.0
        %2068 = vmatprep.subr.mxu0 0.0
        %2069 = vmatpush1.msra.mxu0 0.0
        %2070 = vmatprep.subr.mxu0 0.0
        %2071 = vmatpush1.msra.mxu0 0.0
        %2072 = vmatprep.subr.mxu0 0.0
        %2073 = vmatpush1.msra.mxu0 0.0
        %2074 = vmatprep.subr.mxu0 0.0
        %2075 = vmatpush1.msra.mxu0 0.0
        %2076 = vmatprep.subr.mxu0 0.0
        %2077 = vmatpush1.msra.mxu0 %v2043
        %2078 = vmatprep.subr.mxu0 0.0
        %2079 = vmatpush2.msra.mxu0 0.0
        %2080 = vmatprep.subr.mxu0 0.0
        %2081 = vmatpush2.msra.mxu0 0.0
        %2082 = vmatprep.subr.mxu0 0.0
        %2083 = vmatpush2.msra.mxu0 0.0
        %2084 = vmatprep.subr.mxu0 0.0
        %2085 = vmatpush2.msra.mxu0 0.0
        %2086 = vmatprep.subr.mxu0 0.0
        %2087 = vmatpush2.msra.mxu0 0.0
        %2088 = vmatprep.subr.mxu0 0.0
        %2089 = vmatpush2.msra.mxu0 0.0
        %2090 = vmatprep.subr.mxu0 0.0
        %2091 = vmatpush2.msra.mxu0 0.0
        %2092 = vmatprep.subr.mxu0 0.0
        %2093 = vmatpush2.msra.mxu0 0.0
        %2094 = vmatprep.subr.mxu0 0.0
        %2095 = vmatpush2.msra.mxu0 0.0
        %2096 = vmatprep.subr.mxu0 0.0
        %2097 = vmatpush2.msra.mxu0 0.0
        %2098 = vmatprep.subr.mxu0 0.0
        %2099 = vmatpush2.msra.mxu0 0.0
        %2100 = vmatprep.subr.mxu0 0.0
        %2101 = vmatpush2.msra.mxu0 0.0
        %2102 = vmatprep.subr.mxu0 0.0
        %2103 = vmatpush2.msra.mxu0 0.0
        %2104 = vmatprep.subr.mxu0 0.0
        %2105 = vmatpush2.msra.mxu0 0.0
        %2106 = vmatprep.subr.mxu0 0.0
        %2107 = vmatpush2.msra.mxu0 0.0
        %2108 = vmatprep.subr.mxu0 0.0
        %2109 = vmatpush2.msra.mxu0 0.0
        %2110 = vmatprep.mubr.f32.mxu0 0.0
        %2111 = vmatmul.mubr.f32.gmra.mxu0 %v1896
        %v2112 = vpop.f32.mrf.mxu0
        %v2113 = vadd.f32 0.0, %v2112
        %v2114 = vpop.f32.mrf.mxu0
        %2115 = vmatprep.mubr.f32.mxu0 0.0
        %2116 = vmatmul.mubr.f32.gmra.mxu0 %v1899
        %v2117 = vpop.f32.mrf.mxu0
        %v2118 = vadd.f32 0.0, %v2117
        %v2119 = vpop.f32.mrf.mxu0
        %2120 = vdwg.mxu0
        %v2121 = vld [vmem:[%s14] sm:$0x1]
        %v2122 = vmul.f32 %v2121, %v2121
        %v2123 = vsub.f32 1.0, %v2122
        %v2125 = vlaneseq
        %v2126 = vshrl.u32 %v2125, 7
        %v2127 = vsub.s32 0, %v2126
        %v2128 = vrot.slane %v2123, %v2127
        %v2130 = vmul.f32 %v2128, %v1968
        %v2131 = vmul.f32 %v2128, %v1973
        %v2132 = vmul.f32 %v2128, %v2113
        %v2133 = vmul.f32 %v2128, %v2118
        %v2134 = vadd.f32 %v2122, 1.0
        %v2136 = vlaneseq
        %v2137 = vshrl.u32 %v2136, 7
        %v2138 = vsub.s32 0, %v2137
        %v2139 = vrot.slane %v2134, %v2138
        %v2141 = vmul.f32 %v2139, %v716
        %v2142 = vmul.f32 %v2139, %v717
        %v2143 = vmul.f32 %v2139, %v718
        %v2144 = vmul.f32 %v2139, %v719
        %v2145 = vadd.f32 %v2130, %v2141
        %v2146 = vadd.f32 %v2131, %v2142
        %v2147 = vadd.f32 %v2132, %v2143
        %v2148 = vadd.f32 %v2133, %v2144
        %v2149 = vld [vmem:[%s15] sm:$0x1]
        %v2150 = vld [vmem:[%s16] sm:$0x1]
        %2151 = vadd.xlane.f32.xlu0 %v2145
        %v2152 = vpop.xlane.xlu0 %2151
        %2153 = vadd.xlane.f32.xlu0 %v2146
        %v2154 = vpop.xlane.xlu0 %2153
        %2155 = vadd.xlane.f32.xlu0 %v2147
        %v2156 = vpop.xlane.xlu0 %2155
        %2157 = vadd.xlane.f32.xlu0 %v2148
        %v2158 = vpop.xlane.xlu0 %2157
        %v2159 = vmul.f32 %v2152, %v1761
        %v2160 = vmul.f32 %v2154, %v1761
        %v2161 = vmul.f32 %v2156, %v1761
        %v2162 = vmul.f32 %v2158, %v1761
        %v2163 = vsub.f32 %v2145, %v2159
        %v2164 = vsub.f32 %v2146, %v2160
        %v2165 = vsub.f32 %v2147, %v2161
        %v2166 = vsub.f32 %v2148, %v2162
        %v2167 = vmul.f32 %v2163, %v2163
        %v2168 = vmul.f32 %v2164, %v2164
        %v2169 = vmul.f32 %v2165, %v2165
        %v2170 = vmul.f32 %v2166, %v2166
        %2171 = vadd.xlane.f32.xlu0 %v2167
        %v2172 = vpop.xlane.xlu0 %2171
        %2173 = vadd.xlane.f32.xlu0 %v2168
        %v2174 = vpop.xlane.xlu0 %2173
        %2175 = vadd.xlane.f32.xlu0 %v2169
        %v2176 = vpop.xlane.xlu0 %2175
        %2177 = vadd.xlane.f32.xlu0 %v2170
        %v2178 = vpop.xlane.xlu0 %2177
        %v2179 = vmul.f32 %v2172, %v1761
        %v2180 = vmul.f32 %v2174, %v1761
        %v2181 = vmul.f32 %v2176, %v1761
        %v2182 = vmul.f32 %v2178, %v1761
        %v2183 = vadd.f32 %v2179, 1e-12
        %v2184 = vadd.f32 %v2180, 1e-12
        %v2185 = vadd.f32 %v2181, 1e-12
        %v2186 = vadd.f32 %v2182, 1e-12
        %v2187 = vrsqrt.pop %v2183
        %v2188 = vrsqrt.pop %v2184
        %v2189 = vrsqrt.pop %v2185
        %v2190 = vrsqrt.pop %v2186
        %v2191 = vmul.f32 %v2163, %v2187
        %v2192 = vmul.f32 %v2164, %v2188
        %v2193 = vmul.f32 %v2165, %v2189
        %v2194 = vmul.f32 %v2166, %v2190
        %v2196 = vlaneseq
        %v2197 = vshrl.u32 %v2196, 7
        %v2198 = vsub.s32 0, %v2197
        %v2199 = vrot.slane %v2149, %v2198
        %v2201 = vmul.f32 %v2191, %v2199
        %v2202 = vmul.f32 %v2192, %v2199
        %v2203 = vmul.f32 %v2193, %v2199
        %v2204 = vmul.f32 %v2194, %v2199
        %v2206 = vlaneseq
        %v2207 = vshrl.u32 %v2206, 7
        %v2208 = vsub.s32 0, %v2207
        %v2209 = vrot.slane %v2150, %v2208
        %v2211 = vadd.f32 %v2201, %v2209
        %v2212 = vadd.f32 %v2202, %v2209
        %v2213 = vadd.f32 %v2203, %v2209
        %v2214 = vadd.f32 %v2204, %v2209
        %v2215 = vadd.f32 %v2211, %v1814
        %v2216 = vadd.f32 %v2212, %v1815
        %v2217 = vadd.f32 %v2213, %v1816
        %v2218 = vadd.f32 %v2214, %v1817
        %v2219 = vmul.f32 %v2215, 0.5
        %v2220 = vmul.f32 %v2216, 0.5
        %v2221 = vmul.f32 %v2217, 0.5
        %v2222 = vmul.f32 %v2218, 0.5
        %v2223 = vpack.c.bf16 %v2220, %v2219
        %v2224 = vpack.c.bf16 %v2222, %v2221
        %v2225 = vld [vmem:[%s17] sm:$0xff]
        %v2226 = vld [vmem:[%s17 + $0x8] sm:$0xff]
        %v2227 = vld [vmem:[%s17 + $0x10] sm:$0xff]
        %v2228 = vld [vmem:[%s17 + $0x18] sm:$0xff]
        %v2229 = vld [vmem:[%s17 + $0x20] sm:$0xff]
        %v2230 = vld [vmem:[%s17 + $0x28] sm:$0xff]
        %v2231 = vld [vmem:[%s17 + $0x30] sm:$0xff]
        %v2232 = vld [vmem:[%s17 + $0x38] sm:$0xff]
        %v2233 = vld [vmem:[%s17 + $0x40] sm:$0xff]
        %v2234 = vld [vmem:[%s17 + $0x48] sm:$0xff]
        %v2235 = vld [vmem:[%s17 + $0x50] sm:$0xff]
        %v2236 = vld [vmem:[%s17 + $0x58] sm:$0xff]
        %v2237 = vld [vmem:[%s17 + $0x60] sm:$0xff]
        %v2238 = vld [vmem:[%s17 + $0x68] sm:$0xff]
        %v2239 = vld [vmem:[%s17 + $0x70] sm:$0xff]
        %v2240 = vld [vmem:[%s17 + $0x78] sm:$0xff]
        %v2241 = vld [vmem:[%s18] sm:$0x3]
        %v2243 = vlaneseq
        %v2244 = vshrl.u32 %v2243, 7
        %v2245 = vsub.s32 0, %v2244
        %v2246 = vrot.slane %v2241, %v2245
        %v2247 = vlaneseq
        %v2248 = vshrl.u32 %v2247, 7
        %v2249 = vsub.s32 1, %v2248
        %v2250 = vrot.slane %v2241, %v2249
        %v2269 = vunpack.c.l.b16 %v2225
        %v2270 = vunpack.c.h.b16 %v2225
        %v2271 = vunpack.c.l.b16 %v2226
        %v2272 = vunpack.c.h.b16 %v2226
        %v2273 = vunpack.c.l.b16 %v2227
        %v2274 = vunpack.c.h.b16 %v2227
        %v2275 = vunpack.c.l.b16 %v2228
        %v2276 = vunpack.c.h.b16 %v2228
        %v2277 = vunpack.c.l.b16 %v2229
        %v2278 = vunpack.c.h.b16 %v2229
        %v2279 = vunpack.c.l.b16 %v2230
        %v2280 = vunpack.c.h.b16 %v2230
        %v2281 = vunpack.c.l.b16 %v2231
        %v2282 = vunpack.c.h.b16 %v2231
        %v2283 = vunpack.c.l.b16 %v2232
        %v2284 = vunpack.c.h.b16 %v2232
        %v2285 = vunpack.c.l.b16 %v2233
        %v2286 = vunpack.c.h.b16 %v2233
        %v2287 = vunpack.c.l.b16 %v2234
        %v2288 = vunpack.c.h.b16 %v2234
        %v2289 = vunpack.c.l.b16 %v2235
        %v2290 = vunpack.c.h.b16 %v2235
        %v2291 = vunpack.c.l.b16 %v2236
        %v2292 = vunpack.c.h.b16 %v2236
        %v2293 = vunpack.c.l.b16 %v2237
        %v2294 = vunpack.c.h.b16 %v2237
        %v2295 = vunpack.c.l.b16 %v2238
        %v2296 = vunpack.c.h.b16 %v2238
        %v2297 = vunpack.c.l.b16 %v2239
        %v2298 = vunpack.c.h.b16 %v2239
        %v2299 = vunpack.c.l.b16 %v2240
        %v2300 = vunpack.c.h.b16 %v2240
        %v2301 = vpack.c.b16 %v2271, %v2269
        %v2302 = vpack.c.b16 %v2272, %v2270
        %v2303 = vpack.c.b16 %v2275, %v2273
        %v2304 = vpack.c.b16 %v2276, %v2274
        %v2305 = vpack.c.b16 %v2279, %v2277
        %v2306 = vpack.c.b16 %v2280, %v2278
        %v2307 = vpack.c.b16 %v2283, %v2281
        %v2308 = vpack.c.b16 %v2284, %v2282
        %v2309 = vpack.c.b16 %v2287, %v2285
        %v2310 = vpack.c.b16 %v2288, %v2286
        %v2311 = vpack.c.b16 %v2291, %v2289
        %v2312 = vpack.c.b16 %v2292, %v2290
        %v2313 = vpack.c.b16 %v2295, %v2293
        %v2314 = vpack.c.b16 %v2296, %v2294
        %v2315 = vpack.c.b16 %v2299, %v2297
        %v2316 = vpack.c.b16 %v2300, %v2298
        %2333 = vmatprep.subr.bf16.mxu0 %v2316
        %2334 = vmatpush1.bf16.msra.mxu0 %v2315
        %2335 = vmatprep.subr.bf16.mxu0 %v2314
        %2336 = vmatpush1.bf16.msra.mxu0 %v2313
        %2337 = vmatprep.subr.bf16.mxu0 %v2312
        %2338 = vmatpush1.bf16.msra.mxu0 %v2311
        %2339 = vmatprep.subr.bf16.mxu0 %v2310
        %2340 = vmatpush1.bf16.msra.mxu0 %v2309
        %2341 = vmatprep.subr.bf16.mxu0 %v2308
        %2342 = vmatpush1.bf16.msra.mxu0 %v2307
        %2343 = vmatprep.subr.bf16.mxu0 %v2306
        %2344 = vmatpush1.bf16.msra.mxu0 %v2305
        %2345 = vmatprep.subr.bf16.mxu0 %v2304
        %2346 = vmatpush1.bf16.msra.mxu0 %v2303
        %2347 = vmatprep.subr.bf16.mxu0 %v2302
        %2348 = vmatpush1.bf16.msra.mxu0 %v2301
        %2349 = vmatprep.subr.bf16.mxu0 0
        %2350 = vmatpush2.bf16.msra.mxu0 0
        %2351 = vmatprep.subr.bf16.mxu0 0
        %2352 = vmatpush2.bf16.msra.mxu0 0
        %2353 = vmatprep.subr.bf16.mxu0 0
        %2354 = vmatpush2.bf16.msra.mxu0 0
        %2355 = vmatprep.subr.bf16.mxu0 0
        %2356 = vmatpush2.bf16.msra.mxu0 0
        %2357 = vmatprep.subr.bf16.mxu0 0
        %2358 = vmatpush2.bf16.msra.mxu0 0
        %2359 = vmatprep.subr.bf16.mxu0 0
        %2360 = vmatpush2.bf16.msra.mxu0 0
        %2361 = vmatprep.subr.bf16.mxu0 0
        %2362 = vmatpush2.bf16.msra.mxu0 0
        %2363 = vmatprep.subr.bf16.mxu0 0
        %2364 = vmatpush2.bf16.msra.mxu0 0
        %2365 = vmatprep.mubr.bf16.mxu0 0
        %2366 = vmatmul.mubr.bf16.gmra.mxu0 %v2223
        %v2367 = vpop.f32.mrf.mxu0
        %v2368 = vadd.f32 %v2246, %v2367
        %v2369 = vpop.f32.mrf.mxu0
        %v2370 = vadd.f32 %v2250, %v2369
        %v2371 = vpop.f32.mrf.mxu0
        %v2372 = vadd.f32 %v2246, %v2371
        %v2373 = vpop.f32.mrf.mxu0
        %v2374 = vadd.f32 %v2250, %v2373
        %2375 = vmatprep.mubr.bf16.mxu0 0
        %2376 = vmatmul.mubr.bf16.gmra.mxu0 %v2224
        %v2377 = vpop.f32.mrf.mxu0
        %v2378 = vadd.f32 %v2246, %v2377
        %v2379 = vpop.f32.mrf.mxu0
        %v2380 = vadd.f32 %v2250, %v2379
        %v2381 = vpop.f32.mrf.mxu0
        %v2382 = vadd.f32 %v2246, %v2381
        %v2383 = vpop.f32.mrf.mxu0
        %v2384 = vadd.f32 %v2250, %v2383
        %2385 = vdwg.mxu0
        %v2386 = vmul.f32 %v2368, 0.5
        %v2387 = vmul.f32 %v2370, 0.5
        %v2388 = vmul.f32 %v2372, 0.5
        %v2389 = vmul.f32 %v2374, 0.5
        %v2390 = vmul.f32 %v2378, 0.5
        %v2391 = vmul.f32 %v2380, 0.5
        %v2392 = vmul.f32 %v2382, 0.5
        %v2393 = vmul.f32 %v2384, 0.5
        %v2394 = vmul.f32 %v2368, 0.70710677
        %v2395 = vmul.f32 %v2370, 0.70710677
        %v2396 = vmul.f32 %v2372, 0.70710677
        %v2397 = vmul.f32 %v2374, 0.70710677
        %v2398 = vmul.f32 %v2378, 0.70710677
        %v2399 = vmul.f32 %v2380, 0.70710677
        %v2400 = vmul.f32 %v2382, 0.70710677
        %v2401 = vmul.f32 %v2384, 0.70710677
        %v2402 = vand.u32 2147483647, %v2394
        %v2403 = vand.u32 2147483647, %v2395
        %v2404 = vand.u32 2147483647, %v2396
        %v2405 = vand.u32 2147483647, %v2397
        %v2406 = vand.u32 2147483647, %v2398
        %v2407 = vand.u32 2147483647, %v2399
        %v2408 = vand.u32 2147483647, %v2400
        %v2409 = vand.u32 2147483647, %v2401
        %v2410 = vmul.f32 %v2402, 0.3275911
        %v2411 = vmul.f32 %v2403, 0.3275911
        %v2412 = vmul.f32 %v2404, 0.3275911
        %v2413 = vmul.f32 %v2405, 0.3275911
        %v2414 = vmul.f32 %v2406, 0.3275911
        %v2415 = vmul.f32 %v2407, 0.3275911
        %v2416 = vmul.f32 %v2408, 0.3275911
        %v2417 = vmul.f32 %v2409, 0.3275911
        %v2418 = vadd.f32 %v2410, 1.0
        %v2419 = vadd.f32 %v2411, 1.0
        %v2420 = vadd.f32 %v2412, 1.0
        %v2421 = vadd.f32 %v2413, 1.0
        %v2422 = vadd.f32 %v2414, 1.0
        %v2423 = vadd.f32 %v2415, 1.0
        %v2424 = vadd.f32 %v2416, 1.0
        %v2425 = vadd.f32 %v2417, 1.0
        %v2426 = vrcp.pop %v2418
        %v2427 = vrcp.pop %v2419
        %v2428 = vrcp.pop %v2420
        %v2429 = vrcp.pop %v2421
        %v2430 = vrcp.pop %v2422
        %v2431 = vrcp.pop %v2423
        %v2432 = vrcp.pop %v2424
        %v2433 = vrcp.pop %v2425
        %v2434 = vmul.f32 %v2418, %v2426
        %v2435 = vmul.f32 %v2419, %v2427
        %v2436 = vmul.f32 %v2420, %v2428
        %v2437 = vmul.f32 %v2421, %v2429
        %v2438 = vmul.f32 %v2422, %v2430
        %v2439 = vmul.f32 %v2423, %v2431
        %v2440 = vmul.f32 %v2424, %v2432
        %v2441 = vmul.f32 %v2425, %v2433
        %v2442 = vsub.f32 2.0, %v2434
        %v2443 = vsub.f32 2.0, %v2435
        %v2444 = vsub.f32 2.0, %v2436
        %v2445 = vsub.f32 2.0, %v2437
        %v2446 = vsub.f32 2.0, %v2438
        %v2447 = vsub.f32 2.0, %v2439
        %v2448 = vsub.f32 2.0, %v2440
        %v2449 = vsub.f32 2.0, %v2441
        %v2450 = vmul.f32 %v2426, %v2442
        %v2451 = vmul.f32 %v2427, %v2443
        %v2452 = vmul.f32 %v2428, %v2444
        %v2453 = vmul.f32 %v2429, %v2445
        %v2454 = vmul.f32 %v2430, %v2446
        %v2455 = vmul.f32 %v2431, %v2447
        %v2456 = vmul.f32 %v2432, %v2448
        %v2457 = vmul.f32 %v2433, %v2449
        %v2458 = vmul.f32 %v2450, 1.0614054
        %v2459 = vmul.f32 %v2451, 1.0614054
        %v2460 = vmul.f32 %v2452, 1.0614054
        %v2461 = vmul.f32 %v2453, 1.0614054
        %v2462 = vmul.f32 %v2454, 1.0614054
        %v2463 = vmul.f32 %v2455, 1.0614054
        %v2464 = vmul.f32 %v2456, 1.0614054
        %v2465 = vmul.f32 %v2457, 1.0614054
        %v2466 = vadd.f32 %v2458, -1.4531521
        %v2467 = vadd.f32 %v2459, -1.4531521
        %v2468 = vadd.f32 %v2460, -1.4531521
        %v2469 = vadd.f32 %v2461, -1.4531521
        %v2470 = vadd.f32 %v2462, -1.4531521
        %v2471 = vadd.f32 %v2463, -1.4531521
        %v2472 = vadd.f32 %v2464, -1.4531521
        %v2473 = vadd.f32 %v2465, -1.4531521
        %v2474 = vmul.f32 %v2466, %v2450
        %v2475 = vmul.f32 %v2467, %v2451
        %v2476 = vmul.f32 %v2468, %v2452
        %v2477 = vmul.f32 %v2469, %v2453
        %v2478 = vmul.f32 %v2470, %v2454
        %v2479 = vmul.f32 %v2471, %v2455
        %v2480 = vmul.f32 %v2472, %v2456
        %v2481 = vmul.f32 %v2473, %v2457
        %v2482 = vadd.f32 %v2474, 1.4214138
        %v2483 = vadd.f32 %v2475, 1.4214138
        %v2484 = vadd.f32 %v2476, 1.4214138
        %v2485 = vadd.f32 %v2477, 1.4214138
        %v2486 = vadd.f32 %v2478, 1.4214138
        %v2487 = vadd.f32 %v2479, 1.4214138
        %v2488 = vadd.f32 %v2480, 1.4214138
        %v2489 = vadd.f32 %v2481, 1.4214138
        %v2490 = vmul.f32 %v2482, %v2450
        %v2491 = vmul.f32 %v2483, %v2451
        %v2492 = vmul.f32 %v2484, %v2452
        %v2493 = vmul.f32 %v2485, %v2453
        %v2494 = vmul.f32 %v2486, %v2454
        %v2495 = vmul.f32 %v2487, %v2455
        %v2496 = vmul.f32 %v2488, %v2456
        %v2497 = vmul.f32 %v2489, %v2457
        %v2498 = vadd.f32 %v2490, -0.28449672
        %v2499 = vadd.f32 %v2491, -0.28449672
        %v2500 = vadd.f32 %v2492, -0.28449672
        %v2501 = vadd.f32 %v2493, -0.28449672
        %v2502 = vadd.f32 %v2494, -0.28449672
        %v2503 = vadd.f32 %v2495, -0.28449672
        %v2504 = vadd.f32 %v2496, -0.28449672
        %v2505 = vadd.f32 %v2497, -0.28449672
        %v2506 = vmul.f32 %v2498, %v2450
        %v2507 = vmul.f32 %v2499, %v2451
        %v2508 = vmul.f32 %v2500, %v2452
        %v2509 = vmul.f32 %v2501, %v2453
        %v2510 = vmul.f32 %v2502, %v2454
        %v2511 = vmul.f32 %v2503, %v2455
        %v2512 = vmul.f32 %v2504, %v2456
        %v2513 = vmul.f32 %v2505, %v2457
        %v2514 = vadd.f32 %v2506, 0.2548296
        %v2515 = vadd.f32 %v2507, 0.2548296
        %v2516 = vadd.f32 %v2508, 0.2548296
        %v2517 = vadd.f32 %v2509, 0.2548296
        %v2518 = vadd.f32 %v2510, 0.2548296
        %v2519 = vadd.f32 %v2511, 0.2548296
        %v2520 = vadd.f32 %v2512, 0.2548296
        %v2521 = vadd.f32 %v2513, 0.2548296
        %v2522 = vmul.f32 %v2514, %v2450
        %v2523 = vmul.f32 %v2515, %v2451
        %v2524 = vmul.f32 %v2516, %v2452
        %v2525 = vmul.f32 %v2517, %v2453
        %v2526 = vmul.f32 %v2518, %v2454
        %v2527 = vmul.f32 %v2519, %v2455
        %v2528 = vmul.f32 %v2520, %v2456
        %v2529 = vmul.f32 %v2521, %v2457
        %v2530 = vsub.f32 0.0, %v2402
        %v2531 = vsub.f32 0.0, %v2403
        %v2532 = vsub.f32 0.0, %v2404
        %v2533 = vsub.f32 0.0, %v2405
        %v2534 = vsub.f32 0.0, %v2406
        %v2535 = vsub.f32 0.0, %v2407
        %v2536 = vsub.f32 0.0, %v2408
        %v2537 = vsub.f32 0.0, %v2409
        %v2538 = vmul.f32 %v2530, %v2402
        %v2539 = vmul.f32 %v2531, %v2403
        %v2540 = vmul.f32 %v2532, %v2404
        %v2541 = vmul.f32 %v2533, %v2405
        %v2542 = vmul.f32 %v2534, %v2406
        %v2543 = vmul.f32 %v2535, %v2407
        %v2544 = vmul.f32 %v2536, %v2408
        %v2545 = vmul.f32 %v2537, %v2409
        %v2546 = vmul.f32 %v2538, 1.442695
        %v2547 = vpow.pop %v2546
        %v2548 = vmul.f32 %v2539, 1.442695
        %v2549 = vpow.pop %v2548
        %v2550 = vmul.f32 %v2540, 1.442695
        %v2551 = vpow.pop %v2550
        %v2552 = vmul.f32 %v2541, 1.442695
        %v2553 = vpow.pop %v2552
        %v2554 = vmul.f32 %v2542, 1.442695
        %v2555 = vpow.pop %v2554
        %v2556 = vmul.f32 %v2543, 1.442695
        %v2557 = vpow.pop %v2556
        %v2558 = vmul.f32 %v2544, 1.442695
        %v2559 = vpow.pop %v2558
        %v2560 = vmul.f32 %v2545, 1.442695
        %v2561 = vpow.pop %v2560
        %v2562 = vmul.f32 %v2522, %v2547
        %v2563 = vmul.f32 %v2523, %v2549
        %v2564 = vmul.f32 %v2524, %v2551
        %v2565 = vmul.f32 %v2525, %v2553
        %v2566 = vmul.f32 %v2526, %v2555
        %v2567 = vmul.f32 %v2527, %v2557
        %v2568 = vmul.f32 %v2528, %v2559
        %v2569 = vmul.f32 %v2529, %v2561
        %v2570 = vsub.f32 1.0, %v2562
        %v2571 = vsub.f32 1.0, %v2563
        %v2572 = vsub.f32 1.0, %v2564
        %v2573 = vsub.f32 1.0, %v2565
        %v2574 = vsub.f32 1.0, %v2566
        %v2575 = vsub.f32 1.0, %v2567
        %v2576 = vsub.f32 1.0, %v2568
        %v2577 = vsub.f32 1.0, %v2569
        %vm2578 = vcmp.lt.f32.partialorder %v2394, 0.0
        %vm2579 = vcmp.lt.f32.partialorder %v2395, 0.0
        %vm2580 = vcmp.lt.f32.partialorder %v2396, 0.0
        %vm2581 = vcmp.lt.f32.partialorder %v2397, 0.0
        %vm2582 = vcmp.lt.f32.partialorder %v2398, 0.0
        %vm2583 = vcmp.lt.f32.partialorder %v2399, 0.0
        %vm2584 = vcmp.lt.f32.partialorder %v2400, 0.0
        %vm2585 = vcmp.lt.f32.partialorder %v2401, 0.0
        %v2586 = vsub.f32 0.0, %v2570
        %v2587 = vsub.f32 0.0, %v2571
        %v2588 = vsub.f32 0.0, %v2572
        %v2589 = vsub.f32 0.0, %v2573
        %v2590 = vsub.f32 0.0, %v2574
        %v2591 = vsub.f32 0.0, %v2575
        %v2592 = vsub.f32 0.0, %v2576
        %v2593 = vsub.f32 0.0, %v2577
        %v2594 = vsel %vm2578, %v2586, %v2570
        %v2595 = vsel %vm2579, %v2587, %v2571
        %v2596 = vsel %vm2580, %v2588, %v2572
        %v2597 = vsel %vm2581, %v2589, %v2573
        %v2598 = vsel %vm2582, %v2590, %v2574
        %v2599 = vsel %vm2583, %v2591, %v2575
        %v2600 = vsel %vm2584, %v2592, %v2576
        %v2601 = vsel %vm2585, %v2593, %v2577
        %v2602 = vadd.f32 %v2594, 1.0
        %v2603 = vadd.f32 %v2595, 1.0
        %v2604 = vadd.f32 %v2596, 1.0
        %v2605 = vadd.f32 %v2597, 1.0
        %v2606 = vadd.f32 %v2598, 1.0
        %v2607 = vadd.f32 %v2599, 1.0
        %v2608 = vadd.f32 %v2600, 1.0
        %v2609 = vadd.f32 %v2601, 1.0
        %v2610 = vmul.f32 %v2386, %v2602
        %v2611 = vmul.f32 %v2387, %v2603
        %v2612 = vmul.f32 %v2388, %v2604
        %v2613 = vmul.f32 %v2389, %v2605
        %v2614 = vmul.f32 %v2390, %v2606
        %v2615 = vmul.f32 %v2391, %v2607
        %v2616 = vmul.f32 %v2392, %v2608
        %v2617 = vmul.f32 %v2393, %v2609
        %v2618 = vpack.c.bf16 %v2612, %v2610
        %v2619 = vpack.c.bf16 %v2613, %v2611
        %v2620 = vpack.c.bf16 %v2616, %v2614
        %v2621 = vpack.c.bf16 %v2617, %v2615
        %v2622 = vld [vmem:[%s19] sm:$0xf]
        %v2623 = vld [vmem:[%s19 + $0x4] sm:$0xf]
        %v2624 = vld [vmem:[%s19 + $0x8] sm:$0xf]
        %v2625 = vld [vmem:[%s19 + $0xc] sm:$0xf]
        %v2626 = vld [vmem:[%s19 + $0x10] sm:$0xf]
        %v2627 = vld [vmem:[%s19 + $0x14] sm:$0xf]
        %v2628 = vld [vmem:[%s19 + $0x18] sm:$0xf]
        %v2629 = vld [vmem:[%s19 + $0x1c] sm:$0xf]
        %v2630 = vld [vmem:[%s19 + $0x20] sm:$0xf]
        %v2631 = vld [vmem:[%s19 + $0x24] sm:$0xf]
        %v2632 = vld [vmem:[%s19 + $0x28] sm:$0xf]
        %v2633 = vld [vmem:[%s19 + $0x2c] sm:$0xf]
        %v2634 = vld [vmem:[%s19 + $0x30] sm:$0xf]
        %v2635 = vld [vmem:[%s19 + $0x34] sm:$0xf]
        %v2636 = vld [vmem:[%s19 + $0x38] sm:$0xf]
        %v2637 = vld [vmem:[%s19 + $0x3c] sm:$0xf]
        %v2638 = vld [vmem:[%s19 + $0x40] sm:$0xf]
        %v2639 = vld [vmem:[%s19 + $0x44] sm:$0xf]
        %v2640 = vld [vmem:[%s19 + $0x48] sm:$0xf]
        %v2641 = vld [vmem:[%s19 + $0x4c] sm:$0xf]
        %v2642 = vld [vmem:[%s19 + $0x50] sm:$0xf]
        %v2643 = vld [vmem:[%s19 + $0x54] sm:$0xf]
        %v2644 = vld [vmem:[%s19 + $0x58] sm:$0xf]
        %v2645 = vld [vmem:[%s19 + $0x5c] sm:$0xf]
        %v2646 = vld [vmem:[%s19 + $0x60] sm:$0xf]
        %v2647 = vld [vmem:[%s19 + $0x64] sm:$0xf]
        %v2648 = vld [vmem:[%s19 + $0x68] sm:$0xf]
        %v2649 = vld [vmem:[%s19 + $0x6c] sm:$0xf]
        %v2650 = vld [vmem:[%s19 + $0x70] sm:$0xf]
        %v2651 = vld [vmem:[%s19 + $0x74] sm:$0xf]
        %v2652 = vld [vmem:[%s19 + $0x78] sm:$0xf]
        %v2653 = vld [vmem:[%s19 + $0x7c] sm:$0xf]
        %v2654 = vld [vmem:[%s20] sm:$0x1]
        %v2656 = vlaneseq
        %v2657 = vshrl.u32 %v2656, 7
        %v2658 = vsub.s32 0, %v2657
        %v2659 = vrot.slane %v2654, %v2658
        %v2693 = vunpack.c.l.b16 %v2622
        %v2694 = vunpack.c.l.b16 %v2623
        %v2695 = vunpack.c.l.b16 %v2624
        %v2696 = vunpack.c.l.b16 %v2625
        %v2697 = vunpack.c.l.b16 %v2626
        %v2698 = vunpack.c.l.b16 %v2627
        %v2699 = vunpack.c.l.b16 %v2628
        %v2700 = vunpack.c.l.b16 %v2629
        %v2701 = vunpack.c.l.b16 %v2630
        %v2702 = vunpack.c.l.b16 %v2631
        %v2703 = vunpack.c.l.b16 %v2632
        %v2704 = vunpack.c.l.b16 %v2633
        %v2705 = vunpack.c.l.b16 %v2634
        %v2706 = vunpack.c.l.b16 %v2635
        %v2707 = vunpack.c.l.b16 %v2636
        %v2708 = vunpack.c.l.b16 %v2637
        %v2709 = vunpack.c.l.b16 %v2638
        %v2710 = vunpack.c.l.b16 %v2639
        %v2711 = vunpack.c.l.b16 %v2640
        %v2712 = vunpack.c.l.b16 %v2641
        %v2713 = vunpack.c.l.b16 %v2642
        %v2714 = vunpack.c.l.b16 %v2643
        %v2715 = vunpack.c.l.b16 %v2644
        %v2716 = vunpack.c.l.b16 %v2645
        %v2717 = vunpack.c.l.b16 %v2646
        %v2718 = vunpack.c.l.b16 %v2647
        %v2719 = vunpack.c.l.b16 %v2648
        %v2720 = vunpack.c.l.b16 %v2649
        %v2721 = vunpack.c.l.b16 %v2650
        %v2722 = vunpack.c.l.b16 %v2651
        %v2723 = vunpack.c.l.b16 %v2652
        %v2724 = vunpack.c.l.b16 %v2653
        %v2725 = vpack.c.b16 %v2694, %v2693
        %v2726 = vpack.c.b16 %v2696, %v2695
        %v2727 = vpack.c.b16 %v2698, %v2697
        %v2728 = vpack.c.b16 %v2700, %v2699
        %v2729 = vpack.c.b16 %v2702, %v2701
        %v2730 = vpack.c.b16 %v2704, %v2703
        %v2731 = vpack.c.b16 %v2706, %v2705
        %v2732 = vpack.c.b16 %v2708, %v2707
        %v2733 = vpack.c.b16 %v2710, %v2709
        %v2734 = vpack.c.b16 %v2712, %v2711
        %v2735 = vpack.c.b16 %v2714, %v2713
        %v2736 = vpack.c.b16 %v2716, %v2715
        %v2737 = vpack.c.b16 %v2718, %v2717
        %v2738 = vpack.c.b16 %v2720, %v2719
        %v2739 = vpack.c.b16 %v2722, %v2721
        %v2740 = vpack.c.b16 %v2724, %v2723
        %2757 = vmatprep.subr.bf16.mxu0 0
        %2758 = vmatpush1.bf16.msra.mxu0 %v2732
        %2759 = vmatprep.subr.bf16.mxu0 0
        %2760 = vmatpush1.bf16.msra.mxu0 %v2731
        %2761 = vmatprep.subr.bf16.mxu0 0
        %2762 = vmatpush1.bf16.msra.mxu0 %v2730
        %2763 = vmatprep.subr.bf16.mxu0 0
        %2764 = vmatpush1.bf16.msra.mxu0 %v2729
        %2765 = vmatprep.subr.bf16.mxu0 0
        %2766 = vmatpush1.bf16.msra.mxu0 %v2728
        %2767 = vmatprep.subr.bf16.mxu0 0
        %2768 = vmatpush1.bf16.msra.mxu0 %v2727
        %2769 = vmatprep.subr.bf16.mxu0 0
        %2770 = vmatpush1.bf16.msra.mxu0 %v2726
        %2771 = vmatprep.subr.bf16.mxu0 0
        %2772 = vmatpush1.bf16.msra.mxu0 %v2725
        %2773 = vmatprep.subr.bf16.mxu0 0
        %2774 = vmatpush2.bf16.msra.mxu0 %v2740
        %2775 = vmatprep.subr.bf16.mxu0 0
        %2776 = vmatpush2.bf16.msra.mxu0 %v2739
        %2777 = vmatprep.subr.bf16.mxu0 0
        %2778 = vmatpush2.bf16.msra.mxu0 %v2738
        %2779 = vmatprep.subr.bf16.mxu0 0
        %2780 = vmatpush2.bf16.msra.mxu0 %v2737
        %2781 = vmatprep.subr.bf16.mxu0 0
        %2782 = vmatpush2.bf16.msra.mxu0 %v2736
        %2783 = vmatprep.subr.bf16.mxu0 0
        %2784 = vmatpush2.bf16.msra.mxu0 %v2735
        %2785 = vmatprep.subr.bf16.mxu0 0
        %2786 = vmatpush2.bf16.msra.mxu0 %v2734
        %2787 = vmatprep.subr.bf16.mxu0 0
        %2788 = vmatpush2.bf16.msra.mxu0 %v2733
        %2789 = vmatprep.mubr.bf16.mxu0 %v2619
        %2790 = vmatmul.mubr.bf16.gmra.mxu0 %v2618
        %v2791 = vpop.f32.mrf.mxu0
        %v2792 = vadd.f32 %v2659, %v2791
        %v2793 = vpop.f32.mrf.mxu0
        %v2794 = vpop.f32.mrf.mxu0
        %v2795 = vadd.f32 %v2659, %v2794
        %v2796 = vpop.f32.mrf.mxu0
        %2797 = vmatprep.mubr.bf16.mxu0 %v2621
        %2798 = vmatmul.mubr.bf16.gmra.mxu0 %v2620
        %v2799 = vpop.f32.mrf.mxu0
        %v2800 = vadd.f32 %v2659, %v2799
        %v2801 = vpop.f32.mrf.mxu0
        %v2802 = vpop.f32.mrf.mxu0
        %v2803 = vadd.f32 %v2659, %v2802
        %v2804 = vpop.f32.mrf.mxu0
        %2805 = vdwg.mxu0
        %v2806 = vadd.f32 %v2792, %v2219
        %v2807 = vadd.f32 %v2795, %v2220
        %v2808 = vadd.f32 %v2800, %v2221
        %v2809 = vadd.f32 %v2803, %v2222
        %v2810 = vld [vmem:[%s21] sm:$0x1]
        %v2811 = vld [vmem:[%s22] sm:$0x1]
        %2812 = vadd.xlane.f32.xlu0 %v2806
        %v2813 = vpop.xlane.xlu0 %2812
        %2814 = vadd.xlane.f32.xlu0 %v2807
        %v2815 = vpop.xlane.xlu0 %2814
        %2816 = vadd.xlane.f32.xlu0 %v2808
        %v2817 = vpop.xlane.xlu0 %2816
        %2818 = vadd.xlane.f32.xlu0 %v2809
        %v2819 = vpop.xlane.xlu0 %2818
        %v2820 = vmul.f32 %v2813, %v1761
        %v2821 = vmul.f32 %v2815, %v1761
        %v2822 = vmul.f32 %v2817, %v1761
        %v2823 = vmul.f32 %v2819, %v1761
        %v2824 = vsub.f32 %v2806, %v2820
        %v2825 = vsub.f32 %v2807, %v2821
        %v2826 = vsub.f32 %v2808, %v2822
        %v2827 = vsub.f32 %v2809, %v2823
        %v2828 = vmul.f32 %v2824, %v2824
        %v2829 = vmul.f32 %v2825, %v2825
        %v2830 = vmul.f32 %v2826, %v2826
        %v2831 = vmul.f32 %v2827, %v2827
        %2832 = vadd.xlane.f32.xlu0 %v2828
        %v2833 = vpop.xlane.xlu0 %2832
        %2834 = vadd.xlane.f32.xlu0 %v2829
        %v2835 = vpop.xlane.xlu0 %2834
        %2836 = vadd.xlane.f32.xlu0 %v2830
        %v2837 = vpop.xlane.xlu0 %2836
        %2838 = vadd.xlane.f32.xlu0 %v2831
        %v2839 = vpop.xlane.xlu0 %2838
        %v2840 = vmul.f32 %v2833, %v1761
        %v2841 = vmul.f32 %v2835, %v1761
        %v2842 = vmul.f32 %v2837, %v1761
        %v2843 = vmul.f32 %v2839, %v1761
        %v2844 = vadd.f32 %v2840, 1e-12
        %v2845 = vadd.f32 %v2841, 1e-12
        %v2846 = vadd.f32 %v2842, 1e-12
        %v2847 = vadd.f32 %v2843, 1e-12
        %v2848 = vrsqrt.pop %v2844
        %v2849 = vrsqrt.pop %v2845
        %v2850 = vrsqrt.pop %v2846
        %v2851 = vrsqrt.pop %v2847
        %v2852 = vmul.f32 %v2824, %v2848
        %v2853 = vmul.f32 %v2825, %v2849
        %v2854 = vmul.f32 %v2826, %v2850
        %v2855 = vmul.f32 %v2827, %v2851
        %v2857 = vlaneseq
        %v2858 = vshrl.u32 %v2857, 7
        %v2859 = vsub.s32 0, %v2858
        %v2860 = vrot.slane %v2810, %v2859
        %v2862 = vmul.f32 %v2852, %v2860
        %v2863 = vmul.f32 %v2853, %v2860
        %v2864 = vmul.f32 %v2854, %v2860
        %v2865 = vmul.f32 %v2855, %v2860
        %v2867 = vlaneseq
        %v2868 = vshrl.u32 %v2867, 7
        %v2869 = vsub.s32 0, %v2868
        %v2870 = vrot.slane %v2811, %v2869
        %v2872 = vadd.f32 %v2862, %v2870
        %v2873 = vadd.f32 %v2863, %v2870
        %v2874 = vadd.f32 %v2864, %v2870
        %v2875 = vadd.f32 %v2865, %v2870
        %2876 = vst [vmem:[%s706] sm:$0xff] %v2872
        %2877 = vst [vmem:[%s706 + $0x8] sm:$0xff] %v2873
        %2878 = vst [vmem:[%s706 + $0x10] sm:$0xff] %v2874
        %2879 = vst [vmem:[%s706 + $0x18] sm:$0xff] %v2875
        %s2880 = sand.u32 %s533, 1
        %s2881 = scalar_lea.sflag [#allocation4], %s2880
        %s2882 = sand.u32 %s533, 1
        %s2883 = smul.addr %s2882, 32
        %s2884 = scalar_lea.vmem [#allocation3], %s2883
        // Predicated region
        $region113: #{transformer_layer.1} parent=111 // pred_check
          %p2885 = pneg %p543
        $region114: #{transformer_layer.1} parent=111 // pred_check_branch
          %2887 = sbr.rel (%p2885) target = $region116
        $region115: #{transformer_layer.1} parent=111 // pred_region
          %s2888 = smul.u32 4, %s37
          %s2890 = ssub.s32 512, 512
          %2891 = vsyncadd %s2881, %s2890
          %s2892 = smul.addr %s2888, 128
          %s2893 = scalar_lea.hbm %s23, %s2892
          %s2894 = sshll.u32 %s2884, 4
          %s2895 = int_to_ptr.vmem [resolvable:$true] %s2894
          %2900 = dma.vmem_to_hbm [thread:$0]  %s2895, 512, %s2893, %s2881, 128, 128, 8
        $region116: #{transformer_layer.1} parent=111 // pred_fallthru
          _
      $region112: #{transformer_layer.1} parent=5 // pred_fallthru
        _
      %p2901 = scmp.le.s32.totalorder 2, %s32
      // Predicated region
      $region117: #{transformer_layer.1} parent=5 // pred_check
        %p2902 = pneg %p2901
      $region118: #{transformer_layer.1} parent=5 // pred_check_branch
        %2904 = sbr.rel (%p2902) target = $region120
      $region119: #{transformer_layer.1} parent=5 // pred_region
        %s2905 = ssub.s32 %s32, 2
        // Predicated region
        $region121: #{transformer_layer.1} parent=119 // pred_check
          %p2906 = pneg %p549
        $region122: #{transformer_layer.1} parent=119 // pred_check_branch
          %2908 = sbr.rel (%p2906) target = $region124
        $region123: #{transformer_layer.1} parent=119 // pred_region
          %s2909 = sand.u32 %s534, 1
          %s2910 = scalar_lea.sflag [#allocation4], %s2909
          %s2911 = sand.u32 %s534, 1
          %s2912 = smul.addr %s2911, 32
          %s2913 = scalar_lea.vmem [#allocation3], %s2912
          %2914 = dma.done %s2910, 512
        $region124: #{transformer_layer.1} parent=119 // pred_fallthru
          _
      $region120: #{transformer_layer.1} parent=5 // pred_fallthru
        _
    $region6: #{transformer_layer.1} parent=1 // loop_footer
      %s36 = sadd.s32 1, %s32
    $region7: #{transformer_layer.1} parent=1 // loop_footer_branch
      %31 = sbr.rel target = $region3
    $region8: #{transformer_layer.1} parent=1 // loop_exit
      _
    %2915 = vsyncpa [#allocation4], 1
    %s2916 = scalar_lea.sflag [#allocation4], 1
    %2917 = vsyncpa %s2916, 1

</llo_original>
